<compile_context>
chip_gen: v7x
topology: tpu7x:2x2x1
jax: 0.10.0
libtpu: 0.0.40
codegen_flags: <defaults>
</compile_context>

<pallas_src>
import functools

import jax
import jax.numpy as jnp
from jax.experimental import pallas as pl
from jax.experimental.pallas import tpu as pltpu


def _round_up(x, m):
    return ((x + m - 1) // m) * m


def _dims(in_dim):
    _, h, w = in_dim
    h1 = (h - 4) // 2 + 1            # conv1: 4x4, stride 2
    w1 = (w - 4) // 2 + 1
    return h1, w1, h1 - 1, w1 - 1    # conv2: 2x2, stride 1


# ----------------------------------------------------------------------------
# Fused kernel: one batch block of Bt samples per grid step.
# ----------------------------------------------------------------------------
def _cnn_fused_kernel(patches_ref, w1_ref, ep1_ref, w2_ref, ep2_ref,
                      w3_ref, b3_ref, wl1_ref, bl1_ref, wl2_ref, bl2_ref,
                      out_ref, *, n_spatial, block_n):
    f32 = jnp.float32
    bf16 = jnp.bfloat16

    # (s_pad * Bt, 4*C*KH*KW) bf16 -- rows ordered (spatial, sample).
    p = patches_ref[0]

    # conv1 + bias + ReLU + BN1 affine (ReLU BEFORE BN, as in the module).
    # w1 is block-diagonal over the four conv2 offsets, so h1's 128 columns
    # are [offset0 ch0..31 | offset1 ch0..31 | offset2 ... | offset3 ...].
    z1 = jnp.dot(p, w1_ref[...], preferred_element_type=f32)
    h1 = (jnp.maximum(z1 + ep1_ref[0:1, :], 0.0) * ep1_ref[1:2, :]
          + ep1_ref[2:3, :])

    # conv2: ONE lane-dense matmul over the stacked (offset, channel) axis.
    z2 = jnp.dot(h1.astype(bf16), w2_ref[...], preferred_element_type=f32)
    h2 = (jnp.maximum(z2 + ep2_ref[0:1, :], 0.0) * ep2_ref[1:2, :]
          + ep2_ref[2:3, :])

    # conv3 (1x1) + bias + ReLU.  Dropout == identity in eval mode.
    z3 = jnp.dot(h2.astype(bf16), w3_ref[...], preferred_element_type=f32)
    h3 = jnp.maximum(z3 + b3_ref[...], 0.0).astype(bf16)    # (s_pad*Bt, 64)

    # lin1: accumulate over the valid spatial positions; rows for position s
    # are the contiguous, sublane-aligned slice [s*Bt, (s+1)*Bt).
    y = jnp.zeros((block_n, bl1_ref.shape[1]), f32)
    for s in range(n_spatial):
        y = y + jnp.dot(h3[s * block_n:(s + 1) * block_n, :], wl1_ref[s],
                        preferred_element_type=f32)
    h4 = jnp.maximum(y + bl1_ref[...], 0.0).astype(bf16)     # (Bt, 256)

    # lin2 (out_dim zero-padded to 128 lanes -> lane-dense store).
    out = jnp.dot(h4, wl2_ref[...], preferred_element_type=f32) + bl2_ref[...]
    out_ref[...] = out.astype(out_ref.dtype)


def _resident_spec(arr):
    shape = tuple(arr.shape)
    nd = len(shape)
    return pl.BlockSpec(shape, lambda i, _nd=nd: (0,) * _nd)


# ----------------------------------------------------------------------------
# XLA glue on the raw input only: im2col for conv1 with the conv2 offsets
# folded in, grouped into batch blocks with row order (spatial, sample).
# ----------------------------------------------------------------------------
def _build_patches(x_nchw, block_n):
    N, C, H, W = x_nchw.shape
    oh = (H - 4) // 2 + 1
    ow = (W - 4) // 2 + 1
    h2, w2 = oh - 1, ow - 1
    s2 = h2 * w2
    s_pad = _round_up(s2, 8)
    kfeat = C * 16

    xb = x_nchw.astype(jnp.bfloat16)                 # cast first: bf16 glue traffic
    cols = []
    for i in range(4):
        for j in range(4):
            cols.append(xb[:, :, i:i + 2 * (oh - 1) + 1:2,
                              j:j + 2 * (ow - 1) + 1:2])   # (N, C, oh, ow)
    pt = jnp.stack(cols, axis=2)                     # (N, C, 16, oh, ow)
    pt = jnp.transpose(pt, (0, 3, 4, 1, 2)).reshape(N, oh, ow, kfeat)

    # Fold the conv2 2x2 offsets into the feature axis: (N, h2, w2, 4*kfeat).
    offs = [(0, 0), (0, 1), (1, 0), (1, 1)]
    q = jnp.concatenate([pt[:, di:di + h2, dj:dj + w2, :] for di, dj in offs],
                        axis=-1)
    q = q.reshape(N, s2, 4 * kfeat)
    if s_pad != s2:
        q = jnp.pad(q, ((0, 0), (0, s_pad - s2), (0, 0)))

    n_pad = _round_up(N, block_n)
    if n_pad != N:
        q = jnp.pad(q, ((0, n_pad - N), (0, 0), (0, 0)))
    nblk = n_pad // block_n
    q = q.reshape(nblk, block_n, s_pad, 4 * kfeat)
    q = jnp.transpose(q, (0, 2, 1, 3))               # rows = (spatial, sample)
    return q.reshape(nblk, s_pad * block_n, 4 * kfeat), n_pad, s2, s_pad


# ----------------------------------------------------------------------------
# Parameters: torch-layout init + one-time prep into kernel-ready layouts.
# ----------------------------------------------------------------------------
def init_params(key, in_dim, out_dim):
    _, _, h2, w2 = _dims(in_dim)
    fc_inputs = 64 * h2 * w2
    ks = jax.random.split(key, 16)
    n = lambda k, shp, s=0.05: (s * jax.random.normal(k, shp)).astype(jnp.float32)
    return {
        "conv1_w": n(ks[0], (32, 3, 4, 4)), "conv1_b": n(ks[1], (32,)),
        "conv2_w": n(ks[2], (64, 32, 2, 2)), "conv2_b": n(ks[3], (64,)),
        "conv3_w": n(ks[4], (64, 64, 1, 1)), "conv3_b": n(ks[5], (64,)),
        "bn1_gamma": 1.0 + n(ks[6], (32,)), "bn1_beta": n(ks[7], (32,)),
        "bn1_mean": n(ks[8], (32,)),
        "bn1_var": jax.random.uniform(ks[9], (32,), minval=0.5, maxval=1.5),
        "bn2_gamma": 1.0 + n(ks[10], (64,)), "bn2_beta": n(ks[11], (64,)),
        "bn2_mean": n(ks[12], (64,)),
        "bn2_var": jax.random.uniform(ks[13], (64,), minval=0.5, maxval=1.5),
        "lin1_w": n(ks[14], (256, fc_inputs)),
        "lin1_b": jnp.zeros((256,), jnp.float32),
        "lin2_w": n(ks[15], (out_dim, 256)),
        "lin2_b": jnp.zeros((out_dim,), jnp.float32),
    }


def prepare_params(params, in_dim, out_dim, eps=1e-5):
    """One-time, outside the forward hot path: fold/transpose/pad/cast."""
    bf16 = jnp.bfloat16
    f32 = jnp.float32
    _, _, h2, w2 = _dims(in_dim)
    s2 = h2 * w2

    # conv1 -> block-diagonal (4*kfeat, 4*oc1) over the 4 conv2 offsets.
    c1w = params["conv1_w"]
    oc1 = c1w.shape[0]
    kfeat = c1w.shape[1] * c1w.shape[2] * c1w.shape[3]
    w1f = c1w.reshape(oc1, kfeat).T.astype(f32)          # (kfeat, oc1)
    w1bd = jnp.zeros((4 * kfeat, 4 * oc1), f32)
    for o in range(4):
        w1bd = w1bd.at[o * kfeat:(o + 1) * kfeat, o * oc1:(o + 1) * oc1].set(w1f)
    w1bd = w1bd.astype(bf16)
    s1 = params["bn1_gamma"] / jnp.sqrt(params["bn1_var"] + eps)
    t1 = params["bn1_beta"] - params["bn1_mean"] * s1
    ep1 = jnp.tile(jnp.stack([params["conv1_b"], s1, t1], 0), (1, 4)).astype(f32)

    # conv2 -> stacked (4*oc1, oc2): row = offset*32 + in_channel.
    c2w = params["conv2_w"]
    oc2 = c2w.shape[0]
    w2s = jnp.transpose(c2w, (2, 3, 1, 0)).reshape(4 * oc1, oc2).astype(bf16)
    s2v = params["bn2_gamma"] / jnp.sqrt(params["bn2_var"] + eps)
    t2 = params["bn2_beta"] - params["bn2_mean"] * s2v
    ep2 = jnp.stack([params["conv2_b"], s2v, t2], 0).astype(f32)

    # conv3 (1x1) -> (oc2, oc3).
    c3w = params["conv3_w"]
    oc3 = c3w.shape[0]
    w3 = c3w.reshape(oc3, oc2).T.astype(bf16)
    b3 = params["conv3_b"].reshape(1, oc3).astype(f32)

    # lin1 -> (s2, oc3, 256) slabs; torch flatten order (c, h, w) baked in.
    l1w = params["lin1_w"]
    nfc = l1w.shape[0]
    wl1 = jnp.transpose(l1w.reshape(nfc, oc3, s2), (2, 1, 0)).astype(bf16)
    bl1 = params["lin1_b"].reshape(1, nfc).astype(f32)

    # lin2: zero-pad output dim to a 128-lane multiple (lane-dense store).
    out_pad = _round_up(max(out_dim, 1), 128)
    wl2 = jnp.zeros((nfc, out_pad), bf16).at[:, :out_dim].set(
        params["lin2_w"].T.astype(bf16))
    bl2 = jnp.zeros((1, out_pad), f32).at[0, :out_dim].set(params["lin2_b"])

    return {"w1": w1bd, "ep1": ep1, "w2": w2s, "ep2": ep2, "w3": w3, "b3": b3,
            "wl1": wl1, "bl1": bl1, "wl2": wl2, "bl2": bl2}


# ----------------------------------------------------------------------------
# Forward
# ----------------------------------------------------------------------------
def cnn_small_forward(x_nchw, p, out_dim):
    N = x_nchw.shape[0]
    # Bt: lin1/lin2 matmul M and sublane alignment (multiple of 16 for bf16).
    block_n = min(128, _round_up(max(N, 1), 16))

    patches, n_pad, n_spatial, s_pad = _build_patches(x_nchw, block_n)
    nblk = n_pad // block_n
    feat = patches.shape[-1]
    out_pad = p["wl2"].shape[1]

    kernel = functools.partial(_cnn_fused_kernel, n_spatial=n_spatial,
                               block_n=block_n)
    weights = (p["w1"], p["ep1"], p["w2"], p["ep2"], p["w3"], p["b3"],
               p["wl1"], p["bl1"], p["wl2"], p["bl2"])

    logits = pl.pallas_call(
        kernel,
        grid=(nblk,),
        out_shape=jax.ShapeDtypeStruct((n_pad, out_pad), jnp.float32),
        in_specs=[pl.BlockSpec((1, s_pad * block_n, feat),
                               lambda i: (i, 0, 0))]
                 + [_resident_spec(w) for w in weights],
        out_specs=pl.BlockSpec((block_n, out_pad), lambda i: (i, 0)),
        compiler_params=pltpu.CompilerParams(
            dimension_semantics=("parallel",),        # both TCs on v7x
            vmem_limit_bytes=32 * 1024 * 1024),
    )(patches, *weights)

    return logits[:N, :out_dim]                       # drop batch/lane padding


# ----------------------------------------------------------------------------
# Pure-JAX reference (eval-mode BN, dropout identity) for a correctness check.
# ----------------------------------------------------------------------------
def _reference_forward(x, params, eps=1e-5):
    def conv(h, w, b, stride):
        y = jax.lax.conv_general_dilated(
            h, w, (stride, stride), "VALID",
            dimension_numbers=("NCHW", "OIHW", "NCHW"))
        return y + b.reshape(1, -1, 1, 1)

    def bn(h, g, beta, m, v):
        r = lambda a: a.reshape(1, -1, 1, 1)
        return (h - r(m)) / jnp.sqrt(r(v) + eps) * r(g) + r(beta)

    h = jax.nn.relu(conv(x, params["conv1_w"], params["conv1_b"], 2))
    h = bn(h, params["bn1_gamma"], params["bn1_beta"],
           params["bn1_mean"], params["bn1_var"])
    h = jax.nn.relu(conv(h, params["conv2_w"], params["conv2_b"], 1))
    h = bn(h, params["bn2_gamma"], params["bn2_beta"],
           params["bn2_mean"], params["bn2_var"])
    h = jax.nn.relu(conv(h, params["conv3_w"], params["conv3_b"], 1))
    h = h.reshape(h.shape[0], -1)
    h = jax.nn.relu(h @ params["lin1_w"].T + params["lin1_b"])
    return h @ params["lin2_w"].T + params["lin2_b"]


if __name__ == "__main__":
    in_dim = (3, 16, 16)   # (C, H, W)
    out_dim = 10
    batch = 2

    key = jax.random.PRNGKey(0)
    k_params, k_x = jax.random.split(key)
    params = init_params(k_params, in_dim, out_dim)
    prepped = prepare_params(params, in_dim, out_dim)   # one-time weight prep
    x = jax.random.normal(k_x, (batch, *in_dim), dtype=jnp.float32)

    fwd = jax.jit(cnn_small_forward, static_argnames=("out_dim",))
    out = fwd(x, prepped, out_dim=out_dim)
    out = jax.block_until_ready(out)

    assert out.shape == (batch, out_dim), out.shape
    assert bool(jnp.all(jnp.isfinite(out)))

    ref = _reference_forward(x, params)
    max_err = float(jnp.max(jnp.abs(out - ref)))
    assert max_err < 5e-2, max_err

    print("KERNEL_OK")
</pallas_src>

<mosaic_0001>
module attributes {stable_mosaic.version = 11 : i64} {
  func.func @_cnn_fused_kernel(%arg0: i32, %arg1: memref<1x640x192xbf16, #tpu.memory_space<vmem>>, %arg2: memref<192x128xbf16, #tpu.memory_space<vmem>>, %arg3: memref<3x128xf32, #tpu.memory_space<vmem>>, %arg4: memref<128x64xbf16, #tpu.memory_space<vmem>>, %arg5: memref<3x64xf32, #tpu.memory_space<vmem>>, %arg6: memref<64x64xbf16, #tpu.memory_space<vmem>>, %arg7: memref<1x64xf32, #tpu.memory_space<vmem>>, %arg8: memref<36x64x256xbf16, #tpu.memory_space<vmem>>, %arg9: memref<1x256xf32, #tpu.memory_space<vmem>>, %arg10: memref<256x128xbf16, #tpu.memory_space<vmem>>, %arg11: memref<1x128xf32, #tpu.memory_space<vmem>>, %arg12: memref<16x128xf32, #tpu.memory_space<vmem>>) attributes {dimension_semantics = [#tpu.dimension_semantics<parallel>], iteration_bounds = array<i64: 1>, scalar_prefetch = 0 : i64, scratch_operands = 0 : i64, tpu.core_type = #tpu.core_type<tc>, window_params = [{transform_indices = @transform_0, window_bounds = array<i64: 1, 640, 192>}, {pipeline_mode = #tpu.pipeline_mode<synchronous>, transform_indices = @transform_1, window_bounds = array<i64: 192, 128>}, {pipeline_mode = #tpu.pipeline_mode<synchronous>, transform_indices = @transform_2, window_bounds = array<i64: 3, 128>}, {pipeline_mode = #tpu.pipeline_mode<synchronous>, transform_indices = @transform_3, window_bounds = array<i64: 128, 64>}, {pipeline_mode = #tpu.pipeline_mode<synchronous>, transform_indices = @transform_4, window_bounds = array<i64: 3, 64>}, {pipeline_mode = #tpu.pipeline_mode<synchronous>, transform_indices = @transform_5, window_bounds = array<i64: 64, 64>}, {pipeline_mode = #tpu.pipeline_mode<synchronous>, transform_indices = @transform_6, window_bounds = array<i64: 1, 64>}, {pipeline_mode = #tpu.pipeline_mode<synchronous>, transform_indices = @transform_7, window_bounds = array<i64: 36, 64, 256>}, {pipeline_mode = #tpu.pipeline_mode<synchronous>, transform_indices = @transform_8, window_bounds = array<i64: 1, 256>}, {pipeline_mode = #tpu.pipeline_mode<synchronous>, transform_indices = @transform_9, window_bounds = array<i64: 256, 128>}, {pipeline_mode = #tpu.pipeline_mode<synchronous>, transform_indices = @transform_10, window_bounds = array<i64: 1, 128>}, {transform_indices = @transform_11, window_bounds = array<i64: 16, 128>}]} {
    %c0 = arith.constant 0 : index
    %c0_0 = arith.constant 0 : index
    %c0_1 = arith.constant 0 : index
    %0 = vector.load %arg1[%c0, %c0_0, %c0_1] : memref<1x640x192xbf16, #tpu.memory_space<vmem>>, vector<1x640x192xbf16>
    %1 = vector.shape_cast %0 : vector<1x640x192xbf16> to vector<640x192xbf16>
    %c0_2 = arith.constant 0 : index
    %c0_3 = arith.constant 0 : index
    %2 = vector.load %arg2[%c0_2, %c0_3] : memref<192x128xbf16, #tpu.memory_space<vmem>>, vector<192x128xbf16>
    %cst = arith.constant dense<0.000000e+00> : vector<640x128xf32>
    %3 = tpu.matmul %1, %2, %cst {dimension_numbers = #tpu.dot_dimension_numbers<[1], [0], [0], [1], [0, 0, 1, 1], [], []>} : vector<640x192xbf16>, vector<192x128xbf16>, vector<640x128xf32> -> vector<640x128xf32>
    %c0_4 = arith.constant 0 : index
    %c0_5 = arith.constant 0 : index
    %4 = vector.load %arg3[%c0_4, %c0_5] : memref<3x128xf32, #tpu.memory_space<vmem>>, vector<1x128xf32>
    %5 = vector.broadcast %4 : vector<1x128xf32> to vector<640x128xf32>
    %6 = arith.addf %3, %5 : vector<640x128xf32>
    %cst_6 = arith.constant 0.000000e+00 : f32
    %7 = vector.broadcast %cst_6 : f32 to vector<640x128xf32>
    %8 = arith.maximumf %6, %7 : vector<640x128xf32>
    %c1 = arith.constant 1 : index
    %c0_7 = arith.constant 0 : index
    %9 = vector.load %arg3[%c1, %c0_7] : memref<3x128xf32, #tpu.memory_space<vmem>>, vector<1x128xf32>
    %10 = vector.broadcast %9 : vector<1x128xf32> to vector<640x128xf32>
    %11 = arith.mulf %8, %10 : vector<640x128xf32>
    %c2 = arith.constant 2 : index
    %c0_8 = arith.constant 0 : index
    %12 = vector.load %arg3[%c2, %c0_8] : memref<3x128xf32, #tpu.memory_space<vmem>>, vector<1x128xf32>
    %13 = vector.broadcast %12 : vector<1x128xf32> to vector<640x128xf32>
    %14 = arith.addf %11, %13 : vector<640x128xf32>
    %15 = arith.truncf %14 : vector<640x128xf32> to vector<640x128xbf16>
    %c0_9 = arith.constant 0 : index
    %c0_10 = arith.constant 0 : index
    %16 = vector.load %arg4[%c0_9, %c0_10] : memref<128x64xbf16, #tpu.memory_space<vmem>>, vector<128x64xbf16>
    %cst_11 = arith.constant dense<0.000000e+00> : vector<640x64xf32>
    %17 = tpu.matmul %15, %16, %cst_11 {dimension_numbers = #tpu.dot_dimension_numbers<[1], [0], [0], [1], [0, 0, 1, 1], [], []>} : vector<640x128xbf16>, vector<128x64xbf16>, vector<640x64xf32> -> vector<640x64xf32>
    %c0_12 = arith.constant 0 : index
    %c0_13 = arith.constant 0 : index
    %18 = vector.load %arg5[%c0_12, %c0_13] : memref<3x64xf32, #tpu.memory_space<vmem>>, vector<1x64xf32>
    %19 = vector.broadcast %18 : vector<1x64xf32> to vector<640x64xf32>
    %20 = arith.addf %17, %19 : vector<640x64xf32>
    %cst_14 = arith.constant 0.000000e+00 : f32
    %21 = vector.broadcast %cst_14 : f32 to vector<640x64xf32>
    %22 = arith.maximumf %20, %21 : vector<640x64xf32>
    %c1_15 = arith.constant 1 : index
    %c0_16 = arith.constant 0 : index
    %23 = vector.load %arg5[%c1_15, %c0_16] : memref<3x64xf32, #tpu.memory_space<vmem>>, vector<1x64xf32>
    %24 = vector.broadcast %23 : vector<1x64xf32> to vector<640x64xf32>
    %25 = arith.mulf %22, %24 : vector<640x64xf32>
    %c2_17 = arith.constant 2 : index
    %c0_18 = arith.constant 0 : index
    %26 = vector.load %arg5[%c2_17, %c0_18] : memref<3x64xf32, #tpu.memory_space<vmem>>, vector<1x64xf32>
    %27 = vector.broadcast %26 : vector<1x64xf32> to vector<640x64xf32>
    %28 = arith.addf %25, %27 : vector<640x64xf32>
    %29 = arith.truncf %28 : vector<640x64xf32> to vector<640x64xbf16>
    %c0_19 = arith.constant 0 : index
    %c0_20 = arith.constant 0 : index
    %30 = vector.load %arg6[%c0_19, %c0_20] : memref<64x64xbf16, #tpu.memory_space<vmem>>, vector<64x64xbf16>
    %cst_21 = arith.constant dense<0.000000e+00> : vector<640x64xf32>
    %31 = tpu.matmul %29, %30, %cst_21 {dimension_numbers = #tpu.dot_dimension_numbers<[1], [0], [0], [1], [0, 0, 1, 1], [], []>} : vector<640x64xbf16>, vector<64x64xbf16>, vector<640x64xf32> -> vector<640x64xf32>
    %c0_22 = arith.constant 0 : index
    %c0_23 = arith.constant 0 : index
    %32 = vector.load %arg7[%c0_22, %c0_23] : memref<1x64xf32, #tpu.memory_space<vmem>>, vector<1x64xf32>
    %33 = vector.broadcast %32 : vector<1x64xf32> to vector<640x64xf32>
    %34 = arith.addf %31, %33 : vector<640x64xf32>
    %cst_24 = arith.constant 0.000000e+00 : f32
    %35 = vector.broadcast %cst_24 : f32 to vector<640x64xf32>
    %36 = arith.maximumf %34, %35 : vector<640x64xf32>
    %37 = arith.truncf %36 : vector<640x64xf32> to vector<640x64xbf16>
    %cst_25 = arith.constant 0.000000e+00 : f32
    %38 = vector.broadcast %cst_25 : f32 to vector<16x256xf32>
    %39 = vector.extract_strided_slice %37 {offsets = [0, 0], sizes = [16, 64], strides = [1, 1]} : vector<640x64xbf16> to vector<16x64xbf16>
    %c0_26 = arith.constant 0 : index
    %c0_27 = arith.constant 0 : index
    %c0_28 = arith.constant 0 : index
    %40 = vector.load %arg8[%c0_26, %c0_27, %c0_28] : memref<36x64x256xbf16, #tpu.memory_space<vmem>>, vector<1x64x256xbf16>
    %41 = vector.shape_cast %40 : vector<1x64x256xbf16> to vector<64x256xbf16>
    %cst_29 = arith.constant dense<0.000000e+00> : vector<16x256xf32>
    %42 = tpu.matmul %39, %41, %cst_29 {dimension_numbers = #tpu.dot_dimension_numbers<[1], [0], [0], [1], [0, 0, 1, 1], [], []>} : vector<16x64xbf16>, vector<64x256xbf16>, vector<16x256xf32> -> vector<16x256xf32>
    %43 = arith.addf %38, %42 : vector<16x256xf32>
    %44 = vector.extract_strided_slice %37 {offsets = [16, 0], sizes = [16, 64], strides = [1, 1]} : vector<640x64xbf16> to vector<16x64xbf16>
    %c1_30 = arith.constant 1 : index
    %c0_31 = arith.constant 0 : index
    %c0_32 = arith.constant 0 : index
    %45 = vector.load %arg8[%c1_30, %c0_31, %c0_32] : memref<36x64x256xbf16, #tpu.memory_space<vmem>>, vector<1x64x256xbf16>
    %46 = vector.shape_cast %45 : vector<1x64x256xbf16> to vector<64x256xbf16>
    %cst_33 = arith.constant dense<0.000000e+00> : vector<16x256xf32>
    %47 = tpu.matmul %44, %46, %cst_33 {dimension_numbers = #tpu.dot_dimension_numbers<[1], [0], [0], [1], [0, 0, 1, 1], [], []>} : vector<16x64xbf16>, vector<64x256xbf16>, vector<16x256xf32> -> vector<16x256xf32>
    %48 = arith.addf %43, %47 : vector<16x256xf32>
    %49 = vector.extract_strided_slice %37 {offsets = [32, 0], sizes = [16, 64], strides = [1, 1]} : vector<640x64xbf16> to vector<16x64xbf16>
    %c2_34 = arith.constant 2 : index
    %c0_35 = arith.constant 0 : index
    %c0_36 = arith.constant 0 : index
    %50 = vector.load %arg8[%c2_34, %c0_35, %c0_36] : memref<36x64x256xbf16, #tpu.memory_space<vmem>>, vector<1x64x256xbf16>
    %51 = vector.shape_cast %50 : vector<1x64x256xbf16> to vector<64x256xbf16>
    %cst_37 = arith.constant dense<0.000000e+00> : vector<16x256xf32>
    %52 = tpu.matmul %49, %51, %cst_37 {dimension_numbers = #tpu.dot_dimension_numbers<[1], [0], [0], [1], [0, 0, 1, 1], [], []>} : vector<16x64xbf16>, vector<64x256xbf16>, vector<16x256xf32> -> vector<16x256xf32>
    %53 = arith.addf %48, %52 : vector<16x256xf32>
    %54 = vector.extract_strided_slice %37 {offsets = [48, 0], sizes = [16, 64], strides = [1, 1]} : vector<640x64xbf16> to vector<16x64xbf16>
    %c3 = arith.constant 3 : index
    %c0_38 = arith.constant 0 : index
    %c0_39 = arith.constant 0 : index
    %55 = vector.load %arg8[%c3, %c0_38, %c0_39] : memref<36x64x256xbf16, #tpu.memory_space<vmem>>, vector<1x64x256xbf16>
    %56 = vector.shape_cast %55 : vector<1x64x256xbf16> to vector<64x256xbf16>
    %cst_40 = arith.constant dense<0.000000e+00> : vector<16x256xf32>
    %57 = tpu.matmul %54, %56, %cst_40 {dimension_numbers = #tpu.dot_dimension_numbers<[1], [0], [0], [1], [0, 0, 1, 1], [], []>} : vector<16x64xbf16>, vector<64x256xbf16>, vector<16x256xf32> -> vector<16x256xf32>
    %58 = arith.addf %53, %57 : vector<16x256xf32>
    %59 = vector.extract_strided_slice %37 {offsets = [64, 0], sizes = [16, 64], strides = [1, 1]} : vector<640x64xbf16> to vector<16x64xbf16>
    %c4 = arith.constant 4 : index
    %c0_41 = arith.constant 0 : index
    %c0_42 = arith.constant 0 : index
    %60 = vector.load %arg8[%c4, %c0_41, %c0_42] : memref<36x64x256xbf16, #tpu.memory_space<vmem>>, vector<1x64x256xbf16>
    %61 = vector.shape_cast %60 : vector<1x64x256xbf16> to vector<64x256xbf16>
    %cst_43 = arith.constant dense<0.000000e+00> : vector<16x256xf32>
    %62 = tpu.matmul %59, %61, %cst_43 {dimension_numbers = #tpu.dot_dimension_numbers<[1], [0], [0], [1], [0, 0, 1, 1], [], []>} : vector<16x64xbf16>, vector<64x256xbf16>, vector<16x256xf32> -> vector<16x256xf32>
    %63 = arith.addf %58, %62 : vector<16x256xf32>
    %64 = vector.extract_strided_slice %37 {offsets = [80, 0], sizes = [16, 64], strides = [1, 1]} : vector<640x64xbf16> to vector<16x64xbf16>
    %c5 = arith.constant 5 : index
    %c0_44 = arith.constant 0 : index
    %c0_45 = arith.constant 0 : index
    %65 = vector.load %arg8[%c5, %c0_44, %c0_45] : memref<36x64x256xbf16, #tpu.memory_space<vmem>>, vector<1x64x256xbf16>
    %66 = vector.shape_cast %65 : vector<1x64x256xbf16> to vector<64x256xbf16>
    %cst_46 = arith.constant dense<0.000000e+00> : vector<16x256xf32>
    %67 = tpu.matmul %64, %66, %cst_46 {dimension_numbers = #tpu.dot_dimension_numbers<[1], [0], [0], [1], [0, 0, 1, 1], [], []>} : vector<16x64xbf16>, vector<64x256xbf16>, vector<16x256xf32> -> vector<16x256xf32>
    %68 = arith.addf %63, %67 : vector<16x256xf32>
    %69 = vector.extract_strided_slice %37 {offsets = [96, 0], sizes = [16, 64], strides = [1, 1]} : vector<640x64xbf16> to vector<16x64xbf16>
    %c6 = arith.constant 6 : index
    %c0_47 = arith.constant 0 : index
    %c0_48 = arith.constant 0 : index
    %70 = vector.load %arg8[%c6, %c0_47, %c0_48] : memref<36x64x256xbf16, #tpu.memory_space<vmem>>, vector<1x64x256xbf16>
    %71 = vector.shape_cast %70 : vector<1x64x256xbf16> to vector<64x256xbf16>
    %cst_49 = arith.constant dense<0.000000e+00> : vector<16x256xf32>
    %72 = tpu.matmul %69, %71, %cst_49 {dimension_numbers = #tpu.dot_dimension_numbers<[1], [0], [0], [1], [0, 0, 1, 1], [], []>} : vector<16x64xbf16>, vector<64x256xbf16>, vector<16x256xf32> -> vector<16x256xf32>
    %73 = arith.addf %68, %72 : vector<16x256xf32>
    %74 = vector.extract_strided_slice %37 {offsets = [112, 0], sizes = [16, 64], strides = [1, 1]} : vector<640x64xbf16> to vector<16x64xbf16>
    %c7 = arith.constant 7 : index
    %c0_50 = arith.constant 0 : index
    %c0_51 = arith.constant 0 : index
    %75 = vector.load %arg8[%c7, %c0_50, %c0_51] : memref<36x64x256xbf16, #tpu.memory_space<vmem>>, vector<1x64x256xbf16>
    %76 = vector.shape_cast %75 : vector<1x64x256xbf16> to vector<64x256xbf16>
    %cst_52 = arith.constant dense<0.000000e+00> : vector<16x256xf32>
    %77 = tpu.matmul %74, %76, %cst_52 {dimension_numbers = #tpu.dot_dimension_numbers<[1], [0], [0], [1], [0, 0, 1, 1], [], []>} : vector<16x64xbf16>, vector<64x256xbf16>, vector<16x256xf32> -> vector<16x256xf32>
    %78 = arith.addf %73, %77 : vector<16x256xf32>
    %79 = vector.extract_strided_slice %37 {offsets = [128, 0], sizes = [16, 64], strides = [1, 1]} : vector<640x64xbf16> to vector<16x64xbf16>
    %c8 = arith.constant 8 : index
    %c0_53 = arith.constant 0 : index
    %c0_54 = arith.constant 0 : index
    %80 = vector.load %arg8[%c8, %c0_53, %c0_54] : memref<36x64x256xbf16, #tpu.memory_space<vmem>>, vector<1x64x256xbf16>
    %81 = vector.shape_cast %80 : vector<1x64x256xbf16> to vector<64x256xbf16>
    %cst_55 = arith.constant dense<0.000000e+00> : vector<16x256xf32>
    %82 = tpu.matmul %79, %81, %cst_55 {dimension_numbers = #tpu.dot_dimension_numbers<[1], [0], [0], [1], [0, 0, 1, 1], [], []>} : vector<16x64xbf16>, vector<64x256xbf16>, vector<16x256xf32> -> vector<16x256xf32>
    %83 = arith.addf %78, %82 : vector<16x256xf32>
    %84 = vector.extract_strided_slice %37 {offsets = [144, 0], sizes = [16, 64], strides = [1, 1]} : vector<640x64xbf16> to vector<16x64xbf16>
    %c9 = arith.constant 9 : index
    %c0_56 = arith.constant 0 : index
    %c0_57 = arith.constant 0 : index
    %85 = vector.load %arg8[%c9, %c0_56, %c0_57] : memref<36x64x256xbf16, #tpu.memory_space<vmem>>, vector<1x64x256xbf16>
    %86 = vector.shape_cast %85 : vector<1x64x256xbf16> to vector<64x256xbf16>
    %cst_58 = arith.constant dense<0.000000e+00> : vector<16x256xf32>
    %87 = tpu.matmul %84, %86, %cst_58 {dimension_numbers = #tpu.dot_dimension_numbers<[1], [0], [0], [1], [0, 0, 1, 1], [], []>} : vector<16x64xbf16>, vector<64x256xbf16>, vector<16x256xf32> -> vector<16x256xf32>
    %88 = arith.addf %83, %87 : vector<16x256xf32>
    %89 = vector.extract_strided_slice %37 {offsets = [160, 0], sizes = [16, 64], strides = [1, 1]} : vector<640x64xbf16> to vector<16x64xbf16>
    %c10 = arith.constant 10 : index
    %c0_59 = arith.constant 0 : index
    %c0_60 = arith.constant 0 : index
    %90 = vector.load %arg8[%c10, %c0_59, %c0_60] : memref<36x64x256xbf16, #tpu.memory_space<vmem>>, vector<1x64x256xbf16>
    %91 = vector.shape_cast %90 : vector<1x64x256xbf16> to vector<64x256xbf16>
    %cst_61 = arith.constant dense<0.000000e+00> : vector<16x256xf32>
    %92 = tpu.matmul %89, %91, %cst_61 {dimension_numbers = #tpu.dot_dimension_numbers<[1], [0], [0], [1], [0, 0, 1, 1], [], []>} : vector<16x64xbf16>, vector<64x256xbf16>, vector<16x256xf32> -> vector<16x256xf32>
    %93 = arith.addf %88, %92 : vector<16x256xf32>
    %94 = vector.extract_strided_slice %37 {offsets = [176, 0], sizes = [16, 64], strides = [1, 1]} : vector<640x64xbf16> to vector<16x64xbf16>
    %c11 = arith.constant 11 : index
    %c0_62 = arith.constant 0 : index
    %c0_63 = arith.constant 0 : index
    %95 = vector.load %arg8[%c11, %c0_62, %c0_63] : memref<36x64x256xbf16, #tpu.memory_space<vmem>>, vector<1x64x256xbf16>
    %96 = vector.shape_cast %95 : vector<1x64x256xbf16> to vector<64x256xbf16>
    %cst_64 = arith.constant dense<0.000000e+00> : vector<16x256xf32>
    %97 = tpu.matmul %94, %96, %cst_64 {dimension_numbers = #tpu.dot_dimension_numbers<[1], [0], [0], [1], [0, 0, 1, 1], [], []>} : vector<16x64xbf16>, vector<64x256xbf16>, vector<16x256xf32> -> vector<16x256xf32>
    %98 = arith.addf %93, %97 : vector<16x256xf32>
    %99 = vector.extract_strided_slice %37 {offsets = [192, 0], sizes = [16, 64], strides = [1, 1]} : vector<640x64xbf16> to vector<16x64xbf16>
    %c12 = arith.constant 12 : index
    %c0_65 = arith.constant 0 : index
    %c0_66 = arith.constant 0 : index
    %100 = vector.load %arg8[%c12, %c0_65, %c0_66] : memref<36x64x256xbf16, #tpu.memory_space<vmem>>, vector<1x64x256xbf16>
    %101 = vector.shape_cast %100 : vector<1x64x256xbf16> to vector<64x256xbf16>
    %cst_67 = arith.constant dense<0.000000e+00> : vector<16x256xf32>
    %102 = tpu.matmul %99, %101, %cst_67 {dimension_numbers = #tpu.dot_dimension_numbers<[1], [0], [0], [1], [0, 0, 1, 1], [], []>} : vector<16x64xbf16>, vector<64x256xbf16>, vector<16x256xf32> -> vector<16x256xf32>
    %103 = arith.addf %98, %102 : vector<16x256xf32>
    %104 = vector.extract_strided_slice %37 {offsets = [208, 0], sizes = [16, 64], strides = [1, 1]} : vector<640x64xbf16> to vector<16x64xbf16>
    %c13 = arith.constant 13 : index
    %c0_68 = arith.constant 0 : index
    %c0_69 = arith.constant 0 : index
    %105 = vector.load %arg8[%c13, %c0_68, %c0_69] : memref<36x64x256xbf16, #tpu.memory_space<vmem>>, vector<1x64x256xbf16>
    %106 = vector.shape_cast %105 : vector<1x64x256xbf16> to vector<64x256xbf16>
    %cst_70 = arith.constant dense<0.000000e+00> : vector<16x256xf32>
    %107 = tpu.matmul %104, %106, %cst_70 {dimension_numbers = #tpu.dot_dimension_numbers<[1], [0], [0], [1], [0, 0, 1, 1], [], []>} : vector<16x64xbf16>, vector<64x256xbf16>, vector<16x256xf32> -> vector<16x256xf32>
    %108 = arith.addf %103, %107 : vector<16x256xf32>
    %109 = vector.extract_strided_slice %37 {offsets = [224, 0], sizes = [16, 64], strides = [1, 1]} : vector<640x64xbf16> to vector<16x64xbf16>
    %c14 = arith.constant 14 : index
    %c0_71 = arith.constant 0 : index
    %c0_72 = arith.constant 0 : index
    %110 = vector.load %arg8[%c14, %c0_71, %c0_72] : memref<36x64x256xbf16, #tpu.memory_space<vmem>>, vector<1x64x256xbf16>
    %111 = vector.shape_cast %110 : vector<1x64x256xbf16> to vector<64x256xbf16>
    %cst_73 = arith.constant dense<0.000000e+00> : vector<16x256xf32>
    %112 = tpu.matmul %109, %111, %cst_73 {dimension_numbers = #tpu.dot_dimension_numbers<[1], [0], [0], [1], [0, 0, 1, 1], [], []>} : vector<16x64xbf16>, vector<64x256xbf16>, vector<16x256xf32> -> vector<16x256xf32>
    %113 = arith.addf %108, %112 : vector<16x256xf32>
    %114 = vector.extract_strided_slice %37 {offsets = [240, 0], sizes = [16, 64], strides = [1, 1]} : vector<640x64xbf16> to vector<16x64xbf16>
    %c15 = arith.constant 15 : index
    %c0_74 = arith.constant 0 : index
    %c0_75 = arith.constant 0 : index
    %115 = vector.load %arg8[%c15, %c0_74, %c0_75] : memref<36x64x256xbf16, #tpu.memory_space<vmem>>, vector<1x64x256xbf16>
    %116 = vector.shape_cast %115 : vector<1x64x256xbf16> to vector<64x256xbf16>
    %cst_76 = arith.constant dense<0.000000e+00> : vector<16x256xf32>
    %117 = tpu.matmul %114, %116, %cst_76 {dimension_numbers = #tpu.dot_dimension_numbers<[1], [0], [0], [1], [0, 0, 1, 1], [], []>} : vector<16x64xbf16>, vector<64x256xbf16>, vector<16x256xf32> -> vector<16x256xf32>
    %118 = arith.addf %113, %117 : vector<16x256xf32>
    %119 = vector.extract_strided_slice %37 {offsets = [256, 0], sizes = [16, 64], strides = [1, 1]} : vector<640x64xbf16> to vector<16x64xbf16>
    %c16 = arith.constant 16 : index
    %c0_77 = arith.constant 0 : index
    %c0_78 = arith.constant 0 : index
    %120 = vector.load %arg8[%c16, %c0_77, %c0_78] : memref<36x64x256xbf16, #tpu.memory_space<vmem>>, vector<1x64x256xbf16>
    %121 = vector.shape_cast %120 : vector<1x64x256xbf16> to vector<64x256xbf16>
    %cst_79 = arith.constant dense<0.000000e+00> : vector<16x256xf32>
    %122 = tpu.matmul %119, %121, %cst_79 {dimension_numbers = #tpu.dot_dimension_numbers<[1], [0], [0], [1], [0, 0, 1, 1], [], []>} : vector<16x64xbf16>, vector<64x256xbf16>, vector<16x256xf32> -> vector<16x256xf32>
    %123 = arith.addf %118, %122 : vector<16x256xf32>
    %124 = vector.extract_strided_slice %37 {offsets = [272, 0], sizes = [16, 64], strides = [1, 1]} : vector<640x64xbf16> to vector<16x64xbf16>
    %c17 = arith.constant 17 : index
    %c0_80 = arith.constant 0 : index
    %c0_81 = arith.constant 0 : index
    %125 = vector.load %arg8[%c17, %c0_80, %c0_81] : memref<36x64x256xbf16, #tpu.memory_space<vmem>>, vector<1x64x256xbf16>
    %126 = vector.shape_cast %125 : vector<1x64x256xbf16> to vector<64x256xbf16>
    %cst_82 = arith.constant dense<0.000000e+00> : vector<16x256xf32>
    %127 = tpu.matmul %124, %126, %cst_82 {dimension_numbers = #tpu.dot_dimension_numbers<[1], [0], [0], [1], [0, 0, 1, 1], [], []>} : vector<16x64xbf16>, vector<64x256xbf16>, vector<16x256xf32> -> vector<16x256xf32>
    %128 = arith.addf %123, %127 : vector<16x256xf32>
    %129 = vector.extract_strided_slice %37 {offsets = [288, 0], sizes = [16, 64], strides = [1, 1]} : vector<640x64xbf16> to vector<16x64xbf16>
    %c18 = arith.constant 18 : index
    %c0_83 = arith.constant 0 : index
    %c0_84 = arith.constant 0 : index
    %130 = vector.load %arg8[%c18, %c0_83, %c0_84] : memref<36x64x256xbf16, #tpu.memory_space<vmem>>, vector<1x64x256xbf16>
    %131 = vector.shape_cast %130 : vector<1x64x256xbf16> to vector<64x256xbf16>
    %cst_85 = arith.constant dense<0.000000e+00> : vector<16x256xf32>
    %132 = tpu.matmul %129, %131, %cst_85 {dimension_numbers = #tpu.dot_dimension_numbers<[1], [0], [0], [1], [0, 0, 1, 1], [], []>} : vector<16x64xbf16>, vector<64x256xbf16>, vector<16x256xf32> -> vector<16x256xf32>
    %133 = arith.addf %128, %132 : vector<16x256xf32>
    %134 = vector.extract_strided_slice %37 {offsets = [304, 0], sizes = [16, 64], strides = [1, 1]} : vector<640x64xbf16> to vector<16x64xbf16>
    %c19 = arith.constant 19 : index
    %c0_86 = arith.constant 0 : index
    %c0_87 = arith.constant 0 : index
    %135 = vector.load %arg8[%c19, %c0_86, %c0_87] : memref<36x64x256xbf16, #tpu.memory_space<vmem>>, vector<1x64x256xbf16>
    %136 = vector.shape_cast %135 : vector<1x64x256xbf16> to vector<64x256xbf16>
    %cst_88 = arith.constant dense<0.000000e+00> : vector<16x256xf32>
    %137 = tpu.matmul %134, %136, %cst_88 {dimension_numbers = #tpu.dot_dimension_numbers<[1], [0], [0], [1], [0, 0, 1, 1], [], []>} : vector<16x64xbf16>, vector<64x256xbf16>, vector<16x256xf32> -> vector<16x256xf32>
    %138 = arith.addf %133, %137 : vector<16x256xf32>
    %139 = vector.extract_strided_slice %37 {offsets = [320, 0], sizes = [16, 64], strides = [1, 1]} : vector<640x64xbf16> to vector<16x64xbf16>
    %c20 = arith.constant 20 : index
    %c0_89 = arith.constant 0 : index
    %c0_90 = arith.constant 0 : index
    %140 = vector.load %arg8[%c20, %c0_89, %c0_90] : memref<36x64x256xbf16, #tpu.memory_space<vmem>>, vector<1x64x256xbf16>
    %141 = vector.shape_cast %140 : vector<1x64x256xbf16> to vector<64x256xbf16>
    %cst_91 = arith.constant dense<0.000000e+00> : vector<16x256xf32>
    %142 = tpu.matmul %139, %141, %cst_91 {dimension_numbers = #tpu.dot_dimension_numbers<[1], [0], [0], [1], [0, 0, 1, 1], [], []>} : vector<16x64xbf16>, vector<64x256xbf16>, vector<16x256xf32> -> vector<16x256xf32>
    %143 = arith.addf %138, %142 : vector<16x256xf32>
    %144 = vector.extract_strided_slice %37 {offsets = [336, 0], sizes = [16, 64], strides = [1, 1]} : vector<640x64xbf16> to vector<16x64xbf16>
    %c21 = arith.constant 21 : index
    %c0_92 = arith.constant 0 : index
    %c0_93 = arith.constant 0 : index
    %145 = vector.load %arg8[%c21, %c0_92, %c0_93] : memref<36x64x256xbf16, #tpu.memory_space<vmem>>, vector<1x64x256xbf16>
    %146 = vector.shape_cast %145 : vector<1x64x256xbf16> to vector<64x256xbf16>
    %cst_94 = arith.constant dense<0.000000e+00> : vector<16x256xf32>
    %147 = tpu.matmul %144, %146, %cst_94 {dimension_numbers = #tpu.dot_dimension_numbers<[1], [0], [0], [1], [0, 0, 1, 1], [], []>} : vector<16x64xbf16>, vector<64x256xbf16>, vector<16x256xf32> -> vector<16x256xf32>
    %148 = arith.addf %143, %147 : vector<16x256xf32>
    %149 = vector.extract_strided_slice %37 {offsets = [352, 0], sizes = [16, 64], strides = [1, 1]} : vector<640x64xbf16> to vector<16x64xbf16>
    %c22 = arith.constant 22 : index
    %c0_95 = arith.constant 0 : index
    %c0_96 = arith.constant 0 : index
    %150 = vector.load %arg8[%c22, %c0_95, %c0_96] : memref<36x64x256xbf16, #tpu.memory_space<vmem>>, vector<1x64x256xbf16>
    %151 = vector.shape_cast %150 : vector<1x64x256xbf16> to vector<64x256xbf16>
    %cst_97 = arith.constant dense<0.000000e+00> : vector<16x256xf32>
    %152 = tpu.matmul %149, %151, %cst_97 {dimension_numbers = #tpu.dot_dimension_numbers<[1], [0], [0], [1], [0, 0, 1, 1], [], []>} : vector<16x64xbf16>, vector<64x256xbf16>, vector<16x256xf32> -> vector<16x256xf32>
    %153 = arith.addf %148, %152 : vector<16x256xf32>
    %154 = vector.extract_strided_slice %37 {offsets = [368, 0], sizes = [16, 64], strides = [1, 1]} : vector<640x64xbf16> to vector<16x64xbf16>
    %c23 = arith.constant 23 : index
    %c0_98 = arith.constant 0 : index
    %c0_99 = arith.constant 0 : index
    %155 = vector.load %arg8[%c23, %c0_98, %c0_99] : memref<36x64x256xbf16, #tpu.memory_space<vmem>>, vector<1x64x256xbf16>
    %156 = vector.shape_cast %155 : vector<1x64x256xbf16> to vector<64x256xbf16>
    %cst_100 = arith.constant dense<0.000000e+00> : vector<16x256xf32>
    %157 = tpu.matmul %154, %156, %cst_100 {dimension_numbers = #tpu.dot_dimension_numbers<[1], [0], [0], [1], [0, 0, 1, 1], [], []>} : vector<16x64xbf16>, vector<64x256xbf16>, vector<16x256xf32> -> vector<16x256xf32>
    %158 = arith.addf %153, %157 : vector<16x256xf32>
    %159 = vector.extract_strided_slice %37 {offsets = [384, 0], sizes = [16, 64], strides = [1, 1]} : vector<640x64xbf16> to vector<16x64xbf16>
    %c24 = arith.constant 24 : index
    %c0_101 = arith.constant 0 : index
    %c0_102 = arith.constant 0 : index
    %160 = vector.load %arg8[%c24, %c0_101, %c0_102] : memref<36x64x256xbf16, #tpu.memory_space<vmem>>, vector<1x64x256xbf16>
    %161 = vector.shape_cast %160 : vector<1x64x256xbf16> to vector<64x256xbf16>
    %cst_103 = arith.constant dense<0.000000e+00> : vector<16x256xf32>
    %162 = tpu.matmul %159, %161, %cst_103 {dimension_numbers = #tpu.dot_dimension_numbers<[1], [0], [0], [1], [0, 0, 1, 1], [], []>} : vector<16x64xbf16>, vector<64x256xbf16>, vector<16x256xf32> -> vector<16x256xf32>
    %163 = arith.addf %158, %162 : vector<16x256xf32>
    %164 = vector.extract_strided_slice %37 {offsets = [400, 0], sizes = [16, 64], strides = [1, 1]} : vector<640x64xbf16> to vector<16x64xbf16>
    %c25 = arith.constant 25 : index
    %c0_104 = arith.constant 0 : index
    %c0_105 = arith.constant 0 : index
    %165 = vector.load %arg8[%c25, %c0_104, %c0_105] : memref<36x64x256xbf16, #tpu.memory_space<vmem>>, vector<1x64x256xbf16>
    %166 = vector.shape_cast %165 : vector<1x64x256xbf16> to vector<64x256xbf16>
    %cst_106 = arith.constant dense<0.000000e+00> : vector<16x256xf32>
    %167 = tpu.matmul %164, %166, %cst_106 {dimension_numbers = #tpu.dot_dimension_numbers<[1], [0], [0], [1], [0, 0, 1, 1], [], []>} : vector<16x64xbf16>, vector<64x256xbf16>, vector<16x256xf32> -> vector<16x256xf32>
    %168 = arith.addf %163, %167 : vector<16x256xf32>
    %169 = vector.extract_strided_slice %37 {offsets = [416, 0], sizes = [16, 64], strides = [1, 1]} : vector<640x64xbf16> to vector<16x64xbf16>
    %c26 = arith.constant 26 : index
    %c0_107 = arith.constant 0 : index
    %c0_108 = arith.constant 0 : index
    %170 = vector.load %arg8[%c26, %c0_107, %c0_108] : memref<36x64x256xbf16, #tpu.memory_space<vmem>>, vector<1x64x256xbf16>
    %171 = vector.shape_cast %170 : vector<1x64x256xbf16> to vector<64x256xbf16>
    %cst_109 = arith.constant dense<0.000000e+00> : vector<16x256xf32>
    %172 = tpu.matmul %169, %171, %cst_109 {dimension_numbers = #tpu.dot_dimension_numbers<[1], [0], [0], [1], [0, 0, 1, 1], [], []>} : vector<16x64xbf16>, vector<64x256xbf16>, vector<16x256xf32> -> vector<16x256xf32>
    %173 = arith.addf %168, %172 : vector<16x256xf32>
    %174 = vector.extract_strided_slice %37 {offsets = [432, 0], sizes = [16, 64], strides = [1, 1]} : vector<640x64xbf16> to vector<16x64xbf16>
    %c27 = arith.constant 27 : index
    %c0_110 = arith.constant 0 : index
    %c0_111 = arith.constant 0 : index
    %175 = vector.load %arg8[%c27, %c0_110, %c0_111] : memref<36x64x256xbf16, #tpu.memory_space<vmem>>, vector<1x64x256xbf16>
    %176 = vector.shape_cast %175 : vector<1x64x256xbf16> to vector<64x256xbf16>
    %cst_112 = arith.constant dense<0.000000e+00> : vector<16x256xf32>
    %177 = tpu.matmul %174, %176, %cst_112 {dimension_numbers = #tpu.dot_dimension_numbers<[1], [0], [0], [1], [0, 0, 1, 1], [], []>} : vector<16x64xbf16>, vector<64x256xbf16>, vector<16x256xf32> -> vector<16x256xf32>
    %178 = arith.addf %173, %177 : vector<16x256xf32>
    %179 = vector.extract_strided_slice %37 {offsets = [448, 0], sizes = [16, 64], strides = [1, 1]} : vector<640x64xbf16> to vector<16x64xbf16>
    %c28 = arith.constant 28 : index
    %c0_113 = arith.constant 0 : index
    %c0_114 = arith.constant 0 : index
    %180 = vector.load %arg8[%c28, %c0_113, %c0_114] : memref<36x64x256xbf16, #tpu.memory_space<vmem>>, vector<1x64x256xbf16>
    %181 = vector.shape_cast %180 : vector<1x64x256xbf16> to vector<64x256xbf16>
    %cst_115 = arith.constant dense<0.000000e+00> : vector<16x256xf32>
    %182 = tpu.matmul %179, %181, %cst_115 {dimension_numbers = #tpu.dot_dimension_numbers<[1], [0], [0], [1], [0, 0, 1, 1], [], []>} : vector<16x64xbf16>, vector<64x256xbf16>, vector<16x256xf32> -> vector<16x256xf32>
    %183 = arith.addf %178, %182 : vector<16x256xf32>
    %184 = vector.extract_strided_slice %37 {offsets = [464, 0], sizes = [16, 64], strides = [1, 1]} : vector<640x64xbf16> to vector<16x64xbf16>
    %c29 = arith.constant 29 : index
    %c0_116 = arith.constant 0 : index
    %c0_117 = arith.constant 0 : index
    %185 = vector.load %arg8[%c29, %c0_116, %c0_117] : memref<36x64x256xbf16, #tpu.memory_space<vmem>>, vector<1x64x256xbf16>
    %186 = vector.shape_cast %185 : vector<1x64x256xbf16> to vector<64x256xbf16>
    %cst_118 = arith.constant dense<0.000000e+00> : vector<16x256xf32>
    %187 = tpu.matmul %184, %186, %cst_118 {dimension_numbers = #tpu.dot_dimension_numbers<[1], [0], [0], [1], [0, 0, 1, 1], [], []>} : vector<16x64xbf16>, vector<64x256xbf16>, vector<16x256xf32> -> vector<16x256xf32>
    %188 = arith.addf %183, %187 : vector<16x256xf32>
    %189 = vector.extract_strided_slice %37 {offsets = [480, 0], sizes = [16, 64], strides = [1, 1]} : vector<640x64xbf16> to vector<16x64xbf16>
    %c30 = arith.constant 30 : index
    %c0_119 = arith.constant 0 : index
    %c0_120 = arith.constant 0 : index
    %190 = vector.load %arg8[%c30, %c0_119, %c0_120] : memref<36x64x256xbf16, #tpu.memory_space<vmem>>, vector<1x64x256xbf16>
    %191 = vector.shape_cast %190 : vector<1x64x256xbf16> to vector<64x256xbf16>
    %cst_121 = arith.constant dense<0.000000e+00> : vector<16x256xf32>
    %192 = tpu.matmul %189, %191, %cst_121 {dimension_numbers = #tpu.dot_dimension_numbers<[1], [0], [0], [1], [0, 0, 1, 1], [], []>} : vector<16x64xbf16>, vector<64x256xbf16>, vector<16x256xf32> -> vector<16x256xf32>
    %193 = arith.addf %188, %192 : vector<16x256xf32>
    %194 = vector.extract_strided_slice %37 {offsets = [496, 0], sizes = [16, 64], strides = [1, 1]} : vector<640x64xbf16> to vector<16x64xbf16>
    %c31 = arith.constant 31 : index
    %c0_122 = arith.constant 0 : index
    %c0_123 = arith.constant 0 : index
    %195 = vector.load %arg8[%c31, %c0_122, %c0_123] : memref<36x64x256xbf16, #tpu.memory_space<vmem>>, vector<1x64x256xbf16>
    %196 = vector.shape_cast %195 : vector<1x64x256xbf16> to vector<64x256xbf16>
    %cst_124 = arith.constant dense<0.000000e+00> : vector<16x256xf32>
    %197 = tpu.matmul %194, %196, %cst_124 {dimension_numbers = #tpu.dot_dimension_numbers<[1], [0], [0], [1], [0, 0, 1, 1], [], []>} : vector<16x64xbf16>, vector<64x256xbf16>, vector<16x256xf32> -> vector<16x256xf32>
    %198 = arith.addf %193, %197 : vector<16x256xf32>
    %199 = vector.extract_strided_slice %37 {offsets = [512, 0], sizes = [16, 64], strides = [1, 1]} : vector<640x64xbf16> to vector<16x64xbf16>
    %c32 = arith.constant 32 : index
    %c0_125 = arith.constant 0 : index
    %c0_126 = arith.constant 0 : index
    %200 = vector.load %arg8[%c32, %c0_125, %c0_126] : memref<36x64x256xbf16, #tpu.memory_space<vmem>>, vector<1x64x256xbf16>
    %201 = vector.shape_cast %200 : vector<1x64x256xbf16> to vector<64x256xbf16>
    %cst_127 = arith.constant dense<0.000000e+00> : vector<16x256xf32>
    %202 = tpu.matmul %199, %201, %cst_127 {dimension_numbers = #tpu.dot_dimension_numbers<[1], [0], [0], [1], [0, 0, 1, 1], [], []>} : vector<16x64xbf16>, vector<64x256xbf16>, vector<16x256xf32> -> vector<16x256xf32>
    %203 = arith.addf %198, %202 : vector<16x256xf32>
    %204 = vector.extract_strided_slice %37 {offsets = [528, 0], sizes = [16, 64], strides = [1, 1]} : vector<640x64xbf16> to vector<16x64xbf16>
    %c33 = arith.constant 33 : index
    %c0_128 = arith.constant 0 : index
    %c0_129 = arith.constant 0 : index
    %205 = vector.load %arg8[%c33, %c0_128, %c0_129] : memref<36x64x256xbf16, #tpu.memory_space<vmem>>, vector<1x64x256xbf16>
    %206 = vector.shape_cast %205 : vector<1x64x256xbf16> to vector<64x256xbf16>
    %cst_130 = arith.constant dense<0.000000e+00> : vector<16x256xf32>
    %207 = tpu.matmul %204, %206, %cst_130 {dimension_numbers = #tpu.dot_dimension_numbers<[1], [0], [0], [1], [0, 0, 1, 1], [], []>} : vector<16x64xbf16>, vector<64x256xbf16>, vector<16x256xf32> -> vector<16x256xf32>
    %208 = arith.addf %203, %207 : vector<16x256xf32>
    %209 = vector.extract_strided_slice %37 {offsets = [544, 0], sizes = [16, 64], strides = [1, 1]} : vector<640x64xbf16> to vector<16x64xbf16>
    %c34 = arith.constant 34 : index
    %c0_131 = arith.constant 0 : index
    %c0_132 = arith.constant 0 : index
    %210 = vector.load %arg8[%c34, %c0_131, %c0_132] : memref<36x64x256xbf16, #tpu.memory_space<vmem>>, vector<1x64x256xbf16>
    %211 = vector.shape_cast %210 : vector<1x64x256xbf16> to vector<64x256xbf16>
    %cst_133 = arith.constant dense<0.000000e+00> : vector<16x256xf32>
    %212 = tpu.matmul %209, %211, %cst_133 {dimension_numbers = #tpu.dot_dimension_numbers<[1], [0], [0], [1], [0, 0, 1, 1], [], []>} : vector<16x64xbf16>, vector<64x256xbf16>, vector<16x256xf32> -> vector<16x256xf32>
    %213 = arith.addf %208, %212 : vector<16x256xf32>
    %214 = vector.extract_strided_slice %37 {offsets = [560, 0], sizes = [16, 64], strides = [1, 1]} : vector<640x64xbf16> to vector<16x64xbf16>
    %c35 = arith.constant 35 : index
    %c0_134 = arith.constant 0 : index
    %c0_135 = arith.constant 0 : index
    %215 = vector.load %arg8[%c35, %c0_134, %c0_135] : memref<36x64x256xbf16, #tpu.memory_space<vmem>>, vector<1x64x256xbf16>
    %216 = vector.shape_cast %215 : vector<1x64x256xbf16> to vector<64x256xbf16>
    %cst_136 = arith.constant dense<0.000000e+00> : vector<16x256xf32>
    %217 = tpu.matmul %214, %216, %cst_136 {dimension_numbers = #tpu.dot_dimension_numbers<[1], [0], [0], [1], [0, 0, 1, 1], [], []>} : vector<16x64xbf16>, vector<64x256xbf16>, vector<16x256xf32> -> vector<16x256xf32>
    %218 = arith.addf %213, %217 : vector<16x256xf32>
    %c0_137 = arith.constant 0 : index
    %c0_138 = arith.constant 0 : index
    %219 = vector.load %arg9[%c0_137, %c0_138] : memref<1x256xf32, #tpu.memory_space<vmem>>, vector<1x256xf32>
    %220 = vector.broadcast %219 : vector<1x256xf32> to vector<16x256xf32>
    %221 = arith.addf %218, %220 : vector<16x256xf32>
    %cst_139 = arith.constant 0.000000e+00 : f32
    %222 = vector.broadcast %cst_139 : f32 to vector<16x256xf32>
    %223 = arith.maximumf %221, %222 : vector<16x256xf32>
    %224 = arith.truncf %223 : vector<16x256xf32> to vector<16x256xbf16>
    %c0_140 = arith.constant 0 : index
    %c0_141 = arith.constant 0 : index
    %225 = vector.load %arg10[%c0_140, %c0_141] : memref<256x128xbf16, #tpu.memory_space<vmem>>, vector<256x128xbf16>
    %cst_142 = arith.constant dense<0.000000e+00> : vector<16x128xf32>
    %226 = tpu.matmul %224, %225, %cst_142 {dimension_numbers = #tpu.dot_dimension_numbers<[1], [0], [0], [1], [0, 0, 1, 1], [], []>} : vector<16x256xbf16>, vector<256x128xbf16>, vector<16x128xf32> -> vector<16x128xf32>
    %c0_143 = arith.constant 0 : index
    %c0_144 = arith.constant 0 : index
    %227 = vector.load %arg11[%c0_143, %c0_144] : memref<1x128xf32, #tpu.memory_space<vmem>>, vector<1x128xf32>
    %228 = vector.broadcast %227 : vector<1x128xf32> to vector<16x128xf32>
    %229 = arith.addf %226, %228 : vector<16x128xf32>
    %c0_145 = arith.constant 0 : index
    %c0_146 = arith.constant 0 : index
    %230 = vector.load %arg12[%c0_145, %c0_146] : memref<16x128xf32, #tpu.memory_space<vmem>>, vector<16x128xf32>
    tpu.vector_store %arg12[%c0_145, %c0_146], %229 {strides = array<i32>} : memref<16x128xf32, #tpu.memory_space<vmem>>, vector<16x128xf32>,
    return
  }
  func.func @transform_0(%arg0: i32) -> (i32, i32, i32) {
    %c0_i32 = arith.constant 0 : i32
    %c0_i32_0 = arith.constant 0 : i32
    %c0_i32_1 = arith.constant 0 : i32
    return %arg0, %c0_i32, %c0_i32_0 : i32, i32, i32
  }
  func.func @transform_1(%arg0: i32) -> (i32, i32) {
    %c0_i32 = arith.constant 0 : i32
    %c0_i32_0 = arith.constant 0 : i32
    %c0_i32_1 = arith.constant 0 : i32
    return %c0_i32, %c0_i32_0 : i32, i32
  }
  func.func @transform_2(%arg0: i32) -> (i32, i32) {
    %c0_i32 = arith.constant 0 : i32
    %c0_i32_0 = arith.constant 0 : i32
    %c0_i32_1 = arith.constant 0 : i32
    return %c0_i32, %c0_i32_0 : i32, i32
  }
  func.func @transform_3(%arg0: i32) -> (i32, i32) {
    %c0_i32 = arith.constant 0 : i32
    %c0_i32_0 = arith.constant 0 : i32
    %c0_i32_1 = arith.constant 0 : i32
    return %c0_i32, %c0_i32_0 : i32, i32
  }
  func.func @transform_4(%arg0: i32) -> (i32, i32) {
    %c0_i32 = arith.constant 0 : i32
    %c0_i32_0 = arith.constant 0 : i32
    %c0_i32_1 = arith.constant 0 : i32
    return %c0_i32, %c0_i32_0 : i32, i32
  }
  func.func @transform_5(%arg0: i32) -> (i32, i32) {
    %c0_i32 = arith.constant 0 : i32
    %c0_i32_0 = arith.constant 0 : i32
    %c0_i32_1 = arith.constant 0 : i32
    return %c0_i32, %c0_i32_0 : i32, i32
  }
  func.func @transform_6(%arg0: i32) -> (i32, i32) {
    %c0_i32 = arith.constant 0 : i32
    %c0_i32_0 = arith.constant 0 : i32
    %c0_i32_1 = arith.constant 0 : i32
    return %c0_i32, %c0_i32_0 : i32, i32
  }
  func.func @transform_7(%arg0: i32) -> (i32, i32, i32) {
    %c0_i32 = arith.constant 0 : i32
    %c0_i32_0 = arith.constant 0 : i32
    %c0_i32_1 = arith.constant 0 : i32
    %c0_i32_2 = arith.constant 0 : i32
    return %c0_i32, %c0_i32_0, %c0_i32_1 : i32, i32, i32
  }
  func.func @transform_8(%arg0: i32) -> (i32, i32) {
    %c0_i32 = arith.constant 0 : i32
    %c0_i32_0 = arith.constant 0 : i32
    %c0_i32_1 = arith.constant 0 : i32
    return %c0_i32, %c0_i32_0 : i32, i32
  }
  func.func @transform_9(%arg0: i32) -> (i32, i32) {
    %c0_i32 = arith.constant 0 : i32
    %c0_i32_0 = arith.constant 0 : i32
    %c0_i32_1 = arith.constant 0 : i32
    return %c0_i32, %c0_i32_0 : i32, i32
  }
  func.func @transform_10(%arg0: i32) -> (i32, i32) {
    %c0_i32 = arith.constant 0 : i32
    %c0_i32_0 = arith.constant 0 : i32
    %c0_i32_1 = arith.constant 0 : i32
    return %c0_i32, %c0_i32_0 : i32, i32
  }
  func.func @transform_11(%arg0: i32) -> (i32, i32) {
    %c0_i32 = arith.constant 0 : i32
    %c0_i32_0 = arith.constant 0 : i32
    return %arg0, %c0_i32 : i32, i32
  }
}

</mosaic_0001>

<llo_original>
// kernel: cnn_small_forward.1
$region0: #{cnn_small_forward.1}
  #allocation0 [shape = 'u32[]', space=smem, size = 0x4, offset = 0x4, fixed_abs, tag = 'smem constant byte address 0x4 - core index']
  #allocation1 [shape = 'u32[144,128]{1,0:T(1,128)}', space=vmem, size = 0x12000, scoped, tag = 'internal scratch']
  %s0 = inlined_call_operand.vmem [shape: bf16[1,640,192], index: 0, kind: input, shape index: {}]
  %s1 = inlined_call_operand.vmem [shape: bf16[192,128], index: 1, kind: input, shape index: {}]
  %s2 = inlined_call_operand.vmem [shape: f32[3,128], index: 2, kind: input, shape index: {}]
  %s3 = inlined_call_operand.vmem [shape: bf16[128,64], index: 3, kind: input, shape index: {}]
  %s4 = inlined_call_operand.vmem [shape: f32[3,64], index: 4, kind: input, shape index: {}]
  %s5 = inlined_call_operand.vmem [shape: bf16[64,64], index: 5, kind: input, shape index: {}]
  %s6 = inlined_call_operand.vmem [shape: f32[1,64], index: 6, kind: input, shape index: {}]
  %s7 = inlined_call_operand.vmem [shape: bf16[36,64,256], index: 7, kind: input, shape index: {}]
  %s8 = inlined_call_operand.vmem [shape: f32[1,256], index: 8, kind: input, shape index: {}]
  %s9 = inlined_call_operand.vmem [shape: bf16[256,128], index: 9, kind: input, shape index: {}]
  %s10 = inlined_call_operand.vmem [shape: f32[1,128], index: 10, kind: input, shape index: {}]
  %s11 = inlined_call_operand.vmem [shape: f32[16,128], index: 11, kind: output, shape index: {}]
  %s12 = sld [smem:[#allocation0]]
  $region54: #{cnn_small_forward.1} parent=0
    _
  %s14 = ssub.s32 1, %s12
  %s15 = scalar_select 0, %s14, %s12
  // Predicated region
  $region2: #{cnn_small_forward.1} parent=0 // pred_check
    _
  $region3: #{cnn_small_forward.1} parent=0 // pred_check_branch
    %17 = sbr.rel (0) target = $region5
  $region4: #{cnn_small_forward.1} parent=0 // pred_region
    _
  $region5: #{cnn_small_forward.1} parent=0 // pred_fallthru
    _
  // Predicated region
  $region6: #{cnn_small_forward.1} parent=0 // pred_check
    _
  $region7: #{cnn_small_forward.1} parent=0 // pred_check_branch
    %19 = sbr.rel (0) target = $region9
  $region8: #{cnn_small_forward.1} parent=0 // pred_region
    _
  $region9: #{cnn_small_forward.1} parent=0 // pred_fallthru
    _
  // Predicated region
  $region10: #{cnn_small_forward.1} parent=0 // pred_check
    _
  $region11: #{cnn_small_forward.1} parent=0 // pred_check_branch
    %21 = sbr.rel (0) target = $region13
  $region12: #{cnn_small_forward.1} parent=0 // pred_region
    _
  $region13: #{cnn_small_forward.1} parent=0 // pred_fallthru
    _
  // Predicated region
  $region14: #{cnn_small_forward.1} parent=0 // pred_check
    _
  $region15: #{cnn_small_forward.1} parent=0 // pred_check_branch
    %23 = sbr.rel (0) target = $region17
  $region16: #{cnn_small_forward.1} parent=0 // pred_region
    _
  $region17: #{cnn_small_forward.1} parent=0 // pred_fallthru
    _
  // Predicated region
  $region18: #{cnn_small_forward.1} parent=0 // pred_check
    _
  $region19: #{cnn_small_forward.1} parent=0 // pred_check_branch
    %25 = sbr.rel (0) target = $region21
  $region20: #{cnn_small_forward.1} parent=0 // pred_region
    _
  $region21: #{cnn_small_forward.1} parent=0 // pred_fallthru
    _
  // Predicated region
  $region22: #{cnn_small_forward.1} parent=0 // pred_check
    _
  $region23: #{cnn_small_forward.1} parent=0 // pred_check_branch
    %27 = sbr.rel (0) target = $region25
  $region24: #{cnn_small_forward.1} parent=0 // pred_region
    _
  $region25: #{cnn_small_forward.1} parent=0 // pred_fallthru
    _
  // Predicated region
  $region26: #{cnn_small_forward.1} parent=0 // pred_check
    _
  $region27: #{cnn_small_forward.1} parent=0 // pred_check_branch
    %29 = sbr.rel (0) target = $region29
  $region28: #{cnn_small_forward.1} parent=0 // pred_region
    _
  $region29: #{cnn_small_forward.1} parent=0 // pred_fallthru
    _
  // Predicated region
  $region30: #{cnn_small_forward.1} parent=0 // pred_check
    _
  $region31: #{cnn_small_forward.1} parent=0 // pred_check_branch
    %31 = sbr.rel (0) target = $region33
  $region32: #{cnn_small_forward.1} parent=0 // pred_region
    _
  $region33: #{cnn_small_forward.1} parent=0 // pred_fallthru
    _
  // Predicated region
  $region34: #{cnn_small_forward.1} parent=0 // pred_check
    _
  $region35: #{cnn_small_forward.1} parent=0 // pred_check_branch
    %33 = sbr.rel (0) target = $region37
  $region36: #{cnn_small_forward.1} parent=0 // pred_region
    _
  $region37: #{cnn_small_forward.1} parent=0 // pred_fallthru
    _
  // Predicated region
  $region38: #{cnn_small_forward.1} parent=0 // pred_check
    _
  $region39: #{cnn_small_forward.1} parent=0 // pred_check_branch
    %35 = sbr.rel (0) target = $region41
  $region40: #{cnn_small_forward.1} parent=0 // pred_region
    _
  $region41: #{cnn_small_forward.1} parent=0 // pred_fallthru
    _
  // Predicated region
  $region42: #{cnn_small_forward.1} parent=0 // pred_check
    _
  $region43: #{cnn_small_forward.1} parent=0 // pred_check_branch
    %37 = sbr.rel (0) target = $region45
  $region44: #{cnn_small_forward.1} parent=0 // pred_region
    _
  $region45: #{cnn_small_forward.1} parent=0 // pred_fallthru
    _
  %v39 = vld [vmem:[%s0] sm:$0xff]
  %v40 = vld [vmem:[%s0 + $0x8] sm:$0xff]
  %v41 = vld [vmem:[%s0 + $0x10] sm:$0xff]
  %v42 = vld [vmem:[%s0 + $0x18] sm:$0xff]
  %v43 = vld [vmem:[%s0 + $0x20] sm:$0xff]
  %v44 = vld [vmem:[%s0 + $0x28] sm:$0xff]
  %v45 = vld [vmem:[%s0 + $0x30] sm:$0xff]
  %v46 = vld [vmem:[%s0 + $0x38] sm:$0xff]
  %v47 = vld [vmem:[%s0 + $0x40] sm:$0xff]
  %v48 = vld [vmem:[%s0 + $0x48] sm:$0xff]
  %v49 = vld [vmem:[%s0 + $0x50] sm:$0xff]
  %v50 = vld [vmem:[%s0 + $0x58] sm:$0xff]
  %v51 = vld [vmem:[%s0 + $0x60] sm:$0xff]
  %v52 = vld [vmem:[%s0 + $0x68] sm:$0xff]
  %v53 = vld [vmem:[%s0 + $0x70] sm:$0xff]
  %v54 = vld [vmem:[%s0 + $0x78] sm:$0xff]
  %v55 = vld [vmem:[%s0 + $0x80] sm:$0xff]
  %v56 = vld [vmem:[%s0 + $0x88] sm:$0xff]
  %v57 = vld [vmem:[%s0 + $0x90] sm:$0xff]
  %v58 = vld [vmem:[%s0 + $0x98] sm:$0xff]
  %v59 = vld [vmem:[%s0 + $0xa0] sm:$0xff]
  %v60 = vld [vmem:[%s0 + $0xa8] sm:$0xff]
  %v61 = vld [vmem:[%s0 + $0xb0] sm:$0xff]
  %v62 = vld [vmem:[%s0 + $0xb8] sm:$0xff]
  %v63 = vld [vmem:[%s0 + $0xc0] sm:$0xff]
  %v64 = vld [vmem:[%s0 + $0xc8] sm:$0xff]
  %v65 = vld [vmem:[%s0 + $0xd0] sm:$0xff]
  %v66 = vld [vmem:[%s0 + $0xd8] sm:$0xff]
  %v67 = vld [vmem:[%s0 + $0xe0] sm:$0xff]
  %v68 = vld [vmem:[%s0 + $0xe8] sm:$0xff]
  %v69 = vld [vmem:[%s0 + $0xf0] sm:$0xff]
  %v70 = vld [vmem:[%s0 + $0xf8] sm:$0xff]
  %v71 = vld [vmem:[%s0 + $0x100] sm:$0xff]
  %v72 = vld [vmem:[%s0 + $0x108] sm:$0xff]
  %v73 = vld [vmem:[%s0 + $0x110] sm:$0xff]
  %v74 = vld [vmem:[%s0 + $0x118] sm:$0xff]
  %v75 = vld [vmem:[%s0 + $0x120] sm:$0xff]
  %v76 = vld [vmem:[%s0 + $0x128] sm:$0xff]
  %v77 = vld [vmem:[%s0 + $0x130] sm:$0xff]
  %v78 = vld [vmem:[%s0 + $0x138] sm:$0xff]
  %v79 = vld [vmem:[%s0 + $0x140] sm:$0xff]
  %v80 = vld [vmem:[%s0 + $0x148] sm:$0xff]
  %v81 = vld [vmem:[%s0 + $0x150] sm:$0xff]
  %v82 = vld [vmem:[%s0 + $0x158] sm:$0xff]
  %v83 = vld [vmem:[%s0 + $0x160] sm:$0xff]
  %v84 = vld [vmem:[%s0 + $0x168] sm:$0xff]
  %v85 = vld [vmem:[%s0 + $0x170] sm:$0xff]
  %v86 = vld [vmem:[%s0 + $0x178] sm:$0xff]
  %v87 = vld [vmem:[%s0 + $0x180] sm:$0xff]
  %v88 = vld [vmem:[%s0 + $0x188] sm:$0xff]
  %v89 = vld [vmem:[%s0 + $0x190] sm:$0xff]
  %v90 = vld [vmem:[%s0 + $0x198] sm:$0xff]
  %v91 = vld [vmem:[%s0 + $0x1a0] sm:$0xff]
  %v92 = vld [vmem:[%s0 + $0x1a8] sm:$0xff]
  %v93 = vld [vmem:[%s0 + $0x1b0] sm:$0xff]
  %v94 = vld [vmem:[%s0 + $0x1b8] sm:$0xff]
  %v95 = vld [vmem:[%s0 + $0x1c0] sm:$0xff]
  %v96 = vld [vmem:[%s0 + $0x1c8] sm:$0xff]
  %v97 = vld [vmem:[%s0 + $0x1d0] sm:$0xff]
  %v98 = vld [vmem:[%s0 + $0x1d8] sm:$0xff]
  %v99 = vld [vmem:[%s0 + $0x1e0] sm:$0xff]
  %v100 = vld [vmem:[%s0 + $0x1e8] sm:$0xff]
  %v101 = vld [vmem:[%s0 + $0x1f0] sm:$0xff]
  %v102 = vld [vmem:[%s0 + $0x1f8] sm:$0xff]
  %v103 = vld [vmem:[%s0 + $0x200] sm:$0xff]
  %v104 = vld [vmem:[%s0 + $0x208] sm:$0xff]
  %v105 = vld [vmem:[%s0 + $0x210] sm:$0xff]
  %v106 = vld [vmem:[%s0 + $0x218] sm:$0xff]
  %v107 = vld [vmem:[%s0 + $0x220] sm:$0xff]
  %v108 = vld [vmem:[%s0 + $0x228] sm:$0xff]
  %v109 = vld [vmem:[%s0 + $0x230] sm:$0xff]
  %v110 = vld [vmem:[%s0 + $0x238] sm:$0xff]
  %v111 = vld [vmem:[%s0 + $0x240] sm:$0xff]
  %v112 = vld [vmem:[%s0 + $0x248] sm:$0xff]
  %v113 = vld [vmem:[%s0 + $0x250] sm:$0xff]
  %v114 = vld [vmem:[%s0 + $0x258] sm:$0xff]
  %v115 = vld [vmem:[%s0 + $0x260] sm:$0xff]
  %v116 = vld [vmem:[%s0 + $0x268] sm:$0xff]
  %v117 = vld [vmem:[%s0 + $0x270] sm:$0xff]
  %v118 = vld [vmem:[%s0 + $0x278] sm:$0xff]
  %v119 = vld [vmem:[%s1] sm:$0xf]
  %v120 = vld [vmem:[%s1 + $0x4] sm:$0xf]
  %v121 = vld [vmem:[%s1 + $0x8] sm:$0xf]
  %v122 = vld [vmem:[%s1 + $0xc] sm:$0xf]
  %v123 = vld [vmem:[%s1 + $0x10] sm:$0xf]
  %v124 = vld [vmem:[%s1 + $0x14] sm:$0xf]
  %v125 = vld [vmem:[%s1 + $0x18] sm:$0xf]
  %v126 = vld [vmem:[%s1 + $0x1c] sm:$0xf]
  %v127 = vld [vmem:[%s1 + $0x20] sm:$0xf]
  %v128 = vld [vmem:[%s1 + $0x24] sm:$0xf]
  %v129 = vld [vmem:[%s1 + $0x28] sm:$0xf]
  %v130 = vld [vmem:[%s1 + $0x2c] sm:$0xf]
  %v131 = vld [vmem:[%s1 + $0x30] sm:$0xf]
  %v132 = vld [vmem:[%s1 + $0x34] sm:$0xf]
  %v133 = vld [vmem:[%s1 + $0x38] sm:$0xf]
  %v134 = vld [vmem:[%s1 + $0x3c] sm:$0xf]
  %v135 = vld [vmem:[%s1 + $0x40] sm:$0xf]
  %v136 = vld [vmem:[%s1 + $0x44] sm:$0xf]
  %v137 = vld [vmem:[%s1 + $0x48] sm:$0xf]
  %v138 = vld [vmem:[%s1 + $0x4c] sm:$0xf]
  %v139 = vld [vmem:[%s1 + $0x50] sm:$0xf]
  %v140 = vld [vmem:[%s1 + $0x54] sm:$0xf]
  %v141 = vld [vmem:[%s1 + $0x58] sm:$0xf]
  %v142 = vld [vmem:[%s1 + $0x5c] sm:$0xf]
  %v143 = vld [vmem:[%s2] sm:$0x1]
  %v144 = vlaneseq
  %v145 = vshrl.u32 %v144, 7
  %v146 = vsub.s32 0, %v145
  %v147 = vrot.slane %v143, %v146
  %v228 = vunpack.c.l.b16 %v39
  %v229 = vunpack.c.h.b16 %v39
  %v230 = vunpack.c.l.b16 %v40
  %v231 = vunpack.c.h.b16 %v40
  %v232 = vunpack.c.l.b16 %v41
  %v233 = vunpack.c.h.b16 %v41
  %v234 = vunpack.c.l.b16 %v42
  %v235 = vunpack.c.h.b16 %v42
  %v236 = vunpack.c.l.b16 %v43
  %v237 = vunpack.c.h.b16 %v43
  %v238 = vunpack.c.l.b16 %v44
  %v239 = vunpack.c.h.b16 %v44
  %v240 = vunpack.c.l.b16 %v45
  %v241 = vunpack.c.h.b16 %v45
  %v242 = vunpack.c.l.b16 %v46
  %v243 = vunpack.c.h.b16 %v46
  %v244 = vunpack.c.l.b16 %v47
  %v245 = vunpack.c.h.b16 %v47
  %v246 = vunpack.c.l.b16 %v48
  %v247 = vunpack.c.h.b16 %v48
  %v248 = vunpack.c.l.b16 %v49
  %v249 = vunpack.c.h.b16 %v49
  %v250 = vunpack.c.l.b16 %v50
  %v251 = vunpack.c.h.b16 %v50
  %v252 = vunpack.c.l.b16 %v51
  %v253 = vunpack.c.h.b16 %v51
  %v254 = vunpack.c.l.b16 %v52
  %v255 = vunpack.c.h.b16 %v52
  %v256 = vunpack.c.l.b16 %v53
  %v257 = vunpack.c.h.b16 %v53
  %v258 = vunpack.c.l.b16 %v54
  %v259 = vunpack.c.h.b16 %v54
  %v260 = vunpack.c.l.b16 %v55
  %v261 = vunpack.c.h.b16 %v55
  %v262 = vunpack.c.l.b16 %v56
  %v263 = vunpack.c.h.b16 %v56
  %v264 = vunpack.c.l.b16 %v57
  %v265 = vunpack.c.h.b16 %v57
  %v266 = vunpack.c.l.b16 %v58
  %v267 = vunpack.c.h.b16 %v58
  %v268 = vunpack.c.l.b16 %v59
  %v269 = vunpack.c.h.b16 %v59
  %v270 = vunpack.c.l.b16 %v60
  %v271 = vunpack.c.h.b16 %v60
  %v272 = vunpack.c.l.b16 %v61
  %v273 = vunpack.c.h.b16 %v61
  %v274 = vunpack.c.l.b16 %v62
  %v275 = vunpack.c.h.b16 %v62
  %v276 = vunpack.c.l.b16 %v63
  %v277 = vunpack.c.h.b16 %v63
  %v278 = vunpack.c.l.b16 %v64
  %v279 = vunpack.c.h.b16 %v64
  %v280 = vunpack.c.l.b16 %v65
  %v281 = vunpack.c.h.b16 %v65
  %v282 = vunpack.c.l.b16 %v66
  %v283 = vunpack.c.h.b16 %v66
  %v284 = vunpack.c.l.b16 %v67
  %v285 = vunpack.c.h.b16 %v67
  %v286 = vunpack.c.l.b16 %v68
  %v287 = vunpack.c.h.b16 %v68
  %v288 = vunpack.c.l.b16 %v69
  %v289 = vunpack.c.h.b16 %v69
  %v290 = vunpack.c.l.b16 %v70
  %v291 = vunpack.c.h.b16 %v70
  %v292 = vunpack.c.l.b16 %v71
  %v293 = vunpack.c.h.b16 %v71
  %v294 = vunpack.c.l.b16 %v72
  %v295 = vunpack.c.h.b16 %v72
  %v296 = vunpack.c.l.b16 %v73
  %v297 = vunpack.c.h.b16 %v73
  %v298 = vunpack.c.l.b16 %v74
  %v299 = vunpack.c.h.b16 %v74
  %v300 = vunpack.c.l.b16 %v75
  %v301 = vunpack.c.h.b16 %v75
  %v302 = vunpack.c.l.b16 %v76
  %v303 = vunpack.c.h.b16 %v76
  %v304 = vunpack.c.l.b16 %v77
  %v305 = vunpack.c.h.b16 %v77
  %v306 = vunpack.c.l.b16 %v78
  %v307 = vunpack.c.h.b16 %v78
  %v308 = vunpack.c.l.b16 %v79
  %v309 = vunpack.c.h.b16 %v79
  %v310 = vunpack.c.l.b16 %v80
  %v311 = vunpack.c.h.b16 %v80
  %v312 = vunpack.c.l.b16 %v81
  %v313 = vunpack.c.h.b16 %v81
  %v314 = vunpack.c.l.b16 %v82
  %v315 = vunpack.c.h.b16 %v82
  %v316 = vunpack.c.l.b16 %v83
  %v317 = vunpack.c.h.b16 %v83
  %v318 = vunpack.c.l.b16 %v84
  %v319 = vunpack.c.h.b16 %v84
  %v320 = vunpack.c.l.b16 %v85
  %v321 = vunpack.c.h.b16 %v85
  %v322 = vunpack.c.l.b16 %v86
  %v323 = vunpack.c.h.b16 %v86
  %v324 = vunpack.c.l.b16 %v87
  %v325 = vunpack.c.h.b16 %v87
  %v326 = vunpack.c.l.b16 %v88
  %v327 = vunpack.c.h.b16 %v88
  %v328 = vunpack.c.l.b16 %v89
  %v329 = vunpack.c.h.b16 %v89
  %v330 = vunpack.c.l.b16 %v90
  %v331 = vunpack.c.h.b16 %v90
  %v332 = vunpack.c.l.b16 %v91
  %v333 = vunpack.c.h.b16 %v91
  %v334 = vunpack.c.l.b16 %v92
  %v335 = vunpack.c.h.b16 %v92
  %v336 = vunpack.c.l.b16 %v93
  %v337 = vunpack.c.h.b16 %v93
  %v338 = vunpack.c.l.b16 %v94
  %v339 = vunpack.c.h.b16 %v94
  %v340 = vunpack.c.l.b16 %v95
  %v341 = vunpack.c.h.b16 %v95
  %v342 = vunpack.c.l.b16 %v96
  %v343 = vunpack.c.h.b16 %v96
  %v344 = vunpack.c.l.b16 %v97
  %v345 = vunpack.c.h.b16 %v97
  %v346 = vunpack.c.l.b16 %v98
  %v347 = vunpack.c.h.b16 %v98
  %v348 = vunpack.c.l.b16 %v99
  %v349 = vunpack.c.h.b16 %v99
  %v350 = vunpack.c.l.b16 %v100
  %v351 = vunpack.c.h.b16 %v100
  %v352 = vunpack.c.l.b16 %v101
  %v353 = vunpack.c.h.b16 %v101
  %v354 = vunpack.c.l.b16 %v102
  %v355 = vunpack.c.h.b16 %v102
  %v356 = vunpack.c.l.b16 %v103
  %v357 = vunpack.c.h.b16 %v103
  %v358 = vunpack.c.l.b16 %v104
  %v359 = vunpack.c.h.b16 %v104
  %v360 = vunpack.c.l.b16 %v105
  %v361 = vunpack.c.h.b16 %v105
  %v362 = vunpack.c.l.b16 %v106
  %v363 = vunpack.c.h.b16 %v106
  %v364 = vunpack.c.l.b16 %v107
  %v365 = vunpack.c.h.b16 %v107
  %v366 = vunpack.c.l.b16 %v108
  %v367 = vunpack.c.h.b16 %v108
  %v368 = vunpack.c.l.b16 %v109
  %v369 = vunpack.c.h.b16 %v109
  %v370 = vunpack.c.l.b16 %v110
  %v371 = vunpack.c.h.b16 %v110
  %v372 = vunpack.c.l.b16 %v111
  %v373 = vunpack.c.h.b16 %v111
  %v374 = vunpack.c.l.b16 %v112
  %v375 = vunpack.c.h.b16 %v112
  %v376 = vunpack.c.l.b16 %v113
  %v377 = vunpack.c.h.b16 %v113
  %v378 = vunpack.c.l.b16 %v114
  %v379 = vunpack.c.h.b16 %v114
  %v380 = vunpack.c.l.b16 %v115
  %v381 = vunpack.c.h.b16 %v115
  %v382 = vunpack.c.l.b16 %v116
  %v383 = vunpack.c.h.b16 %v116
  %v384 = vunpack.c.l.b16 %v117
  %v385 = vunpack.c.h.b16 %v117
  %v386 = vunpack.c.l.b16 %v118
  %v387 = vunpack.c.h.b16 %v118
  %v388 = vpack.c.b16 %v230, %v228
  %v389 = vpack.c.b16 %v231, %v229
  %v390 = vpack.c.b16 %v234, %v232
  %v391 = vpack.c.b16 %v235, %v233
  %v392 = vpack.c.b16 %v238, %v236
  %v393 = vpack.c.b16 %v239, %v237
  %v394 = vpack.c.b16 %v242, %v240
  %v395 = vpack.c.b16 %v243, %v241
  %v396 = vpack.c.b16 %v246, %v244
  %v397 = vpack.c.b16 %v247, %v245
  %v398 = vpack.c.b16 %v250, %v248
  %v399 = vpack.c.b16 %v251, %v249
  %v400 = vpack.c.b16 %v254, %v252
  %v401 = vpack.c.b16 %v255, %v253
  %v402 = vpack.c.b16 %v258, %v256
  %v403 = vpack.c.b16 %v259, %v257
  %v404 = vpack.c.b16 %v262, %v260
  %v405 = vpack.c.b16 %v263, %v261
  %v406 = vpack.c.b16 %v266, %v264
  %v407 = vpack.c.b16 %v267, %v265
  %v408 = vpack.c.b16 %v270, %v268
  %v409 = vpack.c.b16 %v271, %v269
  %v410 = vpack.c.b16 %v274, %v272
  %v411 = vpack.c.b16 %v275, %v273
  %v412 = vpack.c.b16 %v278, %v276
  %v413 = vpack.c.b16 %v279, %v277
  %v414 = vpack.c.b16 %v282, %v280
  %v415 = vpack.c.b16 %v283, %v281
  %v416 = vpack.c.b16 %v286, %v284
  %v417 = vpack.c.b16 %v287, %v285
  %v418 = vpack.c.b16 %v290, %v288
  %v419 = vpack.c.b16 %v291, %v289
  %v420 = vpack.c.b16 %v294, %v292
  %v421 = vpack.c.b16 %v295, %v293
  %v422 = vpack.c.b16 %v298, %v296
  %v423 = vpack.c.b16 %v299, %v297
  %v424 = vpack.c.b16 %v302, %v300
  %v425 = vpack.c.b16 %v303, %v301
  %v426 = vpack.c.b16 %v306, %v304
  %v427 = vpack.c.b16 %v307, %v305
  %v428 = vpack.c.b16 %v310, %v308
  %v429 = vpack.c.b16 %v311, %v309
  %v430 = vpack.c.b16 %v314, %v312
  %v431 = vpack.c.b16 %v315, %v313
  %v432 = vpack.c.b16 %v318, %v316
  %v433 = vpack.c.b16 %v319, %v317
  %v434 = vpack.c.b16 %v322, %v320
  %v435 = vpack.c.b16 %v323, %v321
  %v436 = vpack.c.b16 %v326, %v324
  %v437 = vpack.c.b16 %v327, %v325
  %v438 = vpack.c.b16 %v330, %v328
  %v439 = vpack.c.b16 %v331, %v329
  %v440 = vpack.c.b16 %v334, %v332
  %v441 = vpack.c.b16 %v335, %v333
  %v442 = vpack.c.b16 %v338, %v336
  %v443 = vpack.c.b16 %v339, %v337
  %v444 = vpack.c.b16 %v342, %v340
  %v445 = vpack.c.b16 %v343, %v341
  %v446 = vpack.c.b16 %v346, %v344
  %v447 = vpack.c.b16 %v347, %v345
  %v448 = vpack.c.b16 %v350, %v348
  %v449 = vpack.c.b16 %v351, %v349
  %v450 = vpack.c.b16 %v354, %v352
  %v451 = vpack.c.b16 %v355, %v353
  %v452 = vpack.c.b16 %v358, %v356
  %v453 = vpack.c.b16 %v359, %v357
  %v454 = vpack.c.b16 %v362, %v360
  %v455 = vpack.c.b16 %v363, %v361
  %v456 = vpack.c.b16 %v366, %v364
  %v457 = vpack.c.b16 %v367, %v365
  %v458 = vpack.c.b16 %v370, %v368
  %v459 = vpack.c.b16 %v371, %v369
  %v460 = vpack.c.b16 %v374, %v372
  %v461 = vpack.c.b16 %v375, %v373
  %v462 = vpack.c.b16 %v378, %v376
  %v463 = vpack.c.b16 %v379, %v377
  %v464 = vpack.c.b16 %v382, %v380
  %v465 = vpack.c.b16 %v383, %v381
  %v466 = vpack.c.b16 %v386, %v384
  %v467 = vpack.c.b16 %v387, %v385
  %v532 = vunpack.c.l.b16 %v119
  %v533 = vunpack.c.l.b16 %v120
  %v534 = vunpack.c.l.b16 %v121
  %v535 = vunpack.c.l.b16 %v122
  %v536 = vunpack.c.l.b16 %v123
  %v537 = vunpack.c.l.b16 %v124
  %v538 = vunpack.c.l.b16 %v125
  %v539 = vunpack.c.l.b16 %v126
  %v540 = vunpack.c.l.b16 %v127
  %v541 = vunpack.c.l.b16 %v128
  %v542 = vunpack.c.l.b16 %v129
  %v543 = vunpack.c.l.b16 %v130
  %v544 = vunpack.c.l.b16 %v131
  %v545 = vunpack.c.l.b16 %v132
  %v546 = vunpack.c.l.b16 %v133
  %v547 = vunpack.c.l.b16 %v134
  %v548 = vunpack.c.l.b16 %v135
  %v549 = vunpack.c.l.b16 %v136
  %v550 = vunpack.c.l.b16 %v137
  %v551 = vunpack.c.l.b16 %v138
  %v552 = vunpack.c.l.b16 %v139
  %v553 = vunpack.c.l.b16 %v140
  %v554 = vunpack.c.l.b16 %v141
  %v555 = vunpack.c.l.b16 %v142
  %v556 = vpack.c.b16 %v533, %v532
  %v557 = vpack.c.b16 %v535, %v534
  %v558 = vpack.c.b16 %v537, %v536
  %v559 = vpack.c.b16 %v539, %v538
  %v560 = vpack.c.b16 %v541, %v540
  %v561 = vpack.c.b16 %v543, %v542
  %v562 = vpack.c.b16 %v545, %v544
  %v563 = vpack.c.b16 %v547, %v546
  %v564 = vpack.c.b16 %v549, %v548
  %v565 = vpack.c.b16 %v551, %v550
  %v566 = vpack.c.b16 %v553, %v552
  %v567 = vpack.c.b16 %v555, %v554
  %vm580 = vcmask 523264
  %v582 = vsel %vm580, %v389, 0
  %v585 = vsel %vm580, %v391, 0
  %v588 = vsel %vm580, %v393, 0
  %v591 = vsel %vm580, %v395, 0
  %v594 = vsel %vm580, %v397, 0
  %v597 = vsel %vm580, %v399, 0
  %v600 = vsel %vm580, %v401, 0
  %v603 = vsel %vm580, %v403, 0
  %v606 = vsel %vm580, %v405, 0
  %v609 = vsel %vm580, %v407, 0
  %v612 = vsel %vm580, %v409, 0
  %v615 = vsel %vm580, %v411, 0
  %v618 = vsel %vm580, %v413, 0
  %v621 = vsel %vm580, %v415, 0
  %v624 = vsel %vm580, %v417, 0
  %v627 = vsel %vm580, %v419, 0
  %v630 = vsel %vm580, %v421, 0
  %v633 = vsel %vm580, %v423, 0
  %v636 = vsel %vm580, %v425, 0
  %v639 = vsel %vm580, %v427, 0
  %v642 = vsel %vm580, %v429, 0
  %v645 = vsel %vm580, %v431, 0
  %v648 = vsel %vm580, %v433, 0
  %v651 = vsel %vm580, %v435, 0
  %v654 = vsel %vm580, %v437, 0
  %v657 = vsel %vm580, %v439, 0
  %v660 = vsel %vm580, %v441, 0
  %v663 = vsel %vm580, %v443, 0
  %v666 = vsel %vm580, %v445, 0
  %v669 = vsel %vm580, %v447, 0
  %v672 = vsel %vm580, %v449, 0
  %v675 = vsel %vm580, %v451, 0
  %v678 = vsel %vm580, %v453, 0
  %v681 = vsel %vm580, %v455, 0
  %v684 = vsel %vm580, %v457, 0
  %v687 = vsel %vm580, %v459, 0
  %v690 = vsel %vm580, %v461, 0
  %v693 = vsel %vm580, %v463, 0
  %v696 = vsel %vm580, %v465, 0
  %v699 = vsel %vm580, %v467, 0
  %701 = vmatprep.subr.bf16.mxu0 0
  %702 = vmatpush1.bf16.msra.mxu0 %v556
  %703 = vmatprep.subr.bf16.mxu0 0
  %704 = vmatpush1.bf16.msra.mxu0 %v557
  %705 = vmatprep.subr.bf16.mxu0 0
  %706 = vmatpush1.bf16.msra.mxu0 %v558
  %707 = vmatprep.subr.bf16.mxu0 0
  %708 = vmatpush1.bf16.msra.mxu0 %v559
  %709 = vmatprep.subr.bf16.mxu0 0
  %710 = vmatpush1.bf16.msra.mxu0 %v560
  %711 = vmatprep.subr.bf16.mxu0 0
  %712 = vmatpush1.bf16.msra.mxu0 %v561
  %713 = vmatprep.subr.bf16.mxu0 0
  %714 = vmatpush1.bf16.msra.mxu0 %v562
  %715 = vmatprep.subr.bf16.mxu0 0
  %716 = vmatpush1.bf16.msra.mxu0 %v563
  %717 = vmatprep.subr.bf16.mxu0 0
  %718 = vmatpush1.bf16.msra.mxu0 %v564
  %719 = vmatprep.subr.bf16.mxu0 0
  %720 = vmatpush1.bf16.msra.mxu0 %v565
  %721 = vmatprep.subr.bf16.mxu0 0
  %722 = vmatpush1.bf16.msra.mxu0 %v566
  %723 = vmatprep.subr.bf16.mxu0 0
  %724 = vmatpush1.bf16.msra.mxu0 %v567
  %725 = vmatprep.subr.bf16.mxu0 0
  %726 = vmatpush1.bf16.msra.mxu0 0
  %727 = vmatprep.subr.bf16.mxu0 0
  %728 = vmatpush1.bf16.msra.mxu0 0
  %729 = vmatprep.subr.bf16.mxu0 0
  %730 = vmatpush1.bf16.msra.mxu0 0
  %731 = vmatprep.subr.bf16.mxu0 0
  %732 = vmatpush1.bf16.msra.mxu0 0
  %733 = vmatprep.mubr.bf16.mxu0 %v582
  %734 = vmatmul.mubr.bf16.gmra.mrb[0].mxu0 %v388
  %v735 = vpop.f32.mrb[0].mxu0
  %v736 = vadd.f32 %v147, %v735
  %v737 = vpop.f32.mrb[0].mxu0
  %v738 = vpop.f32.mrb[0].mxu0
  %v739 = vadd.f32 %v147, %v738
  %v740 = vpop.f32.mrb[0].mxu0
  %741 = vmatprep.mubr.bf16.mxu0 %v585
  %742 = vmatmul.mubr.bf16.gmra.mrb[0].mxu0 %v390
  %v743 = vpop.f32.mrb[0].mxu0
  %v744 = vadd.f32 %v147, %v743
  %v745 = vpop.f32.mrb[0].mxu0
  %v746 = vpop.f32.mrb[0].mxu0
  %v747 = vadd.f32 %v147, %v746
  %v748 = vpop.f32.mrb[0].mxu0
  %749 = vmatprep.mubr.bf16.mxu0 %v588
  %750 = vmatmul.mubr.bf16.gmra.mrb[0].mxu0 %v392
  %v751 = vpop.f32.mrb[0].mxu0
  %v752 = vadd.f32 %v147, %v751
  %v753 = vpop.f32.mrb[0].mxu0
  %v754 = vpop.f32.mrb[0].mxu0
  %v755 = vadd.f32 %v147, %v754
  %v756 = vpop.f32.mrb[0].mxu0
  %757 = vmatprep.mubr.bf16.mxu0 %v591
  %758 = vmatmul.mubr.bf16.gmra.mrb[0].mxu0 %v394
  %v759 = vpop.f32.mrb[0].mxu0
  %v760 = vadd.f32 %v147, %v759
  %v761 = vpop.f32.mrb[0].mxu0
  %v762 = vpop.f32.mrb[0].mxu0
  %v763 = vadd.f32 %v147, %v762
  %v764 = vpop.f32.mrb[0].mxu0
  %765 = vmatprep.mubr.bf16.mxu0 %v594
  %766 = vmatmul.mubr.bf16.gmra.mrb[0].mxu0 %v396
  %v767 = vpop.f32.mrb[0].mxu0
  %v768 = vadd.f32 %v147, %v767
  %v769 = vpop.f32.mrb[0].mxu0
  %v770 = vpop.f32.mrb[0].mxu0
  %v771 = vadd.f32 %v147, %v770
  %v772 = vpop.f32.mrb[0].mxu0
  %773 = vmatprep.mubr.bf16.mxu0 %v597
  %774 = vmatmul.mubr.bf16.gmra.mrb[0].mxu0 %v398
  %v775 = vpop.f32.mrb[0].mxu0
  %v776 = vadd.f32 %v147, %v775
  %v777 = vpop.f32.mrb[0].mxu0
  %v778 = vpop.f32.mrb[0].mxu0
  %v779 = vadd.f32 %v147, %v778
  %v780 = vpop.f32.mrb[0].mxu0
  %781 = vmatprep.mubr.bf16.mxu0 %v600
  %782 = vmatmul.mubr.bf16.gmra.mrb[0].mxu0 %v400
  %v783 = vpop.f32.mrb[0].mxu0
  %v784 = vadd.f32 %v147, %v783
  %v785 = vpop.f32.mrb[0].mxu0
  %v786 = vpop.f32.mrb[0].mxu0
  %v787 = vadd.f32 %v147, %v786
  %v788 = vpop.f32.mrb[0].mxu0
  %789 = vmatprep.mubr.bf16.mxu0 %v603
  %790 = vmatmul.mubr.bf16.gmra.mrb[0].mxu0 %v402
  %v791 = vpop.f32.mrb[0].mxu0
  %v792 = vadd.f32 %v147, %v791
  %v793 = vpop.f32.mrb[0].mxu0
  %v794 = vpop.f32.mrb[0].mxu0
  %v795 = vadd.f32 %v147, %v794
  %v796 = vpop.f32.mrb[0].mxu0
  %797 = vmatprep.mubr.bf16.mxu0 %v606
  %798 = vmatmul.mubr.bf16.gmra.mrb[0].mxu0 %v404
  %v799 = vpop.f32.mrb[0].mxu0
  %v800 = vadd.f32 %v147, %v799
  %v801 = vpop.f32.mrb[0].mxu0
  %v802 = vpop.f32.mrb[0].mxu0
  %v803 = vadd.f32 %v147, %v802
  %v804 = vpop.f32.mrb[0].mxu0
  %805 = vmatprep.mubr.bf16.mxu0 %v609
  %806 = vmatmul.mubr.bf16.gmra.mrb[0].mxu0 %v406
  %v807 = vpop.f32.mrb[0].mxu0
  %v808 = vadd.f32 %v147, %v807
  %v809 = vpop.f32.mrb[0].mxu0
  %v810 = vpop.f32.mrb[0].mxu0
  %v811 = vadd.f32 %v147, %v810
  %v812 = vpop.f32.mrb[0].mxu0
  %813 = vmatprep.mubr.bf16.mxu0 %v612
  %814 = vmatmul.mubr.bf16.gmra.mrb[0].mxu0 %v408
  %v815 = vpop.f32.mrb[0].mxu0
  %v816 = vadd.f32 %v147, %v815
  %v817 = vpop.f32.mrb[0].mxu0
  %v818 = vpop.f32.mrb[0].mxu0
  %v819 = vadd.f32 %v147, %v818
  %v820 = vpop.f32.mrb[0].mxu0
  %821 = vmatprep.mubr.bf16.mxu0 %v615
  %822 = vmatmul.mubr.bf16.gmra.mrb[0].mxu0 %v410
  %v823 = vpop.f32.mrb[0].mxu0
  %v824 = vadd.f32 %v147, %v823
  %v825 = vpop.f32.mrb[0].mxu0
  %v826 = vpop.f32.mrb[0].mxu0
  %v827 = vadd.f32 %v147, %v826
  %v828 = vpop.f32.mrb[0].mxu0
  %829 = vmatprep.mubr.bf16.mxu0 %v618
  %830 = vmatmul.mubr.bf16.gmra.mrb[0].mxu0 %v412
  %v831 = vpop.f32.mrb[0].mxu0
  %v832 = vadd.f32 %v147, %v831
  %v833 = vpop.f32.mrb[0].mxu0
  %v834 = vpop.f32.mrb[0].mxu0
  %v835 = vadd.f32 %v147, %v834
  %v836 = vpop.f32.mrb[0].mxu0
  %837 = vmatprep.mubr.bf16.mxu0 %v621
  %838 = vmatmul.mubr.bf16.gmra.mrb[0].mxu0 %v414
  %v839 = vpop.f32.mrb[0].mxu0
  %v840 = vadd.f32 %v147, %v839
  %v841 = vpop.f32.mrb[0].mxu0
  %v842 = vpop.f32.mrb[0].mxu0
  %v843 = vadd.f32 %v147, %v842
  %v844 = vpop.f32.mrb[0].mxu0
  %845 = vmatprep.mubr.bf16.mxu0 %v624
  %846 = vmatmul.mubr.bf16.gmra.mrb[0].mxu0 %v416
  %v847 = vpop.f32.mrb[0].mxu0
  %v848 = vadd.f32 %v147, %v847
  %v849 = vpop.f32.mrb[0].mxu0
  %v850 = vpop.f32.mrb[0].mxu0
  %v851 = vadd.f32 %v147, %v850
  %v852 = vpop.f32.mrb[0].mxu0
  %853 = vmatprep.mubr.bf16.mxu0 %v627
  %854 = vmatmul.mubr.bf16.gmra.mrb[0].mxu0 %v418
  %v855 = vpop.f32.mrb[0].mxu0
  %v856 = vadd.f32 %v147, %v855
  %v857 = vpop.f32.mrb[0].mxu0
  %v858 = vpop.f32.mrb[0].mxu0
  %v859 = vadd.f32 %v147, %v858
  %v860 = vpop.f32.mrb[0].mxu0
  %861 = vmatprep.mubr.bf16.mxu0 %v630
  %862 = vmatmul.mubr.bf16.gmra.mrb[0].mxu0 %v420
  %v863 = vpop.f32.mrb[0].mxu0
  %v864 = vadd.f32 %v147, %v863
  %v865 = vpop.f32.mrb[0].mxu0
  %v866 = vpop.f32.mrb[0].mxu0
  %v867 = vadd.f32 %v147, %v866
  %v868 = vpop.f32.mrb[0].mxu0
  %869 = vmatprep.mubr.bf16.mxu0 %v633
  %870 = vmatmul.mubr.bf16.gmra.mrb[0].mxu0 %v422
  %v871 = vpop.f32.mrb[0].mxu0
  %v872 = vadd.f32 %v147, %v871
  %v873 = vpop.f32.mrb[0].mxu0
  %v874 = vpop.f32.mrb[0].mxu0
  %v875 = vadd.f32 %v147, %v874
  %v876 = vpop.f32.mrb[0].mxu0
  %877 = vmatprep.mubr.bf16.mxu0 %v636
  %878 = vmatmul.mubr.bf16.gmra.mrb[0].mxu0 %v424
  %v879 = vpop.f32.mrb[0].mxu0
  %v880 = vadd.f32 %v147, %v879
  %v881 = vpop.f32.mrb[0].mxu0
  %v882 = vpop.f32.mrb[0].mxu0
  %v883 = vadd.f32 %v147, %v882
  %v884 = vpop.f32.mrb[0].mxu0
  %885 = vmatprep.mubr.bf16.mxu0 %v639
  %886 = vmatmul.mubr.bf16.gmra.mrb[0].mxu0 %v426
  %v887 = vpop.f32.mrb[0].mxu0
  %v888 = vadd.f32 %v147, %v887
  %v889 = vpop.f32.mrb[0].mxu0
  %v890 = vpop.f32.mrb[0].mxu0
  %v891 = vadd.f32 %v147, %v890
  %v892 = vpop.f32.mrb[0].mxu0
  %893 = vmatprep.mubr.bf16.mxu0 %v642
  %894 = vmatmul.mubr.bf16.gmra.mrb[0].mxu0 %v428
  %v895 = vpop.f32.mrb[0].mxu0
  %v896 = vadd.f32 %v147, %v895
  %v897 = vpop.f32.mrb[0].mxu0
  %v898 = vpop.f32.mrb[0].mxu0
  %v899 = vadd.f32 %v147, %v898
  %v900 = vpop.f32.mrb[0].mxu0
  %901 = vmatprep.mubr.bf16.mxu0 %v645
  %902 = vmatmul.mubr.bf16.gmra.mrb[0].mxu0 %v430
  %v903 = vpop.f32.mrb[0].mxu0
  %v904 = vadd.f32 %v147, %v903
  %v905 = vpop.f32.mrb[0].mxu0
  %v906 = vpop.f32.mrb[0].mxu0
  %v907 = vadd.f32 %v147, %v906
  %v908 = vpop.f32.mrb[0].mxu0
  %909 = vmatprep.mubr.bf16.mxu0 %v648
  %910 = vmatmul.mubr.bf16.gmra.mrb[0].mxu0 %v432
  %v911 = vpop.f32.mrb[0].mxu0
  %v912 = vadd.f32 %v147, %v911
  %v913 = vpop.f32.mrb[0].mxu0
  %v914 = vpop.f32.mrb[0].mxu0
  %v915 = vadd.f32 %v147, %v914
  %v916 = vpop.f32.mrb[0].mxu0
  %917 = vmatprep.mubr.bf16.mxu0 %v651
  %918 = vmatmul.mubr.bf16.gmra.mrb[0].mxu0 %v434
  %v919 = vpop.f32.mrb[0].mxu0
  %v920 = vadd.f32 %v147, %v919
  %v921 = vpop.f32.mrb[0].mxu0
  %v922 = vpop.f32.mrb[0].mxu0
  %v923 = vadd.f32 %v147, %v922
  %v924 = vpop.f32.mrb[0].mxu0
  %925 = vmatprep.mubr.bf16.mxu0 %v654
  %926 = vmatmul.mubr.bf16.gmra.mrb[0].mxu0 %v436
  %v927 = vpop.f32.mrb[0].mxu0
  %v928 = vadd.f32 %v147, %v927
  %v929 = vpop.f32.mrb[0].mxu0
  %v930 = vpop.f32.mrb[0].mxu0
  %v931 = vadd.f32 %v147, %v930
  %v932 = vpop.f32.mrb[0].mxu0
  %933 = vmatprep.mubr.bf16.mxu0 %v657
  %934 = vmatmul.mubr.bf16.gmra.mrb[0].mxu0 %v438
  %v935 = vpop.f32.mrb[0].mxu0
  %v936 = vadd.f32 %v147, %v935
  %v937 = vpop.f32.mrb[0].mxu0
  %v938 = vpop.f32.mrb[0].mxu0
  %v939 = vadd.f32 %v147, %v938
  %v940 = vpop.f32.mrb[0].mxu0
  %941 = vmatprep.mubr.bf16.mxu0 %v660
  %942 = vmatmul.mubr.bf16.gmra.mrb[0].mxu0 %v440
  %v943 = vpop.f32.mrb[0].mxu0
  %v944 = vadd.f32 %v147, %v943
  %v945 = vpop.f32.mrb[0].mxu0
  %v946 = vpop.f32.mrb[0].mxu0
  %v947 = vadd.f32 %v147, %v946
  %v948 = vpop.f32.mrb[0].mxu0
  %949 = vmatprep.mubr.bf16.mxu0 %v663
  %950 = vmatmul.mubr.bf16.gmra.mrb[0].mxu0 %v442
  %v951 = vpop.f32.mrb[0].mxu0
  %v952 = vadd.f32 %v147, %v951
  %v953 = vpop.f32.mrb[0].mxu0
  %v954 = vpop.f32.mrb[0].mxu0
  %v955 = vadd.f32 %v147, %v954
  %v956 = vpop.f32.mrb[0].mxu0
  %957 = vmatprep.mubr.bf16.mxu0 %v666
  %958 = vmatmul.mubr.bf16.gmra.mrb[0].mxu0 %v444
  %v959 = vpop.f32.mrb[0].mxu0
  %v960 = vadd.f32 %v147, %v959
  %v961 = vpop.f32.mrb[0].mxu0
  %v962 = vpop.f32.mrb[0].mxu0
  %v963 = vadd.f32 %v147, %v962
  %v964 = vpop.f32.mrb[0].mxu0
  %965 = vmatprep.mubr.bf16.mxu0 %v669
  %966 = vmatmul.mubr.bf16.gmra.mrb[0].mxu0 %v446
  %v967 = vpop.f32.mrb[0].mxu0
  %v968 = vadd.f32 %v147, %v967
  %v969 = vpop.f32.mrb[0].mxu0
  %v970 = vpop.f32.mrb[0].mxu0
  %v971 = vadd.f32 %v147, %v970
  %v972 = vpop.f32.mrb[0].mxu0
  %973 = vmatprep.mubr.bf16.mxu0 %v672
  %974 = vmatmul.mubr.bf16.gmra.mrb[0].mxu0 %v448
  %v975 = vpop.f32.mrb[0].mxu0
  %v976 = vadd.f32 %v147, %v975
  %v977 = vpop.f32.mrb[0].mxu0
  %v978 = vpop.f32.mrb[0].mxu0
  %v979 = vadd.f32 %v147, %v978
  %v980 = vpop.f32.mrb[0].mxu0
  %981 = vmatprep.mubr.bf16.mxu0 %v675
  %982 = vmatmul.mubr.bf16.gmra.mrb[0].mxu0 %v450
  %v983 = vpop.f32.mrb[0].mxu0
  %v984 = vadd.f32 %v147, %v983
  %v985 = vpop.f32.mrb[0].mxu0
  %v986 = vpop.f32.mrb[0].mxu0
  %v987 = vadd.f32 %v147, %v986
  %v988 = vpop.f32.mrb[0].mxu0
  %989 = vmatprep.mubr.bf16.mxu0 %v678
  %990 = vmatmul.mubr.bf16.gmra.mrb[0].mxu0 %v452
  %v991 = vpop.f32.mrb[0].mxu0
  %v992 = vadd.f32 %v147, %v991
  %v993 = vpop.f32.mrb[0].mxu0
  %v994 = vpop.f32.mrb[0].mxu0
  %v995 = vadd.f32 %v147, %v994
  %v996 = vpop.f32.mrb[0].mxu0
  %997 = vmatprep.mubr.bf16.mxu0 %v681
  %998 = vmatmul.mubr.bf16.gmra.mrb[0].mxu0 %v454
  %v999 = vpop.f32.mrb[0].mxu0
  %v1000 = vadd.f32 %v147, %v999
  %v1001 = vpop.f32.mrb[0].mxu0
  %v1002 = vpop.f32.mrb[0].mxu0
  %v1003 = vadd.f32 %v147, %v1002
  %v1004 = vpop.f32.mrb[0].mxu0
  %1005 = vmatprep.mubr.bf16.mxu0 %v684
  %1006 = vmatmul.mubr.bf16.gmra.mrb[0].mxu0 %v456
  %v1007 = vpop.f32.mrb[0].mxu0
  %v1008 = vadd.f32 %v147, %v1007
  %v1009 = vpop.f32.mrb[0].mxu0
  %v1010 = vpop.f32.mrb[0].mxu0
  %v1011 = vadd.f32 %v147, %v1010
  %v1012 = vpop.f32.mrb[0].mxu0
  %1013 = vmatprep.mubr.bf16.mxu0 %v687
  %1014 = vmatmul.mubr.bf16.gmra.mrb[0].mxu0 %v458
  %v1015 = vpop.f32.mrb[0].mxu0
  %v1016 = vadd.f32 %v147, %v1015
  %v1017 = vpop.f32.mrb[0].mxu0
  %v1018 = vpop.f32.mrb[0].mxu0
  %v1019 = vadd.f32 %v147, %v1018
  %v1020 = vpop.f32.mrb[0].mxu0
  %1021 = vmatprep.mubr.bf16.mxu0 %v690
  %1022 = vmatmul.mubr.bf16.gmra.mrb[0].mxu0 %v460
  %v1023 = vpop.f32.mrb[0].mxu0
  %v1024 = vadd.f32 %v147, %v1023
  %v1025 = vpop.f32.mrb[0].mxu0
  %v1026 = vpop.f32.mrb[0].mxu0
  %v1027 = vadd.f32 %v147, %v1026
  %v1028 = vpop.f32.mrb[0].mxu0
  %1029 = vmatprep.mubr.bf16.mxu0 %v693
  %1030 = vmatmul.mubr.bf16.gmra.mrb[0].mxu0 %v462
  %v1031 = vpop.f32.mrb[0].mxu0
  %v1032 = vadd.f32 %v147, %v1031
  %v1033 = vpop.f32.mrb[0].mxu0
  %v1034 = vpop.f32.mrb[0].mxu0
  %v1035 = vadd.f32 %v147, %v1034
  %v1036 = vpop.f32.mrb[0].mxu0
  %1037 = vmatprep.mubr.bf16.mxu0 %v696
  %1038 = vmatmul.mubr.bf16.gmra.mrb[0].mxu0 %v464
  %v1039 = vpop.f32.mrb[0].mxu0
  %v1040 = vadd.f32 %v147, %v1039
  %v1041 = vpop.f32.mrb[0].mxu0
  %v1042 = vpop.f32.mrb[0].mxu0
  %v1043 = vadd.f32 %v147, %v1042
  %v1044 = vpop.f32.mrb[0].mxu0
  %1045 = vmatprep.mubr.bf16.mxu0 %v699
  %1046 = vmatmul.mubr.bf16.gmra.mrb[0].mxu0 %v466
  %v1047 = vpop.f32.mrb[0].mxu0
  %v1048 = vadd.f32 %v147, %v1047
  %v1049 = vpop.f32.mrb[0].mxu0
  %v1050 = vpop.f32.mrb[0].mxu0
  %v1051 = vadd.f32 %v147, %v1050
  %v1052 = vpop.f32.mrb[0].mxu0
  %1053 = vdwg.mxu0
  %v1054 = vmax.f32 %v736, 0.0
  %v1055 = vmax.f32 %v739, 0.0
  %v1056 = vmax.f32 %v744, 0.0
  %v1057 = vmax.f32 %v747, 0.0
  %v1058 = vmax.f32 %v752, 0.0
  %v1059 = vmax.f32 %v755, 0.0
  %v1060 = vmax.f32 %v760, 0.0
  %v1061 = vmax.f32 %v763, 0.0
  %v1062 = vmax.f32 %v768, 0.0
  %v1063 = vmax.f32 %v771, 0.0
  %v1064 = vmax.f32 %v776, 0.0
  %v1065 = vmax.f32 %v779, 0.0
  %v1066 = vmax.f32 %v784, 0.0
  %v1067 = vmax.f32 %v787, 0.0
  %v1068 = vmax.f32 %v792, 0.0
  %v1069 = vmax.f32 %v795, 0.0
  %v1070 = vmax.f32 %v800, 0.0
  %v1071 = vmax.f32 %v803, 0.0
  %v1072 = vmax.f32 %v808, 0.0
  %v1073 = vmax.f32 %v811, 0.0
  %v1074 = vmax.f32 %v816, 0.0
  %v1075 = vmax.f32 %v819, 0.0
  %v1076 = vmax.f32 %v824, 0.0
  %v1077 = vmax.f32 %v827, 0.0
  %v1078 = vmax.f32 %v832, 0.0
  %v1079 = vmax.f32 %v835, 0.0
  %v1080 = vmax.f32 %v840, 0.0
  %v1081 = vmax.f32 %v843, 0.0
  %v1082 = vmax.f32 %v848, 0.0
  %v1083 = vmax.f32 %v851, 0.0
  %v1084 = vmax.f32 %v856, 0.0
  %v1085 = vmax.f32 %v859, 0.0
  %v1086 = vmax.f32 %v864, 0.0
  %v1087 = vmax.f32 %v867, 0.0
  %v1088 = vmax.f32 %v872, 0.0
  %v1089 = vmax.f32 %v875, 0.0
  %v1090 = vmax.f32 %v880, 0.0
  %v1091 = vmax.f32 %v883, 0.0
  %v1092 = vmax.f32 %v888, 0.0
  %v1093 = vmax.f32 %v891, 0.0
  %v1094 = vmax.f32 %v896, 0.0
  %v1095 = vmax.f32 %v899, 0.0
  %v1096 = vmax.f32 %v904, 0.0
  %v1097 = vmax.f32 %v907, 0.0
  %v1098 = vmax.f32 %v912, 0.0
  %v1099 = vmax.f32 %v915, 0.0
  %v1100 = vmax.f32 %v920, 0.0
  %v1101 = vmax.f32 %v923, 0.0
  %v1102 = vmax.f32 %v928, 0.0
  %v1103 = vmax.f32 %v931, 0.0
  %v1104 = vmax.f32 %v936, 0.0
  %v1105 = vmax.f32 %v939, 0.0
  %v1106 = vmax.f32 %v944, 0.0
  %v1107 = vmax.f32 %v947, 0.0
  %v1108 = vmax.f32 %v952, 0.0
  %v1109 = vmax.f32 %v955, 0.0
  %v1110 = vmax.f32 %v960, 0.0
  %v1111 = vmax.f32 %v963, 0.0
  %v1112 = vmax.f32 %v968, 0.0
  %v1113 = vmax.f32 %v971, 0.0
  %v1114 = vmax.f32 %v976, 0.0
  %v1115 = vmax.f32 %v979, 0.0
  %v1116 = vmax.f32 %v984, 0.0
  %v1117 = vmax.f32 %v987, 0.0
  %v1118 = vmax.f32 %v992, 0.0
  %v1119 = vmax.f32 %v995, 0.0
  %v1120 = vmax.f32 %v1000, 0.0
  %v1121 = vmax.f32 %v1003, 0.0
  %v1122 = vmax.f32 %v1008, 0.0
  %v1123 = vmax.f32 %v1011, 0.0
  %v1124 = vmax.f32 %v1016, 0.0
  %v1125 = vmax.f32 %v1019, 0.0
  %v1126 = vmax.f32 %v1024, 0.0
  %v1127 = vmax.f32 %v1027, 0.0
  %v1128 = vmax.f32 %v1032, 0.0
  %v1129 = vmax.f32 %v1035, 0.0
  %v1130 = vmax.f32 %v1040, 0.0
  %v1131 = vmax.f32 %v1043, 0.0
  %v1132 = vmax.f32 %v1048, 0.0
  %v1133 = vmax.f32 %v1051, 0.0
  %v1134 = vld [vmem:[%s2 + $0x1] sm:$0x1]
  %v1135 = vlaneseq
  %v1136 = vshrl.u32 %v1135, 7
  %v1137 = vsub.s32 0, %v1136
  %v1138 = vrot.slane %v1134, %v1137
  %v1139 = vmul.f32 %v1054, %v1138
  %v1140 = vmul.f32 %v1055, %v1138
  %v1141 = vmul.f32 %v1056, %v1138
  %v1142 = vmul.f32 %v1057, %v1138
  %v1143 = vmul.f32 %v1058, %v1138
  %v1144 = vmul.f32 %v1059, %v1138
  %v1145 = vmul.f32 %v1060, %v1138
  %v1146 = vmul.f32 %v1061, %v1138
  %v1147 = vmul.f32 %v1062, %v1138
  %v1148 = vmul.f32 %v1063, %v1138
  %v1149 = vmul.f32 %v1064, %v1138
  %v1150 = vmul.f32 %v1065, %v1138
  %v1151 = vmul.f32 %v1066, %v1138
  %v1152 = vmul.f32 %v1067, %v1138
  %v1153 = vmul.f32 %v1068, %v1138
  %v1154 = vmul.f32 %v1069, %v1138
  %v1155 = vmul.f32 %v1070, %v1138
  %v1156 = vmul.f32 %v1071, %v1138
  %v1157 = vmul.f32 %v1072, %v1138
  %v1158 = vmul.f32 %v1073, %v1138
  %v1159 = vmul.f32 %v1074, %v1138
  %v1160 = vmul.f32 %v1075, %v1138
  %v1161 = vmul.f32 %v1076, %v1138
  %v1162 = vmul.f32 %v1077, %v1138
  %v1163 = vmul.f32 %v1078, %v1138
  %v1164 = vmul.f32 %v1079, %v1138
  %v1165 = vmul.f32 %v1080, %v1138
  %v1166 = vmul.f32 %v1081, %v1138
  %v1167 = vmul.f32 %v1082, %v1138
  %v1168 = vmul.f32 %v1083, %v1138
  %v1169 = vmul.f32 %v1084, %v1138
  %v1170 = vmul.f32 %v1085, %v1138
  %v1171 = vmul.f32 %v1086, %v1138
  %v1172 = vmul.f32 %v1087, %v1138
  %v1173 = vmul.f32 %v1088, %v1138
  %v1174 = vmul.f32 %v1089, %v1138
  %v1175 = vmul.f32 %v1090, %v1138
  %v1176 = vmul.f32 %v1091, %v1138
  %v1177 = vmul.f32 %v1092, %v1138
  %v1178 = vmul.f32 %v1093, %v1138
  %v1179 = vmul.f32 %v1094, %v1138
  %v1180 = vmul.f32 %v1095, %v1138
  %v1181 = vmul.f32 %v1096, %v1138
  %v1182 = vmul.f32 %v1097, %v1138
  %v1183 = vmul.f32 %v1098, %v1138
  %v1184 = vmul.f32 %v1099, %v1138
  %v1185 = vmul.f32 %v1100, %v1138
  %v1186 = vmul.f32 %v1101, %v1138
  %v1187 = vmul.f32 %v1102, %v1138
  %v1188 = vmul.f32 %v1103, %v1138
  %v1189 = vmul.f32 %v1104, %v1138
  %v1190 = vmul.f32 %v1105, %v1138
  %v1191 = vmul.f32 %v1106, %v1138
  %v1192 = vmul.f32 %v1107, %v1138
  %v1193 = vmul.f32 %v1108, %v1138
  %v1194 = vmul.f32 %v1109, %v1138
  %v1195 = vmul.f32 %v1110, %v1138
  %v1196 = vmul.f32 %v1111, %v1138
  %v1197 = vmul.f32 %v1112, %v1138
  %v1198 = vmul.f32 %v1113, %v1138
  %v1199 = vmul.f32 %v1114, %v1138
  %v1200 = vmul.f32 %v1115, %v1138
  %v1201 = vmul.f32 %v1116, %v1138
  %v1202 = vmul.f32 %v1117, %v1138
  %v1203 = vmul.f32 %v1118, %v1138
  %v1204 = vmul.f32 %v1119, %v1138
  %v1205 = vmul.f32 %v1120, %v1138
  %v1206 = vmul.f32 %v1121, %v1138
  %v1207 = vmul.f32 %v1122, %v1138
  %v1208 = vmul.f32 %v1123, %v1138
  %v1209 = vmul.f32 %v1124, %v1138
  %v1210 = vmul.f32 %v1125, %v1138
  %v1211 = vmul.f32 %v1126, %v1138
  %v1212 = vmul.f32 %v1127, %v1138
  %v1213 = vmul.f32 %v1128, %v1138
  %v1214 = vmul.f32 %v1129, %v1138
  %v1215 = vmul.f32 %v1130, %v1138
  %v1216 = vmul.f32 %v1131, %v1138
  %v1217 = vmul.f32 %v1132, %v1138
  %v1218 = vmul.f32 %v1133, %v1138
  %v1219 = vld [vmem:[%s2 + $0x2] sm:$0x1]
  %v1220 = vlaneseq
  %v1221 = vshrl.u32 %v1220, 7
  %v1222 = vsub.s32 0, %v1221
  %v1223 = vrot.slane %v1219, %v1222
  %v1224 = vadd.f32 %v1139, %v1223
  %v1225 = vadd.f32 %v1140, %v1223
  %v1226 = vadd.f32 %v1141, %v1223
  %v1227 = vadd.f32 %v1142, %v1223
  %v1228 = vadd.f32 %v1143, %v1223
  %v1229 = vadd.f32 %v1144, %v1223
  %v1230 = vadd.f32 %v1145, %v1223
  %v1231 = vadd.f32 %v1146, %v1223
  %v1232 = vadd.f32 %v1147, %v1223
  %v1233 = vadd.f32 %v1148, %v1223
  %v1234 = vadd.f32 %v1149, %v1223
  %v1235 = vadd.f32 %v1150, %v1223
  %v1236 = vadd.f32 %v1151, %v1223
  %v1237 = vadd.f32 %v1152, %v1223
  %v1238 = vadd.f32 %v1153, %v1223
  %v1239 = vadd.f32 %v1154, %v1223
  %v1240 = vadd.f32 %v1155, %v1223
  %v1241 = vadd.f32 %v1156, %v1223
  %v1242 = vadd.f32 %v1157, %v1223
  %v1243 = vadd.f32 %v1158, %v1223
  %v1244 = vadd.f32 %v1159, %v1223
  %v1245 = vadd.f32 %v1160, %v1223
  %v1246 = vadd.f32 %v1161, %v1223
  %v1247 = vadd.f32 %v1162, %v1223
  %v1248 = vadd.f32 %v1163, %v1223
  %v1249 = vadd.f32 %v1164, %v1223
  %v1250 = vadd.f32 %v1165, %v1223
  %v1251 = vadd.f32 %v1166, %v1223
  %v1252 = vadd.f32 %v1167, %v1223
  %v1253 = vadd.f32 %v1168, %v1223
  %v1254 = vadd.f32 %v1169, %v1223
  %v1255 = vadd.f32 %v1170, %v1223
  %v1256 = vadd.f32 %v1171, %v1223
  %v1257 = vadd.f32 %v1172, %v1223
  %v1258 = vadd.f32 %v1173, %v1223
  %v1259 = vadd.f32 %v1174, %v1223
  %v1260 = vadd.f32 %v1175, %v1223
  %v1261 = vadd.f32 %v1176, %v1223
  %v1262 = vadd.f32 %v1177, %v1223
  %v1263 = vadd.f32 %v1178, %v1223
  %v1264 = vadd.f32 %v1179, %v1223
  %v1265 = vadd.f32 %v1180, %v1223
  %v1266 = vadd.f32 %v1181, %v1223
  %v1267 = vadd.f32 %v1182, %v1223
  %v1268 = vadd.f32 %v1183, %v1223
  %v1269 = vadd.f32 %v1184, %v1223
  %v1270 = vadd.f32 %v1185, %v1223
  %v1271 = vadd.f32 %v1186, %v1223
  %v1272 = vadd.f32 %v1187, %v1223
  %v1273 = vadd.f32 %v1188, %v1223
  %v1274 = vadd.f32 %v1189, %v1223
  %v1275 = vadd.f32 %v1190, %v1223
  %v1276 = vadd.f32 %v1191, %v1223
  %v1277 = vadd.f32 %v1192, %v1223
  %v1278 = vadd.f32 %v1193, %v1223
  %v1279 = vadd.f32 %v1194, %v1223
  %v1280 = vadd.f32 %v1195, %v1223
  %v1281 = vadd.f32 %v1196, %v1223
  %v1282 = vadd.f32 %v1197, %v1223
  %v1283 = vadd.f32 %v1198, %v1223
  %v1284 = vadd.f32 %v1199, %v1223
  %v1285 = vadd.f32 %v1200, %v1223
  %v1286 = vadd.f32 %v1201, %v1223
  %v1287 = vadd.f32 %v1202, %v1223
  %v1288 = vadd.f32 %v1203, %v1223
  %v1289 = vadd.f32 %v1204, %v1223
  %v1290 = vadd.f32 %v1205, %v1223
  %v1291 = vadd.f32 %v1206, %v1223
  %v1292 = vadd.f32 %v1207, %v1223
  %v1293 = vadd.f32 %v1208, %v1223
  %v1294 = vadd.f32 %v1209, %v1223
  %v1295 = vadd.f32 %v1210, %v1223
  %v1296 = vadd.f32 %v1211, %v1223
  %v1297 = vadd.f32 %v1212, %v1223
  %v1298 = vadd.f32 %v1213, %v1223
  %v1299 = vadd.f32 %v1214, %v1223
  %v1300 = vadd.f32 %v1215, %v1223
  %v1301 = vadd.f32 %v1216, %v1223
  %v1302 = vadd.f32 %v1217, %v1223
  %v1303 = vadd.f32 %v1218, %v1223
  %v1304 = vpack.c.bf16 %v1225, %v1224
  %v1305 = vpack.c.bf16 %v1227, %v1226
  %v1306 = vpack.c.bf16 %v1229, %v1228
  %v1307 = vpack.c.bf16 %v1231, %v1230
  %v1308 = vpack.c.bf16 %v1233, %v1232
  %v1309 = vpack.c.bf16 %v1235, %v1234
  %v1310 = vpack.c.bf16 %v1237, %v1236
  %v1311 = vpack.c.bf16 %v1239, %v1238
  %v1312 = vpack.c.bf16 %v1241, %v1240
  %v1313 = vpack.c.bf16 %v1243, %v1242
  %v1314 = vpack.c.bf16 %v1245, %v1244
  %v1315 = vpack.c.bf16 %v1247, %v1246
  %v1316 = vpack.c.bf16 %v1249, %v1248
  %v1317 = vpack.c.bf16 %v1251, %v1250
  %v1318 = vpack.c.bf16 %v1253, %v1252
  %v1319 = vpack.c.bf16 %v1255, %v1254
  %v1320 = vpack.c.bf16 %v1257, %v1256
  %v1321 = vpack.c.bf16 %v1259, %v1258
  %v1322 = vpack.c.bf16 %v1261, %v1260
  %v1323 = vpack.c.bf16 %v1263, %v1262
  %v1324 = vpack.c.bf16 %v1265, %v1264
  %v1325 = vpack.c.bf16 %v1267, %v1266
  %v1326 = vpack.c.bf16 %v1269, %v1268
  %v1327 = vpack.c.bf16 %v1271, %v1270
  %v1328 = vpack.c.bf16 %v1273, %v1272
  %v1329 = vpack.c.bf16 %v1275, %v1274
  %v1330 = vpack.c.bf16 %v1277, %v1276
  %v1331 = vpack.c.bf16 %v1279, %v1278
  %v1332 = vpack.c.bf16 %v1281, %v1280
  %v1333 = vpack.c.bf16 %v1283, %v1282
  %v1334 = vpack.c.bf16 %v1285, %v1284
  %v1335 = vpack.c.bf16 %v1287, %v1286
  %v1336 = vpack.c.bf16 %v1289, %v1288
  %v1337 = vpack.c.bf16 %v1291, %v1290
  %v1338 = vpack.c.bf16 %v1293, %v1292
  %v1339 = vpack.c.bf16 %v1295, %v1294
  %v1340 = vpack.c.bf16 %v1297, %v1296
  %v1341 = vpack.c.bf16 %v1299, %v1298
  %v1342 = vpack.c.bf16 %v1301, %v1300
  %v1343 = vpack.c.bf16 %v1303, %v1302
  %v1344 = vld [vmem:[%s3] sm:$0xf]
  %v1345 = vld [vmem:[%s3 + $0x4] sm:$0xf]
  %v1346 = vld [vmem:[%s3 + $0x8] sm:$0xf]
  %v1347 = vld [vmem:[%s3 + $0xc] sm:$0xf]
  %v1348 = vld [vmem:[%s3 + $0x10] sm:$0xf]
  %v1349 = vld [vmem:[%s3 + $0x14] sm:$0xf]
  %v1350 = vld [vmem:[%s3 + $0x18] sm:$0xf]
  %v1351 = vld [vmem:[%s3 + $0x1c] sm:$0xf]
  %v1352 = vld [vmem:[%s3 + $0x20] sm:$0xf]
  %v1353 = vld [vmem:[%s3 + $0x24] sm:$0xf]
  %v1354 = vld [vmem:[%s3 + $0x28] sm:$0xf]
  %v1355 = vld [vmem:[%s3 + $0x2c] sm:$0xf]
  %v1356 = vld [vmem:[%s3 + $0x30] sm:$0xf]
  %v1357 = vld [vmem:[%s3 + $0x34] sm:$0xf]
  %v1358 = vld [vmem:[%s3 + $0x38] sm:$0xf]
  %v1359 = vld [vmem:[%s3 + $0x3c] sm:$0xf]
  %v1360 = vld [vmem:[%s4] sm:$0x1]
  %v1361 = vlaneseq
  %v1362 = vshrl.u32 %v1361, 7
  %v1363 = vsub.s32 0, %v1362
  %v1364 = vrot.slane %v1360, %v1363
  %v1381 = vunpack.c.l.b16 %v1344
  %v1382 = vunpack.c.l.b16 %v1345
  %v1383 = vunpack.c.l.b16 %v1346
  %v1384 = vunpack.c.l.b16 %v1347
  %v1385 = vunpack.c.l.b16 %v1348
  %v1386 = vunpack.c.l.b16 %v1349
  %v1387 = vunpack.c.l.b16 %v1350
  %v1388 = vunpack.c.l.b16 %v1351
  %v1389 = vunpack.c.l.b16 %v1352
  %v1390 = vunpack.c.l.b16 %v1353
  %v1391 = vunpack.c.l.b16 %v1354
  %v1392 = vunpack.c.l.b16 %v1355
  %v1393 = vunpack.c.l.b16 %v1356
  %v1394 = vunpack.c.l.b16 %v1357
  %v1395 = vunpack.c.l.b16 %v1358
  %v1396 = vunpack.c.l.b16 %v1359
  %v1397 = vpack.c.b16 %v1382, %v1381
  %v1398 = vpack.c.b16 %v1384, %v1383
  %v1399 = vpack.c.b16 %v1386, %v1385
  %v1400 = vpack.c.b16 %v1388, %v1387
  %v1401 = vpack.c.b16 %v1390, %v1389
  %v1402 = vpack.c.b16 %v1392, %v1391
  %v1403 = vpack.c.b16 %v1394, %v1393
  %v1404 = vpack.c.b16 %v1396, %v1395
  %1413 = vmatprep.subr.bf16.mxu0 0
  %1414 = vmatpush1.bf16.msra.mxu0 %v1397
  %1415 = vmatprep.subr.bf16.mxu0 0
  %1416 = vmatpush1.bf16.msra.mxu0 %v1398
  %1417 = vmatprep.subr.bf16.mxu0 0
  %1418 = vmatpush1.bf16.msra.mxu0 %v1399
  %1419 = vmatprep.subr.bf16.mxu0 0
  %1420 = vmatpush1.bf16.msra.mxu0 %v1400
  %1421 = vmatprep.subr.bf16.mxu0 0
  %1422 = vmatpush1.bf16.msra.mxu0 %v1401
  %1423 = vmatprep.subr.bf16.mxu0 0
  %1424 = vmatpush1.bf16.msra.mxu0 %v1402
  %1425 = vmatprep.subr.bf16.mxu0 0
  %1426 = vmatpush1.bf16.msra.mxu0 %v1403
  %1427 = vmatprep.subr.bf16.mxu0 0
  %1428 = vmatpush1.bf16.msra.mxu0 %v1404
  %1429 = vmatprep.subr.bf16.mxu0 0
  %1430 = vmatpush1.bf16.msra.mxu0 0
  %1431 = vmatprep.subr.bf16.mxu0 0
  %1432 = vmatpush1.bf16.msra.mxu0 0
  %1433 = vmatprep.subr.bf16.mxu0 0
  %1434 = vmatpush1.bf16.msra.mxu0 0
  %1435 = vmatprep.subr.bf16.mxu0 0
  %1436 = vmatpush1.bf16.msra.mxu0 0
  %1437 = vmatprep.subr.bf16.mxu0 0
  %1438 = vmatpush1.bf16.msra.mxu0 0
  %1439 = vmatprep.subr.bf16.mxu0 0
  %1440 = vmatpush1.bf16.msra.mxu0 0
  %1441 = vmatprep.subr.bf16.mxu0 0
  %1442 = vmatpush1.bf16.msra.mxu0 0
  %1443 = vmatprep.subr.bf16.mxu0 0
  %1444 = vmatpush1.bf16.msra.mxu0 0
  %1445 = vmatprep.mubr.bf16.mxu0 0
  %1446 = vmatmul.mubr.bf16.gmra.mrb[0].mxu0 %v1304
  %v1447 = vpop.f32.mrb[0].mxu0
  %v1448 = vadd.f32 %v1364, %v1447
  %v1449 = vpop.f32.mrb[0].mxu0
  %v1450 = vpop.f32.mrb[0].mxu0
  %v1451 = vadd.f32 %v1364, %v1450
  %v1452 = vpop.f32.mrb[0].mxu0
  %1453 = vmatprep.mubr.bf16.mxu0 0
  %1454 = vmatmul.mubr.bf16.gmra.mrb[0].mxu0 %v1305
  %v1455 = vpop.f32.mrb[0].mxu0
  %v1456 = vadd.f32 %v1364, %v1455
  %v1457 = vpop.f32.mrb[0].mxu0
  %v1458 = vpop.f32.mrb[0].mxu0
  %v1459 = vadd.f32 %v1364, %v1458
  %v1460 = vpop.f32.mrb[0].mxu0
  %1461 = vmatprep.mubr.bf16.mxu0 0
  %1462 = vmatmul.mubr.bf16.gmra.mrb[0].mxu0 %v1306
  %v1463 = vpop.f32.mrb[0].mxu0
  %v1464 = vadd.f32 %v1364, %v1463
  %v1465 = vpop.f32.mrb[0].mxu0
  %v1466 = vpop.f32.mrb[0].mxu0
  %v1467 = vadd.f32 %v1364, %v1466
  %v1468 = vpop.f32.mrb[0].mxu0
  %1469 = vmatprep.mubr.bf16.mxu0 0
  %1470 = vmatmul.mubr.bf16.gmra.mrb[0].mxu0 %v1307
  %v1471 = vpop.f32.mrb[0].mxu0
  %v1472 = vadd.f32 %v1364, %v1471
  %v1473 = vpop.f32.mrb[0].mxu0
  %v1474 = vpop.f32.mrb[0].mxu0
  %v1475 = vadd.f32 %v1364, %v1474
  %v1476 = vpop.f32.mrb[0].mxu0
  %1477 = vmatprep.mubr.bf16.mxu0 0
  %1478 = vmatmul.mubr.bf16.gmra.mrb[0].mxu0 %v1308
  %v1479 = vpop.f32.mrb[0].mxu0
  %v1480 = vadd.f32 %v1364, %v1479
  %v1481 = vpop.f32.mrb[0].mxu0
  %v1482 = vpop.f32.mrb[0].mxu0
  %v1483 = vadd.f32 %v1364, %v1482
  %v1484 = vpop.f32.mrb[0].mxu0
  %1485 = vmatprep.mubr.bf16.mxu0 0
  %1486 = vmatmul.mubr.bf16.gmra.mrb[0].mxu0 %v1309
  %v1487 = vpop.f32.mrb[0].mxu0
  %v1488 = vadd.f32 %v1364, %v1487
  %v1489 = vpop.f32.mrb[0].mxu0
  %v1490 = vpop.f32.mrb[0].mxu0
  %v1491 = vadd.f32 %v1364, %v1490
  %v1492 = vpop.f32.mrb[0].mxu0
  %1493 = vmatprep.mubr.bf16.mxu0 0
  %1494 = vmatmul.mubr.bf16.gmra.mrb[0].mxu0 %v1310
  %v1495 = vpop.f32.mrb[0].mxu0
  %v1496 = vadd.f32 %v1364, %v1495
  %v1497 = vpop.f32.mrb[0].mxu0
  %v1498 = vpop.f32.mrb[0].mxu0
  %v1499 = vadd.f32 %v1364, %v1498
  %v1500 = vpop.f32.mrb[0].mxu0
  %1501 = vmatprep.mubr.bf16.mxu0 0
  %1502 = vmatmul.mubr.bf16.gmra.mrb[0].mxu0 %v1311
  %v1503 = vpop.f32.mrb[0].mxu0
  %v1504 = vadd.f32 %v1364, %v1503
  %v1505 = vpop.f32.mrb[0].mxu0
  %v1506 = vpop.f32.mrb[0].mxu0
  %v1507 = vadd.f32 %v1364, %v1506
  %v1508 = vpop.f32.mrb[0].mxu0
  %1509 = vmatprep.mubr.bf16.mxu0 0
  %1510 = vmatmul.mubr.bf16.gmra.mrb[0].mxu0 %v1312
  %v1511 = vpop.f32.mrb[0].mxu0
  %v1512 = vadd.f32 %v1364, %v1511
  %v1513 = vpop.f32.mrb[0].mxu0
  %v1514 = vpop.f32.mrb[0].mxu0
  %v1515 = vadd.f32 %v1364, %v1514
  %v1516 = vpop.f32.mrb[0].mxu0
  %1517 = vmatprep.mubr.bf16.mxu0 0
  %1518 = vmatmul.mubr.bf16.gmra.mrb[0].mxu0 %v1313
  %v1519 = vpop.f32.mrb[0].mxu0
  %v1520 = vadd.f32 %v1364, %v1519
  %v1521 = vpop.f32.mrb[0].mxu0
  %v1522 = vpop.f32.mrb[0].mxu0
  %v1523 = vadd.f32 %v1364, %v1522
  %v1524 = vpop.f32.mrb[0].mxu0
  %1525 = vmatprep.mubr.bf16.mxu0 0
  %1526 = vmatmul.mubr.bf16.gmra.mrb[0].mxu0 %v1314
  %v1527 = vpop.f32.mrb[0].mxu0
  %v1528 = vadd.f32 %v1364, %v1527
  %v1529 = vpop.f32.mrb[0].mxu0
  %v1530 = vpop.f32.mrb[0].mxu0
  %v1531 = vadd.f32 %v1364, %v1530
  %v1532 = vpop.f32.mrb[0].mxu0
  %1533 = vmatprep.mubr.bf16.mxu0 0
  %1534 = vmatmul.mubr.bf16.gmra.mrb[0].mxu0 %v1315
  %v1535 = vpop.f32.mrb[0].mxu0
  %v1536 = vadd.f32 %v1364, %v1535
  %v1537 = vpop.f32.mrb[0].mxu0
  %v1538 = vpop.f32.mrb[0].mxu0
  %v1539 = vadd.f32 %v1364, %v1538
  %v1540 = vpop.f32.mrb[0].mxu0
  %1541 = vmatprep.mubr.bf16.mxu0 0
  %1542 = vmatmul.mubr.bf16.gmra.mrb[0].mxu0 %v1316
  %v1543 = vpop.f32.mrb[0].mxu0
  %v1544 = vadd.f32 %v1364, %v1543
  %v1545 = vpop.f32.mrb[0].mxu0
  %v1546 = vpop.f32.mrb[0].mxu0
  %v1547 = vadd.f32 %v1364, %v1546
  %v1548 = vpop.f32.mrb[0].mxu0
  %1549 = vmatprep.mubr.bf16.mxu0 0
  %1550 = vmatmul.mubr.bf16.gmra.mrb[0].mxu0 %v1317
  %v1551 = vpop.f32.mrb[0].mxu0
  %v1552 = vadd.f32 %v1364, %v1551
  %v1553 = vpop.f32.mrb[0].mxu0
  %v1554 = vpop.f32.mrb[0].mxu0
  %v1555 = vadd.f32 %v1364, %v1554
  %v1556 = vpop.f32.mrb[0].mxu0
  %1557 = vmatprep.mubr.bf16.mxu0 0
  %1558 = vmatmul.mubr.bf16.gmra.mrb[0].mxu0 %v1318
  %v1559 = vpop.f32.mrb[0].mxu0
  %v1560 = vadd.f32 %v1364, %v1559
  %v1561 = vpop.f32.mrb[0].mxu0
  %v1562 = vpop.f32.mrb[0].mxu0
  %v1563 = vadd.f32 %v1364, %v1562
  %v1564 = vpop.f32.mrb[0].mxu0
  %1565 = vmatprep.mubr.bf16.mxu0 0
  %1566 = vmatmul.mubr.bf16.gmra.mrb[0].mxu0 %v1319
  %v1567 = vpop.f32.mrb[0].mxu0
  %v1568 = vadd.f32 %v1364, %v1567
  %v1569 = vpop.f32.mrb[0].mxu0
  %v1570 = vpop.f32.mrb[0].mxu0
  %v1571 = vadd.f32 %v1364, %v1570
  %v1572 = vpop.f32.mrb[0].mxu0
  %1573 = vmatprep.mubr.bf16.mxu0 0
  %1574 = vmatmul.mubr.bf16.gmra.mrb[0].mxu0 %v1320
  %v1575 = vpop.f32.mrb[0].mxu0
  %v1576 = vadd.f32 %v1364, %v1575
  %v1577 = vpop.f32.mrb[0].mxu0
  %v1578 = vpop.f32.mrb[0].mxu0
  %v1579 = vadd.f32 %v1364, %v1578
  %v1580 = vpop.f32.mrb[0].mxu0
  %1581 = vmatprep.mubr.bf16.mxu0 0
  %1582 = vmatmul.mubr.bf16.gmra.mrb[0].mxu0 %v1321
  %v1583 = vpop.f32.mrb[0].mxu0
  %v1584 = vadd.f32 %v1364, %v1583
  %v1585 = vpop.f32.mrb[0].mxu0
  %v1586 = vpop.f32.mrb[0].mxu0
  %v1587 = vadd.f32 %v1364, %v1586
  %v1588 = vpop.f32.mrb[0].mxu0
  %1589 = vmatprep.mubr.bf16.mxu0 0
  %1590 = vmatmul.mubr.bf16.gmra.mrb[0].mxu0 %v1322
  %v1591 = vpop.f32.mrb[0].mxu0
  %v1592 = vadd.f32 %v1364, %v1591
  %v1593 = vpop.f32.mrb[0].mxu0
  %v1594 = vpop.f32.mrb[0].mxu0
  %v1595 = vadd.f32 %v1364, %v1594
  %v1596 = vpop.f32.mrb[0].mxu0
  %1597 = vmatprep.mubr.bf16.mxu0 0
  %1598 = vmatmul.mubr.bf16.gmra.mrb[0].mxu0 %v1323
  %v1599 = vpop.f32.mrb[0].mxu0
  %v1600 = vadd.f32 %v1364, %v1599
  %v1601 = vpop.f32.mrb[0].mxu0
  %v1602 = vpop.f32.mrb[0].mxu0
  %v1603 = vadd.f32 %v1364, %v1602
  %v1604 = vpop.f32.mrb[0].mxu0
  %1605 = vmatprep.mubr.bf16.mxu0 0
  %1606 = vmatmul.mubr.bf16.gmra.mrb[0].mxu0 %v1324
  %v1607 = vpop.f32.mrb[0].mxu0
  %v1608 = vadd.f32 %v1364, %v1607
  %v1609 = vpop.f32.mrb[0].mxu0
  %v1610 = vpop.f32.mrb[0].mxu0
  %v1611 = vadd.f32 %v1364, %v1610
  %v1612 = vpop.f32.mrb[0].mxu0
  %1613 = vmatprep.mubr.bf16.mxu0 0
  %1614 = vmatmul.mubr.bf16.gmra.mrb[0].mxu0 %v1325
  %v1615 = vpop.f32.mrb[0].mxu0
  %v1616 = vadd.f32 %v1364, %v1615
  %v1617 = vpop.f32.mrb[0].mxu0
  %v1618 = vpop.f32.mrb[0].mxu0
  %v1619 = vadd.f32 %v1364, %v1618
  %v1620 = vpop.f32.mrb[0].mxu0
  %1621 = vmatprep.mubr.bf16.mxu0 0
  %1622 = vmatmul.mubr.bf16.gmra.mrb[0].mxu0 %v1326
  %v1623 = vpop.f32.mrb[0].mxu0
  %v1624 = vadd.f32 %v1364, %v1623
  %v1625 = vpop.f32.mrb[0].mxu0
  %v1626 = vpop.f32.mrb[0].mxu0
  %v1627 = vadd.f32 %v1364, %v1626
  %v1628 = vpop.f32.mrb[0].mxu0
  %1629 = vmatprep.mubr.bf16.mxu0 0
  %1630 = vmatmul.mubr.bf16.gmra.mrb[0].mxu0 %v1327
  %v1631 = vpop.f32.mrb[0].mxu0
  %v1632 = vadd.f32 %v1364, %v1631
  %v1633 = vpop.f32.mrb[0].mxu0
  %v1634 = vpop.f32.mrb[0].mxu0
  %v1635 = vadd.f32 %v1364, %v1634
  %v1636 = vpop.f32.mrb[0].mxu0
  %1637 = vmatprep.mubr.bf16.mxu0 0
  %1638 = vmatmul.mubr.bf16.gmra.mrb[0].mxu0 %v1328
  %v1639 = vpop.f32.mrb[0].mxu0
  %v1640 = vadd.f32 %v1364, %v1639
  %v1641 = vpop.f32.mrb[0].mxu0
  %v1642 = vpop.f32.mrb[0].mxu0
  %v1643 = vadd.f32 %v1364, %v1642
  %v1644 = vpop.f32.mrb[0].mxu0
  %1645 = vmatprep.mubr.bf16.mxu0 0
  %1646 = vmatmul.mubr.bf16.gmra.mrb[0].mxu0 %v1329
  %v1647 = vpop.f32.mrb[0].mxu0
  %v1648 = vadd.f32 %v1364, %v1647
  %v1649 = vpop.f32.mrb[0].mxu0
  %v1650 = vpop.f32.mrb[0].mxu0
  %v1651 = vadd.f32 %v1364, %v1650
  %v1652 = vpop.f32.mrb[0].mxu0
  %1653 = vmatprep.mubr.bf16.mxu0 0
  %1654 = vmatmul.mubr.bf16.gmra.mrb[0].mxu0 %v1330
  %v1655 = vpop.f32.mrb[0].mxu0
  %v1656 = vadd.f32 %v1364, %v1655
  %v1657 = vpop.f32.mrb[0].mxu0
  %v1658 = vpop.f32.mrb[0].mxu0
  %v1659 = vadd.f32 %v1364, %v1658
  %v1660 = vpop.f32.mrb[0].mxu0
  %1661 = vmatprep.mubr.bf16.mxu0 0
  %1662 = vmatmul.mubr.bf16.gmra.mrb[0].mxu0 %v1331
  %v1663 = vpop.f32.mrb[0].mxu0
  %v1664 = vadd.f32 %v1364, %v1663
  %v1665 = vpop.f32.mrb[0].mxu0
  %v1666 = vpop.f32.mrb[0].mxu0
  %v1667 = vadd.f32 %v1364, %v1666
  %v1668 = vpop.f32.mrb[0].mxu0
  %1669 = vmatprep.mubr.bf16.mxu0 0
  %1670 = vmatmul.mubr.bf16.gmra.mrb[0].mxu0 %v1332
  %v1671 = vpop.f32.mrb[0].mxu0
  %v1672 = vadd.f32 %v1364, %v1671
  %v1673 = vpop.f32.mrb[0].mxu0
  %v1674 = vpop.f32.mrb[0].mxu0
  %v1675 = vadd.f32 %v1364, %v1674
  %v1676 = vpop.f32.mrb[0].mxu0
  %1677 = vmatprep.mubr.bf16.mxu0 0
  %1678 = vmatmul.mubr.bf16.gmra.mrb[0].mxu0 %v1333
  %v1679 = vpop.f32.mrb[0].mxu0
  %v1680 = vadd.f32 %v1364, %v1679
  %v1681 = vpop.f32.mrb[0].mxu0
  %v1682 = vpop.f32.mrb[0].mxu0
  %v1683 = vadd.f32 %v1364, %v1682
  %v1684 = vpop.f32.mrb[0].mxu0
  %1685 = vmatprep.mubr.bf16.mxu0 0
  %1686 = vmatmul.mubr.bf16.gmra.mrb[0].mxu0 %v1334
  %v1687 = vpop.f32.mrb[0].mxu0
  %v1688 = vadd.f32 %v1364, %v1687
  %v1689 = vpop.f32.mrb[0].mxu0
  %v1690 = vpop.f32.mrb[0].mxu0
  %v1691 = vadd.f32 %v1364, %v1690
  %v1692 = vpop.f32.mrb[0].mxu0
  %1693 = vmatprep.mubr.bf16.mxu0 0
  %1694 = vmatmul.mubr.bf16.gmra.mrb[0].mxu0 %v1335
  %v1695 = vpop.f32.mrb[0].mxu0
  %v1696 = vadd.f32 %v1364, %v1695
  %v1697 = vpop.f32.mrb[0].mxu0
  %v1698 = vpop.f32.mrb[0].mxu0
  %v1699 = vadd.f32 %v1364, %v1698
  %v1700 = vpop.f32.mrb[0].mxu0
  %1701 = vmatprep.mubr.bf16.mxu0 0
  %1702 = vmatmul.mubr.bf16.gmra.mrb[0].mxu0 %v1336
  %v1703 = vpop.f32.mrb[0].mxu0
  %v1704 = vadd.f32 %v1364, %v1703
  %v1705 = vpop.f32.mrb[0].mxu0
  %v1706 = vpop.f32.mrb[0].mxu0
  %v1707 = vadd.f32 %v1364, %v1706
  %v1708 = vpop.f32.mrb[0].mxu0
  %1709 = vmatprep.mubr.bf16.mxu0 0
  %1710 = vmatmul.mubr.bf16.gmra.mrb[0].mxu0 %v1337
  %v1711 = vpop.f32.mrb[0].mxu0
  %v1712 = vadd.f32 %v1364, %v1711
  %v1713 = vpop.f32.mrb[0].mxu0
  %v1714 = vpop.f32.mrb[0].mxu0
  %v1715 = vadd.f32 %v1364, %v1714
  %v1716 = vpop.f32.mrb[0].mxu0
  %1717 = vmatprep.mubr.bf16.mxu0 0
  %1718 = vmatmul.mubr.bf16.gmra.mrb[0].mxu0 %v1338
  %v1719 = vpop.f32.mrb[0].mxu0
  %v1720 = vadd.f32 %v1364, %v1719
  %v1721 = vpop.f32.mrb[0].mxu0
  %v1722 = vpop.f32.mrb[0].mxu0
  %v1723 = vadd.f32 %v1364, %v1722
  %v1724 = vpop.f32.mrb[0].mxu0
  %1725 = vmatprep.mubr.bf16.mxu0 0
  %1726 = vmatmul.mubr.bf16.gmra.mrb[0].mxu0 %v1339
  %v1727 = vpop.f32.mrb[0].mxu0
  %v1728 = vadd.f32 %v1364, %v1727
  %v1729 = vpop.f32.mrb[0].mxu0
  %v1730 = vpop.f32.mrb[0].mxu0
  %v1731 = vadd.f32 %v1364, %v1730
  %v1732 = vpop.f32.mrb[0].mxu0
  %1733 = vmatprep.mubr.bf16.mxu0 0
  %1734 = vmatmul.mubr.bf16.gmra.mrb[0].mxu0 %v1340
  %v1735 = vpop.f32.mrb[0].mxu0
  %v1736 = vadd.f32 %v1364, %v1735
  %v1737 = vpop.f32.mrb[0].mxu0
  %v1738 = vpop.f32.mrb[0].mxu0
  %v1739 = vadd.f32 %v1364, %v1738
  %v1740 = vpop.f32.mrb[0].mxu0
  %1741 = vmatprep.mubr.bf16.mxu0 0
  %1742 = vmatmul.mubr.bf16.gmra.mrb[0].mxu0 %v1341
  %v1743 = vpop.f32.mrb[0].mxu0
  %v1744 = vadd.f32 %v1364, %v1743
  %v1745 = vpop.f32.mrb[0].mxu0
  %v1746 = vpop.f32.mrb[0].mxu0
  %v1747 = vadd.f32 %v1364, %v1746
  %v1748 = vpop.f32.mrb[0].mxu0
  %1749 = vmatprep.mubr.bf16.mxu0 0
  %1750 = vmatmul.mubr.bf16.gmra.mrb[0].mxu0 %v1342
  %v1751 = vpop.f32.mrb[0].mxu0
  %v1752 = vadd.f32 %v1364, %v1751
  %v1753 = vpop.f32.mrb[0].mxu0
  %v1754 = vpop.f32.mrb[0].mxu0
  %v1755 = vadd.f32 %v1364, %v1754
  %v1756 = vpop.f32.mrb[0].mxu0
  %1757 = vmatprep.mubr.bf16.mxu0 0
  %1758 = vmatmul.mubr.bf16.gmra.mrb[0].mxu0 %v1343
  %v1759 = vpop.f32.mrb[0].mxu0
  %v1760 = vadd.f32 %v1364, %v1759
  %v1761 = vpop.f32.mrb[0].mxu0
  %v1762 = vpop.f32.mrb[0].mxu0
  %v1763 = vadd.f32 %v1364, %v1762
  %v1764 = vpop.f32.mrb[0].mxu0
  %1765 = vdwg.mxu0
  %v1766 = vmax.f32 %v1448, 0.0
  %v1767 = vmax.f32 %v1451, 0.0
  %v1768 = vmax.f32 %v1456, 0.0
  %v1769 = vmax.f32 %v1459, 0.0
  %v1770 = vmax.f32 %v1464, 0.0
  %v1771 = vmax.f32 %v1467, 0.0
  %v1772 = vmax.f32 %v1472, 0.0
  %v1773 = vmax.f32 %v1475, 0.0
  %v1774 = vmax.f32 %v1480, 0.0
  %v1775 = vmax.f32 %v1483, 0.0
  %v1776 = vmax.f32 %v1488, 0.0
  %v1777 = vmax.f32 %v1491, 0.0
  %v1778 = vmax.f32 %v1496, 0.0
  %v1779 = vmax.f32 %v1499, 0.0
  %v1780 = vmax.f32 %v1504, 0.0
  %v1781 = vmax.f32 %v1507, 0.0
  %v1782 = vmax.f32 %v1512, 0.0
  %v1783 = vmax.f32 %v1515, 0.0
  %v1784 = vmax.f32 %v1520, 0.0
  %v1785 = vmax.f32 %v1523, 0.0
  %v1786 = vmax.f32 %v1528, 0.0
  %v1787 = vmax.f32 %v1531, 0.0
  %v1788 = vmax.f32 %v1536, 0.0
  %v1789 = vmax.f32 %v1539, 0.0
  %v1790 = vmax.f32 %v1544, 0.0
  %v1791 = vmax.f32 %v1547, 0.0
  %v1792 = vmax.f32 %v1552, 0.0
  %v1793 = vmax.f32 %v1555, 0.0
  %v1794 = vmax.f32 %v1560, 0.0
  %v1795 = vmax.f32 %v1563, 0.0
  %v1796 = vmax.f32 %v1568, 0.0
  %v1797 = vmax.f32 %v1571, 0.0
  %v1798 = vmax.f32 %v1576, 0.0
  %v1799 = vmax.f32 %v1579, 0.0
  %v1800 = vmax.f32 %v1584, 0.0
  %v1801 = vmax.f32 %v1587, 0.0
  %v1802 = vmax.f32 %v1592, 0.0
  %v1803 = vmax.f32 %v1595, 0.0
  %v1804 = vmax.f32 %v1600, 0.0
  %v1805 = vmax.f32 %v1603, 0.0
  %v1806 = vmax.f32 %v1608, 0.0
  %v1807 = vmax.f32 %v1611, 0.0
  %v1808 = vmax.f32 %v1616, 0.0
  %v1809 = vmax.f32 %v1619, 0.0
  %v1810 = vmax.f32 %v1624, 0.0
  %v1811 = vmax.f32 %v1627, 0.0
  %v1812 = vmax.f32 %v1632, 0.0
  %v1813 = vmax.f32 %v1635, 0.0
  %v1814 = vmax.f32 %v1640, 0.0
  %v1815 = vmax.f32 %v1643, 0.0
  %v1816 = vmax.f32 %v1648, 0.0
  %v1817 = vmax.f32 %v1651, 0.0
  %v1818 = vmax.f32 %v1656, 0.0
  %v1819 = vmax.f32 %v1659, 0.0
  %v1820 = vmax.f32 %v1664, 0.0
  %v1821 = vmax.f32 %v1667, 0.0
  %v1822 = vmax.f32 %v1672, 0.0
  %v1823 = vmax.f32 %v1675, 0.0
  %v1824 = vmax.f32 %v1680, 0.0
  %v1825 = vmax.f32 %v1683, 0.0
  %v1826 = vmax.f32 %v1688, 0.0
  %v1827 = vmax.f32 %v1691, 0.0
  %v1828 = vmax.f32 %v1696, 0.0
  %v1829 = vmax.f32 %v1699, 0.0
  %v1830 = vmax.f32 %v1704, 0.0
  %v1831 = vmax.f32 %v1707, 0.0
  %v1832 = vmax.f32 %v1712, 0.0
  %v1833 = vmax.f32 %v1715, 0.0
  %v1834 = vmax.f32 %v1720, 0.0
  %v1835 = vmax.f32 %v1723, 0.0
  %v1836 = vmax.f32 %v1728, 0.0
  %v1837 = vmax.f32 %v1731, 0.0
  %v1838 = vmax.f32 %v1736, 0.0
  %v1839 = vmax.f32 %v1739, 0.0
  %v1840 = vmax.f32 %v1744, 0.0
  %v1841 = vmax.f32 %v1747, 0.0
  %v1842 = vmax.f32 %v1752, 0.0
  %v1843 = vmax.f32 %v1755, 0.0
  %v1844 = vmax.f32 %v1760, 0.0
  %v1845 = vmax.f32 %v1763, 0.0
  %v1846 = vld [vmem:[%s4 + $0x1] sm:$0x1]
  %v1847 = vlaneseq
  %v1848 = vshrl.u32 %v1847, 7
  %v1849 = vsub.s32 0, %v1848
  %v1850 = vrot.slane %v1846, %v1849
  %v1851 = vmul.f32 %v1766, %v1850
  %v1852 = vmul.f32 %v1767, %v1850
  %v1853 = vmul.f32 %v1768, %v1850
  %v1854 = vmul.f32 %v1769, %v1850
  %v1855 = vmul.f32 %v1770, %v1850
  %v1856 = vmul.f32 %v1771, %v1850
  %v1857 = vmul.f32 %v1772, %v1850
  %v1858 = vmul.f32 %v1773, %v1850
  %v1859 = vmul.f32 %v1774, %v1850
  %v1860 = vmul.f32 %v1775, %v1850
  %v1861 = vmul.f32 %v1776, %v1850
  %v1862 = vmul.f32 %v1777, %v1850
  %v1863 = vmul.f32 %v1778, %v1850
  %v1864 = vmul.f32 %v1779, %v1850
  %v1865 = vmul.f32 %v1780, %v1850
  %v1866 = vmul.f32 %v1781, %v1850
  %v1867 = vmul.f32 %v1782, %v1850
  %v1868 = vmul.f32 %v1783, %v1850
  %v1869 = vmul.f32 %v1784, %v1850
  %v1870 = vmul.f32 %v1785, %v1850
  %v1871 = vmul.f32 %v1786, %v1850
  %v1872 = vmul.f32 %v1787, %v1850
  %v1873 = vmul.f32 %v1788, %v1850
  %v1874 = vmul.f32 %v1789, %v1850
  %v1875 = vmul.f32 %v1790, %v1850
  %v1876 = vmul.f32 %v1791, %v1850
  %v1877 = vmul.f32 %v1792, %v1850
  %v1878 = vmul.f32 %v1793, %v1850
  %v1879 = vmul.f32 %v1794, %v1850
  %v1880 = vmul.f32 %v1795, %v1850
  %v1881 = vmul.f32 %v1796, %v1850
  %v1882 = vmul.f32 %v1797, %v1850
  %v1883 = vmul.f32 %v1798, %v1850
  %v1884 = vmul.f32 %v1799, %v1850
  %v1885 = vmul.f32 %v1800, %v1850
  %v1886 = vmul.f32 %v1801, %v1850
  %v1887 = vmul.f32 %v1802, %v1850
  %v1888 = vmul.f32 %v1803, %v1850
  %v1889 = vmul.f32 %v1804, %v1850
  %v1890 = vmul.f32 %v1805, %v1850
  %v1891 = vmul.f32 %v1806, %v1850
  %v1892 = vmul.f32 %v1807, %v1850
  %v1893 = vmul.f32 %v1808, %v1850
  %v1894 = vmul.f32 %v1809, %v1850
  %v1895 = vmul.f32 %v1810, %v1850
  %v1896 = vmul.f32 %v1811, %v1850
  %v1897 = vmul.f32 %v1812, %v1850
  %v1898 = vmul.f32 %v1813, %v1850
  %v1899 = vmul.f32 %v1814, %v1850
  %v1900 = vmul.f32 %v1815, %v1850
  %v1901 = vmul.f32 %v1816, %v1850
  %v1902 = vmul.f32 %v1817, %v1850
  %v1903 = vmul.f32 %v1818, %v1850
  %v1904 = vmul.f32 %v1819, %v1850
  %v1905 = vmul.f32 %v1820, %v1850
  %v1906 = vmul.f32 %v1821, %v1850
  %v1907 = vmul.f32 %v1822, %v1850
  %v1908 = vmul.f32 %v1823, %v1850
  %v1909 = vmul.f32 %v1824, %v1850
  %v1910 = vmul.f32 %v1825, %v1850
  %v1911 = vmul.f32 %v1826, %v1850
  %v1912 = vmul.f32 %v1827, %v1850
  %v1913 = vmul.f32 %v1828, %v1850
  %v1914 = vmul.f32 %v1829, %v1850
  %v1915 = vmul.f32 %v1830, %v1850
  %v1916 = vmul.f32 %v1831, %v1850
  %v1917 = vmul.f32 %v1832, %v1850
  %v1918 = vmul.f32 %v1833, %v1850
  %v1919 = vmul.f32 %v1834, %v1850
  %v1920 = vmul.f32 %v1835, %v1850
  %v1921 = vmul.f32 %v1836, %v1850
  %v1922 = vmul.f32 %v1837, %v1850
  %v1923 = vmul.f32 %v1838, %v1850
  %v1924 = vmul.f32 %v1839, %v1850
  %v1925 = vmul.f32 %v1840, %v1850
  %v1926 = vmul.f32 %v1841, %v1850
  %v1927 = vmul.f32 %v1842, %v1850
  %v1928 = vmul.f32 %v1843, %v1850
  %v1929 = vmul.f32 %v1844, %v1850
  %v1930 = vmul.f32 %v1845, %v1850
  %v1931 = vld [vmem:[%s4 + $0x2] sm:$0x1]
  %v1932 = vlaneseq
  %v1933 = vshrl.u32 %v1932, 7
  %v1934 = vsub.s32 0, %v1933
  %v1935 = vrot.slane %v1931, %v1934
  %v1936 = vadd.f32 %v1851, %v1935
  %v1937 = vadd.f32 %v1852, %v1935
  %v1938 = vadd.f32 %v1853, %v1935
  %v1939 = vadd.f32 %v1854, %v1935
  %v1940 = vadd.f32 %v1855, %v1935
  %v1941 = vadd.f32 %v1856, %v1935
  %v1942 = vadd.f32 %v1857, %v1935
  %v1943 = vadd.f32 %v1858, %v1935
  %v1944 = vadd.f32 %v1859, %v1935
  %v1945 = vadd.f32 %v1860, %v1935
  %v1946 = vadd.f32 %v1861, %v1935
  %v1947 = vadd.f32 %v1862, %v1935
  %v1948 = vadd.f32 %v1863, %v1935
  %v1949 = vadd.f32 %v1864, %v1935
  %v1950 = vadd.f32 %v1865, %v1935
  %v1951 = vadd.f32 %v1866, %v1935
  %v1952 = vadd.f32 %v1867, %v1935
  %v1953 = vadd.f32 %v1868, %v1935
  %v1954 = vadd.f32 %v1869, %v1935
  %v1955 = vadd.f32 %v1870, %v1935
  %v1956 = vadd.f32 %v1871, %v1935
  %v1957 = vadd.f32 %v1872, %v1935
  %v1958 = vadd.f32 %v1873, %v1935
  %v1959 = vadd.f32 %v1874, %v1935
  %v1960 = vadd.f32 %v1875, %v1935
  %v1961 = vadd.f32 %v1876, %v1935
  %v1962 = vadd.f32 %v1877, %v1935
  %v1963 = vadd.f32 %v1878, %v1935
  %v1964 = vadd.f32 %v1879, %v1935
  %v1965 = vadd.f32 %v1880, %v1935
  %v1966 = vadd.f32 %v1881, %v1935
  %v1967 = vadd.f32 %v1882, %v1935
  %v1968 = vadd.f32 %v1883, %v1935
  %v1969 = vadd.f32 %v1884, %v1935
  %v1970 = vadd.f32 %v1885, %v1935
  %v1971 = vadd.f32 %v1886, %v1935
  %v1972 = vadd.f32 %v1887, %v1935
  %v1973 = vadd.f32 %v1888, %v1935
  %v1974 = vadd.f32 %v1889, %v1935
  %v1975 = vadd.f32 %v1890, %v1935
  %v1976 = vadd.f32 %v1891, %v1935
  %v1977 = vadd.f32 %v1892, %v1935
  %v1978 = vadd.f32 %v1893, %v1935
  %v1979 = vadd.f32 %v1894, %v1935
  %v1980 = vadd.f32 %v1895, %v1935
  %v1981 = vadd.f32 %v1896, %v1935
  %v1982 = vadd.f32 %v1897, %v1935
  %v1983 = vadd.f32 %v1898, %v1935
  %v1984 = vadd.f32 %v1899, %v1935
  %v1985 = vadd.f32 %v1900, %v1935
  %v1986 = vadd.f32 %v1901, %v1935
  %v1987 = vadd.f32 %v1902, %v1935
  %v1988 = vadd.f32 %v1903, %v1935
  %v1989 = vadd.f32 %v1904, %v1935
  %v1990 = vadd.f32 %v1905, %v1935
  %v1991 = vadd.f32 %v1906, %v1935
  %v1992 = vadd.f32 %v1907, %v1935
  %v1993 = vadd.f32 %v1908, %v1935
  %v1994 = vadd.f32 %v1909, %v1935
  %v1995 = vadd.f32 %v1910, %v1935
  %v1996 = vadd.f32 %v1911, %v1935
  %v1997 = vadd.f32 %v1912, %v1935
  %v1998 = vadd.f32 %v1913, %v1935
  %v1999 = vadd.f32 %v1914, %v1935
  %v2000 = vadd.f32 %v1915, %v1935
  %v2001 = vadd.f32 %v1916, %v1935
  %v2002 = vadd.f32 %v1917, %v1935
  %v2003 = vadd.f32 %v1918, %v1935
  %v2004 = vadd.f32 %v1919, %v1935
  %v2005 = vadd.f32 %v1920, %v1935
  %v2006 = vadd.f32 %v1921, %v1935
  %v2007 = vadd.f32 %v1922, %v1935
  %v2008 = vadd.f32 %v1923, %v1935
  %v2009 = vadd.f32 %v1924, %v1935
  %v2010 = vadd.f32 %v1925, %v1935
  %v2011 = vadd.f32 %v1926, %v1935
  %v2012 = vadd.f32 %v1927, %v1935
  %v2013 = vadd.f32 %v1928, %v1935
  %v2014 = vadd.f32 %v1929, %v1935
  %v2015 = vadd.f32 %v1930, %v1935
  %v2016 = vpack.c.bf16 %v1937, %v1936
  %v2017 = vpack.c.bf16 %v1939, %v1938
  %v2018 = vpack.c.bf16 %v1941, %v1940
  %v2019 = vpack.c.bf16 %v1943, %v1942
  %v2020 = vpack.c.bf16 %v1945, %v1944
  %v2021 = vpack.c.bf16 %v1947, %v1946
  %v2022 = vpack.c.bf16 %v1949, %v1948
  %v2023 = vpack.c.bf16 %v1951, %v1950
  %v2024 = vpack.c.bf16 %v1953, %v1952
  %v2025 = vpack.c.bf16 %v1955, %v1954
  %v2026 = vpack.c.bf16 %v1957, %v1956
  %v2027 = vpack.c.bf16 %v1959, %v1958
  %v2028 = vpack.c.bf16 %v1961, %v1960
  %v2029 = vpack.c.bf16 %v1963, %v1962
  %v2030 = vpack.c.bf16 %v1965, %v1964
  %v2031 = vpack.c.bf16 %v1967, %v1966
  %v2032 = vpack.c.bf16 %v1969, %v1968
  %v2033 = vpack.c.bf16 %v1971, %v1970
  %v2034 = vpack.c.bf16 %v1973, %v1972
  %v2035 = vpack.c.bf16 %v1975, %v1974
  %v2036 = vpack.c.bf16 %v1977, %v1976
  %v2037 = vpack.c.bf16 %v1979, %v1978
  %v2038 = vpack.c.bf16 %v1981, %v1980
  %v2039 = vpack.c.bf16 %v1983, %v1982
  %v2040 = vpack.c.bf16 %v1985, %v1984
  %v2041 = vpack.c.bf16 %v1987, %v1986
  %v2042 = vpack.c.bf16 %v1989, %v1988
  %v2043 = vpack.c.bf16 %v1991, %v1990
  %v2044 = vpack.c.bf16 %v1993, %v1992
  %v2045 = vpack.c.bf16 %v1995, %v1994
  %v2046 = vpack.c.bf16 %v1997, %v1996
  %v2047 = vpack.c.bf16 %v1999, %v1998
  %v2048 = vpack.c.bf16 %v2001, %v2000
  %v2049 = vpack.c.bf16 %v2003, %v2002
  %v2050 = vpack.c.bf16 %v2005, %v2004
  %v2051 = vpack.c.bf16 %v2007, %v2006
  %v2052 = vpack.c.bf16 %v2009, %v2008
  %v2053 = vpack.c.bf16 %v2011, %v2010
  %v2054 = vpack.c.bf16 %v2013, %v2012
  %v2055 = vpack.c.bf16 %v2015, %v2014
  %v2056 = vld [vmem:[%s5] sm:$0xf]
  %v2057 = vld [vmem:[%s5 + $0x4] sm:$0xf]
  %v2058 = vld [vmem:[%s5 + $0x8] sm:$0xf]
  %v2059 = vld [vmem:[%s5 + $0xc] sm:$0xf]
  %v2060 = vld [vmem:[%s5 + $0x10] sm:$0xf]
  %v2061 = vld [vmem:[%s5 + $0x14] sm:$0xf]
  %v2062 = vld [vmem:[%s5 + $0x18] sm:$0xf]
  %v2063 = vld [vmem:[%s5 + $0x1c] sm:$0xf]
  %v2064 = vld [vmem:[%s6] sm:$0x1]
  %v2066 = vlaneseq
  %v2067 = vshrl.u32 %v2066, 7
  %v2068 = vsub.s32 0, %v2067
  %v2069 = vrot.slane %v2064, %v2068
  %v2079 = vunpack.c.l.b16 %v2056
  %v2080 = vunpack.c.l.b16 %v2057
  %v2081 = vunpack.c.l.b16 %v2058
  %v2082 = vunpack.c.l.b16 %v2059
  %v2083 = vunpack.c.l.b16 %v2060
  %v2084 = vunpack.c.l.b16 %v2061
  %v2085 = vunpack.c.l.b16 %v2062
  %v2086 = vunpack.c.l.b16 %v2063
  %v2087 = vpack.c.b16 %v2080, %v2079
  %v2088 = vpack.c.b16 %v2082, %v2081
  %v2089 = vpack.c.b16 %v2084, %v2083
  %v2090 = vpack.c.b16 %v2086, %v2085
  %v2096 = vsel %vm580, %v2016, 0
  %v2099 = vsel %vm580, %v2017, 0
  %v2102 = vsel %vm580, %v2018, 0
  %v2105 = vsel %vm580, %v2019, 0
  %v2108 = vsel %vm580, %v2020, 0
  %v2111 = vsel %vm580, %v2021, 0
  %v2114 = vsel %vm580, %v2022, 0
  %v2117 = vsel %vm580, %v2023, 0
  %v2120 = vsel %vm580, %v2024, 0
  %v2123 = vsel %vm580, %v2025, 0
  %v2126 = vsel %vm580, %v2026, 0
  %v2129 = vsel %vm580, %v2027, 0
  %v2132 = vsel %vm580, %v2028, 0
  %v2135 = vsel %vm580, %v2029, 0
  %v2138 = vsel %vm580, %v2030, 0
  %v2141 = vsel %vm580, %v2031, 0
  %v2144 = vsel %vm580, %v2032, 0
  %v2147 = vsel %vm580, %v2033, 0
  %v2150 = vsel %vm580, %v2034, 0
  %v2153 = vsel %vm580, %v2035, 0
  %v2156 = vsel %vm580, %v2036, 0
  %v2159 = vsel %vm580, %v2037, 0
  %v2162 = vsel %vm580, %v2038, 0
  %v2165 = vsel %vm580, %v2039, 0
  %v2168 = vsel %vm580, %v2040, 0
  %v2171 = vsel %vm580, %v2041, 0
  %v2174 = vsel %vm580, %v2042, 0
  %v2177 = vsel %vm580, %v2043, 0
  %v2180 = vsel %vm580, %v2044, 0
  %v2183 = vsel %vm580, %v2045, 0
  %v2186 = vsel %vm580, %v2046, 0
  %v2189 = vsel %vm580, %v2047, 0
  %v2192 = vsel %vm580, %v2048, 0
  %v2195 = vsel %vm580, %v2049, 0
  %v2198 = vsel %vm580, %v2050, 0
  %v2201 = vsel %vm580, %v2051, 0
  %v2204 = vsel %vm580, %v2052, 0
  %v2207 = vsel %vm580, %v2053, 0
  %v2210 = vsel %vm580, %v2054, 0
  %v2213 = vsel %vm580, %v2055, 0
  %2215 = vmatprep.subr.bf16.mxu0 0
  %2216 = vmatpush1.bf16.msra.mxu0 %v2087
  %2217 = vmatprep.subr.bf16.mxu0 0
  %2218 = vmatpush1.bf16.msra.mxu0 %v2088
  %2219 = vmatprep.subr.bf16.mxu0 0
  %2220 = vmatpush1.bf16.msra.mxu0 %v2089
  %2221 = vmatprep.subr.bf16.mxu0 0
  %2222 = vmatpush1.bf16.msra.mxu0 %v2090
  %2223 = vmatprep.subr.bf16.mxu0 0
  %2224 = vmatpush1.bf16.msra.mxu0 0
  %2225 = vmatprep.subr.bf16.mxu0 0
  %2226 = vmatpush1.bf16.msra.mxu0 0
  %2227 = vmatprep.subr.bf16.mxu0 0
  %2228 = vmatpush1.bf16.msra.mxu0 0
  %2229 = vmatprep.subr.bf16.mxu0 0
  %2230 = vmatpush1.bf16.msra.mxu0 0
  %2231 = vmatprep.subr.bf16.mxu0 0
  %2232 = vmatpush1.bf16.msra.mxu0 0
  %2233 = vmatprep.subr.bf16.mxu0 0
  %2234 = vmatpush1.bf16.msra.mxu0 0
  %2235 = vmatprep.subr.bf16.mxu0 0
  %2236 = vmatpush1.bf16.msra.mxu0 0
  %2237 = vmatprep.subr.bf16.mxu0 0
  %2238 = vmatpush1.bf16.msra.mxu0 0
  %2239 = vmatprep.subr.bf16.mxu0 0
  %2240 = vmatpush1.bf16.msra.mxu0 0
  %2241 = vmatprep.subr.bf16.mxu0 0
  %2242 = vmatpush1.bf16.msra.mxu0 0
  %2243 = vmatprep.subr.bf16.mxu0 0
  %2244 = vmatpush1.bf16.msra.mxu0 0
  %2245 = vmatprep.subr.bf16.mxu0 0
  %2246 = vmatpush1.bf16.msra.mxu0 0
  %2247 = vmatprep.mubr.bf16.mxu0 0
  %2248 = vmatmul.mubr.bf16.gmra.mrb[0].mxu0 %v2096
  %v2249 = vpop.f32.mrb[0].mxu0
  %v2250 = vadd.f32 %v2069, %v2249
  %v2251 = vpop.f32.mrb[0].mxu0
  %v2252 = vpop.f32.mrb[0].mxu0
  %v2253 = vadd.f32 %v2069, %v2252
  %v2254 = vpop.f32.mrb[0].mxu0
  %2255 = vmatprep.mubr.bf16.mxu0 0
  %2256 = vmatmul.mubr.bf16.gmra.mrb[0].mxu0 %v2099
  %v2257 = vpop.f32.mrb[0].mxu0
  %v2258 = vadd.f32 %v2069, %v2257
  %v2259 = vpop.f32.mrb[0].mxu0
  %v2260 = vpop.f32.mrb[0].mxu0
  %v2261 = vadd.f32 %v2069, %v2260
  %v2262 = vpop.f32.mrb[0].mxu0
  %2263 = vmatprep.mubr.bf16.mxu0 0
  %2264 = vmatmul.mubr.bf16.gmra.mrb[0].mxu0 %v2102
  %v2265 = vpop.f32.mrb[0].mxu0
  %v2266 = vadd.f32 %v2069, %v2265
  %v2267 = vpop.f32.mrb[0].mxu0
  %v2268 = vpop.f32.mrb[0].mxu0
  %v2269 = vadd.f32 %v2069, %v2268
  %v2270 = vpop.f32.mrb[0].mxu0
  %2271 = vmatprep.mubr.bf16.mxu0 0
  %2272 = vmatmul.mubr.bf16.gmra.mrb[0].mxu0 %v2105
  %v2273 = vpop.f32.mrb[0].mxu0
  %v2274 = vadd.f32 %v2069, %v2273
  %v2275 = vpop.f32.mrb[0].mxu0
  %v2276 = vpop.f32.mrb[0].mxu0
  %v2277 = vadd.f32 %v2069, %v2276
  %v2278 = vpop.f32.mrb[0].mxu0
  %2279 = vmatprep.mubr.bf16.mxu0 0
  %2280 = vmatmul.mubr.bf16.gmra.mrb[0].mxu0 %v2108
  %v2281 = vpop.f32.mrb[0].mxu0
  %v2282 = vadd.f32 %v2069, %v2281
  %v2283 = vpop.f32.mrb[0].mxu0
  %v2284 = vpop.f32.mrb[0].mxu0
  %v2285 = vadd.f32 %v2069, %v2284
  %v2286 = vpop.f32.mrb[0].mxu0
  %2287 = vmatprep.mubr.bf16.mxu0 0
  %2288 = vmatmul.mubr.bf16.gmra.mrb[0].mxu0 %v2111
  %v2289 = vpop.f32.mrb[0].mxu0
  %v2290 = vadd.f32 %v2069, %v2289
  %v2291 = vpop.f32.mrb[0].mxu0
  %v2292 = vpop.f32.mrb[0].mxu0
  %v2293 = vadd.f32 %v2069, %v2292
  %v2294 = vpop.f32.mrb[0].mxu0
  %2295 = vmatprep.mubr.bf16.mxu0 0
  %2296 = vmatmul.mubr.bf16.gmra.mrb[0].mxu0 %v2114
  %v2297 = vpop.f32.mrb[0].mxu0
  %v2298 = vadd.f32 %v2069, %v2297
  %v2299 = vpop.f32.mrb[0].mxu0
  %v2300 = vpop.f32.mrb[0].mxu0
  %v2301 = vadd.f32 %v2069, %v2300
  %v2302 = vpop.f32.mrb[0].mxu0
  %2303 = vmatprep.mubr.bf16.mxu0 0
  %2304 = vmatmul.mubr.bf16.gmra.mrb[0].mxu0 %v2117
  %v2305 = vpop.f32.mrb[0].mxu0
  %v2306 = vadd.f32 %v2069, %v2305
  %v2307 = vpop.f32.mrb[0].mxu0
  %v2308 = vpop.f32.mrb[0].mxu0
  %v2309 = vadd.f32 %v2069, %v2308
  %v2310 = vpop.f32.mrb[0].mxu0
  %2311 = vmatprep.mubr.bf16.mxu0 0
  %2312 = vmatmul.mubr.bf16.gmra.mrb[0].mxu0 %v2120
  %v2313 = vpop.f32.mrb[0].mxu0
  %v2314 = vadd.f32 %v2069, %v2313
  %v2315 = vpop.f32.mrb[0].mxu0
  %v2316 = vpop.f32.mrb[0].mxu0
  %v2317 = vadd.f32 %v2069, %v2316
  %v2318 = vpop.f32.mrb[0].mxu0
  %2319 = vmatprep.mubr.bf16.mxu0 0
  %2320 = vmatmul.mubr.bf16.gmra.mrb[0].mxu0 %v2123
  %v2321 = vpop.f32.mrb[0].mxu0
  %v2322 = vadd.f32 %v2069, %v2321
  %v2323 = vpop.f32.mrb[0].mxu0
  %v2324 = vpop.f32.mrb[0].mxu0
  %v2325 = vadd.f32 %v2069, %v2324
  %v2326 = vpop.f32.mrb[0].mxu0
  %2327 = vmatprep.mubr.bf16.mxu0 0
  %2328 = vmatmul.mubr.bf16.gmra.mrb[0].mxu0 %v2126
  %v2329 = vpop.f32.mrb[0].mxu0
  %v2330 = vadd.f32 %v2069, %v2329
  %v2331 = vpop.f32.mrb[0].mxu0
  %v2332 = vpop.f32.mrb[0].mxu0
  %v2333 = vadd.f32 %v2069, %v2332
  %v2334 = vpop.f32.mrb[0].mxu0
  %2335 = vmatprep.mubr.bf16.mxu0 0
  %2336 = vmatmul.mubr.bf16.gmra.mrb[0].mxu0 %v2129
  %v2337 = vpop.f32.mrb[0].mxu0
  %v2338 = vadd.f32 %v2069, %v2337
  %v2339 = vpop.f32.mrb[0].mxu0
  %v2340 = vpop.f32.mrb[0].mxu0
  %v2341 = vadd.f32 %v2069, %v2340
  %v2342 = vpop.f32.mrb[0].mxu0
  %2343 = vmatprep.mubr.bf16.mxu0 0
  %2344 = vmatmul.mubr.bf16.gmra.mrb[0].mxu0 %v2132
  %v2345 = vpop.f32.mrb[0].mxu0
  %v2346 = vadd.f32 %v2069, %v2345
  %v2347 = vpop.f32.mrb[0].mxu0
  %v2348 = vpop.f32.mrb[0].mxu0
  %v2349 = vadd.f32 %v2069, %v2348
  %v2350 = vpop.f32.mrb[0].mxu0
  %2351 = vmatprep.mubr.bf16.mxu0 0
  %2352 = vmatmul.mubr.bf16.gmra.mrb[0].mxu0 %v2135
  %v2353 = vpop.f32.mrb[0].mxu0
  %v2354 = vadd.f32 %v2069, %v2353
  %v2355 = vpop.f32.mrb[0].mxu0
  %v2356 = vpop.f32.mrb[0].mxu0
  %v2357 = vadd.f32 %v2069, %v2356
  %v2358 = vpop.f32.mrb[0].mxu0
  %2359 = vmatprep.mubr.bf16.mxu0 0
  %2360 = vmatmul.mubr.bf16.gmra.mrb[0].mxu0 %v2138
  %v2361 = vpop.f32.mrb[0].mxu0
  %v2362 = vadd.f32 %v2069, %v2361
  %v2363 = vpop.f32.mrb[0].mxu0
  %v2364 = vpop.f32.mrb[0].mxu0
  %v2365 = vadd.f32 %v2069, %v2364
  %v2366 = vpop.f32.mrb[0].mxu0
  %2367 = vmatprep.mubr.bf16.mxu0 0
  %2368 = vmatmul.mubr.bf16.gmra.mrb[0].mxu0 %v2141
  %v2369 = vpop.f32.mrb[0].mxu0
  %v2370 = vadd.f32 %v2069, %v2369
  %v2371 = vpop.f32.mrb[0].mxu0
  %v2372 = vpop.f32.mrb[0].mxu0
  %v2373 = vadd.f32 %v2069, %v2372
  %v2374 = vpop.f32.mrb[0].mxu0
  %2375 = vmatprep.mubr.bf16.mxu0 0
  %2376 = vmatmul.mubr.bf16.gmra.mrb[0].mxu0 %v2144
  %v2377 = vpop.f32.mrb[0].mxu0
  %v2378 = vadd.f32 %v2069, %v2377
  %v2379 = vpop.f32.mrb[0].mxu0
  %v2380 = vpop.f32.mrb[0].mxu0
  %v2381 = vadd.f32 %v2069, %v2380
  %v2382 = vpop.f32.mrb[0].mxu0
  %2383 = vmatprep.mubr.bf16.mxu0 0
  %2384 = vmatmul.mubr.bf16.gmra.mrb[0].mxu0 %v2147
  %v2385 = vpop.f32.mrb[0].mxu0
  %v2386 = vadd.f32 %v2069, %v2385
  %v2387 = vpop.f32.mrb[0].mxu0
  %v2388 = vpop.f32.mrb[0].mxu0
  %v2389 = vadd.f32 %v2069, %v2388
  %v2390 = vpop.f32.mrb[0].mxu0
  %2391 = vmatprep.mubr.bf16.mxu0 0
  %2392 = vmatmul.mubr.bf16.gmra.mrb[0].mxu0 %v2150
  %v2393 = vpop.f32.mrb[0].mxu0
  %v2394 = vadd.f32 %v2069, %v2393
  %v2395 = vpop.f32.mrb[0].mxu0
  %v2396 = vpop.f32.mrb[0].mxu0
  %v2397 = vadd.f32 %v2069, %v2396
  %v2398 = vpop.f32.mrb[0].mxu0
  %2399 = vmatprep.mubr.bf16.mxu0 0
  %2400 = vmatmul.mubr.bf16.gmra.mrb[0].mxu0 %v2153
  %v2401 = vpop.f32.mrb[0].mxu0
  %v2402 = vadd.f32 %v2069, %v2401
  %v2403 = vpop.f32.mrb[0].mxu0
  %v2404 = vpop.f32.mrb[0].mxu0
  %v2405 = vadd.f32 %v2069, %v2404
  %v2406 = vpop.f32.mrb[0].mxu0
  %2407 = vmatprep.mubr.bf16.mxu0 0
  %2408 = vmatmul.mubr.bf16.gmra.mrb[0].mxu0 %v2156
  %v2409 = vpop.f32.mrb[0].mxu0
  %v2410 = vadd.f32 %v2069, %v2409
  %v2411 = vpop.f32.mrb[0].mxu0
  %v2412 = vpop.f32.mrb[0].mxu0
  %v2413 = vadd.f32 %v2069, %v2412
  %v2414 = vpop.f32.mrb[0].mxu0
  %2415 = vmatprep.mubr.bf16.mxu0 0
  %2416 = vmatmul.mubr.bf16.gmra.mrb[0].mxu0 %v2159
  %v2417 = vpop.f32.mrb[0].mxu0
  %v2418 = vadd.f32 %v2069, %v2417
  %v2419 = vpop.f32.mrb[0].mxu0
  %v2420 = vpop.f32.mrb[0].mxu0
  %v2421 = vadd.f32 %v2069, %v2420
  %v2422 = vpop.f32.mrb[0].mxu0
  %2423 = vmatprep.mubr.bf16.mxu0 0
  %2424 = vmatmul.mubr.bf16.gmra.mrb[0].mxu0 %v2162
  %v2425 = vpop.f32.mrb[0].mxu0
  %v2426 = vadd.f32 %v2069, %v2425
  %v2427 = vpop.f32.mrb[0].mxu0
  %v2428 = vpop.f32.mrb[0].mxu0
  %v2429 = vadd.f32 %v2069, %v2428
  %v2430 = vpop.f32.mrb[0].mxu0
  %2431 = vmatprep.mubr.bf16.mxu0 0
  %2432 = vmatmul.mubr.bf16.gmra.mrb[0].mxu0 %v2165
  %v2433 = vpop.f32.mrb[0].mxu0
  %v2434 = vadd.f32 %v2069, %v2433
  %v2435 = vpop.f32.mrb[0].mxu0
  %v2436 = vpop.f32.mrb[0].mxu0
  %v2437 = vadd.f32 %v2069, %v2436
  %v2438 = vpop.f32.mrb[0].mxu0
  %2439 = vmatprep.mubr.bf16.mxu0 0
  %2440 = vmatmul.mubr.bf16.gmra.mrb[0].mxu0 %v2168
  %v2441 = vpop.f32.mrb[0].mxu0
  %v2442 = vadd.f32 %v2069, %v2441
  %v2443 = vpop.f32.mrb[0].mxu0
  %v2444 = vpop.f32.mrb[0].mxu0
  %v2445 = vadd.f32 %v2069, %v2444
  %v2446 = vpop.f32.mrb[0].mxu0
  %2447 = vmatprep.mubr.bf16.mxu0 0
  %2448 = vmatmul.mubr.bf16.gmra.mrb[0].mxu0 %v2171
  %v2449 = vpop.f32.mrb[0].mxu0
  %v2450 = vadd.f32 %v2069, %v2449
  %v2451 = vpop.f32.mrb[0].mxu0
  %v2452 = vpop.f32.mrb[0].mxu0
  %v2453 = vadd.f32 %v2069, %v2452
  %v2454 = vpop.f32.mrb[0].mxu0
  %2455 = vmatprep.mubr.bf16.mxu0 0
  %2456 = vmatmul.mubr.bf16.gmra.mrb[0].mxu0 %v2174
  %v2457 = vpop.f32.mrb[0].mxu0
  %v2458 = vadd.f32 %v2069, %v2457
  %v2459 = vpop.f32.mrb[0].mxu0
  %v2460 = vpop.f32.mrb[0].mxu0
  %v2461 = vadd.f32 %v2069, %v2460
  %v2462 = vpop.f32.mrb[0].mxu0
  %2463 = vmatprep.mubr.bf16.mxu0 0
  %2464 = vmatmul.mubr.bf16.gmra.mrb[0].mxu0 %v2177
  %v2465 = vpop.f32.mrb[0].mxu0
  %v2466 = vadd.f32 %v2069, %v2465
  %v2467 = vpop.f32.mrb[0].mxu0
  %v2468 = vpop.f32.mrb[0].mxu0
  %v2469 = vadd.f32 %v2069, %v2468
  %v2470 = vpop.f32.mrb[0].mxu0
  %2471 = vmatprep.mubr.bf16.mxu0 0
  %2472 = vmatmul.mubr.bf16.gmra.mrb[0].mxu0 %v2180
  %v2473 = vpop.f32.mrb[0].mxu0
  %v2474 = vadd.f32 %v2069, %v2473
  %v2475 = vpop.f32.mrb[0].mxu0
  %v2476 = vpop.f32.mrb[0].mxu0
  %v2477 = vadd.f32 %v2069, %v2476
  %v2478 = vpop.f32.mrb[0].mxu0
  %2479 = vmatprep.mubr.bf16.mxu0 0
  %2480 = vmatmul.mubr.bf16.gmra.mrb[0].mxu0 %v2183
  %v2481 = vpop.f32.mrb[0].mxu0
  %v2482 = vadd.f32 %v2069, %v2481
  %v2483 = vpop.f32.mrb[0].mxu0
  %v2484 = vpop.f32.mrb[0].mxu0
  %v2485 = vadd.f32 %v2069, %v2484
  %v2486 = vpop.f32.mrb[0].mxu0
  %2487 = vmatprep.mubr.bf16.mxu0 0
  %2488 = vmatmul.mubr.bf16.gmra.mrb[0].mxu0 %v2186
  %v2489 = vpop.f32.mrb[0].mxu0
  %v2490 = vadd.f32 %v2069, %v2489
  %v2491 = vpop.f32.mrb[0].mxu0
  %v2492 = vpop.f32.mrb[0].mxu0
  %v2493 = vadd.f32 %v2069, %v2492
  %v2494 = vpop.f32.mrb[0].mxu0
  %2495 = vmatprep.mubr.bf16.mxu0 0
  %2496 = vmatmul.mubr.bf16.gmra.mrb[0].mxu0 %v2189
  %v2497 = vpop.f32.mrb[0].mxu0
  %v2498 = vadd.f32 %v2069, %v2497
  %v2499 = vpop.f32.mrb[0].mxu0
  %v2500 = vpop.f32.mrb[0].mxu0
  %v2501 = vadd.f32 %v2069, %v2500
  %v2502 = vpop.f32.mrb[0].mxu0
  %2503 = vmatprep.mubr.bf16.mxu0 0
  %2504 = vmatmul.mubr.bf16.gmra.mrb[0].mxu0 %v2192
  %v2505 = vpop.f32.mrb[0].mxu0
  %v2506 = vadd.f32 %v2069, %v2505
  %v2507 = vpop.f32.mrb[0].mxu0
  %v2508 = vpop.f32.mrb[0].mxu0
  %v2509 = vadd.f32 %v2069, %v2508
  %v2510 = vpop.f32.mrb[0].mxu0
  %2511 = vmatprep.mubr.bf16.mxu0 0
  %2512 = vmatmul.mubr.bf16.gmra.mrb[0].mxu0 %v2195
  %v2513 = vpop.f32.mrb[0].mxu0
  %v2514 = vadd.f32 %v2069, %v2513
  %v2515 = vpop.f32.mrb[0].mxu0
  %v2516 = vpop.f32.mrb[0].mxu0
  %v2517 = vadd.f32 %v2069, %v2516
  %v2518 = vpop.f32.mrb[0].mxu0
  %2519 = vmatprep.mubr.bf16.mxu0 0
  %2520 = vmatmul.mubr.bf16.gmra.mrb[0].mxu0 %v2198
  %v2521 = vpop.f32.mrb[0].mxu0
  %v2522 = vadd.f32 %v2069, %v2521
  %v2523 = vpop.f32.mrb[0].mxu0
  %v2524 = vpop.f32.mrb[0].mxu0
  %v2525 = vadd.f32 %v2069, %v2524
  %v2526 = vpop.f32.mrb[0].mxu0
  %2527 = vmatprep.mubr.bf16.mxu0 0
  %2528 = vmatmul.mubr.bf16.gmra.mrb[0].mxu0 %v2201
  %v2529 = vpop.f32.mrb[0].mxu0
  %v2530 = vadd.f32 %v2069, %v2529
  %v2531 = vpop.f32.mrb[0].mxu0
  %v2532 = vpop.f32.mrb[0].mxu0
  %v2533 = vadd.f32 %v2069, %v2532
  %v2534 = vpop.f32.mrb[0].mxu0
  %2535 = vmatprep.mubr.bf16.mxu0 0
  %2536 = vmatmul.mubr.bf16.gmra.mrb[0].mxu0 %v2204
  %v2537 = vpop.f32.mrb[0].mxu0
  %v2538 = vpop.f32.mrb[0].mxu0
  %v2539 = vpop.f32.mrb[0].mxu0
  %v2540 = vpop.f32.mrb[0].mxu0
  %2541 = vmatprep.mubr.bf16.mxu0 0
  %2542 = vmatmul.mubr.bf16.gmra.mrb[0].mxu0 %v2207
  %v2543 = vpop.f32.mrb[0].mxu0
  %v2544 = vpop.f32.mrb[0].mxu0
  %v2545 = vpop.f32.mrb[0].mxu0
  %v2546 = vpop.f32.mrb[0].mxu0
  %2547 = vmatprep.mubr.bf16.mxu0 0
  %2548 = vmatmul.mubr.bf16.gmra.mrb[0].mxu0 %v2210
  %v2549 = vpop.f32.mrb[0].mxu0
  %v2550 = vpop.f32.mrb[0].mxu0
  %v2551 = vpop.f32.mrb[0].mxu0
  %v2552 = vpop.f32.mrb[0].mxu0
  %2553 = vmatprep.mubr.bf16.mxu0 0
  %2554 = vmatmul.mubr.bf16.gmra.mrb[0].mxu0 %v2213
  %v2555 = vpop.f32.mrb[0].mxu0
  %v2556 = vpop.f32.mrb[0].mxu0
  %v2557 = vpop.f32.mrb[0].mxu0
  %v2558 = vpop.f32.mrb[0].mxu0
  %2559 = vdwg.mxu0
  %v2560 = vmax.f32 %v2250, 0.0
  %v2561 = vmax.f32 %v2253, 0.0
  %v2562 = vmax.f32 %v2258, 0.0
  %v2563 = vmax.f32 %v2261, 0.0
  %v2564 = vmax.f32 %v2266, 0.0
  %v2565 = vmax.f32 %v2269, 0.0
  %v2566 = vmax.f32 %v2274, 0.0
  %v2567 = vmax.f32 %v2277, 0.0
  %v2568 = vmax.f32 %v2282, 0.0
  %v2569 = vmax.f32 %v2285, 0.0
  %v2570 = vmax.f32 %v2290, 0.0
  %v2571 = vmax.f32 %v2293, 0.0
  %v2572 = vmax.f32 %v2298, 0.0
  %v2573 = vmax.f32 %v2301, 0.0
  %v2574 = vmax.f32 %v2306, 0.0
  %v2575 = vmax.f32 %v2309, 0.0
  %v2576 = vmax.f32 %v2314, 0.0
  %v2577 = vmax.f32 %v2317, 0.0
  %v2578 = vmax.f32 %v2322, 0.0
  %v2579 = vmax.f32 %v2325, 0.0
  %v2580 = vmax.f32 %v2330, 0.0
  %v2581 = vmax.f32 %v2333, 0.0
  %v2582 = vmax.f32 %v2338, 0.0
  %v2583 = vmax.f32 %v2341, 0.0
  %v2584 = vmax.f32 %v2346, 0.0
  %v2585 = vmax.f32 %v2349, 0.0
  %v2586 = vmax.f32 %v2354, 0.0
  %v2587 = vmax.f32 %v2357, 0.0
  %v2588 = vmax.f32 %v2362, 0.0
  %v2589 = vmax.f32 %v2365, 0.0
  %v2590 = vmax.f32 %v2370, 0.0
  %v2591 = vmax.f32 %v2373, 0.0
  %v2592 = vmax.f32 %v2378, 0.0
  %v2593 = vmax.f32 %v2381, 0.0
  %v2594 = vmax.f32 %v2386, 0.0
  %v2595 = vmax.f32 %v2389, 0.0
  %v2596 = vmax.f32 %v2394, 0.0
  %v2597 = vmax.f32 %v2397, 0.0
  %v2598 = vmax.f32 %v2402, 0.0
  %v2599 = vmax.f32 %v2405, 0.0
  %v2600 = vmax.f32 %v2410, 0.0
  %v2601 = vmax.f32 %v2413, 0.0
  %v2602 = vmax.f32 %v2418, 0.0
  %v2603 = vmax.f32 %v2421, 0.0
  %v2604 = vmax.f32 %v2426, 0.0
  %v2605 = vmax.f32 %v2429, 0.0
  %v2606 = vmax.f32 %v2434, 0.0
  %v2607 = vmax.f32 %v2437, 0.0
  %v2608 = vmax.f32 %v2442, 0.0
  %v2609 = vmax.f32 %v2445, 0.0
  %v2610 = vmax.f32 %v2450, 0.0
  %v2611 = vmax.f32 %v2453, 0.0
  %v2612 = vmax.f32 %v2458, 0.0
  %v2613 = vmax.f32 %v2461, 0.0
  %v2614 = vmax.f32 %v2466, 0.0
  %v2615 = vmax.f32 %v2469, 0.0
  %v2616 = vmax.f32 %v2474, 0.0
  %v2617 = vmax.f32 %v2477, 0.0
  %v2618 = vmax.f32 %v2482, 0.0
  %v2619 = vmax.f32 %v2485, 0.0
  %v2620 = vmax.f32 %v2490, 0.0
  %v2621 = vmax.f32 %v2493, 0.0
  %v2622 = vmax.f32 %v2498, 0.0
  %v2623 = vmax.f32 %v2501, 0.0
  %v2624 = vmax.f32 %v2506, 0.0
  %v2625 = vmax.f32 %v2509, 0.0
  %v2626 = vmax.f32 %v2514, 0.0
  %v2627 = vmax.f32 %v2517, 0.0
  %v2628 = vmax.f32 %v2522, 0.0
  %v2629 = vmax.f32 %v2525, 0.0
  %v2630 = vmax.f32 %v2530, 0.0
  %v2631 = vmax.f32 %v2533, 0.0
  %v2632 = vpack.c.bf16 %v2561, %v2560
  %v2633 = vpack.c.bf16 %v2563, %v2562
  %v2634 = vpack.c.bf16 %v2565, %v2564
  %v2635 = vpack.c.bf16 %v2567, %v2566
  %v2636 = vpack.c.bf16 %v2569, %v2568
  %v2637 = vpack.c.bf16 %v2571, %v2570
  %v2638 = vpack.c.bf16 %v2573, %v2572
  %v2639 = vpack.c.bf16 %v2575, %v2574
  %v2640 = vpack.c.bf16 %v2577, %v2576
  %v2641 = vpack.c.bf16 %v2579, %v2578
  %v2642 = vpack.c.bf16 %v2581, %v2580
  %v2643 = vpack.c.bf16 %v2583, %v2582
  %v2644 = vpack.c.bf16 %v2585, %v2584
  %v2645 = vpack.c.bf16 %v2587, %v2586
  %v2646 = vpack.c.bf16 %v2589, %v2588
  %v2647 = vpack.c.bf16 %v2591, %v2590
  %v2648 = vpack.c.bf16 %v2593, %v2592
  %v2649 = vpack.c.bf16 %v2595, %v2594
  %v2650 = vpack.c.bf16 %v2597, %v2596
  %v2651 = vpack.c.bf16 %v2599, %v2598
  %v2652 = vpack.c.bf16 %v2601, %v2600
  %v2653 = vpack.c.bf16 %v2603, %v2602
  %v2654 = vpack.c.bf16 %v2605, %v2604
  %v2655 = vpack.c.bf16 %v2607, %v2606
  %v2656 = vpack.c.bf16 %v2609, %v2608
  %v2657 = vpack.c.bf16 %v2611, %v2610
  %v2658 = vpack.c.bf16 %v2613, %v2612
  %v2659 = vpack.c.bf16 %v2615, %v2614
  %v2660 = vpack.c.bf16 %v2617, %v2616
  %v2661 = vpack.c.bf16 %v2619, %v2618
  %v2662 = vpack.c.bf16 %v2621, %v2620
  %v2663 = vpack.c.bf16 %v2623, %v2622
  %v2664 = vpack.c.bf16 %v2625, %v2624
  %v2665 = vpack.c.bf16 %v2627, %v2626
  %v2666 = vpack.c.bf16 %v2629, %v2628
  %v2667 = vpack.c.bf16 %v2631, %v2630
  %v2668 = vld [vmem:[%s7] sm:$0xff]
  %v2669 = vld [vmem:[%s7 + $0x8] sm:$0xff]
  %v2670 = vld [vmem:[%s7 + $0x10] sm:$0xff]
  %v2671 = vld [vmem:[%s7 + $0x18] sm:$0xff]
  %v2672 = vld [vmem:[%s7 + $0x20] sm:$0xff]
  %v2673 = vld [vmem:[%s7 + $0x28] sm:$0xff]
  %v2674 = vld [vmem:[%s7 + $0x30] sm:$0xff]
  %v2675 = vld [vmem:[%s7 + $0x38] sm:$0xff]
  %s2676 = scalar_lea.vmem %s7, 64
  %v2677 = vld [vmem:[%s2676] sm:$0xff]
  %v2678 = vld [vmem:[%s2676 + $0x8] sm:$0xff]
  %v2679 = vld [vmem:[%s2676 + $0x10] sm:$0xff]
  %v2680 = vld [vmem:[%s2676 + $0x18] sm:$0xff]
  %v2681 = vld [vmem:[%s2676 + $0x20] sm:$0xff]
  %v2682 = vld [vmem:[%s2676 + $0x28] sm:$0xff]
  %v2683 = vld [vmem:[%s2676 + $0x30] sm:$0xff]
  %v2684 = vld [vmem:[%s2676 + $0x38] sm:$0xff]
  %v2693 = vunpack.c.l.b16 %v2677
  %v2694 = vunpack.c.h.b16 %v2677
  %v2695 = vunpack.c.l.b16 %v2678
  %v2696 = vunpack.c.h.b16 %v2678
  %v2697 = vunpack.c.l.b16 %v2679
  %v2698 = vunpack.c.h.b16 %v2679
  %v2699 = vunpack.c.l.b16 %v2680
  %v2700 = vunpack.c.h.b16 %v2680
  %v2701 = vunpack.c.l.b16 %v2681
  %v2702 = vunpack.c.h.b16 %v2681
  %v2703 = vunpack.c.l.b16 %v2682
  %v2704 = vunpack.c.h.b16 %v2682
  %v2705 = vunpack.c.l.b16 %v2683
  %v2706 = vunpack.c.h.b16 %v2683
  %v2707 = vunpack.c.l.b16 %v2684
  %v2708 = vunpack.c.h.b16 %v2684
  %v2709 = vpack.c.b16 %v2695, %v2693
  %v2710 = vpack.c.b16 %v2696, %v2694
  %v2711 = vpack.c.b16 %v2699, %v2697
  %v2712 = vpack.c.b16 %v2700, %v2698
  %v2713 = vpack.c.b16 %v2703, %v2701
  %v2714 = vpack.c.b16 %v2704, %v2702
  %v2715 = vpack.c.b16 %v2707, %v2705
  %v2716 = vpack.c.b16 %v2708, %v2706
  %v2726 = vsel %vm580, %v2633, 0
  %2728 = vmatprep.subr.bf16.mxu0 %v2710
  %2729 = vmatpush1.bf16.msra.mxu0 %v2709
  %2730 = vmatprep.subr.bf16.mxu0 %v2712
  %2731 = vmatpush1.bf16.msra.mxu0 %v2711
  %2732 = vmatprep.subr.bf16.mxu0 %v2714
  %2733 = vmatpush1.bf16.msra.mxu0 %v2713
  %2734 = vmatprep.subr.bf16.mxu0 %v2716
  %2735 = vmatpush1.bf16.msra.mxu0 %v2715
  %2736 = vmatprep.subr.bf16.mxu0 0
  %2737 = vmatpush1.bf16.msra.mxu0 0
  %2738 = vmatprep.subr.bf16.mxu0 0
  %2739 = vmatpush1.bf16.msra.mxu0 0
  %2740 = vmatprep.subr.bf16.mxu0 0
  %2741 = vmatpush1.bf16.msra.mxu0 0
  %2742 = vmatprep.subr.bf16.mxu0 0
  %2743 = vmatpush1.bf16.msra.mxu0 0
  %2744 = vmatprep.subr.bf16.mxu0 0
  %2745 = vmatpush1.bf16.msra.mxu0 0
  %2746 = vmatprep.subr.bf16.mxu0 0
  %2747 = vmatpush1.bf16.msra.mxu0 0
  %2748 = vmatprep.subr.bf16.mxu0 0
  %2749 = vmatpush1.bf16.msra.mxu0 0
  %2750 = vmatprep.subr.bf16.mxu0 0
  %2751 = vmatpush1.bf16.msra.mxu0 0
  %2752 = vmatprep.subr.bf16.mxu0 0
  %2753 = vmatpush1.bf16.msra.mxu0 0
  %2754 = vmatprep.subr.bf16.mxu0 0
  %2755 = vmatpush1.bf16.msra.mxu0 0
  %2756 = vmatprep.subr.bf16.mxu0 0
  %2757 = vmatpush1.bf16.msra.mxu0 0
  %2758 = vmatprep.subr.bf16.mxu0 0
  %2759 = vmatpush1.bf16.msra.mxu0 0
  %2760 = vmatprep.mubr.bf16.mxu0 0
  %2761 = vmatmul.mubr.bf16.gmra.mrb[0].mxu0 %v2726
  %v2762 = vpop.f32.mrb[0].mxu0
  %v2763 = vadd.f32 0.0, %v2762
  %v2764 = vpop.f32.mrb[0].mxu0
  %v2765 = vadd.f32 0.0, %v2764
  %v2766 = vpop.f32.mrb[0].mxu0
  %v2767 = vadd.f32 0.0, %v2766
  %v2768 = vpop.f32.mrb[0].mxu0
  %v2769 = vadd.f32 0.0, %v2768
  %2770 = vdwg.mxu0
  %v2779 = vunpack.c.l.b16 %v2668
  %v2780 = vunpack.c.h.b16 %v2668
  %v2781 = vunpack.c.l.b16 %v2669
  %v2782 = vunpack.c.h.b16 %v2669
  %v2783 = vunpack.c.l.b16 %v2670
  %v2784 = vunpack.c.h.b16 %v2670
  %v2785 = vunpack.c.l.b16 %v2671
  %v2786 = vunpack.c.h.b16 %v2671
  %v2787 = vunpack.c.l.b16 %v2672
  %v2788 = vunpack.c.h.b16 %v2672
  %v2789 = vunpack.c.l.b16 %v2673
  %v2790 = vunpack.c.h.b16 %v2673
  %v2791 = vunpack.c.l.b16 %v2674
  %v2792 = vunpack.c.h.b16 %v2674
  %v2793 = vunpack.c.l.b16 %v2675
  %v2794 = vunpack.c.h.b16 %v2675
  %v2795 = vpack.c.b16 %v2781, %v2779
  %v2796 = vpack.c.b16 %v2782, %v2780
  %v2797 = vpack.c.b16 %v2785, %v2783
  %v2798 = vpack.c.b16 %v2786, %v2784
  %v2799 = vpack.c.b16 %v2789, %v2787
  %v2800 = vpack.c.b16 %v2790, %v2788
  %v2801 = vpack.c.b16 %v2793, %v2791
  %v2802 = vpack.c.b16 %v2794, %v2792
  %v2812 = vsel %vm580, %v2632, 0
  %2814 = vmatprep.subr.bf16.mxu0 %v2796
  %2815 = vmatpush1.bf16.msra.mxu0 %v2795
  %2816 = vmatprep.subr.bf16.mxu0 %v2798
  %2817 = vmatpush1.bf16.msra.mxu0 %v2797
  %2818 = vmatprep.subr.bf16.mxu0 %v2800
  %2819 = vmatpush1.bf16.msra.mxu0 %v2799
  %2820 = vmatprep.subr.bf16.mxu0 %v2802
  %2821 = vmatpush1.bf16.msra.mxu0 %v2801
  %2822 = vmatprep.subr.bf16.mxu0 0
  %2823 = vmatpush1.bf16.msra.mxu0 0
  %2824 = vmatprep.subr.bf16.mxu0 0
  %2825 = vmatpush1.bf16.msra.mxu0 0
  %2826 = vmatprep.subr.bf16.mxu0 0
  %2827 = vmatpush1.bf16.msra.mxu0 0
  %2828 = vmatprep.subr.bf16.mxu0 0
  %2829 = vmatpush1.bf16.msra.mxu0 0
  %2830 = vmatprep.subr.bf16.mxu0 0
  %2831 = vmatpush1.bf16.msra.mxu0 0
  %2832 = vmatprep.subr.bf16.mxu0 0
  %2833 = vmatpush1.bf16.msra.mxu0 0
  %2834 = vmatprep.subr.bf16.mxu0 0
  %2835 = vmatpush1.bf16.msra.mxu0 0
  %2836 = vmatprep.subr.bf16.mxu0 0
  %2837 = vmatpush1.bf16.msra.mxu0 0
  %2838 = vmatprep.subr.bf16.mxu0 0
  %2839 = vmatpush1.bf16.msra.mxu0 0
  %2840 = vmatprep.subr.bf16.mxu0 0
  %2841 = vmatpush1.bf16.msra.mxu0 0
  %2842 = vmatprep.subr.bf16.mxu0 0
  %2843 = vmatpush1.bf16.msra.mxu0 0
  %2844 = vmatprep.subr.bf16.mxu0 0
  %2845 = vmatpush1.bf16.msra.mxu0 0
  %2846 = vmatprep.mubr.bf16.mxu0 0
  %2847 = vmatmul.mubr.bf16.gmra.mrb[0].mxu0 %v2812
  %v2848 = vpop.f32.mrb[0].mxu0
  %v2849 = vadd.f32 %v2763, %v2848
  %v2850 = vpop.f32.mrb[0].mxu0
  %v2851 = vadd.f32 %v2765, %v2850
  %v2852 = vpop.f32.mrb[0].mxu0
  %v2853 = vadd.f32 %v2767, %v2852
  %v2854 = vpop.f32.mrb[0].mxu0
  %v2855 = vadd.f32 %v2769, %v2854
  %2856 = vdwg.mxu0
  %s2857 = scalar_lea.vmem %s7, 128
  %v2858 = vld [vmem:[%s2857] sm:$0xff]
  %v2859 = vld [vmem:[%s2857 + $0x8] sm:$0xff]
  %v2860 = vld [vmem:[%s2857 + $0x10] sm:$0xff]
  %v2861 = vld [vmem:[%s2857 + $0x18] sm:$0xff]
  %v2862 = vld [vmem:[%s2857 + $0x20] sm:$0xff]
  %v2863 = vld [vmem:[%s2857 + $0x28] sm:$0xff]
  %v2864 = vld [vmem:[%s2857 + $0x30] sm:$0xff]
  %v2865 = vld [vmem:[%s2857 + $0x38] sm:$0xff]
  %v2874 = vunpack.c.l.b16 %v2858
  %v2875 = vunpack.c.h.b16 %v2858
  %v2876 = vunpack.c.l.b16 %v2859
  %v2877 = vunpack.c.h.b16 %v2859
  %v2878 = vunpack.c.l.b16 %v2860
  %v2879 = vunpack.c.h.b16 %v2860
  %v2880 = vunpack.c.l.b16 %v2861
  %v2881 = vunpack.c.h.b16 %v2861
  %v2882 = vunpack.c.l.b16 %v2862
  %v2883 = vunpack.c.h.b16 %v2862
  %v2884 = vunpack.c.l.b16 %v2863
  %v2885 = vunpack.c.h.b16 %v2863
  %v2886 = vunpack.c.l.b16 %v2864
  %v2887 = vunpack.c.h.b16 %v2864
  %v2888 = vunpack.c.l.b16 %v2865
  %v2889 = vunpack.c.h.b16 %v2865
  %v2890 = vpack.c.b16 %v2876, %v2874
  %v2891 = vpack.c.b16 %v2877, %v2875
  %v2892 = vpack.c.b16 %v2880, %v2878
  %v2893 = vpack.c.b16 %v2881, %v2879
  %v2894 = vpack.c.b16 %v2884, %v2882
  %v2895 = vpack.c.b16 %v2885, %v2883
  %v2896 = vpack.c.b16 %v2888, %v2886
  %v2897 = vpack.c.b16 %v2889, %v2887
  %v2907 = vsel %vm580, %v2634, 0
  %2909 = vmatprep.subr.bf16.mxu0 %v2891
  %2910 = vmatpush1.bf16.msra.mxu0 %v2890
  %2911 = vmatprep.subr.bf16.mxu0 %v2893
  %2912 = vmatpush1.bf16.msra.mxu0 %v2892
  %2913 = vmatprep.subr.bf16.mxu0 %v2895
  %2914 = vmatpush1.bf16.msra.mxu0 %v2894
  %2915 = vmatprep.subr.bf16.mxu0 %v2897
  %2916 = vmatpush1.bf16.msra.mxu0 %v2896
  %2917 = vmatprep.subr.bf16.mxu0 0
  %2918 = vmatpush1.bf16.msra.mxu0 0
  %2919 = vmatprep.subr.bf16.mxu0 0
  %2920 = vmatpush1.bf16.msra.mxu0 0
  %2921 = vmatprep.subr.bf16.mxu0 0
  %2922 = vmatpush1.bf16.msra.mxu0 0
  %2923 = vmatprep.subr.bf16.mxu0 0
  %2924 = vmatpush1.bf16.msra.mxu0 0
  %2925 = vmatprep.subr.bf16.mxu0 0
  %2926 = vmatpush1.bf16.msra.mxu0 0
  %2927 = vmatprep.subr.bf16.mxu0 0
  %2928 = vmatpush1.bf16.msra.mxu0 0
  %2929 = vmatprep.subr.bf16.mxu0 0
  %2930 = vmatpush1.bf16.msra.mxu0 0
  %2931 = vmatprep.subr.bf16.mxu0 0
  %2932 = vmatpush1.bf16.msra.mxu0 0
  %2933 = vmatprep.subr.bf16.mxu0 0
  %2934 = vmatpush1.bf16.msra.mxu0 0
  %2935 = vmatprep.subr.bf16.mxu0 0
  %2936 = vmatpush1.bf16.msra.mxu0 0
  %2937 = vmatprep.subr.bf16.mxu0 0
  %2938 = vmatpush1.bf16.msra.mxu0 0
  %2939 = vmatprep.subr.bf16.mxu0 0
  %2940 = vmatpush1.bf16.msra.mxu0 0
  %2941 = vmatprep.mubr.bf16.mxu0 0
  %2942 = vmatmul.mubr.bf16.gmra.mrb[0].mxu0 %v2907
  %v2943 = vpop.f32.mrb[0].mxu0
  %v2944 = vadd.f32 0.0, %v2943
  %v2945 = vpop.f32.mrb[0].mxu0
  %v2946 = vadd.f32 0.0, %v2945
  %v2947 = vpop.f32.mrb[0].mxu0
  %v2948 = vadd.f32 0.0, %v2947
  %v2949 = vpop.f32.mrb[0].mxu0
  %v2950 = vadd.f32 0.0, %v2949
  %2951 = vdwg.mxu0
  %v2952 = vadd.f32 %v2849, %v2944
  %v2953 = vadd.f32 %v2851, %v2946
  %v2954 = vadd.f32 %v2853, %v2948
  %v2955 = vadd.f32 %v2855, %v2950
  %s2956 = scalar_lea.vmem %s7, 192
  %v2957 = vld [vmem:[%s2956] sm:$0xff]
  %v2958 = vld [vmem:[%s2956 + $0x8] sm:$0xff]
  %v2959 = vld [vmem:[%s2956 + $0x10] sm:$0xff]
  %v2960 = vld [vmem:[%s2956 + $0x18] sm:$0xff]
  %v2961 = vld [vmem:[%s2956 + $0x20] sm:$0xff]
  %v2962 = vld [vmem:[%s2956 + $0x28] sm:$0xff]
  %v2963 = vld [vmem:[%s2956 + $0x30] sm:$0xff]
  %v2964 = vld [vmem:[%s2956 + $0x38] sm:$0xff]
  %v2973 = vunpack.c.l.b16 %v2957
  %v2974 = vunpack.c.h.b16 %v2957
  %v2975 = vunpack.c.l.b16 %v2958
  %v2976 = vunpack.c.h.b16 %v2958
  %v2977 = vunpack.c.l.b16 %v2959
  %v2978 = vunpack.c.h.b16 %v2959
  %v2979 = vunpack.c.l.b16 %v2960
  %v2980 = vunpack.c.h.b16 %v2960
  %v2981 = vunpack.c.l.b16 %v2961
  %v2982 = vunpack.c.h.b16 %v2961
  %v2983 = vunpack.c.l.b16 %v2962
  %v2984 = vunpack.c.h.b16 %v2962
  %v2985 = vunpack.c.l.b16 %v2963
  %v2986 = vunpack.c.h.b16 %v2963
  %v2987 = vunpack.c.l.b16 %v2964
  %v2988 = vunpack.c.h.b16 %v2964
  %v2989 = vpack.c.b16 %v2975, %v2973
  %v2990 = vpack.c.b16 %v2976, %v2974
  %v2991 = vpack.c.b16 %v2979, %v2977
  %v2992 = vpack.c.b16 %v2980, %v2978
  %v2993 = vpack.c.b16 %v2983, %v2981
  %v2994 = vpack.c.b16 %v2984, %v2982
  %v2995 = vpack.c.b16 %v2987, %v2985
  %v2996 = vpack.c.b16 %v2988, %v2986
  %v3006 = vsel %vm580, %v2635, 0
  %3008 = vmatprep.subr.bf16.mxu0 %v2990
  %3009 = vmatpush1.bf16.msra.mxu0 %v2989
  %3010 = vmatprep.subr.bf16.mxu0 %v2992
  %3011 = vmatpush1.bf16.msra.mxu0 %v2991
  %3012 = vmatprep.subr.bf16.mxu0 %v2994
  %3013 = vmatpush1.bf16.msra.mxu0 %v2993
  %3014 = vmatprep.subr.bf16.mxu0 %v2996
  %3015 = vmatpush1.bf16.msra.mxu0 %v2995
  %3016 = vmatprep.subr.bf16.mxu0 0
  %3017 = vmatpush1.bf16.msra.mxu0 0
  %3018 = vmatprep.subr.bf16.mxu0 0
  %3019 = vmatpush1.bf16.msra.mxu0 0
  %3020 = vmatprep.subr.bf16.mxu0 0
  %3021 = vmatpush1.bf16.msra.mxu0 0
  %3022 = vmatprep.subr.bf16.mxu0 0
  %3023 = vmatpush1.bf16.msra.mxu0 0
  %3024 = vmatprep.subr.bf16.mxu0 0
  %3025 = vmatpush1.bf16.msra.mxu0 0
  %3026 = vmatprep.subr.bf16.mxu0 0
  %3027 = vmatpush1.bf16.msra.mxu0 0
  %3028 = vmatprep.subr.bf16.mxu0 0
  %3029 = vmatpush1.bf16.msra.mxu0 0
  %3030 = vmatprep.subr.bf16.mxu0 0
  %3031 = vmatpush1.bf16.msra.mxu0 0
  %3032 = vmatprep.subr.bf16.mxu0 0
  %3033 = vmatpush1.bf16.msra.mxu0 0
  %3034 = vmatprep.subr.bf16.mxu0 0
  %3035 = vmatpush1.bf16.msra.mxu0 0
  %3036 = vmatprep.subr.bf16.mxu0 0
  %3037 = vmatpush1.bf16.msra.mxu0 0
  %3038 = vmatprep.subr.bf16.mxu0 0
  %3039 = vmatpush1.bf16.msra.mxu0 0
  %3040 = vmatprep.mubr.bf16.mxu0 0
  %3041 = vmatmul.mubr.bf16.gmra.mrb[0].mxu0 %v3006
  %v3042 = vpop.f32.mrb[0].mxu0
  %v3043 = vadd.f32 0.0, %v3042
  %v3044 = vpop.f32.mrb[0].mxu0
  %v3045 = vadd.f32 0.0, %v3044
  %v3046 = vpop.f32.mrb[0].mxu0
  %v3047 = vadd.f32 0.0, %v3046
  %v3048 = vpop.f32.mrb[0].mxu0
  %v3049 = vadd.f32 0.0, %v3048
  %3050 = vdwg.mxu0
  %v3051 = vadd.f32 %v2952, %v3043
  %v3052 = vadd.f32 %v2953, %v3045
  %v3053 = vadd.f32 %v2954, %v3047
  %v3054 = vadd.f32 %v2955, %v3049
  %s3055 = scalar_lea.vmem %s7, 256
  %v3056 = vld [vmem:[%s3055] sm:$0xff]
  %v3057 = vld [vmem:[%s3055 + $0x8] sm:$0xff]
  %v3058 = vld [vmem:[%s3055 + $0x10] sm:$0xff]
  %v3059 = vld [vmem:[%s3055 + $0x18] sm:$0xff]
  %v3060 = vld [vmem:[%s3055 + $0x20] sm:$0xff]
  %v3061 = vld [vmem:[%s3055 + $0x28] sm:$0xff]
  %v3062 = vld [vmem:[%s3055 + $0x30] sm:$0xff]
  %v3063 = vld [vmem:[%s3055 + $0x38] sm:$0xff]
  %v3072 = vunpack.c.l.b16 %v3056
  %v3073 = vunpack.c.h.b16 %v3056
  %v3074 = vunpack.c.l.b16 %v3057
  %v3075 = vunpack.c.h.b16 %v3057
  %v3076 = vunpack.c.l.b16 %v3058
  %v3077 = vunpack.c.h.b16 %v3058
  %v3078 = vunpack.c.l.b16 %v3059
  %v3079 = vunpack.c.h.b16 %v3059
  %v3080 = vunpack.c.l.b16 %v3060
  %v3081 = vunpack.c.h.b16 %v3060
  %v3082 = vunpack.c.l.b16 %v3061
  %v3083 = vunpack.c.h.b16 %v3061
  %v3084 = vunpack.c.l.b16 %v3062
  %v3085 = vunpack.c.h.b16 %v3062
  %v3086 = vunpack.c.l.b16 %v3063
  %v3087 = vunpack.c.h.b16 %v3063
  %v3088 = vpack.c.b16 %v3074, %v3072
  %v3089 = vpack.c.b16 %v3075, %v3073
  %v3090 = vpack.c.b16 %v3078, %v3076
  %v3091 = vpack.c.b16 %v3079, %v3077
  %v3092 = vpack.c.b16 %v3082, %v3080
  %v3093 = vpack.c.b16 %v3083, %v3081
  %v3094 = vpack.c.b16 %v3086, %v3084
  %v3095 = vpack.c.b16 %v3087, %v3085
  %v3105 = vsel %vm580, %v2636, 0
  %3107 = vmatprep.subr.bf16.mxu0 %v3089
  %3108 = vmatpush1.bf16.msra.mxu0 %v3088
  %3109 = vmatprep.subr.bf16.mxu0 %v3091
  %3110 = vmatpush1.bf16.msra.mxu0 %v3090
  %3111 = vmatprep.subr.bf16.mxu0 %v3093
  %3112 = vmatpush1.bf16.msra.mxu0 %v3092
  %3113 = vmatprep.subr.bf16.mxu0 %v3095
  %3114 = vmatpush1.bf16.msra.mxu0 %v3094
  %3115 = vmatprep.subr.bf16.mxu0 0
  %3116 = vmatpush1.bf16.msra.mxu0 0
  %3117 = vmatprep.subr.bf16.mxu0 0
  %3118 = vmatpush1.bf16.msra.mxu0 0
  %3119 = vmatprep.subr.bf16.mxu0 0
  %3120 = vmatpush1.bf16.msra.mxu0 0
  %3121 = vmatprep.subr.bf16.mxu0 0
  %3122 = vmatpush1.bf16.msra.mxu0 0
  %3123 = vmatprep.subr.bf16.mxu0 0
  %3124 = vmatpush1.bf16.msra.mxu0 0
  %3125 = vmatprep.subr.bf16.mxu0 0
  %3126 = vmatpush1.bf16.msra.mxu0 0
  %3127 = vmatprep.subr.bf16.mxu0 0
  %3128 = vmatpush1.bf16.msra.mxu0 0
  %3129 = vmatprep.subr.bf16.mxu0 0
  %3130 = vmatpush1.bf16.msra.mxu0 0
  %3131 = vmatprep.subr.bf16.mxu0 0
  %3132 = vmatpush1.bf16.msra.mxu0 0
  %3133 = vmatprep.subr.bf16.mxu0 0
  %3134 = vmatpush1.bf16.msra.mxu0 0
  %3135 = vmatprep.subr.bf16.mxu0 0
  %3136 = vmatpush1.bf16.msra.mxu0 0
  %3137 = vmatprep.subr.bf16.mxu0 0
  %3138 = vmatpush1.bf16.msra.mxu0 0
  %3139 = vmatprep.mubr.bf16.mxu0 0
  %3140 = vmatmul.mubr.bf16.gmra.mrb[0].mxu0 %v3105
  %v3141 = vpop.f32.mrb[0].mxu0
  %v3142 = vadd.f32 0.0, %v3141
  %v3143 = vpop.f32.mrb[0].mxu0
  %v3144 = vadd.f32 0.0, %v3143
  %v3145 = vpop.f32.mrb[0].mxu0
  %v3146 = vadd.f32 0.0, %v3145
  %v3147 = vpop.f32.mrb[0].mxu0
  %v3148 = vadd.f32 0.0, %v3147
  %3149 = vdwg.mxu0
  %v3150 = vadd.f32 %v3051, %v3142
  %v3151 = vadd.f32 %v3052, %v3144
  %v3152 = vadd.f32 %v3053, %v3146
  %v3153 = vadd.f32 %v3054, %v3148
  %s3154 = scalar_lea.vmem %s7, 320
  %v3155 = vld [vmem:[%s3154] sm:$0xff]
  %v3156 = vld [vmem:[%s3154 + $0x8] sm:$0xff]
  %v3157 = vld [vmem:[%s3154 + $0x10] sm:$0xff]
  %v3158 = vld [vmem:[%s3154 + $0x18] sm:$0xff]
  %v3159 = vld [vmem:[%s3154 + $0x20] sm:$0xff]
  %v3160 = vld [vmem:[%s3154 + $0x28] sm:$0xff]
  %v3161 = vld [vmem:[%s3154 + $0x30] sm:$0xff]
  %v3162 = vld [vmem:[%s3154 + $0x38] sm:$0xff]
  %v3171 = vunpack.c.l.b16 %v3155
  %v3172 = vunpack.c.h.b16 %v3155
  %v3173 = vunpack.c.l.b16 %v3156
  %v3174 = vunpack.c.h.b16 %v3156
  %v3175 = vunpack.c.l.b16 %v3157
  %v3176 = vunpack.c.h.b16 %v3157
  %v3177 = vunpack.c.l.b16 %v3158
  %v3178 = vunpack.c.h.b16 %v3158
  %v3179 = vunpack.c.l.b16 %v3159
  %v3180 = vunpack.c.h.b16 %v3159
  %v3181 = vunpack.c.l.b16 %v3160
  %v3182 = vunpack.c.h.b16 %v3160
  %v3183 = vunpack.c.l.b16 %v3161
  %v3184 = vunpack.c.h.b16 %v3161
  %v3185 = vunpack.c.l.b16 %v3162
  %v3186 = vunpack.c.h.b16 %v3162
  %v3187 = vpack.c.b16 %v3173, %v3171
  %v3188 = vpack.c.b16 %v3174, %v3172
  %v3189 = vpack.c.b16 %v3177, %v3175
  %v3190 = vpack.c.b16 %v3178, %v3176
  %v3191 = vpack.c.b16 %v3181, %v3179
  %v3192 = vpack.c.b16 %v3182, %v3180
  %v3193 = vpack.c.b16 %v3185, %v3183
  %v3194 = vpack.c.b16 %v3186, %v3184
  %v3204 = vsel %vm580, %v2637, 0
  %3206 = vmatprep.subr.bf16.mxu0 %v3188
  %3207 = vmatpush1.bf16.msra.mxu0 %v3187
  %3208 = vmatprep.subr.bf16.mxu0 %v3190
  %3209 = vmatpush1.bf16.msra.mxu0 %v3189
  %3210 = vmatprep.subr.bf16.mxu0 %v3192
  %3211 = vmatpush1.bf16.msra.mxu0 %v3191
  %3212 = vmatprep.subr.bf16.mxu0 %v3194
  %3213 = vmatpush1.bf16.msra.mxu0 %v3193
  %3214 = vmatprep.subr.bf16.mxu0 0
  %3215 = vmatpush1.bf16.msra.mxu0 0
  %3216 = vmatprep.subr.bf16.mxu0 0
  %3217 = vmatpush1.bf16.msra.mxu0 0
  %3218 = vmatprep.subr.bf16.mxu0 0
  %3219 = vmatpush1.bf16.msra.mxu0 0
  %3220 = vmatprep.subr.bf16.mxu0 0
  %3221 = vmatpush1.bf16.msra.mxu0 0
  %3222 = vmatprep.subr.bf16.mxu0 0
  %3223 = vmatpush1.bf16.msra.mxu0 0
  %3224 = vmatprep.subr.bf16.mxu0 0
  %3225 = vmatpush1.bf16.msra.mxu0 0
  %3226 = vmatprep.subr.bf16.mxu0 0
  %3227 = vmatpush1.bf16.msra.mxu0 0
  %3228 = vmatprep.subr.bf16.mxu0 0
  %3229 = vmatpush1.bf16.msra.mxu0 0
  %3230 = vmatprep.subr.bf16.mxu0 0
  %3231 = vmatpush1.bf16.msra.mxu0 0
  %3232 = vmatprep.subr.bf16.mxu0 0
  %3233 = vmatpush1.bf16.msra.mxu0 0
  %3234 = vmatprep.subr.bf16.mxu0 0
  %3235 = vmatpush1.bf16.msra.mxu0 0
  %3236 = vmatprep.subr.bf16.mxu0 0
  %3237 = vmatpush1.bf16.msra.mxu0 0
  %3238 = vmatprep.mubr.bf16.mxu0 0
  %3239 = vmatmul.mubr.bf16.gmra.mrb[0].mxu0 %v3204
  %v3240 = vpop.f32.mrb[0].mxu0
  %v3241 = vadd.f32 0.0, %v3240
  %v3242 = vpop.f32.mrb[0].mxu0
  %v3243 = vadd.f32 0.0, %v3242
  %v3244 = vpop.f32.mrb[0].mxu0
  %v3245 = vadd.f32 0.0, %v3244
  %v3246 = vpop.f32.mrb[0].mxu0
  %v3247 = vadd.f32 0.0, %v3246
  %3248 = vdwg.mxu0
  %v3249 = vadd.f32 %v3150, %v3241
  %v3250 = vadd.f32 %v3151, %v3243
  %v3251 = vadd.f32 %v3152, %v3245
  %v3252 = vadd.f32 %v3153, %v3247
  %s3253 = scalar_lea.vmem %s7, 384
  %v3254 = vld [vmem:[%s3253] sm:$0xff]
  %v3255 = vld [vmem:[%s3253 + $0x8] sm:$0xff]
  %v3256 = vld [vmem:[%s3253 + $0x10] sm:$0xff]
  %v3257 = vld [vmem:[%s3253 + $0x18] sm:$0xff]
  %v3258 = vld [vmem:[%s3253 + $0x20] sm:$0xff]
  %v3259 = vld [vmem:[%s3253 + $0x28] sm:$0xff]
  %v3260 = vld [vmem:[%s3253 + $0x30] sm:$0xff]
  %v3261 = vld [vmem:[%s3253 + $0x38] sm:$0xff]
  %v3270 = vunpack.c.l.b16 %v3254
  %v3271 = vunpack.c.h.b16 %v3254
  %v3272 = vunpack.c.l.b16 %v3255
  %v3273 = vunpack.c.h.b16 %v3255
  %v3274 = vunpack.c.l.b16 %v3256
  %v3275 = vunpack.c.h.b16 %v3256
  %v3276 = vunpack.c.l.b16 %v3257
  %v3277 = vunpack.c.h.b16 %v3257
  %v3278 = vunpack.c.l.b16 %v3258
  %v3279 = vunpack.c.h.b16 %v3258
  %v3280 = vunpack.c.l.b16 %v3259
  %v3281 = vunpack.c.h.b16 %v3259
  %v3282 = vunpack.c.l.b16 %v3260
  %v3283 = vunpack.c.h.b16 %v3260
  %v3284 = vunpack.c.l.b16 %v3261
  %v3285 = vunpack.c.h.b16 %v3261
  %v3286 = vpack.c.b16 %v3272, %v3270
  %v3287 = vpack.c.b16 %v3273, %v3271
  %v3288 = vpack.c.b16 %v3276, %v3274
  %v3289 = vpack.c.b16 %v3277, %v3275
  %v3290 = vpack.c.b16 %v3280, %v3278
  %v3291 = vpack.c.b16 %v3281, %v3279
  %v3292 = vpack.c.b16 %v3284, %v3282
  %v3293 = vpack.c.b16 %v3285, %v3283
  %v3303 = vsel %vm580, %v2638, 0
  %3305 = vmatprep.subr.bf16.mxu0 %v3287
  %3306 = vmatpush1.bf16.msra.mxu0 %v3286
  %3307 = vmatprep.subr.bf16.mxu0 %v3289
  %3308 = vmatpush1.bf16.msra.mxu0 %v3288
  %3309 = vmatprep.subr.bf16.mxu0 %v3291
  %3310 = vmatpush1.bf16.msra.mxu0 %v3290
  %3311 = vmatprep.subr.bf16.mxu0 %v3293
  %3312 = vmatpush1.bf16.msra.mxu0 %v3292
  %3313 = vmatprep.subr.bf16.mxu0 0
  %3314 = vmatpush1.bf16.msra.mxu0 0
  %3315 = vmatprep.subr.bf16.mxu0 0
  %3316 = vmatpush1.bf16.msra.mxu0 0
  %3317 = vmatprep.subr.bf16.mxu0 0
  %3318 = vmatpush1.bf16.msra.mxu0 0
  %3319 = vmatprep.subr.bf16.mxu0 0
  %3320 = vmatpush1.bf16.msra.mxu0 0
  %3321 = vmatprep.subr.bf16.mxu0 0
  %3322 = vmatpush1.bf16.msra.mxu0 0
  %3323 = vmatprep.subr.bf16.mxu0 0
  %3324 = vmatpush1.bf16.msra.mxu0 0
  %3325 = vmatprep.subr.bf16.mxu0 0
  %3326 = vmatpush1.bf16.msra.mxu0 0
  %3327 = vmatprep.subr.bf16.mxu0 0
  %3328 = vmatpush1.bf16.msra.mxu0 0
  %3329 = vmatprep.subr.bf16.mxu0 0
  %3330 = vmatpush1.bf16.msra.mxu0 0
  %3331 = vmatprep.subr.bf16.mxu0 0
  %3332 = vmatpush1.bf16.msra.mxu0 0
  %3333 = vmatprep.subr.bf16.mxu0 0
  %3334 = vmatpush1.bf16.msra.mxu0 0
  %3335 = vmatprep.subr.bf16.mxu0 0
  %3336 = vmatpush1.bf16.msra.mxu0 0
  %3337 = vmatprep.mubr.bf16.mxu0 0
  %3338 = vmatmul.mubr.bf16.gmra.mrb[0].mxu0 %v3303
  %v3339 = vpop.f32.mrb[0].mxu0
  %v3340 = vadd.f32 0.0, %v3339
  %v3341 = vpop.f32.mrb[0].mxu0
  %v3342 = vadd.f32 0.0, %v3341
  %v3343 = vpop.f32.mrb[0].mxu0
  %v3344 = vadd.f32 0.0, %v3343
  %v3345 = vpop.f32.mrb[0].mxu0
  %v3346 = vadd.f32 0.0, %v3345
  %3347 = vdwg.mxu0
  %v3348 = vadd.f32 %v3249, %v3340
  %v3349 = vadd.f32 %v3250, %v3342
  %v3350 = vadd.f32 %v3251, %v3344
  %v3351 = vadd.f32 %v3252, %v3346
  %s3352 = scalar_lea.vmem %s7, 448
  %v3353 = vld [vmem:[%s3352] sm:$0xff]
  %v3354 = vld [vmem:[%s3352 + $0x8] sm:$0xff]
  %v3355 = vld [vmem:[%s3352 + $0x10] sm:$0xff]
  %v3356 = vld [vmem:[%s3352 + $0x18] sm:$0xff]
  %v3357 = vld [vmem:[%s3352 + $0x20] sm:$0xff]
  %v3358 = vld [vmem:[%s3352 + $0x28] sm:$0xff]
  %v3359 = vld [vmem:[%s3352 + $0x30] sm:$0xff]
  %v3360 = vld [vmem:[%s3352 + $0x38] sm:$0xff]
  %v3369 = vunpack.c.l.b16 %v3353
  %v3370 = vunpack.c.h.b16 %v3353
  %v3371 = vunpack.c.l.b16 %v3354
  %v3372 = vunpack.c.h.b16 %v3354
  %v3373 = vunpack.c.l.b16 %v3355
  %v3374 = vunpack.c.h.b16 %v3355
  %v3375 = vunpack.c.l.b16 %v3356
  %v3376 = vunpack.c.h.b16 %v3356
  %v3377 = vunpack.c.l.b16 %v3357
  %v3378 = vunpack.c.h.b16 %v3357
  %v3379 = vunpack.c.l.b16 %v3358
  %v3380 = vunpack.c.h.b16 %v3358
  %v3381 = vunpack.c.l.b16 %v3359
  %v3382 = vunpack.c.h.b16 %v3359
  %v3383 = vunpack.c.l.b16 %v3360
  %v3384 = vunpack.c.h.b16 %v3360
  %v3385 = vpack.c.b16 %v3371, %v3369
  %v3386 = vpack.c.b16 %v3372, %v3370
  %v3387 = vpack.c.b16 %v3375, %v3373
  %v3388 = vpack.c.b16 %v3376, %v3374
  %v3389 = vpack.c.b16 %v3379, %v3377
  %v3390 = vpack.c.b16 %v3380, %v3378
  %v3391 = vpack.c.b16 %v3383, %v3381
  %v3392 = vpack.c.b16 %v3384, %v3382
  %v3402 = vsel %vm580, %v2639, 0
  %3404 = vmatprep.subr.bf16.mxu0 %v3386
  %3405 = vmatpush1.bf16.msra.mxu0 %v3385
  %3406 = vmatprep.subr.bf16.mxu0 %v3388
  %3407 = vmatpush1.bf16.msra.mxu0 %v3387
  %3408 = vmatprep.subr.bf16.mxu0 %v3390
  %3409 = vmatpush1.bf16.msra.mxu0 %v3389
  %3410 = vmatprep.subr.bf16.mxu0 %v3392
  %3411 = vmatpush1.bf16.msra.mxu0 %v3391
  %3412 = vmatprep.subr.bf16.mxu0 0
  %3413 = vmatpush1.bf16.msra.mxu0 0
  %3414 = vmatprep.subr.bf16.mxu0 0
  %3415 = vmatpush1.bf16.msra.mxu0 0
  %3416 = vmatprep.subr.bf16.mxu0 0
  %3417 = vmatpush1.bf16.msra.mxu0 0
  %3418 = vmatprep.subr.bf16.mxu0 0
  %3419 = vmatpush1.bf16.msra.mxu0 0
  %3420 = vmatprep.subr.bf16.mxu0 0
  %3421 = vmatpush1.bf16.msra.mxu0 0
  %3422 = vmatprep.subr.bf16.mxu0 0
  %3423 = vmatpush1.bf16.msra.mxu0 0
  %3424 = vmatprep.subr.bf16.mxu0 0
  %3425 = vmatpush1.bf16.msra.mxu0 0
  %3426 = vmatprep.subr.bf16.mxu0 0
  %3427 = vmatpush1.bf16.msra.mxu0 0
  %3428 = vmatprep.subr.bf16.mxu0 0
  %3429 = vmatpush1.bf16.msra.mxu0 0
  %3430 = vmatprep.subr.bf16.mxu0 0
  %3431 = vmatpush1.bf16.msra.mxu0 0
  %3432 = vmatprep.subr.bf16.mxu0 0
  %3433 = vmatpush1.bf16.msra.mxu0 0
  %3434 = vmatprep.subr.bf16.mxu0 0
  %3435 = vmatpush1.bf16.msra.mxu0 0
  %3436 = vmatprep.mubr.bf16.mxu0 0
  %3437 = vmatmul.mubr.bf16.gmra.mrb[0].mxu0 %v3402
  %v3438 = vpop.f32.mrb[0].mxu0
  %v3439 = vadd.f32 0.0, %v3438
  %v3440 = vpop.f32.mrb[0].mxu0
  %v3441 = vadd.f32 0.0, %v3440
  %v3442 = vpop.f32.mrb[0].mxu0
  %v3443 = vadd.f32 0.0, %v3442
  %v3444 = vpop.f32.mrb[0].mxu0
  %v3445 = vadd.f32 0.0, %v3444
  %3446 = vdwg.mxu0
  %v3447 = vadd.f32 %v3348, %v3439
  %v3448 = vadd.f32 %v3349, %v3441
  %v3449 = vadd.f32 %v3350, %v3443
  %v3450 = vadd.f32 %v3351, %v3445
  %s3451 = scalar_lea.vmem %s7, 512
  %v3452 = vld [vmem:[%s3451] sm:$0xff]
  %v3453 = vld [vmem:[%s3451 + $0x8] sm:$0xff]
  %v3454 = vld [vmem:[%s3451 + $0x10] sm:$0xff]
  %v3455 = vld [vmem:[%s3451 + $0x18] sm:$0xff]
  %v3456 = vld [vmem:[%s3451 + $0x20] sm:$0xff]
  %v3457 = vld [vmem:[%s3451 + $0x28] sm:$0xff]
  %v3458 = vld [vmem:[%s3451 + $0x30] sm:$0xff]
  %v3459 = vld [vmem:[%s3451 + $0x38] sm:$0xff]
  %v3468 = vunpack.c.l.b16 %v3452
  %v3469 = vunpack.c.h.b16 %v3452
  %v3470 = vunpack.c.l.b16 %v3453
  %v3471 = vunpack.c.h.b16 %v3453
  %v3472 = vunpack.c.l.b16 %v3454
  %v3473 = vunpack.c.h.b16 %v3454
  %v3474 = vunpack.c.l.b16 %v3455
  %v3475 = vunpack.c.h.b16 %v3455
  %v3476 = vunpack.c.l.b16 %v3456
  %v3477 = vunpack.c.h.b16 %v3456
  %v3478 = vunpack.c.l.b16 %v3457
  %v3479 = vunpack.c.h.b16 %v3457
  %v3480 = vunpack.c.l.b16 %v3458
  %v3481 = vunpack.c.h.b16 %v3458
  %v3482 = vunpack.c.l.b16 %v3459
  %v3483 = vunpack.c.h.b16 %v3459
  %v3484 = vpack.c.b16 %v3470, %v3468
  %v3485 = vpack.c.b16 %v3471, %v3469
  %v3486 = vpack.c.b16 %v3474, %v3472
  %v3487 = vpack.c.b16 %v3475, %v3473
  %v3488 = vpack.c.b16 %v3478, %v3476
  %v3489 = vpack.c.b16 %v3479, %v3477
  %v3490 = vpack.c.b16 %v3482, %v3480
  %v3491 = vpack.c.b16 %v3483, %v3481
  %v3501 = vsel %vm580, %v2640, 0
  %3503 = vmatprep.subr.bf16.mxu0 %v3485
  %3504 = vmatpush1.bf16.msra.mxu0 %v3484
  %3505 = vmatprep.subr.bf16.mxu0 %v3487
  %3506 = vmatpush1.bf16.msra.mxu0 %v3486
  %3507 = vmatprep.subr.bf16.mxu0 %v3489
  %3508 = vmatpush1.bf16.msra.mxu0 %v3488
  %3509 = vmatprep.subr.bf16.mxu0 %v3491
  %3510 = vmatpush1.bf16.msra.mxu0 %v3490
  %3511 = vmatprep.subr.bf16.mxu0 0
  %3512 = vmatpush1.bf16.msra.mxu0 0
  %3513 = vmatprep.subr.bf16.mxu0 0
  %3514 = vmatpush1.bf16.msra.mxu0 0
  %3515 = vmatprep.subr.bf16.mxu0 0
  %3516 = vmatpush1.bf16.msra.mxu0 0
  %3517 = vmatprep.subr.bf16.mxu0 0
  %3518 = vmatpush1.bf16.msra.mxu0 0
  %3519 = vmatprep.subr.bf16.mxu0 0
  %3520 = vmatpush1.bf16.msra.mxu0 0
  %3521 = vmatprep.subr.bf16.mxu0 0
  %3522 = vmatpush1.bf16.msra.mxu0 0
  %3523 = vmatprep.subr.bf16.mxu0 0
  %3524 = vmatpush1.bf16.msra.mxu0 0
  %3525 = vmatprep.subr.bf16.mxu0 0
  %3526 = vmatpush1.bf16.msra.mxu0 0
  %3527 = vmatprep.subr.bf16.mxu0 0
  %3528 = vmatpush1.bf16.msra.mxu0 0
  %3529 = vmatprep.subr.bf16.mxu0 0
  %3530 = vmatpush1.bf16.msra.mxu0 0
  %3531 = vmatprep.subr.bf16.mxu0 0
  %3532 = vmatpush1.bf16.msra.mxu0 0
  %3533 = vmatprep.subr.bf16.mxu0 0
  %3534 = vmatpush1.bf16.msra.mxu0 0
  %3535 = vmatprep.mubr.bf16.mxu0 0
  %3536 = vmatmul.mubr.bf16.gmra.mrb[0].mxu0 %v3501
  %v3537 = vpop.f32.mrb[0].mxu0
  %v3538 = vadd.f32 0.0, %v3537
  %v3539 = vpop.f32.mrb[0].mxu0
  %v3540 = vadd.f32 0.0, %v3539
  %v3541 = vpop.f32.mrb[0].mxu0
  %v3542 = vadd.f32 0.0, %v3541
  %v3543 = vpop.f32.mrb[0].mxu0
  %v3544 = vadd.f32 0.0, %v3543
  %3545 = vdwg.mxu0
  %v3546 = vadd.f32 %v3447, %v3538
  %v3547 = vadd.f32 %v3448, %v3540
  %v3548 = vadd.f32 %v3449, %v3542
  %v3549 = vadd.f32 %v3450, %v3544
  %s3550 = scalar_lea.vmem %s7, 576
  %v3551 = vld [vmem:[%s3550] sm:$0xff]
  %v3552 = vld [vmem:[%s3550 + $0x8] sm:$0xff]
  %v3553 = vld [vmem:[%s3550 + $0x10] sm:$0xff]
  %v3554 = vld [vmem:[%s3550 + $0x18] sm:$0xff]
  %v3555 = vld [vmem:[%s3550 + $0x20] sm:$0xff]
  %v3556 = vld [vmem:[%s3550 + $0x28] sm:$0xff]
  %v3557 = vld [vmem:[%s3550 + $0x30] sm:$0xff]
  %v3558 = vld [vmem:[%s3550 + $0x38] sm:$0xff]
  %v3567 = vunpack.c.l.b16 %v3551
  %v3568 = vunpack.c.h.b16 %v3551
  %v3569 = vunpack.c.l.b16 %v3552
  %v3570 = vunpack.c.h.b16 %v3552
  %v3571 = vunpack.c.l.b16 %v3553
  %v3572 = vunpack.c.h.b16 %v3553
  %v3573 = vunpack.c.l.b16 %v3554
  %v3574 = vunpack.c.h.b16 %v3554
  %v3575 = vunpack.c.l.b16 %v3555
  %v3576 = vunpack.c.h.b16 %v3555
  %v3577 = vunpack.c.l.b16 %v3556
  %v3578 = vunpack.c.h.b16 %v3556
  %v3579 = vunpack.c.l.b16 %v3557
  %v3580 = vunpack.c.h.b16 %v3557
  %v3581 = vunpack.c.l.b16 %v3558
  %v3582 = vunpack.c.h.b16 %v3558
  %v3583 = vpack.c.b16 %v3569, %v3567
  %v3584 = vpack.c.b16 %v3570, %v3568
  %v3585 = vpack.c.b16 %v3573, %v3571
  %v3586 = vpack.c.b16 %v3574, %v3572
  %v3587 = vpack.c.b16 %v3577, %v3575
  %v3588 = vpack.c.b16 %v3578, %v3576
  %v3589 = vpack.c.b16 %v3581, %v3579
  %v3590 = vpack.c.b16 %v3582, %v3580
  %v3600 = vsel %vm580, %v2641, 0
  %3602 = vmatprep.subr.bf16.mxu0 %v3584
  %3603 = vmatpush1.bf16.msra.mxu0 %v3583
  %3604 = vmatprep.subr.bf16.mxu0 %v3586
  %3605 = vmatpush1.bf16.msra.mxu0 %v3585
  %3606 = vmatprep.subr.bf16.mxu0 %v3588
  %3607 = vmatpush1.bf16.msra.mxu0 %v3587
  %3608 = vmatprep.subr.bf16.mxu0 %v3590
  %3609 = vmatpush1.bf16.msra.mxu0 %v3589
  %3610 = vmatprep.subr.bf16.mxu0 0
  %3611 = vmatpush1.bf16.msra.mxu0 0
  %3612 = vmatprep.subr.bf16.mxu0 0
  %3613 = vmatpush1.bf16.msra.mxu0 0
  %3614 = vmatprep.subr.bf16.mxu0 0
  %3615 = vmatpush1.bf16.msra.mxu0 0
  %3616 = vmatprep.subr.bf16.mxu0 0
  %3617 = vmatpush1.bf16.msra.mxu0 0
  %3618 = vmatprep.subr.bf16.mxu0 0
  %3619 = vmatpush1.bf16.msra.mxu0 0
  %3620 = vmatprep.subr.bf16.mxu0 0
  %3621 = vmatpush1.bf16.msra.mxu0 0
  %3622 = vmatprep.subr.bf16.mxu0 0
  %3623 = vmatpush1.bf16.msra.mxu0 0
  %3624 = vmatprep.subr.bf16.mxu0 0
  %3625 = vmatpush1.bf16.msra.mxu0 0
  %3626 = vmatprep.subr.bf16.mxu0 0
  %3627 = vmatpush1.bf16.msra.mxu0 0
  %3628 = vmatprep.subr.bf16.mxu0 0
  %3629 = vmatpush1.bf16.msra.mxu0 0
  %3630 = vmatprep.subr.bf16.mxu0 0
  %3631 = vmatpush1.bf16.msra.mxu0 0
  %3632 = vmatprep.subr.bf16.mxu0 0
  %3633 = vmatpush1.bf16.msra.mxu0 0
  %3634 = vmatprep.mubr.bf16.mxu0 0
  %3635 = vmatmul.mubr.bf16.gmra.mrb[0].mxu0 %v3600
  %v3636 = vpop.f32.mrb[0].mxu0
  %v3637 = vadd.f32 0.0, %v3636
  %v3638 = vpop.f32.mrb[0].mxu0
  %v3639 = vadd.f32 0.0, %v3638
  %v3640 = vpop.f32.mrb[0].mxu0
  %v3641 = vadd.f32 0.0, %v3640
  %v3642 = vpop.f32.mrb[0].mxu0
  %v3643 = vadd.f32 0.0, %v3642
  %3644 = vdwg.mxu0
  %v3645 = vadd.f32 %v3546, %v3637
  %v3646 = vadd.f32 %v3547, %v3639
  %v3647 = vadd.f32 %v3548, %v3641
  %v3648 = vadd.f32 %v3549, %v3643
  %s3649 = scalar_lea.vmem %s7, 640
  %v3650 = vld [vmem:[%s3649] sm:$0xff]
  %v3651 = vld [vmem:[%s3649 + $0x8] sm:$0xff]
  %v3652 = vld [vmem:[%s3649 + $0x10] sm:$0xff]
  %v3653 = vld [vmem:[%s3649 + $0x18] sm:$0xff]
  %v3654 = vld [vmem:[%s3649 + $0x20] sm:$0xff]
  %v3655 = vld [vmem:[%s3649 + $0x28] sm:$0xff]
  %v3656 = vld [vmem:[%s3649 + $0x30] sm:$0xff]
  %v3657 = vld [vmem:[%s3649 + $0x38] sm:$0xff]
  %v3666 = vunpack.c.l.b16 %v3650
  %v3667 = vunpack.c.h.b16 %v3650
  %v3668 = vunpack.c.l.b16 %v3651
  %v3669 = vunpack.c.h.b16 %v3651
  %v3670 = vunpack.c.l.b16 %v3652
  %v3671 = vunpack.c.h.b16 %v3652
  %v3672 = vunpack.c.l.b16 %v3653
  %v3673 = vunpack.c.h.b16 %v3653
  %v3674 = vunpack.c.l.b16 %v3654
  %v3675 = vunpack.c.h.b16 %v3654
  %v3676 = vunpack.c.l.b16 %v3655
  %v3677 = vunpack.c.h.b16 %v3655
  %v3678 = vunpack.c.l.b16 %v3656
  %v3679 = vunpack.c.h.b16 %v3656
  %v3680 = vunpack.c.l.b16 %v3657
  %v3681 = vunpack.c.h.b16 %v3657
  %v3682 = vpack.c.b16 %v3668, %v3666
  %v3683 = vpack.c.b16 %v3669, %v3667
  %v3684 = vpack.c.b16 %v3672, %v3670
  %v3685 = vpack.c.b16 %v3673, %v3671
  %v3686 = vpack.c.b16 %v3676, %v3674
  %v3687 = vpack.c.b16 %v3677, %v3675
  %v3688 = vpack.c.b16 %v3680, %v3678
  %v3689 = vpack.c.b16 %v3681, %v3679
  %v3699 = vsel %vm580, %v2642, 0
  %3701 = vmatprep.subr.bf16.mxu0 %v3683
  %3702 = vmatpush1.bf16.msra.mxu0 %v3682
  %3703 = vmatprep.subr.bf16.mxu0 %v3685
  %3704 = vmatpush1.bf16.msra.mxu0 %v3684
  %3705 = vmatprep.subr.bf16.mxu0 %v3687
  %3706 = vmatpush1.bf16.msra.mxu0 %v3686
  %3707 = vmatprep.subr.bf16.mxu0 %v3689
  %3708 = vmatpush1.bf16.msra.mxu0 %v3688
  %3709 = vmatprep.subr.bf16.mxu0 0
  %3710 = vmatpush1.bf16.msra.mxu0 0
  %3711 = vmatprep.subr.bf16.mxu0 0
  %3712 = vmatpush1.bf16.msra.mxu0 0
  %3713 = vmatprep.subr.bf16.mxu0 0
  %3714 = vmatpush1.bf16.msra.mxu0 0
  %3715 = vmatprep.subr.bf16.mxu0 0
  %3716 = vmatpush1.bf16.msra.mxu0 0
  %3717 = vmatprep.subr.bf16.mxu0 0
  %3718 = vmatpush1.bf16.msra.mxu0 0
  %3719 = vmatprep.subr.bf16.mxu0 0
  %3720 = vmatpush1.bf16.msra.mxu0 0
  %3721 = vmatprep.subr.bf16.mxu0 0
  %3722 = vmatpush1.bf16.msra.mxu0 0
  %3723 = vmatprep.subr.bf16.mxu0 0
  %3724 = vmatpush1.bf16.msra.mxu0 0
  %3725 = vmatprep.subr.bf16.mxu0 0
  %3726 = vmatpush1.bf16.msra.mxu0 0
  %3727 = vmatprep.subr.bf16.mxu0 0
  %3728 = vmatpush1.bf16.msra.mxu0 0
  %3729 = vmatprep.subr.bf16.mxu0 0
  %3730 = vmatpush1.bf16.msra.mxu0 0
  %3731 = vmatprep.subr.bf16.mxu0 0
  %3732 = vmatpush1.bf16.msra.mxu0 0
  %3733 = vmatprep.mubr.bf16.mxu0 0
  %3734 = vmatmul.mubr.bf16.gmra.mrb[0].mxu0 %v3699
  %v3735 = vpop.f32.mrb[0].mxu0
  %v3736 = vadd.f32 0.0, %v3735
  %v3737 = vpop.f32.mrb[0].mxu0
  %v3738 = vadd.f32 0.0, %v3737
  %v3739 = vpop.f32.mrb[0].mxu0
  %v3740 = vadd.f32 0.0, %v3739
  %v3741 = vpop.f32.mrb[0].mxu0
  %v3742 = vadd.f32 0.0, %v3741
  %3743 = vdwg.mxu0
  %v3744 = vadd.f32 %v3645, %v3736
  %v3745 = vadd.f32 %v3646, %v3738
  %v3746 = vadd.f32 %v3647, %v3740
  %v3747 = vadd.f32 %v3648, %v3742
  %s3748 = scalar_lea.vmem %s7, 704
  %v3749 = vld [vmem:[%s3748] sm:$0xff]
  %v3750 = vld [vmem:[%s3748 + $0x8] sm:$0xff]
  %v3751 = vld [vmem:[%s3748 + $0x10] sm:$0xff]
  %v3752 = vld [vmem:[%s3748 + $0x18] sm:$0xff]
  %v3753 = vld [vmem:[%s3748 + $0x20] sm:$0xff]
  %v3754 = vld [vmem:[%s3748 + $0x28] sm:$0xff]
  %v3755 = vld [vmem:[%s3748 + $0x30] sm:$0xff]
  %v3756 = vld [vmem:[%s3748 + $0x38] sm:$0xff]
  %v3765 = vunpack.c.l.b16 %v3749
  %v3766 = vunpack.c.h.b16 %v3749
  %v3767 = vunpack.c.l.b16 %v3750
  %v3768 = vunpack.c.h.b16 %v3750
  %v3769 = vunpack.c.l.b16 %v3751
  %v3770 = vunpack.c.h.b16 %v3751
  %v3771 = vunpack.c.l.b16 %v3752
  %v3772 = vunpack.c.h.b16 %v3752
  %v3773 = vunpack.c.l.b16 %v3753
  %v3774 = vunpack.c.h.b16 %v3753
  %v3775 = vunpack.c.l.b16 %v3754
  %v3776 = vunpack.c.h.b16 %v3754
  %v3777 = vunpack.c.l.b16 %v3755
  %v3778 = vunpack.c.h.b16 %v3755
  %v3779 = vunpack.c.l.b16 %v3756
  %v3780 = vunpack.c.h.b16 %v3756
  %v3781 = vpack.c.b16 %v3767, %v3765
  %v3782 = vpack.c.b16 %v3768, %v3766
  %v3783 = vpack.c.b16 %v3771, %v3769
  %v3784 = vpack.c.b16 %v3772, %v3770
  %v3785 = vpack.c.b16 %v3775, %v3773
  %v3786 = vpack.c.b16 %v3776, %v3774
  %v3787 = vpack.c.b16 %v3779, %v3777
  %v3788 = vpack.c.b16 %v3780, %v3778
  %v3798 = vsel %vm580, %v2643, 0
  %3800 = vmatprep.subr.bf16.mxu0 %v3782
  %3801 = vmatpush1.bf16.msra.mxu0 %v3781
  %3802 = vmatprep.subr.bf16.mxu0 %v3784
  %3803 = vmatpush1.bf16.msra.mxu0 %v3783
  %3804 = vmatprep.subr.bf16.mxu0 %v3786
  %3805 = vmatpush1.bf16.msra.mxu0 %v3785
  %3806 = vmatprep.subr.bf16.mxu0 %v3788
  %3807 = vmatpush1.bf16.msra.mxu0 %v3787
  %3808 = vmatprep.subr.bf16.mxu0 0
  %3809 = vmatpush1.bf16.msra.mxu0 0
  %3810 = vmatprep.subr.bf16.mxu0 0
  %3811 = vmatpush1.bf16.msra.mxu0 0
  %3812 = vmatprep.subr.bf16.mxu0 0
  %3813 = vmatpush1.bf16.msra.mxu0 0
  %3814 = vmatprep.subr.bf16.mxu0 0
  %3815 = vmatpush1.bf16.msra.mxu0 0
  %3816 = vmatprep.subr.bf16.mxu0 0
  %3817 = vmatpush1.bf16.msra.mxu0 0
  %3818 = vmatprep.subr.bf16.mxu0 0
  %3819 = vmatpush1.bf16.msra.mxu0 0
  %3820 = vmatprep.subr.bf16.mxu0 0
  %3821 = vmatpush1.bf16.msra.mxu0 0
  %3822 = vmatprep.subr.bf16.mxu0 0
  %3823 = vmatpush1.bf16.msra.mxu0 0
  %3824 = vmatprep.subr.bf16.mxu0 0
  %3825 = vmatpush1.bf16.msra.mxu0 0
  %3826 = vmatprep.subr.bf16.mxu0 0
  %3827 = vmatpush1.bf16.msra.mxu0 0
  %3828 = vmatprep.subr.bf16.mxu0 0
  %3829 = vmatpush1.bf16.msra.mxu0 0
  %3830 = vmatprep.subr.bf16.mxu0 0
  %3831 = vmatpush1.bf16.msra.mxu0 0
  %3832 = vmatprep.mubr.bf16.mxu0 0
  %3833 = vmatmul.mubr.bf16.gmra.mrb[0].mxu0 %v3798
  %v3834 = vpop.f32.mrb[0].mxu0
  %v3835 = vadd.f32 0.0, %v3834
  %v3836 = vpop.f32.mrb[0].mxu0
  %v3837 = vadd.f32 0.0, %v3836
  %v3838 = vpop.f32.mrb[0].mxu0
  %v3839 = vadd.f32 0.0, %v3838
  %v3840 = vpop.f32.mrb[0].mxu0
  %v3841 = vadd.f32 0.0, %v3840
  %3842 = vdwg.mxu0
  %v3843 = vadd.f32 %v3744, %v3835
  %v3844 = vadd.f32 %v3745, %v3837
  %v3845 = vadd.f32 %v3746, %v3839
  %v3846 = vadd.f32 %v3747, %v3841
  %s3847 = scalar_lea.vmem %s7, 768
  %v3848 = vld [vmem:[%s3847] sm:$0xff]
  %v3849 = vld [vmem:[%s3847 + $0x8] sm:$0xff]
  %v3850 = vld [vmem:[%s3847 + $0x10] sm:$0xff]
  %v3851 = vld [vmem:[%s3847 + $0x18] sm:$0xff]
  %v3852 = vld [vmem:[%s3847 + $0x20] sm:$0xff]
  %v3853 = vld [vmem:[%s3847 + $0x28] sm:$0xff]
  %v3854 = vld [vmem:[%s3847 + $0x30] sm:$0xff]
  %v3855 = vld [vmem:[%s3847 + $0x38] sm:$0xff]
  %v3864 = vunpack.c.l.b16 %v3848
  %v3865 = vunpack.c.h.b16 %v3848
  %v3866 = vunpack.c.l.b16 %v3849
  %v3867 = vunpack.c.h.b16 %v3849
  %v3868 = vunpack.c.l.b16 %v3850
  %v3869 = vunpack.c.h.b16 %v3850
  %v3870 = vunpack.c.l.b16 %v3851
  %v3871 = vunpack.c.h.b16 %v3851
  %v3872 = vunpack.c.l.b16 %v3852
  %v3873 = vunpack.c.h.b16 %v3852
  %v3874 = vunpack.c.l.b16 %v3853
  %v3875 = vunpack.c.h.b16 %v3853
  %v3876 = vunpack.c.l.b16 %v3854
  %v3877 = vunpack.c.h.b16 %v3854
  %v3878 = vunpack.c.l.b16 %v3855
  %v3879 = vunpack.c.h.b16 %v3855
  %v3880 = vpack.c.b16 %v3866, %v3864
  %v3881 = vpack.c.b16 %v3867, %v3865
  %v3882 = vpack.c.b16 %v3870, %v3868
  %v3883 = vpack.c.b16 %v3871, %v3869
  %v3884 = vpack.c.b16 %v3874, %v3872
  %v3885 = vpack.c.b16 %v3875, %v3873
  %v3886 = vpack.c.b16 %v3878, %v3876
  %v3887 = vpack.c.b16 %v3879, %v3877
  %v3897 = vsel %vm580, %v2644, 0
  %3899 = vmatprep.subr.bf16.mxu0 %v3881
  %3900 = vmatpush1.bf16.msra.mxu0 %v3880
  %3901 = vmatprep.subr.bf16.mxu0 %v3883
  %3902 = vmatpush1.bf16.msra.mxu0 %v3882
  %3903 = vmatprep.subr.bf16.mxu0 %v3885
  %3904 = vmatpush1.bf16.msra.mxu0 %v3884
  %3905 = vmatprep.subr.bf16.mxu0 %v3887
  %3906 = vmatpush1.bf16.msra.mxu0 %v3886
  %3907 = vmatprep.subr.bf16.mxu0 0
  %3908 = vmatpush1.bf16.msra.mxu0 0
  %3909 = vmatprep.subr.bf16.mxu0 0
  %3910 = vmatpush1.bf16.msra.mxu0 0
  %3911 = vmatprep.subr.bf16.mxu0 0
  %3912 = vmatpush1.bf16.msra.mxu0 0
  %3913 = vmatprep.subr.bf16.mxu0 0
  %3914 = vmatpush1.bf16.msra.mxu0 0
  %3915 = vmatprep.subr.bf16.mxu0 0
  %3916 = vmatpush1.bf16.msra.mxu0 0
  %3917 = vmatprep.subr.bf16.mxu0 0
  %3918 = vmatpush1.bf16.msra.mxu0 0
  %3919 = vmatprep.subr.bf16.mxu0 0
  %3920 = vmatpush1.bf16.msra.mxu0 0
  %3921 = vmatprep.subr.bf16.mxu0 0
  %3922 = vmatpush1.bf16.msra.mxu0 0
  %3923 = vmatprep.subr.bf16.mxu0 0
  %3924 = vmatpush1.bf16.msra.mxu0 0
  %3925 = vmatprep.subr.bf16.mxu0 0
  %3926 = vmatpush1.bf16.msra.mxu0 0
  %3927 = vmatprep.subr.bf16.mxu0 0
  %3928 = vmatpush1.bf16.msra.mxu0 0
  %3929 = vmatprep.subr.bf16.mxu0 0
  %3930 = vmatpush1.bf16.msra.mxu0 0
  %3931 = vmatprep.mubr.bf16.mxu0 0
  %3932 = vmatmul.mubr.bf16.gmra.mrb[0].mxu0 %v3897
  %v3933 = vpop.f32.mrb[0].mxu0
  %v3934 = vadd.f32 0.0, %v3933
  %v3935 = vpop.f32.mrb[0].mxu0
  %v3936 = vadd.f32 0.0, %v3935
  %v3937 = vpop.f32.mrb[0].mxu0
  %v3938 = vadd.f32 0.0, %v3937
  %v3939 = vpop.f32.mrb[0].mxu0
  %v3940 = vadd.f32 0.0, %v3939
  %3941 = vdwg.mxu0
  %v3942 = vadd.f32 %v3843, %v3934
  %v3943 = vadd.f32 %v3844, %v3936
  %v3944 = vadd.f32 %v3845, %v3938
  %v3945 = vadd.f32 %v3846, %v3940
  %s3946 = scalar_lea.vmem %s7, 832
  %v3947 = vld [vmem:[%s3946] sm:$0xff]
  %v3948 = vld [vmem:[%s3946 + $0x8] sm:$0xff]
  %v3949 = vld [vmem:[%s3946 + $0x10] sm:$0xff]
  %v3950 = vld [vmem:[%s3946 + $0x18] sm:$0xff]
  %v3951 = vld [vmem:[%s3946 + $0x20] sm:$0xff]
  %v3952 = vld [vmem:[%s3946 + $0x28] sm:$0xff]
  %v3953 = vld [vmem:[%s3946 + $0x30] sm:$0xff]
  %v3954 = vld [vmem:[%s3946 + $0x38] sm:$0xff]
  %v3963 = vunpack.c.l.b16 %v3947
  %v3964 = vunpack.c.h.b16 %v3947
  %v3965 = vunpack.c.l.b16 %v3948
  %v3966 = vunpack.c.h.b16 %v3948
  %v3967 = vunpack.c.l.b16 %v3949
  %v3968 = vunpack.c.h.b16 %v3949
  %v3969 = vunpack.c.l.b16 %v3950
  %v3970 = vunpack.c.h.b16 %v3950
  %v3971 = vunpack.c.l.b16 %v3951
  %v3972 = vunpack.c.h.b16 %v3951
  %v3973 = vunpack.c.l.b16 %v3952
  %v3974 = vunpack.c.h.b16 %v3952
  %v3975 = vunpack.c.l.b16 %v3953
  %v3976 = vunpack.c.h.b16 %v3953
  %v3977 = vunpack.c.l.b16 %v3954
  %v3978 = vunpack.c.h.b16 %v3954
  %v3979 = vpack.c.b16 %v3965, %v3963
  %v3980 = vpack.c.b16 %v3966, %v3964
  %v3981 = vpack.c.b16 %v3969, %v3967
  %v3982 = vpack.c.b16 %v3970, %v3968
  %v3983 = vpack.c.b16 %v3973, %v3971
  %v3984 = vpack.c.b16 %v3974, %v3972
  %v3985 = vpack.c.b16 %v3977, %v3975
  %v3986 = vpack.c.b16 %v3978, %v3976
  %v3996 = vsel %vm580, %v2645, 0
  %3998 = vmatprep.subr.bf16.mxu0 %v3980
  %3999 = vmatpush1.bf16.msra.mxu0 %v3979
  %4000 = vmatprep.subr.bf16.mxu0 %v3982
  %4001 = vmatpush1.bf16.msra.mxu0 %v3981
  %4002 = vmatprep.subr.bf16.mxu0 %v3984
  %4003 = vmatpush1.bf16.msra.mxu0 %v3983
  %4004 = vmatprep.subr.bf16.mxu0 %v3986
  %4005 = vmatpush1.bf16.msra.mxu0 %v3985
  %4006 = vmatprep.subr.bf16.mxu0 0
  %4007 = vmatpush1.bf16.msra.mxu0 0
  %4008 = vmatprep.subr.bf16.mxu0 0
  %4009 = vmatpush1.bf16.msra.mxu0 0
  %4010 = vmatprep.subr.bf16.mxu0 0
  %4011 = vmatpush1.bf16.msra.mxu0 0
  %4012 = vmatprep.subr.bf16.mxu0 0
  %4013 = vmatpush1.bf16.msra.mxu0 0
  %4014 = vmatprep.subr.bf16.mxu0 0
  %4015 = vmatpush1.bf16.msra.mxu0 0
  %4016 = vmatprep.subr.bf16.mxu0 0
  %4017 = vmatpush1.bf16.msra.mxu0 0
  %4018 = vmatprep.subr.bf16.mxu0 0
  %4019 = vmatpush1.bf16.msra.mxu0 0
  %4020 = vmatprep.subr.bf16.mxu0 0
  %4021 = vmatpush1.bf16.msra.mxu0 0
  %4022 = vmatprep.subr.bf16.mxu0 0
  %4023 = vmatpush1.bf16.msra.mxu0 0
  %4024 = vmatprep.subr.bf16.mxu0 0
  %4025 = vmatpush1.bf16.msra.mxu0 0
  %4026 = vmatprep.subr.bf16.mxu0 0
  %4027 = vmatpush1.bf16.msra.mxu0 0
  %4028 = vmatprep.subr.bf16.mxu0 0
  %4029 = vmatpush1.bf16.msra.mxu0 0
  %4030 = vmatprep.mubr.bf16.mxu0 0
  %4031 = vmatmul.mubr.bf16.gmra.mrb[0].mxu0 %v3996
  %v4032 = vpop.f32.mrb[0].mxu0
  %v4033 = vadd.f32 0.0, %v4032
  %v4034 = vpop.f32.mrb[0].mxu0
  %v4035 = vadd.f32 0.0, %v4034
  %v4036 = vpop.f32.mrb[0].mxu0
  %v4037 = vadd.f32 0.0, %v4036
  %v4038 = vpop.f32.mrb[0].mxu0
  %v4039 = vadd.f32 0.0, %v4038
  %4040 = vdwg.mxu0
  %v4041 = vadd.f32 %v3942, %v4033
  %v4042 = vadd.f32 %v3943, %v4035
  %v4043 = vadd.f32 %v3944, %v4037
  %v4044 = vadd.f32 %v3945, %v4039
  %s4045 = scalar_lea.vmem %s7, 896
  %v4046 = vld [vmem:[%s4045] sm:$0xff]
  %v4047 = vld [vmem:[%s4045 + $0x8] sm:$0xff]
  %v4048 = vld [vmem:[%s4045 + $0x10] sm:$0xff]
  %v4049 = vld [vmem:[%s4045 + $0x18] sm:$0xff]
  %v4050 = vld [vmem:[%s4045 + $0x20] sm:$0xff]
  %v4051 = vld [vmem:[%s4045 + $0x28] sm:$0xff]
  %v4052 = vld [vmem:[%s4045 + $0x30] sm:$0xff]
  %v4053 = vld [vmem:[%s4045 + $0x38] sm:$0xff]
  %v4062 = vunpack.c.l.b16 %v4046
  %v4063 = vunpack.c.h.b16 %v4046
  %v4064 = vunpack.c.l.b16 %v4047
  %v4065 = vunpack.c.h.b16 %v4047
  %v4066 = vunpack.c.l.b16 %v4048
  %v4067 = vunpack.c.h.b16 %v4048
  %v4068 = vunpack.c.l.b16 %v4049
  %v4069 = vunpack.c.h.b16 %v4049
  %v4070 = vunpack.c.l.b16 %v4050
  %v4071 = vunpack.c.h.b16 %v4050
  %v4072 = vunpack.c.l.b16 %v4051
  %v4073 = vunpack.c.h.b16 %v4051
  %v4074 = vunpack.c.l.b16 %v4052
  %v4075 = vunpack.c.h.b16 %v4052
  %v4076 = vunpack.c.l.b16 %v4053
  %v4077 = vunpack.c.h.b16 %v4053
  %v4078 = vpack.c.b16 %v4064, %v4062
  %v4079 = vpack.c.b16 %v4065, %v4063
  %v4080 = vpack.c.b16 %v4068, %v4066
  %v4081 = vpack.c.b16 %v4069, %v4067
  %v4082 = vpack.c.b16 %v4072, %v4070
  %v4083 = vpack.c.b16 %v4073, %v4071
  %v4084 = vpack.c.b16 %v4076, %v4074
  %v4085 = vpack.c.b16 %v4077, %v4075
  %v4095 = vsel %vm580, %v2646, 0
  %4097 = vmatprep.subr.bf16.mxu0 %v4079
  %4098 = vmatpush1.bf16.msra.mxu0 %v4078
  %4099 = vmatprep.subr.bf16.mxu0 %v4081
  %4100 = vmatpush1.bf16.msra.mxu0 %v4080
  %4101 = vmatprep.subr.bf16.mxu0 %v4083
  %4102 = vmatpush1.bf16.msra.mxu0 %v4082
  %4103 = vmatprep.subr.bf16.mxu0 %v4085
  %4104 = vmatpush1.bf16.msra.mxu0 %v4084
  %4105 = vmatprep.subr.bf16.mxu0 0
  %4106 = vmatpush1.bf16.msra.mxu0 0
  %4107 = vmatprep.subr.bf16.mxu0 0
  %4108 = vmatpush1.bf16.msra.mxu0 0
  %4109 = vmatprep.subr.bf16.mxu0 0
  %4110 = vmatpush1.bf16.msra.mxu0 0
  %4111 = vmatprep.subr.bf16.mxu0 0
  %4112 = vmatpush1.bf16.msra.mxu0 0
  %4113 = vmatprep.subr.bf16.mxu0 0
  %4114 = vmatpush1.bf16.msra.mxu0 0
  %4115 = vmatprep.subr.bf16.mxu0 0
  %4116 = vmatpush1.bf16.msra.mxu0 0
  %4117 = vmatprep.subr.bf16.mxu0 0
  %4118 = vmatpush1.bf16.msra.mxu0 0
  %4119 = vmatprep.subr.bf16.mxu0 0
  %4120 = vmatpush1.bf16.msra.mxu0 0
  %4121 = vmatprep.subr.bf16.mxu0 0
  %4122 = vmatpush1.bf16.msra.mxu0 0
  %4123 = vmatprep.subr.bf16.mxu0 0
  %4124 = vmatpush1.bf16.msra.mxu0 0
  %4125 = vmatprep.subr.bf16.mxu0 0
  %4126 = vmatpush1.bf16.msra.mxu0 0
  %4127 = vmatprep.subr.bf16.mxu0 0
  %4128 = vmatpush1.bf16.msra.mxu0 0
  %4129 = vmatprep.mubr.bf16.mxu0 0
  %4130 = vmatmul.mubr.bf16.gmra.mrb[0].mxu0 %v4095
  %v4131 = vpop.f32.mrb[0].mxu0
  %v4132 = vadd.f32 0.0, %v4131
  %v4133 = vpop.f32.mrb[0].mxu0
  %v4134 = vadd.f32 0.0, %v4133
  %v4135 = vpop.f32.mrb[0].mxu0
  %v4136 = vadd.f32 0.0, %v4135
  %v4137 = vpop.f32.mrb[0].mxu0
  %v4138 = vadd.f32 0.0, %v4137
  %4139 = vdwg.mxu0
  %v4140 = vadd.f32 %v4041, %v4132
  %v4141 = vadd.f32 %v4042, %v4134
  %v4142 = vadd.f32 %v4043, %v4136
  %v4143 = vadd.f32 %v4044, %v4138
  %s4144 = scalar_lea.vmem %s7, 960
  %v4145 = vld [vmem:[%s4144] sm:$0xff]
  %v4146 = vld [vmem:[%s4144 + $0x8] sm:$0xff]
  %v4147 = vld [vmem:[%s4144 + $0x10] sm:$0xff]
  %v4148 = vld [vmem:[%s4144 + $0x18] sm:$0xff]
  %v4149 = vld [vmem:[%s4144 + $0x20] sm:$0xff]
  %v4150 = vld [vmem:[%s4144 + $0x28] sm:$0xff]
  %v4151 = vld [vmem:[%s4144 + $0x30] sm:$0xff]
  %v4152 = vld [vmem:[%s4144 + $0x38] sm:$0xff]
  %v4161 = vunpack.c.l.b16 %v4145
  %v4162 = vunpack.c.h.b16 %v4145
  %v4163 = vunpack.c.l.b16 %v4146
  %v4164 = vunpack.c.h.b16 %v4146
  %v4165 = vunpack.c.l.b16 %v4147
  %v4166 = vunpack.c.h.b16 %v4147
  %v4167 = vunpack.c.l.b16 %v4148
  %v4168 = vunpack.c.h.b16 %v4148
  %v4169 = vunpack.c.l.b16 %v4149
  %v4170 = vunpack.c.h.b16 %v4149
  %v4171 = vunpack.c.l.b16 %v4150
  %v4172 = vunpack.c.h.b16 %v4150
  %v4173 = vunpack.c.l.b16 %v4151
  %v4174 = vunpack.c.h.b16 %v4151
  %v4175 = vunpack.c.l.b16 %v4152
  %v4176 = vunpack.c.h.b16 %v4152
  %v4177 = vpack.c.b16 %v4163, %v4161
  %v4178 = vpack.c.b16 %v4164, %v4162
  %v4179 = vpack.c.b16 %v4167, %v4165
  %v4180 = vpack.c.b16 %v4168, %v4166
  %v4181 = vpack.c.b16 %v4171, %v4169
  %v4182 = vpack.c.b16 %v4172, %v4170
  %v4183 = vpack.c.b16 %v4175, %v4173
  %v4184 = vpack.c.b16 %v4176, %v4174
  %v4194 = vsel %vm580, %v2647, 0
  %4196 = vmatprep.subr.bf16.mxu0 %v4178
  %4197 = vmatpush1.bf16.msra.mxu0 %v4177
  %4198 = vmatprep.subr.bf16.mxu0 %v4180
  %4199 = vmatpush1.bf16.msra.mxu0 %v4179
  %4200 = vmatprep.subr.bf16.mxu0 %v4182
  %4201 = vmatpush1.bf16.msra.mxu0 %v4181
  %4202 = vmatprep.subr.bf16.mxu0 %v4184
  %4203 = vmatpush1.bf16.msra.mxu0 %v4183
  %4204 = vmatprep.subr.bf16.mxu0 0
  %4205 = vmatpush1.bf16.msra.mxu0 0
  %4206 = vmatprep.subr.bf16.mxu0 0
  %4207 = vmatpush1.bf16.msra.mxu0 0
  %4208 = vmatprep.subr.bf16.mxu0 0
  %4209 = vmatpush1.bf16.msra.mxu0 0
  %4210 = vmatprep.subr.bf16.mxu0 0
  %4211 = vmatpush1.bf16.msra.mxu0 0
  %4212 = vmatprep.subr.bf16.mxu0 0
  %4213 = vmatpush1.bf16.msra.mxu0 0
  %4214 = vmatprep.subr.bf16.mxu0 0
  %4215 = vmatpush1.bf16.msra.mxu0 0
  %4216 = vmatprep.subr.bf16.mxu0 0
  %4217 = vmatpush1.bf16.msra.mxu0 0
  %4218 = vmatprep.subr.bf16.mxu0 0
  %4219 = vmatpush1.bf16.msra.mxu0 0
  %4220 = vmatprep.subr.bf16.mxu0 0
  %4221 = vmatpush1.bf16.msra.mxu0 0
  %4222 = vmatprep.subr.bf16.mxu0 0
  %4223 = vmatpush1.bf16.msra.mxu0 0
  %4224 = vmatprep.subr.bf16.mxu0 0
  %4225 = vmatpush1.bf16.msra.mxu0 0
  %4226 = vmatprep.subr.bf16.mxu0 0
  %4227 = vmatpush1.bf16.msra.mxu0 0
  %4228 = vmatprep.mubr.bf16.mxu0 0
  %4229 = vmatmul.mubr.bf16.gmra.mrb[0].mxu0 %v4194
  %v4230 = vpop.f32.mrb[0].mxu0
  %v4231 = vadd.f32 0.0, %v4230
  %v4232 = vpop.f32.mrb[0].mxu0
  %v4233 = vadd.f32 0.0, %v4232
  %v4234 = vpop.f32.mrb[0].mxu0
  %v4235 = vadd.f32 0.0, %v4234
  %v4236 = vpop.f32.mrb[0].mxu0
  %v4237 = vadd.f32 0.0, %v4236
  %4238 = vdwg.mxu0
  %v4239 = vadd.f32 %v4140, %v4231
  %v4240 = vadd.f32 %v4141, %v4233
  %v4241 = vadd.f32 %v4142, %v4235
  %v4242 = vadd.f32 %v4143, %v4237
  %s4243 = scalar_lea.vmem %s7, 1024
  %v4244 = vld [vmem:[%s4243] sm:$0xff]
  %v4245 = vld [vmem:[%s4243 + $0x8] sm:$0xff]
  %v4246 = vld [vmem:[%s4243 + $0x10] sm:$0xff]
  %v4247 = vld [vmem:[%s4243 + $0x18] sm:$0xff]
  %v4248 = vld [vmem:[%s4243 + $0x20] sm:$0xff]
  %v4249 = vld [vmem:[%s4243 + $0x28] sm:$0xff]
  %v4250 = vld [vmem:[%s4243 + $0x30] sm:$0xff]
  %v4251 = vld [vmem:[%s4243 + $0x38] sm:$0xff]
  %v4260 = vunpack.c.l.b16 %v4244
  %v4261 = vunpack.c.h.b16 %v4244
  %v4262 = vunpack.c.l.b16 %v4245
  %v4263 = vunpack.c.h.b16 %v4245
  %v4264 = vunpack.c.l.b16 %v4246
  %v4265 = vunpack.c.h.b16 %v4246
  %v4266 = vunpack.c.l.b16 %v4247
  %v4267 = vunpack.c.h.b16 %v4247
  %v4268 = vunpack.c.l.b16 %v4248
  %v4269 = vunpack.c.h.b16 %v4248
  %v4270 = vunpack.c.l.b16 %v4249
  %v4271 = vunpack.c.h.b16 %v4249
  %v4272 = vunpack.c.l.b16 %v4250
  %v4273 = vunpack.c.h.b16 %v4250
  %v4274 = vunpack.c.l.b16 %v4251
  %v4275 = vunpack.c.h.b16 %v4251
  %v4276 = vpack.c.b16 %v4262, %v4260
  %v4277 = vpack.c.b16 %v4263, %v4261
  %v4278 = vpack.c.b16 %v4266, %v4264
  %v4279 = vpack.c.b16 %v4267, %v4265
  %v4280 = vpack.c.b16 %v4270, %v4268
  %v4281 = vpack.c.b16 %v4271, %v4269
  %v4282 = vpack.c.b16 %v4274, %v4272
  %v4283 = vpack.c.b16 %v4275, %v4273
  %v4293 = vsel %vm580, %v2648, 0
  %4295 = vmatprep.subr.bf16.mxu0 %v4277
  %4296 = vmatpush1.bf16.msra.mxu0 %v4276
  %4297 = vmatprep.subr.bf16.mxu0 %v4279
  %4298 = vmatpush1.bf16.msra.mxu0 %v4278
  %4299 = vmatprep.subr.bf16.mxu0 %v4281
  %4300 = vmatpush1.bf16.msra.mxu0 %v4280
  %4301 = vmatprep.subr.bf16.mxu0 %v4283
  %4302 = vmatpush1.bf16.msra.mxu0 %v4282
  %4303 = vmatprep.subr.bf16.mxu0 0
  %4304 = vmatpush1.bf16.msra.mxu0 0
  %4305 = vmatprep.subr.bf16.mxu0 0
  %4306 = vmatpush1.bf16.msra.mxu0 0
  %4307 = vmatprep.subr.bf16.mxu0 0
  %4308 = vmatpush1.bf16.msra.mxu0 0
  %4309 = vmatprep.subr.bf16.mxu0 0
  %4310 = vmatpush1.bf16.msra.mxu0 0
  %4311 = vmatprep.subr.bf16.mxu0 0
  %4312 = vmatpush1.bf16.msra.mxu0 0
  %4313 = vmatprep.subr.bf16.mxu0 0
  %4314 = vmatpush1.bf16.msra.mxu0 0
  %4315 = vmatprep.subr.bf16.mxu0 0
  %4316 = vmatpush1.bf16.msra.mxu0 0
  %4317 = vmatprep.subr.bf16.mxu0 0
  %4318 = vmatpush1.bf16.msra.mxu0 0
  %4319 = vmatprep.subr.bf16.mxu0 0
  %4320 = vmatpush1.bf16.msra.mxu0 0
  %4321 = vmatprep.subr.bf16.mxu0 0
  %4322 = vmatpush1.bf16.msra.mxu0 0
  %4323 = vmatprep.subr.bf16.mxu0 0
  %4324 = vmatpush1.bf16.msra.mxu0 0
  %4325 = vmatprep.subr.bf16.mxu0 0
  %4326 = vmatpush1.bf16.msra.mxu0 0
  %4327 = vmatprep.mubr.bf16.mxu0 0
  %4328 = vmatmul.mubr.bf16.gmra.mrb[0].mxu0 %v4293
  %v4329 = vpop.f32.mrb[0].mxu0
  %v4330 = vadd.f32 0.0, %v4329
  %v4331 = vpop.f32.mrb[0].mxu0
  %v4332 = vadd.f32 0.0, %v4331
  %v4333 = vpop.f32.mrb[0].mxu0
  %v4334 = vadd.f32 0.0, %v4333
  %v4335 = vpop.f32.mrb[0].mxu0
  %v4336 = vadd.f32 0.0, %v4335
  %4337 = vdwg.mxu0
  %v4338 = vadd.f32 %v4239, %v4330
  %v4339 = vadd.f32 %v4240, %v4332
  %v4340 = vadd.f32 %v4241, %v4334
  %v4341 = vadd.f32 %v4242, %v4336
  %s4342 = scalar_lea.vmem %s7, 1088
  %v4343 = vld [vmem:[%s4342] sm:$0xff]
  %v4344 = vld [vmem:[%s4342 + $0x8] sm:$0xff]
  %v4345 = vld [vmem:[%s4342 + $0x10] sm:$0xff]
  %v4346 = vld [vmem:[%s4342 + $0x18] sm:$0xff]
  %v4347 = vld [vmem:[%s4342 + $0x20] sm:$0xff]
  %v4348 = vld [vmem:[%s4342 + $0x28] sm:$0xff]
  %v4349 = vld [vmem:[%s4342 + $0x30] sm:$0xff]
  %v4350 = vld [vmem:[%s4342 + $0x38] sm:$0xff]
  %v4359 = vunpack.c.l.b16 %v4343
  %v4360 = vunpack.c.h.b16 %v4343
  %v4361 = vunpack.c.l.b16 %v4344
  %v4362 = vunpack.c.h.b16 %v4344
  %v4363 = vunpack.c.l.b16 %v4345
  %v4364 = vunpack.c.h.b16 %v4345
  %v4365 = vunpack.c.l.b16 %v4346
  %v4366 = vunpack.c.h.b16 %v4346
  %v4367 = vunpack.c.l.b16 %v4347
  %v4368 = vunpack.c.h.b16 %v4347
  %v4369 = vunpack.c.l.b16 %v4348
  %v4370 = vunpack.c.h.b16 %v4348
  %v4371 = vunpack.c.l.b16 %v4349
  %v4372 = vunpack.c.h.b16 %v4349
  %v4373 = vunpack.c.l.b16 %v4350
  %v4374 = vunpack.c.h.b16 %v4350
  %v4375 = vpack.c.b16 %v4361, %v4359
  %v4376 = vpack.c.b16 %v4362, %v4360
  %v4377 = vpack.c.b16 %v4365, %v4363
  %v4378 = vpack.c.b16 %v4366, %v4364
  %v4379 = vpack.c.b16 %v4369, %v4367
  %v4380 = vpack.c.b16 %v4370, %v4368
  %v4381 = vpack.c.b16 %v4373, %v4371
  %v4382 = vpack.c.b16 %v4374, %v4372
  %v4392 = vsel %vm580, %v2649, 0
  %4394 = vmatprep.subr.bf16.mxu0 %v4376
  %4395 = vmatpush1.bf16.msra.mxu0 %v4375
  %4396 = vmatprep.subr.bf16.mxu0 %v4378
  %4397 = vmatpush1.bf16.msra.mxu0 %v4377
  %4398 = vmatprep.subr.bf16.mxu0 %v4380
  %4399 = vmatpush1.bf16.msra.mxu0 %v4379
  %4400 = vmatprep.subr.bf16.mxu0 %v4382
  %4401 = vmatpush1.bf16.msra.mxu0 %v4381
  %4402 = vmatprep.subr.bf16.mxu0 0
  %4403 = vmatpush1.bf16.msra.mxu0 0
  %4404 = vmatprep.subr.bf16.mxu0 0
  %4405 = vmatpush1.bf16.msra.mxu0 0
  %4406 = vmatprep.subr.bf16.mxu0 0
  %4407 = vmatpush1.bf16.msra.mxu0 0
  %4408 = vmatprep.subr.bf16.mxu0 0
  %4409 = vmatpush1.bf16.msra.mxu0 0
  %4410 = vmatprep.subr.bf16.mxu0 0
  %4411 = vmatpush1.bf16.msra.mxu0 0
  %4412 = vmatprep.subr.bf16.mxu0 0
  %4413 = vmatpush1.bf16.msra.mxu0 0
  %4414 = vmatprep.subr.bf16.mxu0 0
  %4415 = vmatpush1.bf16.msra.mxu0 0
  %4416 = vmatprep.subr.bf16.mxu0 0
  %4417 = vmatpush1.bf16.msra.mxu0 0
  %4418 = vmatprep.subr.bf16.mxu0 0
  %4419 = vmatpush1.bf16.msra.mxu0 0
  %4420 = vmatprep.subr.bf16.mxu0 0
  %4421 = vmatpush1.bf16.msra.mxu0 0
  %4422 = vmatprep.subr.bf16.mxu0 0
  %4423 = vmatpush1.bf16.msra.mxu0 0
  %4424 = vmatprep.subr.bf16.mxu0 0
  %4425 = vmatpush1.bf16.msra.mxu0 0
  %4426 = vmatprep.mubr.bf16.mxu0 0
  %4427 = vmatmul.mubr.bf16.gmra.mrb[0].mxu0 %v4392
  %v4428 = vpop.f32.mrb[0].mxu0
  %v4429 = vadd.f32 0.0, %v4428
  %v4430 = vpop.f32.mrb[0].mxu0
  %v4431 = vadd.f32 0.0, %v4430
  %v4432 = vpop.f32.mrb[0].mxu0
  %v4433 = vadd.f32 0.0, %v4432
  %v4434 = vpop.f32.mrb[0].mxu0
  %v4435 = vadd.f32 0.0, %v4434
  %4436 = vdwg.mxu0
  %v4437 = vadd.f32 %v4338, %v4429
  %v4438 = vadd.f32 %v4339, %v4431
  %v4439 = vadd.f32 %v4340, %v4433
  %v4440 = vadd.f32 %v4341, %v4435
  %s4441 = scalar_lea.vmem %s7, 1152
  %v4442 = vld [vmem:[%s4441] sm:$0xff]
  %v4443 = vld [vmem:[%s4441 + $0x8] sm:$0xff]
  %v4444 = vld [vmem:[%s4441 + $0x10] sm:$0xff]
  %v4445 = vld [vmem:[%s4441 + $0x18] sm:$0xff]
  %v4446 = vld [vmem:[%s4441 + $0x20] sm:$0xff]
  %v4447 = vld [vmem:[%s4441 + $0x28] sm:$0xff]
  %v4448 = vld [vmem:[%s4441 + $0x30] sm:$0xff]
  %v4449 = vld [vmem:[%s4441 + $0x38] sm:$0xff]
  %v4458 = vunpack.c.l.b16 %v4442
  %v4459 = vunpack.c.h.b16 %v4442
  %v4460 = vunpack.c.l.b16 %v4443
  %v4461 = vunpack.c.h.b16 %v4443
  %v4462 = vunpack.c.l.b16 %v4444
  %v4463 = vunpack.c.h.b16 %v4444
  %v4464 = vunpack.c.l.b16 %v4445
  %v4465 = vunpack.c.h.b16 %v4445
  %v4466 = vunpack.c.l.b16 %v4446
  %v4467 = vunpack.c.h.b16 %v4446
  %v4468 = vunpack.c.l.b16 %v4447
  %v4469 = vunpack.c.h.b16 %v4447
  %v4470 = vunpack.c.l.b16 %v4448
  %v4471 = vunpack.c.h.b16 %v4448
  %v4472 = vunpack.c.l.b16 %v4449
  %v4473 = vunpack.c.h.b16 %v4449
  %v4474 = vpack.c.b16 %v4460, %v4458
  %v4475 = vpack.c.b16 %v4461, %v4459
  %v4476 = vpack.c.b16 %v4464, %v4462
  %v4477 = vpack.c.b16 %v4465, %v4463
  %v4478 = vpack.c.b16 %v4468, %v4466
  %v4479 = vpack.c.b16 %v4469, %v4467
  %v4480 = vpack.c.b16 %v4472, %v4470
  %v4481 = vpack.c.b16 %v4473, %v4471
  %v4491 = vsel %vm580, %v2650, 0
  %4493 = vmatprep.subr.bf16.mxu0 %v4475
  %4494 = vmatpush1.bf16.msra.mxu0 %v4474
  %4495 = vmatprep.subr.bf16.mxu0 %v4477
  %4496 = vmatpush1.bf16.msra.mxu0 %v4476
  %4497 = vmatprep.subr.bf16.mxu0 %v4479
  %4498 = vmatpush1.bf16.msra.mxu0 %v4478
  %4499 = vmatprep.subr.bf16.mxu0 %v4481
  %4500 = vmatpush1.bf16.msra.mxu0 %v4480
  %4501 = vmatprep.subr.bf16.mxu0 0
  %4502 = vmatpush1.bf16.msra.mxu0 0
  %4503 = vmatprep.subr.bf16.mxu0 0
  %4504 = vmatpush1.bf16.msra.mxu0 0
  %4505 = vmatprep.subr.bf16.mxu0 0
  %4506 = vmatpush1.bf16.msra.mxu0 0
  %4507 = vmatprep.subr.bf16.mxu0 0
  %4508 = vmatpush1.bf16.msra.mxu0 0
  %4509 = vmatprep.subr.bf16.mxu0 0
  %4510 = vmatpush1.bf16.msra.mxu0 0
  %4511 = vmatprep.subr.bf16.mxu0 0
  %4512 = vmatpush1.bf16.msra.mxu0 0
  %4513 = vmatprep.subr.bf16.mxu0 0
  %4514 = vmatpush1.bf16.msra.mxu0 0
  %4515 = vmatprep.subr.bf16.mxu0 0
  %4516 = vmatpush1.bf16.msra.mxu0 0
  %4517 = vmatprep.subr.bf16.mxu0 0
  %4518 = vmatpush1.bf16.msra.mxu0 0
  %4519 = vmatprep.subr.bf16.mxu0 0
  %4520 = vmatpush1.bf16.msra.mxu0 0
  %4521 = vmatprep.subr.bf16.mxu0 0
  %4522 = vmatpush1.bf16.msra.mxu0 0
  %4523 = vmatprep.subr.bf16.mxu0 0
  %4524 = vmatpush1.bf16.msra.mxu0 0
  %4525 = vmatprep.mubr.bf16.mxu0 0
  %4526 = vmatmul.mubr.bf16.gmra.mrb[0].mxu0 %v4491
  %v4527 = vpop.f32.mrb[0].mxu0
  %v4528 = vadd.f32 0.0, %v4527
  %v4529 = vpop.f32.mrb[0].mxu0
  %v4530 = vadd.f32 0.0, %v4529
  %v4531 = vpop.f32.mrb[0].mxu0
  %v4532 = vadd.f32 0.0, %v4531
  %v4533 = vpop.f32.mrb[0].mxu0
  %v4534 = vadd.f32 0.0, %v4533
  %4535 = vdwg.mxu0
  %v4536 = vadd.f32 %v4437, %v4528
  %v4537 = vadd.f32 %v4438, %v4530
  %v4538 = vadd.f32 %v4439, %v4532
  %v4539 = vadd.f32 %v4440, %v4534
  %s4540 = scalar_lea.vmem %s7, 1216
  %v4541 = vld [vmem:[%s4540] sm:$0xff]
  %v4542 = vld [vmem:[%s4540 + $0x8] sm:$0xff]
  %v4543 = vld [vmem:[%s4540 + $0x10] sm:$0xff]
  %v4544 = vld [vmem:[%s4540 + $0x18] sm:$0xff]
  %v4545 = vld [vmem:[%s4540 + $0x20] sm:$0xff]
  %v4546 = vld [vmem:[%s4540 + $0x28] sm:$0xff]
  %v4547 = vld [vmem:[%s4540 + $0x30] sm:$0xff]
  %v4548 = vld [vmem:[%s4540 + $0x38] sm:$0xff]
  %v4557 = vunpack.c.l.b16 %v4541
  %v4558 = vunpack.c.h.b16 %v4541
  %v4559 = vunpack.c.l.b16 %v4542
  %v4560 = vunpack.c.h.b16 %v4542
  %v4561 = vunpack.c.l.b16 %v4543
  %v4562 = vunpack.c.h.b16 %v4543
  %v4563 = vunpack.c.l.b16 %v4544
  %v4564 = vunpack.c.h.b16 %v4544
  %v4565 = vunpack.c.l.b16 %v4545
  %v4566 = vunpack.c.h.b16 %v4545
  %v4567 = vunpack.c.l.b16 %v4546
  %v4568 = vunpack.c.h.b16 %v4546
  %v4569 = vunpack.c.l.b16 %v4547
  %v4570 = vunpack.c.h.b16 %v4547
  %v4571 = vunpack.c.l.b16 %v4548
  %v4572 = vunpack.c.h.b16 %v4548
  %v4573 = vpack.c.b16 %v4559, %v4557
  %v4574 = vpack.c.b16 %v4560, %v4558
  %v4575 = vpack.c.b16 %v4563, %v4561
  %v4576 = vpack.c.b16 %v4564, %v4562
  %v4577 = vpack.c.b16 %v4567, %v4565
  %v4578 = vpack.c.b16 %v4568, %v4566
  %v4579 = vpack.c.b16 %v4571, %v4569
  %v4580 = vpack.c.b16 %v4572, %v4570
  %v4590 = vsel %vm580, %v2651, 0
  %4592 = vmatprep.subr.bf16.mxu0 %v4574
  %4593 = vmatpush1.bf16.msra.mxu0 %v4573
  %4594 = vmatprep.subr.bf16.mxu0 %v4576
  %4595 = vmatpush1.bf16.msra.mxu0 %v4575
  %4596 = vmatprep.subr.bf16.mxu0 %v4578
  %4597 = vmatpush1.bf16.msra.mxu0 %v4577
  %4598 = vmatprep.subr.bf16.mxu0 %v4580
  %4599 = vmatpush1.bf16.msra.mxu0 %v4579
  %4600 = vmatprep.subr.bf16.mxu0 0
  %4601 = vmatpush1.bf16.msra.mxu0 0
  %4602 = vmatprep.subr.bf16.mxu0 0
  %4603 = vmatpush1.bf16.msra.mxu0 0
  %4604 = vmatprep.subr.bf16.mxu0 0
  %4605 = vmatpush1.bf16.msra.mxu0 0
  %4606 = vmatprep.subr.bf16.mxu0 0
  %4607 = vmatpush1.bf16.msra.mxu0 0
  %4608 = vmatprep.subr.bf16.mxu0 0
  %4609 = vmatpush1.bf16.msra.mxu0 0
  %4610 = vmatprep.subr.bf16.mxu0 0
  %4611 = vmatpush1.bf16.msra.mxu0 0
  %4612 = vmatprep.subr.bf16.mxu0 0
  %4613 = vmatpush1.bf16.msra.mxu0 0
  %4614 = vmatprep.subr.bf16.mxu0 0
  %4615 = vmatpush1.bf16.msra.mxu0 0
  %4616 = vmatprep.subr.bf16.mxu0 0
  %4617 = vmatpush1.bf16.msra.mxu0 0
  %4618 = vmatprep.subr.bf16.mxu0 0
  %4619 = vmatpush1.bf16.msra.mxu0 0
  %4620 = vmatprep.subr.bf16.mxu0 0
  %4621 = vmatpush1.bf16.msra.mxu0 0
  %4622 = vmatprep.subr.bf16.mxu0 0
  %4623 = vmatpush1.bf16.msra.mxu0 0
  %4624 = vmatprep.mubr.bf16.mxu0 0
  %4625 = vmatmul.mubr.bf16.gmra.mrb[0].mxu0 %v4590
  %v4626 = vpop.f32.mrb[0].mxu0
  %v4627 = vadd.f32 0.0, %v4626
  %v4628 = vpop.f32.mrb[0].mxu0
  %v4629 = vadd.f32 0.0, %v4628
  %v4630 = vpop.f32.mrb[0].mxu0
  %v4631 = vadd.f32 0.0, %v4630
  %v4632 = vpop.f32.mrb[0].mxu0
  %v4633 = vadd.f32 0.0, %v4632
  %4634 = vdwg.mxu0
  %v4635 = vadd.f32 %v4536, %v4627
  %v4636 = vadd.f32 %v4537, %v4629
  %v4637 = vadd.f32 %v4538, %v4631
  %v4638 = vadd.f32 %v4539, %v4633
  %s4639 = scalar_lea.vmem %s7, 1280
  %v4640 = vld [vmem:[%s4639] sm:$0xff]
  %v4641 = vld [vmem:[%s4639 + $0x8] sm:$0xff]
  %v4642 = vld [vmem:[%s4639 + $0x10] sm:$0xff]
  %v4643 = vld [vmem:[%s4639 + $0x18] sm:$0xff]
  %v4644 = vld [vmem:[%s4639 + $0x20] sm:$0xff]
  %v4645 = vld [vmem:[%s4639 + $0x28] sm:$0xff]
  %v4646 = vld [vmem:[%s4639 + $0x30] sm:$0xff]
  %v4647 = vld [vmem:[%s4639 + $0x38] sm:$0xff]
  %v4656 = vunpack.c.l.b16 %v4640
  %v4657 = vunpack.c.h.b16 %v4640
  %v4658 = vunpack.c.l.b16 %v4641
  %v4659 = vunpack.c.h.b16 %v4641
  %v4660 = vunpack.c.l.b16 %v4642
  %v4661 = vunpack.c.h.b16 %v4642
  %v4662 = vunpack.c.l.b16 %v4643
  %v4663 = vunpack.c.h.b16 %v4643
  %v4664 = vunpack.c.l.b16 %v4644
  %v4665 = vunpack.c.h.b16 %v4644
  %v4666 = vunpack.c.l.b16 %v4645
  %v4667 = vunpack.c.h.b16 %v4645
  %v4668 = vunpack.c.l.b16 %v4646
  %v4669 = vunpack.c.h.b16 %v4646
  %v4670 = vunpack.c.l.b16 %v4647
  %v4671 = vunpack.c.h.b16 %v4647
  %v4672 = vpack.c.b16 %v4658, %v4656
  %v4673 = vpack.c.b16 %v4659, %v4657
  %v4674 = vpack.c.b16 %v4662, %v4660
  %v4675 = vpack.c.b16 %v4663, %v4661
  %v4676 = vpack.c.b16 %v4666, %v4664
  %v4677 = vpack.c.b16 %v4667, %v4665
  %v4678 = vpack.c.b16 %v4670, %v4668
  %v4679 = vpack.c.b16 %v4671, %v4669
  %v4689 = vsel %vm580, %v2652, 0
  %4691 = vmatprep.subr.bf16.mxu0 %v4673
  %4692 = vmatpush1.bf16.msra.mxu0 %v4672
  %4693 = vmatprep.subr.bf16.mxu0 %v4675
  %4694 = vmatpush1.bf16.msra.mxu0 %v4674
  %4695 = vmatprep.subr.bf16.mxu0 %v4677
  %4696 = vmatpush1.bf16.msra.mxu0 %v4676
  %4697 = vmatprep.subr.bf16.mxu0 %v4679
  %4698 = vmatpush1.bf16.msra.mxu0 %v4678
  %4699 = vmatprep.subr.bf16.mxu0 0
  %4700 = vmatpush1.bf16.msra.mxu0 0
  %4701 = vmatprep.subr.bf16.mxu0 0
  %4702 = vmatpush1.bf16.msra.mxu0 0
  %4703 = vmatprep.subr.bf16.mxu0 0
  %4704 = vmatpush1.bf16.msra.mxu0 0
  %4705 = vmatprep.subr.bf16.mxu0 0
  %4706 = vmatpush1.bf16.msra.mxu0 0
  %4707 = vmatprep.subr.bf16.mxu0 0
  %4708 = vmatpush1.bf16.msra.mxu0 0
  %4709 = vmatprep.subr.bf16.mxu0 0
  %4710 = vmatpush1.bf16.msra.mxu0 0
  %4711 = vmatprep.subr.bf16.mxu0 0
  %4712 = vmatpush1.bf16.msra.mxu0 0
  %4713 = vmatprep.subr.bf16.mxu0 0
  %4714 = vmatpush1.bf16.msra.mxu0 0
  %4715 = vmatprep.subr.bf16.mxu0 0
  %4716 = vmatpush1.bf16.msra.mxu0 0
  %4717 = vmatprep.subr.bf16.mxu0 0
  %4718 = vmatpush1.bf16.msra.mxu0 0
  %4719 = vmatprep.subr.bf16.mxu0 0
  %4720 = vmatpush1.bf16.msra.mxu0 0
  %4721 = vmatprep.subr.bf16.mxu0 0
  %4722 = vmatpush1.bf16.msra.mxu0 0
  %4723 = vmatprep.mubr.bf16.mxu0 0
  %4724 = vmatmul.mubr.bf16.gmra.mrb[0].mxu0 %v4689
  %v4725 = vpop.f32.mrb[0].mxu0
  %v4726 = vadd.f32 0.0, %v4725
  %v4727 = vpop.f32.mrb[0].mxu0
  %v4728 = vadd.f32 0.0, %v4727
  %v4729 = vpop.f32.mrb[0].mxu0
  %v4730 = vadd.f32 0.0, %v4729
  %v4731 = vpop.f32.mrb[0].mxu0
  %v4732 = vadd.f32 0.0, %v4731
  %4733 = vdwg.mxu0
  %v4734 = vadd.f32 %v4635, %v4726
  %v4735 = vadd.f32 %v4636, %v4728
  %v4736 = vadd.f32 %v4637, %v4730
  %v4737 = vadd.f32 %v4638, %v4732
  %s4738 = scalar_lea.vmem %s7, 1344
  %v4739 = vld [vmem:[%s4738] sm:$0xff]
  %v4740 = vld [vmem:[%s4738 + $0x8] sm:$0xff]
  %v4741 = vld [vmem:[%s4738 + $0x10] sm:$0xff]
  %v4742 = vld [vmem:[%s4738 + $0x18] sm:$0xff]
  %v4743 = vld [vmem:[%s4738 + $0x20] sm:$0xff]
  %v4744 = vld [vmem:[%s4738 + $0x28] sm:$0xff]
  %v4745 = vld [vmem:[%s4738 + $0x30] sm:$0xff]
  %v4746 = vld [vmem:[%s4738 + $0x38] sm:$0xff]
  %v4755 = vunpack.c.l.b16 %v4739
  %v4756 = vunpack.c.h.b16 %v4739
  %v4757 = vunpack.c.l.b16 %v4740
  %v4758 = vunpack.c.h.b16 %v4740
  %v4759 = vunpack.c.l.b16 %v4741
  %v4760 = vunpack.c.h.b16 %v4741
  %v4761 = vunpack.c.l.b16 %v4742
  %v4762 = vunpack.c.h.b16 %v4742
  %v4763 = vunpack.c.l.b16 %v4743
  %v4764 = vunpack.c.h.b16 %v4743
  %v4765 = vunpack.c.l.b16 %v4744
  %v4766 = vunpack.c.h.b16 %v4744
  %v4767 = vunpack.c.l.b16 %v4745
  %v4768 = vunpack.c.h.b16 %v4745
  %v4769 = vunpack.c.l.b16 %v4746
  %v4770 = vunpack.c.h.b16 %v4746
  %v4771 = vpack.c.b16 %v4757, %v4755
  %v4772 = vpack.c.b16 %v4758, %v4756
  %v4773 = vpack.c.b16 %v4761, %v4759
  %v4774 = vpack.c.b16 %v4762, %v4760
  %v4775 = vpack.c.b16 %v4765, %v4763
  %v4776 = vpack.c.b16 %v4766, %v4764
  %v4777 = vpack.c.b16 %v4769, %v4767
  %v4778 = vpack.c.b16 %v4770, %v4768
  %v4788 = vsel %vm580, %v2653, 0
  %4790 = vmatprep.subr.bf16.mxu0 %v4772
  %4791 = vmatpush1.bf16.msra.mxu0 %v4771
  %4792 = vmatprep.subr.bf16.mxu0 %v4774
  %4793 = vmatpush1.bf16.msra.mxu0 %v4773
  %4794 = vmatprep.subr.bf16.mxu0 %v4776
  %4795 = vmatpush1.bf16.msra.mxu0 %v4775
  %4796 = vmatprep.subr.bf16.mxu0 %v4778
  %4797 = vmatpush1.bf16.msra.mxu0 %v4777
  %4798 = vmatprep.subr.bf16.mxu0 0
  %4799 = vmatpush1.bf16.msra.mxu0 0
  %4800 = vmatprep.subr.bf16.mxu0 0
  %4801 = vmatpush1.bf16.msra.mxu0 0
  %4802 = vmatprep.subr.bf16.mxu0 0
  %4803 = vmatpush1.bf16.msra.mxu0 0
  %4804 = vmatprep.subr.bf16.mxu0 0
  %4805 = vmatpush1.bf16.msra.mxu0 0
  %4806 = vmatprep.subr.bf16.mxu0 0
  %4807 = vmatpush1.bf16.msra.mxu0 0
  %4808 = vmatprep.subr.bf16.mxu0 0
  %4809 = vmatpush1.bf16.msra.mxu0 0
  %4810 = vmatprep.subr.bf16.mxu0 0
  %4811 = vmatpush1.bf16.msra.mxu0 0
  %4812 = vmatprep.subr.bf16.mxu0 0
  %4813 = vmatpush1.bf16.msra.mxu0 0
  %4814 = vmatprep.subr.bf16.mxu0 0
  %4815 = vmatpush1.bf16.msra.mxu0 0
  %4816 = vmatprep.subr.bf16.mxu0 0
  %4817 = vmatpush1.bf16.msra.mxu0 0
  %4818 = vmatprep.subr.bf16.mxu0 0
  %4819 = vmatpush1.bf16.msra.mxu0 0
  %4820 = vmatprep.subr.bf16.mxu0 0
  %4821 = vmatpush1.bf16.msra.mxu0 0
  %4822 = vmatprep.mubr.bf16.mxu0 0
  %4823 = vmatmul.mubr.bf16.gmra.mrb[0].mxu0 %v4788
  %v4824 = vpop.f32.mrb[0].mxu0
  %v4825 = vadd.f32 0.0, %v4824
  %v4826 = vpop.f32.mrb[0].mxu0
  %v4827 = vadd.f32 0.0, %v4826
  %v4828 = vpop.f32.mrb[0].mxu0
  %v4829 = vadd.f32 0.0, %v4828
  %v4830 = vpop.f32.mrb[0].mxu0
  %v4831 = vadd.f32 0.0, %v4830
  %4832 = vdwg.mxu0
  %v4833 = vadd.f32 %v4734, %v4825
  %v4834 = vadd.f32 %v4735, %v4827
  %v4835 = vadd.f32 %v4736, %v4829
  %v4836 = vadd.f32 %v4737, %v4831
  %s4837 = scalar_lea.vmem %s7, 1408
  %v4838 = vld [vmem:[%s4837] sm:$0xff]
  %v4839 = vld [vmem:[%s4837 + $0x8] sm:$0xff]
  %v4840 = vld [vmem:[%s4837 + $0x10] sm:$0xff]
  %v4841 = vld [vmem:[%s4837 + $0x18] sm:$0xff]
  %v4842 = vld [vmem:[%s4837 + $0x20] sm:$0xff]
  %v4843 = vld [vmem:[%s4837 + $0x28] sm:$0xff]
  %v4844 = vld [vmem:[%s4837 + $0x30] sm:$0xff]
  %v4845 = vld [vmem:[%s4837 + $0x38] sm:$0xff]
  %v4854 = vunpack.c.l.b16 %v4838
  %v4855 = vunpack.c.h.b16 %v4838
  %v4856 = vunpack.c.l.b16 %v4839
  %v4857 = vunpack.c.h.b16 %v4839
  %v4858 = vunpack.c.l.b16 %v4840
  %v4859 = vunpack.c.h.b16 %v4840
  %v4860 = vunpack.c.l.b16 %v4841
  %v4861 = vunpack.c.h.b16 %v4841
  %v4862 = vunpack.c.l.b16 %v4842
  %v4863 = vunpack.c.h.b16 %v4842
  %v4864 = vunpack.c.l.b16 %v4843
  %v4865 = vunpack.c.h.b16 %v4843
  %v4866 = vunpack.c.l.b16 %v4844
  %v4867 = vunpack.c.h.b16 %v4844
  %v4868 = vunpack.c.l.b16 %v4845
  %v4869 = vunpack.c.h.b16 %v4845
  %v4870 = vpack.c.b16 %v4856, %v4854
  %v4871 = vpack.c.b16 %v4857, %v4855
  %v4872 = vpack.c.b16 %v4860, %v4858
  %v4873 = vpack.c.b16 %v4861, %v4859
  %v4874 = vpack.c.b16 %v4864, %v4862
  %v4875 = vpack.c.b16 %v4865, %v4863
  %v4876 = vpack.c.b16 %v4868, %v4866
  %v4877 = vpack.c.b16 %v4869, %v4867
  %v4887 = vsel %vm580, %v2654, 0
  %4889 = vmatprep.subr.bf16.mxu0 %v4871
  %4890 = vmatpush1.bf16.msra.mxu0 %v4870
  %4891 = vmatprep.subr.bf16.mxu0 %v4873
  %4892 = vmatpush1.bf16.msra.mxu0 %v4872
  %4893 = vmatprep.subr.bf16.mxu0 %v4875
  %4894 = vmatpush1.bf16.msra.mxu0 %v4874
  %4895 = vmatprep.subr.bf16.mxu0 %v4877
  %4896 = vmatpush1.bf16.msra.mxu0 %v4876
  %4897 = vmatprep.subr.bf16.mxu0 0
  %4898 = vmatpush1.bf16.msra.mxu0 0
  %4899 = vmatprep.subr.bf16.mxu0 0
  %4900 = vmatpush1.bf16.msra.mxu0 0
  %4901 = vmatprep.subr.bf16.mxu0 0
  %4902 = vmatpush1.bf16.msra.mxu0 0
  %4903 = vmatprep.subr.bf16.mxu0 0
  %4904 = vmatpush1.bf16.msra.mxu0 0
  %4905 = vmatprep.subr.bf16.mxu0 0
  %4906 = vmatpush1.bf16.msra.mxu0 0
  %4907 = vmatprep.subr.bf16.mxu0 0
  %4908 = vmatpush1.bf16.msra.mxu0 0
  %4909 = vmatprep.subr.bf16.mxu0 0
  %4910 = vmatpush1.bf16.msra.mxu0 0
  %4911 = vmatprep.subr.bf16.mxu0 0
  %4912 = vmatpush1.bf16.msra.mxu0 0
  %4913 = vmatprep.subr.bf16.mxu0 0
  %4914 = vmatpush1.bf16.msra.mxu0 0
  %4915 = vmatprep.subr.bf16.mxu0 0
  %4916 = vmatpush1.bf16.msra.mxu0 0
  %4917 = vmatprep.subr.bf16.mxu0 0
  %4918 = vmatpush1.bf16.msra.mxu0 0
  %4919 = vmatprep.subr.bf16.mxu0 0
  %4920 = vmatpush1.bf16.msra.mxu0 0
  %4921 = vmatprep.mubr.bf16.mxu0 0
  %4922 = vmatmul.mubr.bf16.gmra.mrb[0].mxu0 %v4887
  %v4923 = vpop.f32.mrb[0].mxu0
  %v4924 = vadd.f32 0.0, %v4923
  %v4925 = vpop.f32.mrb[0].mxu0
  %v4926 = vadd.f32 0.0, %v4925
  %v4927 = vpop.f32.mrb[0].mxu0
  %v4928 = vadd.f32 0.0, %v4927
  %v4929 = vpop.f32.mrb[0].mxu0
  %v4930 = vadd.f32 0.0, %v4929
  %4931 = vdwg.mxu0
  %v4932 = vadd.f32 %v4833, %v4924
  %v4933 = vadd.f32 %v4834, %v4926
  %v4934 = vadd.f32 %v4835, %v4928
  %v4935 = vadd.f32 %v4836, %v4930
  %s4936 = scalar_lea.vmem %s7, 1472
  %v4937 = vld [vmem:[%s4936] sm:$0xff]
  %v4938 = vld [vmem:[%s4936 + $0x8] sm:$0xff]
  %v4939 = vld [vmem:[%s4936 + $0x10] sm:$0xff]
  %v4940 = vld [vmem:[%s4936 + $0x18] sm:$0xff]
  %v4941 = vld [vmem:[%s4936 + $0x20] sm:$0xff]
  %v4942 = vld [vmem:[%s4936 + $0x28] sm:$0xff]
  %v4943 = vld [vmem:[%s4936 + $0x30] sm:$0xff]
  %v4944 = vld [vmem:[%s4936 + $0x38] sm:$0xff]
  %v4953 = vunpack.c.l.b16 %v4937
  %v4954 = vunpack.c.h.b16 %v4937
  %v4955 = vunpack.c.l.b16 %v4938
  %v4956 = vunpack.c.h.b16 %v4938
  %v4957 = vunpack.c.l.b16 %v4939
  %v4958 = vunpack.c.h.b16 %v4939
  %v4959 = vunpack.c.l.b16 %v4940
  %v4960 = vunpack.c.h.b16 %v4940
  %v4961 = vunpack.c.l.b16 %v4941
  %v4962 = vunpack.c.h.b16 %v4941
  %v4963 = vunpack.c.l.b16 %v4942
  %v4964 = vunpack.c.h.b16 %v4942
  %v4965 = vunpack.c.l.b16 %v4943
  %v4966 = vunpack.c.h.b16 %v4943
  %v4967 = vunpack.c.l.b16 %v4944
  %v4968 = vunpack.c.h.b16 %v4944
  %v4969 = vpack.c.b16 %v4955, %v4953
  %v4970 = vpack.c.b16 %v4956, %v4954
  %v4971 = vpack.c.b16 %v4959, %v4957
  %v4972 = vpack.c.b16 %v4960, %v4958
  %v4973 = vpack.c.b16 %v4963, %v4961
  %v4974 = vpack.c.b16 %v4964, %v4962
  %v4975 = vpack.c.b16 %v4967, %v4965
  %v4976 = vpack.c.b16 %v4968, %v4966
  %v4986 = vsel %vm580, %v2655, 0
  %4988 = vmatprep.subr.bf16.mxu0 %v4970
  %4989 = vmatpush1.bf16.msra.mxu0 %v4969
  %4990 = vmatprep.subr.bf16.mxu0 %v4972
  %4991 = vmatpush1.bf16.msra.mxu0 %v4971
  %4992 = vmatprep.subr.bf16.mxu0 %v4974
  %4993 = vmatpush1.bf16.msra.mxu0 %v4973
  %4994 = vmatprep.subr.bf16.mxu0 %v4976
  %4995 = vmatpush1.bf16.msra.mxu0 %v4975
  %4996 = vmatprep.subr.bf16.mxu0 0
  %4997 = vmatpush1.bf16.msra.mxu0 0
  %4998 = vmatprep.subr.bf16.mxu0 0
  %4999 = vmatpush1.bf16.msra.mxu0 0
  %5000 = vmatprep.subr.bf16.mxu0 0
  %5001 = vmatpush1.bf16.msra.mxu0 0
  %5002 = vmatprep.subr.bf16.mxu0 0
  %5003 = vmatpush1.bf16.msra.mxu0 0
  %5004 = vmatprep.subr.bf16.mxu0 0
  %5005 = vmatpush1.bf16.msra.mxu0 0
  %5006 = vmatprep.subr.bf16.mxu0 0
  %5007 = vmatpush1.bf16.msra.mxu0 0
  %5008 = vmatprep.subr.bf16.mxu0 0
  %5009 = vmatpush1.bf16.msra.mxu0 0
  %5010 = vmatprep.subr.bf16.mxu0 0
  %5011 = vmatpush1.bf16.msra.mxu0 0
  %5012 = vmatprep.subr.bf16.mxu0 0
  %5013 = vmatpush1.bf16.msra.mxu0 0
  %5014 = vmatprep.subr.bf16.mxu0 0
  %5015 = vmatpush1.bf16.msra.mxu0 0
  %5016 = vmatprep.subr.bf16.mxu0 0
  %5017 = vmatpush1.bf16.msra.mxu0 0
  %5018 = vmatprep.subr.bf16.mxu0 0
  %5019 = vmatpush1.bf16.msra.mxu0 0
  %5020 = vmatprep.mubr.bf16.mxu0 0
  %5021 = vmatmul.mubr.bf16.gmra.mrb[0].mxu0 %v4986
  %v5022 = vpop.f32.mrb[0].mxu0
  %v5023 = vadd.f32 0.0, %v5022
  %v5024 = vpop.f32.mrb[0].mxu0
  %v5025 = vadd.f32 0.0, %v5024
  %v5026 = vpop.f32.mrb[0].mxu0
  %v5027 = vadd.f32 0.0, %v5026
  %v5028 = vpop.f32.mrb[0].mxu0
  %v5029 = vadd.f32 0.0, %v5028
  %5030 = vdwg.mxu0
  %v5031 = vadd.f32 %v4932, %v5023
  %v5032 = vadd.f32 %v4933, %v5025
  %v5033 = vadd.f32 %v4934, %v5027
  %v5034 = vadd.f32 %v4935, %v5029
  %s5035 = scalar_lea.vmem %s7, 1536
  %v5036 = vld [vmem:[%s5035] sm:$0xff]
  %v5037 = vld [vmem:[%s5035 + $0x8] sm:$0xff]
  %v5038 = vld [vmem:[%s5035 + $0x10] sm:$0xff]
  %v5039 = vld [vmem:[%s5035 + $0x18] sm:$0xff]
  %v5040 = vld [vmem:[%s5035 + $0x20] sm:$0xff]
  %v5041 = vld [vmem:[%s5035 + $0x28] sm:$0xff]
  %v5042 = vld [vmem:[%s5035 + $0x30] sm:$0xff]
  %v5043 = vld [vmem:[%s5035 + $0x38] sm:$0xff]
  %v5052 = vunpack.c.l.b16 %v5036
  %v5053 = vunpack.c.h.b16 %v5036
  %v5054 = vunpack.c.l.b16 %v5037
  %v5055 = vunpack.c.h.b16 %v5037
  %v5056 = vunpack.c.l.b16 %v5038
  %v5057 = vunpack.c.h.b16 %v5038
  %v5058 = vunpack.c.l.b16 %v5039
  %v5059 = vunpack.c.h.b16 %v5039
  %v5060 = vunpack.c.l.b16 %v5040
  %v5061 = vunpack.c.h.b16 %v5040
  %v5062 = vunpack.c.l.b16 %v5041
  %v5063 = vunpack.c.h.b16 %v5041
  %v5064 = vunpack.c.l.b16 %v5042
  %v5065 = vunpack.c.h.b16 %v5042
  %v5066 = vunpack.c.l.b16 %v5043
  %v5067 = vunpack.c.h.b16 %v5043
  %v5068 = vpack.c.b16 %v5054, %v5052
  %v5069 = vpack.c.b16 %v5055, %v5053
  %v5070 = vpack.c.b16 %v5058, %v5056
  %v5071 = vpack.c.b16 %v5059, %v5057
  %v5072 = vpack.c.b16 %v5062, %v5060
  %v5073 = vpack.c.b16 %v5063, %v5061
  %v5074 = vpack.c.b16 %v5066, %v5064
  %v5075 = vpack.c.b16 %v5067, %v5065
  %v5085 = vsel %vm580, %v2656, 0
  %5087 = vmatprep.subr.bf16.mxu0 %v5069
  %5088 = vmatpush1.bf16.msra.mxu0 %v5068
  %5089 = vmatprep.subr.bf16.mxu0 %v5071
  %5090 = vmatpush1.bf16.msra.mxu0 %v5070
  %5091 = vmatprep.subr.bf16.mxu0 %v5073
  %5092 = vmatpush1.bf16.msra.mxu0 %v5072
  %5093 = vmatprep.subr.bf16.mxu0 %v5075
  %5094 = vmatpush1.bf16.msra.mxu0 %v5074
  %5095 = vmatprep.subr.bf16.mxu0 0
  %5096 = vmatpush1.bf16.msra.mxu0 0
  %5097 = vmatprep.subr.bf16.mxu0 0
  %5098 = vmatpush1.bf16.msra.mxu0 0
  %5099 = vmatprep.subr.bf16.mxu0 0
  %5100 = vmatpush1.bf16.msra.mxu0 0
  %5101 = vmatprep.subr.bf16.mxu0 0
  %5102 = vmatpush1.bf16.msra.mxu0 0
  %5103 = vmatprep.subr.bf16.mxu0 0
  %5104 = vmatpush1.bf16.msra.mxu0 0
  %5105 = vmatprep.subr.bf16.mxu0 0
  %5106 = vmatpush1.bf16.msra.mxu0 0
  %5107 = vmatprep.subr.bf16.mxu0 0
  %5108 = vmatpush1.bf16.msra.mxu0 0
  %5109 = vmatprep.subr.bf16.mxu0 0
  %5110 = vmatpush1.bf16.msra.mxu0 0
  %5111 = vmatprep.subr.bf16.mxu0 0
  %5112 = vmatpush1.bf16.msra.mxu0 0
  %5113 = vmatprep.subr.bf16.mxu0 0
  %5114 = vmatpush1.bf16.msra.mxu0 0
  %5115 = vmatprep.subr.bf16.mxu0 0
  %5116 = vmatpush1.bf16.msra.mxu0 0
  %5117 = vmatprep.subr.bf16.mxu0 0
  %5118 = vmatpush1.bf16.msra.mxu0 0
  %5119 = vmatprep.mubr.bf16.mxu0 0
  %5120 = vmatmul.mubr.bf16.gmra.mrb[0].mxu0 %v5085
  %v5121 = vpop.f32.mrb[0].mxu0
  %v5122 = vadd.f32 0.0, %v5121
  %v5123 = vpop.f32.mrb[0].mxu0
  %v5124 = vadd.f32 0.0, %v5123
  %v5125 = vpop.f32.mrb[0].mxu0
  %v5126 = vadd.f32 0.0, %v5125
  %v5127 = vpop.f32.mrb[0].mxu0
  %v5128 = vadd.f32 0.0, %v5127
  %5129 = vdwg.mxu0
  %v5130 = vadd.f32 %v5031, %v5122
  %v5131 = vadd.f32 %v5032, %v5124
  %v5132 = vadd.f32 %v5033, %v5126
  %v5133 = vadd.f32 %v5034, %v5128
  %s5134 = scalar_lea.vmem %s7, 1600
  %v5135 = vld [vmem:[%s5134] sm:$0xff]
  %v5136 = vld [vmem:[%s5134 + $0x8] sm:$0xff]
  %v5137 = vld [vmem:[%s5134 + $0x10] sm:$0xff]
  %v5138 = vld [vmem:[%s5134 + $0x18] sm:$0xff]
  %v5139 = vld [vmem:[%s5134 + $0x20] sm:$0xff]
  %v5140 = vld [vmem:[%s5134 + $0x28] sm:$0xff]
  %v5141 = vld [vmem:[%s5134 + $0x30] sm:$0xff]
  %v5142 = vld [vmem:[%s5134 + $0x38] sm:$0xff]
  %v5151 = vunpack.c.l.b16 %v5135
  %v5152 = vunpack.c.h.b16 %v5135
  %v5153 = vunpack.c.l.b16 %v5136
  %v5154 = vunpack.c.h.b16 %v5136
  %v5155 = vunpack.c.l.b16 %v5137
  %v5156 = vunpack.c.h.b16 %v5137
  %v5157 = vunpack.c.l.b16 %v5138
  %v5158 = vunpack.c.h.b16 %v5138
  %v5159 = vunpack.c.l.b16 %v5139
  %v5160 = vunpack.c.h.b16 %v5139
  %v5161 = vunpack.c.l.b16 %v5140
  %v5162 = vunpack.c.h.b16 %v5140
  %v5163 = vunpack.c.l.b16 %v5141
  %v5164 = vunpack.c.h.b16 %v5141
  %v5165 = vunpack.c.l.b16 %v5142
  %v5166 = vunpack.c.h.b16 %v5142
  %v5167 = vpack.c.b16 %v5153, %v5151
  %v5168 = vpack.c.b16 %v5154, %v5152
  %v5169 = vpack.c.b16 %v5157, %v5155
  %v5170 = vpack.c.b16 %v5158, %v5156
  %v5171 = vpack.c.b16 %v5161, %v5159
  %v5172 = vpack.c.b16 %v5162, %v5160
  %v5173 = vpack.c.b16 %v5165, %v5163
  %v5174 = vpack.c.b16 %v5166, %v5164
  %v5184 = vsel %vm580, %v2657, 0
  %5186 = vmatprep.subr.bf16.mxu0 %v5168
  %5187 = vmatpush1.bf16.msra.mxu0 %v5167
  %5188 = vmatprep.subr.bf16.mxu0 %v5170
  %5189 = vmatpush1.bf16.msra.mxu0 %v5169
  %5190 = vmatprep.subr.bf16.mxu0 %v5172
  %5191 = vmatpush1.bf16.msra.mxu0 %v5171
  %5192 = vmatprep.subr.bf16.mxu0 %v5174
  %5193 = vmatpush1.bf16.msra.mxu0 %v5173
  %5194 = vmatprep.subr.bf16.mxu0 0
  %5195 = vmatpush1.bf16.msra.mxu0 0
  %5196 = vmatprep.subr.bf16.mxu0 0
  %5197 = vmatpush1.bf16.msra.mxu0 0
  %5198 = vmatprep.subr.bf16.mxu0 0
  %5199 = vmatpush1.bf16.msra.mxu0 0
  %5200 = vmatprep.subr.bf16.mxu0 0
  %5201 = vmatpush1.bf16.msra.mxu0 0
  %5202 = vmatprep.subr.bf16.mxu0 0
  %5203 = vmatpush1.bf16.msra.mxu0 0
  %5204 = vmatprep.subr.bf16.mxu0 0
  %5205 = vmatpush1.bf16.msra.mxu0 0
  %5206 = vmatprep.subr.bf16.mxu0 0
  %5207 = vmatpush1.bf16.msra.mxu0 0
  %5208 = vmatprep.subr.bf16.mxu0 0
  %5209 = vmatpush1.bf16.msra.mxu0 0
  %5210 = vmatprep.subr.bf16.mxu0 0
  %5211 = vmatpush1.bf16.msra.mxu0 0
  %5212 = vmatprep.subr.bf16.mxu0 0
  %5213 = vmatpush1.bf16.msra.mxu0 0
  %5214 = vmatprep.subr.bf16.mxu0 0
  %5215 = vmatpush1.bf16.msra.mxu0 0
  %5216 = vmatprep.subr.bf16.mxu0 0
  %5217 = vmatpush1.bf16.msra.mxu0 0
  %5218 = vmatprep.mubr.bf16.mxu0 0
  %5219 = vmatmul.mubr.bf16.gmra.mrb[0].mxu0 %v5184
  %v5220 = vpop.f32.mrb[0].mxu0
  %v5221 = vadd.f32 0.0, %v5220
  %v5222 = vpop.f32.mrb[0].mxu0
  %v5223 = vadd.f32 0.0, %v5222
  %v5224 = vpop.f32.mrb[0].mxu0
  %v5225 = vadd.f32 0.0, %v5224
  %v5226 = vpop.f32.mrb[0].mxu0
  %v5227 = vadd.f32 0.0, %v5226
  %5228 = vdwg.mxu0
  %v5229 = vadd.f32 %v5130, %v5221
  %v5230 = vadd.f32 %v5131, %v5223
  %v5231 = vadd.f32 %v5132, %v5225
  %v5232 = vadd.f32 %v5133, %v5227
  %s5233 = scalar_lea.vmem %s7, 1664
  %v5234 = vld [vmem:[%s5233] sm:$0xff]
  %v5235 = vld [vmem:[%s5233 + $0x8] sm:$0xff]
  %v5236 = vld [vmem:[%s5233 + $0x10] sm:$0xff]
  %v5237 = vld [vmem:[%s5233 + $0x18] sm:$0xff]
  %v5238 = vld [vmem:[%s5233 + $0x20] sm:$0xff]
  %v5239 = vld [vmem:[%s5233 + $0x28] sm:$0xff]
  %v5240 = vld [vmem:[%s5233 + $0x30] sm:$0xff]
  %v5241 = vld [vmem:[%s5233 + $0x38] sm:$0xff]
  %v5250 = vunpack.c.l.b16 %v5234
  %v5251 = vunpack.c.h.b16 %v5234
  %v5252 = vunpack.c.l.b16 %v5235
  %v5253 = vunpack.c.h.b16 %v5235
  %v5254 = vunpack.c.l.b16 %v5236
  %v5255 = vunpack.c.h.b16 %v5236
  %v5256 = vunpack.c.l.b16 %v5237
  %v5257 = vunpack.c.h.b16 %v5237
  %v5258 = vunpack.c.l.b16 %v5238
  %v5259 = vunpack.c.h.b16 %v5238
  %v5260 = vunpack.c.l.b16 %v5239
  %v5261 = vunpack.c.h.b16 %v5239
  %v5262 = vunpack.c.l.b16 %v5240
  %v5263 = vunpack.c.h.b16 %v5240
  %v5264 = vunpack.c.l.b16 %v5241
  %v5265 = vunpack.c.h.b16 %v5241
  %v5266 = vpack.c.b16 %v5252, %v5250
  %v5267 = vpack.c.b16 %v5253, %v5251
  %v5268 = vpack.c.b16 %v5256, %v5254
  %v5269 = vpack.c.b16 %v5257, %v5255
  %v5270 = vpack.c.b16 %v5260, %v5258
  %v5271 = vpack.c.b16 %v5261, %v5259
  %v5272 = vpack.c.b16 %v5264, %v5262
  %v5273 = vpack.c.b16 %v5265, %v5263
  %v5283 = vsel %vm580, %v2658, 0
  %5285 = vmatprep.subr.bf16.mxu0 %v5267
  %5286 = vmatpush1.bf16.msra.mxu0 %v5266
  %5287 = vmatprep.subr.bf16.mxu0 %v5269
  %5288 = vmatpush1.bf16.msra.mxu0 %v5268
  %5289 = vmatprep.subr.bf16.mxu0 %v5271
  %5290 = vmatpush1.bf16.msra.mxu0 %v5270
  %5291 = vmatprep.subr.bf16.mxu0 %v5273
  %5292 = vmatpush1.bf16.msra.mxu0 %v5272
  %5293 = vmatprep.subr.bf16.mxu0 0
  %5294 = vmatpush1.bf16.msra.mxu0 0
  %5295 = vmatprep.subr.bf16.mxu0 0
  %5296 = vmatpush1.bf16.msra.mxu0 0
  %5297 = vmatprep.subr.bf16.mxu0 0
  %5298 = vmatpush1.bf16.msra.mxu0 0
  %5299 = vmatprep.subr.bf16.mxu0 0
  %5300 = vmatpush1.bf16.msra.mxu0 0
  %5301 = vmatprep.subr.bf16.mxu0 0
  %5302 = vmatpush1.bf16.msra.mxu0 0
  %5303 = vmatprep.subr.bf16.mxu0 0
  %5304 = vmatpush1.bf16.msra.mxu0 0
  %5305 = vmatprep.subr.bf16.mxu0 0
  %5306 = vmatpush1.bf16.msra.mxu0 0
  %5307 = vmatprep.subr.bf16.mxu0 0
  %5308 = vmatpush1.bf16.msra.mxu0 0
  %5309 = vmatprep.subr.bf16.mxu0 0
  %5310 = vmatpush1.bf16.msra.mxu0 0
  %5311 = vmatprep.subr.bf16.mxu0 0
  %5312 = vmatpush1.bf16.msra.mxu0 0
  %5313 = vmatprep.subr.bf16.mxu0 0
  %5314 = vmatpush1.bf16.msra.mxu0 0
  %5315 = vmatprep.subr.bf16.mxu0 0
  %5316 = vmatpush1.bf16.msra.mxu0 0
  %5317 = vmatprep.mubr.bf16.mxu0 0
  %5318 = vmatmul.mubr.bf16.gmra.mrb[0].mxu0 %v5283
  %v5319 = vpop.f32.mrb[0].mxu0
  %v5320 = vadd.f32 0.0, %v5319
  %v5321 = vpop.f32.mrb[0].mxu0
  %v5322 = vadd.f32 0.0, %v5321
  %v5323 = vpop.f32.mrb[0].mxu0
  %v5324 = vadd.f32 0.0, %v5323
  %v5325 = vpop.f32.mrb[0].mxu0
  %v5326 = vadd.f32 0.0, %v5325
  %5327 = vdwg.mxu0
  %v5328 = vadd.f32 %v5229, %v5320
  %v5329 = vadd.f32 %v5230, %v5322
  %v5330 = vadd.f32 %v5231, %v5324
  %v5331 = vadd.f32 %v5232, %v5326
  %s5332 = scalar_lea.vmem %s7, 1728
  %v5333 = vld [vmem:[%s5332] sm:$0xff]
  %v5334 = vld [vmem:[%s5332 + $0x8] sm:$0xff]
  %v5335 = vld [vmem:[%s5332 + $0x10] sm:$0xff]
  %v5336 = vld [vmem:[%s5332 + $0x18] sm:$0xff]
  %v5337 = vld [vmem:[%s5332 + $0x20] sm:$0xff]
  %v5338 = vld [vmem:[%s5332 + $0x28] sm:$0xff]
  %v5339 = vld [vmem:[%s5332 + $0x30] sm:$0xff]
  %v5340 = vld [vmem:[%s5332 + $0x38] sm:$0xff]
  %v5349 = vunpack.c.l.b16 %v5333
  %v5350 = vunpack.c.h.b16 %v5333
  %v5351 = vunpack.c.l.b16 %v5334
  %v5352 = vunpack.c.h.b16 %v5334
  %v5353 = vunpack.c.l.b16 %v5335
  %v5354 = vunpack.c.h.b16 %v5335
  %v5355 = vunpack.c.l.b16 %v5336
  %v5356 = vunpack.c.h.b16 %v5336
  %v5357 = vunpack.c.l.b16 %v5337
  %v5358 = vunpack.c.h.b16 %v5337
  %v5359 = vunpack.c.l.b16 %v5338
  %v5360 = vunpack.c.h.b16 %v5338
  %v5361 = vunpack.c.l.b16 %v5339
  %v5362 = vunpack.c.h.b16 %v5339
  %v5363 = vunpack.c.l.b16 %v5340
  %v5364 = vunpack.c.h.b16 %v5340
  %v5365 = vpack.c.b16 %v5351, %v5349
  %v5366 = vpack.c.b16 %v5352, %v5350
  %v5367 = vpack.c.b16 %v5355, %v5353
  %v5368 = vpack.c.b16 %v5356, %v5354
  %v5369 = vpack.c.b16 %v5359, %v5357
  %v5370 = vpack.c.b16 %v5360, %v5358
  %v5371 = vpack.c.b16 %v5363, %v5361
  %v5372 = vpack.c.b16 %v5364, %v5362
  %v5382 = vsel %vm580, %v2659, 0
  %5384 = vmatprep.subr.bf16.mxu0 %v5366
  %5385 = vmatpush1.bf16.msra.mxu0 %v5365
  %5386 = vmatprep.subr.bf16.mxu0 %v5368
  %5387 = vmatpush1.bf16.msra.mxu0 %v5367
  %5388 = vmatprep.subr.bf16.mxu0 %v5370
  %5389 = vmatpush1.bf16.msra.mxu0 %v5369
  %5390 = vmatprep.subr.bf16.mxu0 %v5372
  %5391 = vmatpush1.bf16.msra.mxu0 %v5371
  %5392 = vmatprep.subr.bf16.mxu0 0
  %5393 = vmatpush1.bf16.msra.mxu0 0
  %5394 = vmatprep.subr.bf16.mxu0 0
  %5395 = vmatpush1.bf16.msra.mxu0 0
  %5396 = vmatprep.subr.bf16.mxu0 0
  %5397 = vmatpush1.bf16.msra.mxu0 0
  %5398 = vmatprep.subr.bf16.mxu0 0
  %5399 = vmatpush1.bf16.msra.mxu0 0
  %5400 = vmatprep.subr.bf16.mxu0 0
  %5401 = vmatpush1.bf16.msra.mxu0 0
  %5402 = vmatprep.subr.bf16.mxu0 0
  %5403 = vmatpush1.bf16.msra.mxu0 0
  %5404 = vmatprep.subr.bf16.mxu0 0
  %5405 = vmatpush1.bf16.msra.mxu0 0
  %5406 = vmatprep.subr.bf16.mxu0 0
  %5407 = vmatpush1.bf16.msra.mxu0 0
  %5408 = vmatprep.subr.bf16.mxu0 0
  %5409 = vmatpush1.bf16.msra.mxu0 0
  %5410 = vmatprep.subr.bf16.mxu0 0
  %5411 = vmatpush1.bf16.msra.mxu0 0
  %5412 = vmatprep.subr.bf16.mxu0 0
  %5413 = vmatpush1.bf16.msra.mxu0 0
  %5414 = vmatprep.subr.bf16.mxu0 0
  %5415 = vmatpush1.bf16.msra.mxu0 0
  %5416 = vmatprep.mubr.bf16.mxu0 0
  %5417 = vmatmul.mubr.bf16.gmra.mrb[0].mxu0 %v5382
  %v5418 = vpop.f32.mrb[0].mxu0
  %v5419 = vadd.f32 0.0, %v5418
  %v5420 = vpop.f32.mrb[0].mxu0
  %v5421 = vadd.f32 0.0, %v5420
  %v5422 = vpop.f32.mrb[0].mxu0
  %v5423 = vadd.f32 0.0, %v5422
  %v5424 = vpop.f32.mrb[0].mxu0
  %v5425 = vadd.f32 0.0, %v5424
  %5426 = vdwg.mxu0
  %v5427 = vadd.f32 %v5328, %v5419
  %v5428 = vadd.f32 %v5329, %v5421
  %v5429 = vadd.f32 %v5330, %v5423
  %v5430 = vadd.f32 %v5331, %v5425
  %s5431 = scalar_lea.vmem %s7, 1792
  %v5432 = vld [vmem:[%s5431] sm:$0xff]
  %v5433 = vld [vmem:[%s5431 + $0x8] sm:$0xff]
  %v5434 = vld [vmem:[%s5431 + $0x10] sm:$0xff]
  %v5435 = vld [vmem:[%s5431 + $0x18] sm:$0xff]
  %v5436 = vld [vmem:[%s5431 + $0x20] sm:$0xff]
  %v5437 = vld [vmem:[%s5431 + $0x28] sm:$0xff]
  %v5438 = vld [vmem:[%s5431 + $0x30] sm:$0xff]
  %v5439 = vld [vmem:[%s5431 + $0x38] sm:$0xff]
  %v5448 = vunpack.c.l.b16 %v5432
  %v5449 = vunpack.c.h.b16 %v5432
  %v5450 = vunpack.c.l.b16 %v5433
  %v5451 = vunpack.c.h.b16 %v5433
  %v5452 = vunpack.c.l.b16 %v5434
  %v5453 = vunpack.c.h.b16 %v5434
  %v5454 = vunpack.c.l.b16 %v5435
  %v5455 = vunpack.c.h.b16 %v5435
  %v5456 = vunpack.c.l.b16 %v5436
  %v5457 = vunpack.c.h.b16 %v5436
  %v5458 = vunpack.c.l.b16 %v5437
  %v5459 = vunpack.c.h.b16 %v5437
  %v5460 = vunpack.c.l.b16 %v5438
  %v5461 = vunpack.c.h.b16 %v5438
  %v5462 = vunpack.c.l.b16 %v5439
  %v5463 = vunpack.c.h.b16 %v5439
  %v5464 = vpack.c.b16 %v5450, %v5448
  %v5465 = vpack.c.b16 %v5451, %v5449
  %v5466 = vpack.c.b16 %v5454, %v5452
  %v5467 = vpack.c.b16 %v5455, %v5453
  %v5468 = vpack.c.b16 %v5458, %v5456
  %v5469 = vpack.c.b16 %v5459, %v5457
  %v5470 = vpack.c.b16 %v5462, %v5460
  %v5471 = vpack.c.b16 %v5463, %v5461
  %v5481 = vsel %vm580, %v2660, 0
  %5483 = vmatprep.subr.bf16.mxu0 %v5465
  %5484 = vmatpush1.bf16.msra.mxu0 %v5464
  %5485 = vmatprep.subr.bf16.mxu0 %v5467
  %5486 = vmatpush1.bf16.msra.mxu0 %v5466
  %5487 = vmatprep.subr.bf16.mxu0 %v5469
  %5488 = vmatpush1.bf16.msra.mxu0 %v5468
  %5489 = vmatprep.subr.bf16.mxu0 %v5471
  %5490 = vmatpush1.bf16.msra.mxu0 %v5470
  %5491 = vmatprep.subr.bf16.mxu0 0
  %5492 = vmatpush1.bf16.msra.mxu0 0
  %5493 = vmatprep.subr.bf16.mxu0 0
  %5494 = vmatpush1.bf16.msra.mxu0 0
  %5495 = vmatprep.subr.bf16.mxu0 0
  %5496 = vmatpush1.bf16.msra.mxu0 0
  %5497 = vmatprep.subr.bf16.mxu0 0
  %5498 = vmatpush1.bf16.msra.mxu0 0
  %5499 = vmatprep.subr.bf16.mxu0 0
  %5500 = vmatpush1.bf16.msra.mxu0 0
  %5501 = vmatprep.subr.bf16.mxu0 0
  %5502 = vmatpush1.bf16.msra.mxu0 0
  %5503 = vmatprep.subr.bf16.mxu0 0
  %5504 = vmatpush1.bf16.msra.mxu0 0
  %5505 = vmatprep.subr.bf16.mxu0 0
  %5506 = vmatpush1.bf16.msra.mxu0 0
  %5507 = vmatprep.subr.bf16.mxu0 0
  %5508 = vmatpush1.bf16.msra.mxu0 0
  %5509 = vmatprep.subr.bf16.mxu0 0
  %5510 = vmatpush1.bf16.msra.mxu0 0
  %5511 = vmatprep.subr.bf16.mxu0 0
  %5512 = vmatpush1.bf16.msra.mxu0 0
  %5513 = vmatprep.subr.bf16.mxu0 0
  %5514 = vmatpush1.bf16.msra.mxu0 0
  %5515 = vmatprep.mubr.bf16.mxu0 0
  %5516 = vmatmul.mubr.bf16.gmra.mrb[0].mxu0 %v5481
  %v5517 = vpop.f32.mrb[0].mxu0
  %v5518 = vadd.f32 0.0, %v5517
  %v5519 = vpop.f32.mrb[0].mxu0
  %v5520 = vadd.f32 0.0, %v5519
  %v5521 = vpop.f32.mrb[0].mxu0
  %v5522 = vadd.f32 0.0, %v5521
  %v5523 = vpop.f32.mrb[0].mxu0
  %v5524 = vadd.f32 0.0, %v5523
  %5525 = vdwg.mxu0
  %v5526 = vadd.f32 %v5427, %v5518
  %v5527 = vadd.f32 %v5428, %v5520
  %v5528 = vadd.f32 %v5429, %v5522
  %v5529 = vadd.f32 %v5430, %v5524
  %s5530 = scalar_lea.vmem %s7, 1856
  %v5531 = vld [vmem:[%s5530] sm:$0xff]
  %v5532 = vld [vmem:[%s5530 + $0x8] sm:$0xff]
  %v5533 = vld [vmem:[%s5530 + $0x10] sm:$0xff]
  %v5534 = vld [vmem:[%s5530 + $0x18] sm:$0xff]
  %v5535 = vld [vmem:[%s5530 + $0x20] sm:$0xff]
  %v5536 = vld [vmem:[%s5530 + $0x28] sm:$0xff]
  %v5537 = vld [vmem:[%s5530 + $0x30] sm:$0xff]
  %v5538 = vld [vmem:[%s5530 + $0x38] sm:$0xff]
  %v5547 = vunpack.c.l.b16 %v5531
  %v5548 = vunpack.c.h.b16 %v5531
  %v5549 = vunpack.c.l.b16 %v5532
  %v5550 = vunpack.c.h.b16 %v5532
  %v5551 = vunpack.c.l.b16 %v5533
  %v5552 = vunpack.c.h.b16 %v5533
  %v5553 = vunpack.c.l.b16 %v5534
  %v5554 = vunpack.c.h.b16 %v5534
  %v5555 = vunpack.c.l.b16 %v5535
  %v5556 = vunpack.c.h.b16 %v5535
  %v5557 = vunpack.c.l.b16 %v5536
  %v5558 = vunpack.c.h.b16 %v5536
  %v5559 = vunpack.c.l.b16 %v5537
  %v5560 = vunpack.c.h.b16 %v5537
  %v5561 = vunpack.c.l.b16 %v5538
  %v5562 = vunpack.c.h.b16 %v5538
  %v5563 = vpack.c.b16 %v5549, %v5547
  %v5564 = vpack.c.b16 %v5550, %v5548
  %v5565 = vpack.c.b16 %v5553, %v5551
  %v5566 = vpack.c.b16 %v5554, %v5552
  %v5567 = vpack.c.b16 %v5557, %v5555
  %v5568 = vpack.c.b16 %v5558, %v5556
  %v5569 = vpack.c.b16 %v5561, %v5559
  %v5570 = vpack.c.b16 %v5562, %v5560
  %v5580 = vsel %vm580, %v2661, 0
  %5582 = vmatprep.subr.bf16.mxu0 %v5564
  %5583 = vmatpush1.bf16.msra.mxu0 %v5563
  %5584 = vmatprep.subr.bf16.mxu0 %v5566
  %5585 = vmatpush1.bf16.msra.mxu0 %v5565
  %5586 = vmatprep.subr.bf16.mxu0 %v5568
  %5587 = vmatpush1.bf16.msra.mxu0 %v5567
  %5588 = vmatprep.subr.bf16.mxu0 %v5570
  %5589 = vmatpush1.bf16.msra.mxu0 %v5569
  %5590 = vmatprep.subr.bf16.mxu0 0
  %5591 = vmatpush1.bf16.msra.mxu0 0
  %5592 = vmatprep.subr.bf16.mxu0 0
  %5593 = vmatpush1.bf16.msra.mxu0 0
  %5594 = vmatprep.subr.bf16.mxu0 0
  %5595 = vmatpush1.bf16.msra.mxu0 0
  %5596 = vmatprep.subr.bf16.mxu0 0
  %5597 = vmatpush1.bf16.msra.mxu0 0
  %5598 = vmatprep.subr.bf16.mxu0 0
  %5599 = vmatpush1.bf16.msra.mxu0 0
  %5600 = vmatprep.subr.bf16.mxu0 0
  %5601 = vmatpush1.bf16.msra.mxu0 0
  %5602 = vmatprep.subr.bf16.mxu0 0
  %5603 = vmatpush1.bf16.msra.mxu0 0
  %5604 = vmatprep.subr.bf16.mxu0 0
  %5605 = vmatpush1.bf16.msra.mxu0 0
  %5606 = vmatprep.subr.bf16.mxu0 0
  %5607 = vmatpush1.bf16.msra.mxu0 0
  %5608 = vmatprep.subr.bf16.mxu0 0
  %5609 = vmatpush1.bf16.msra.mxu0 0
  %5610 = vmatprep.subr.bf16.mxu0 0
  %5611 = vmatpush1.bf16.msra.mxu0 0
  %5612 = vmatprep.subr.bf16.mxu0 0
  %5613 = vmatpush1.bf16.msra.mxu0 0
  %5614 = vmatprep.mubr.bf16.mxu0 0
  %5615 = vmatmul.mubr.bf16.gmra.mrb[0].mxu0 %v5580
  %v5616 = vpop.f32.mrb[0].mxu0
  %v5617 = vadd.f32 0.0, %v5616
  %v5618 = vpop.f32.mrb[0].mxu0
  %v5619 = vadd.f32 0.0, %v5618
  %v5620 = vpop.f32.mrb[0].mxu0
  %v5621 = vadd.f32 0.0, %v5620
  %v5622 = vpop.f32.mrb[0].mxu0
  %v5623 = vadd.f32 0.0, %v5622
  %5624 = vdwg.mxu0
  %v5625 = vadd.f32 %v5526, %v5617
  %v5626 = vadd.f32 %v5527, %v5619
  %v5627 = vadd.f32 %v5528, %v5621
  %v5628 = vadd.f32 %v5529, %v5623
  %s5629 = scalar_lea.vmem %s7, 1920
  %v5630 = vld [vmem:[%s5629] sm:$0xff]
  %v5631 = vld [vmem:[%s5629 + $0x8] sm:$0xff]
  %v5632 = vld [vmem:[%s5629 + $0x10] sm:$0xff]
  %v5633 = vld [vmem:[%s5629 + $0x18] sm:$0xff]
  %v5634 = vld [vmem:[%s5629 + $0x20] sm:$0xff]
  %v5635 = vld [vmem:[%s5629 + $0x28] sm:$0xff]
  %v5636 = vld [vmem:[%s5629 + $0x30] sm:$0xff]
  %v5637 = vld [vmem:[%s5629 + $0x38] sm:$0xff]
  %v5646 = vunpack.c.l.b16 %v5630
  %v5647 = vunpack.c.h.b16 %v5630
  %v5648 = vunpack.c.l.b16 %v5631
  %v5649 = vunpack.c.h.b16 %v5631
  %v5650 = vunpack.c.l.b16 %v5632
  %v5651 = vunpack.c.h.b16 %v5632
  %v5652 = vunpack.c.l.b16 %v5633
  %v5653 = vunpack.c.h.b16 %v5633
  %v5654 = vunpack.c.l.b16 %v5634
  %v5655 = vunpack.c.h.b16 %v5634
  %v5656 = vunpack.c.l.b16 %v5635
  %v5657 = vunpack.c.h.b16 %v5635
  %v5658 = vunpack.c.l.b16 %v5636
  %v5659 = vunpack.c.h.b16 %v5636
  %v5660 = vunpack.c.l.b16 %v5637
  %v5661 = vunpack.c.h.b16 %v5637
  %v5662 = vpack.c.b16 %v5648, %v5646
  %v5663 = vpack.c.b16 %v5649, %v5647
  %v5664 = vpack.c.b16 %v5652, %v5650
  %v5665 = vpack.c.b16 %v5653, %v5651
  %v5666 = vpack.c.b16 %v5656, %v5654
  %v5667 = vpack.c.b16 %v5657, %v5655
  %v5668 = vpack.c.b16 %v5660, %v5658
  %v5669 = vpack.c.b16 %v5661, %v5659
  %v5679 = vsel %vm580, %v2662, 0
  %5681 = vmatprep.subr.bf16.mxu0 %v5663
  %5682 = vmatpush1.bf16.msra.mxu0 %v5662
  %5683 = vmatprep.subr.bf16.mxu0 %v5665
  %5684 = vmatpush1.bf16.msra.mxu0 %v5664
  %5685 = vmatprep.subr.bf16.mxu0 %v5667
  %5686 = vmatpush1.bf16.msra.mxu0 %v5666
  %5687 = vmatprep.subr.bf16.mxu0 %v5669
  %5688 = vmatpush1.bf16.msra.mxu0 %v5668
  %5689 = vmatprep.subr.bf16.mxu0 0
  %5690 = vmatpush1.bf16.msra.mxu0 0
  %5691 = vmatprep.subr.bf16.mxu0 0
  %5692 = vmatpush1.bf16.msra.mxu0 0
  %5693 = vmatprep.subr.bf16.mxu0 0
  %5694 = vmatpush1.bf16.msra.mxu0 0
  %5695 = vmatprep.subr.bf16.mxu0 0
  %5696 = vmatpush1.bf16.msra.mxu0 0
  %5697 = vmatprep.subr.bf16.mxu0 0
  %5698 = vmatpush1.bf16.msra.mxu0 0
  %5699 = vmatprep.subr.bf16.mxu0 0
  %5700 = vmatpush1.bf16.msra.mxu0 0
  %5701 = vmatprep.subr.bf16.mxu0 0
  %5702 = vmatpush1.bf16.msra.mxu0 0
  %5703 = vmatprep.subr.bf16.mxu0 0
  %5704 = vmatpush1.bf16.msra.mxu0 0
  %5705 = vmatprep.subr.bf16.mxu0 0
  %5706 = vmatpush1.bf16.msra.mxu0 0
  %5707 = vmatprep.subr.bf16.mxu0 0
  %5708 = vmatpush1.bf16.msra.mxu0 0
  %5709 = vmatprep.subr.bf16.mxu0 0
  %5710 = vmatpush1.bf16.msra.mxu0 0
  %5711 = vmatprep.subr.bf16.mxu0 0
  %5712 = vmatpush1.bf16.msra.mxu0 0
  %5713 = vmatprep.mubr.bf16.mxu0 0
  %5714 = vmatmul.mubr.bf16.gmra.mrb[0].mxu0 %v5679
  %v5715 = vpop.f32.mrb[0].mxu0
  %v5716 = vadd.f32 0.0, %v5715
  %v5717 = vpop.f32.mrb[0].mxu0
  %v5718 = vadd.f32 0.0, %v5717
  %v5719 = vpop.f32.mrb[0].mxu0
  %v5720 = vadd.f32 0.0, %v5719
  %v5721 = vpop.f32.mrb[0].mxu0
  %v5722 = vadd.f32 0.0, %v5721
  %5723 = vdwg.mxu0
  %v5724 = vadd.f32 %v5625, %v5716
  %v5725 = vadd.f32 %v5626, %v5718
  %v5726 = vadd.f32 %v5627, %v5720
  %v5727 = vadd.f32 %v5628, %v5722
  %s5728 = scalar_lea.vmem %s7, 1984
  %v5729 = vld [vmem:[%s5728] sm:$0xff]
  %v5730 = vld [vmem:[%s5728 + $0x8] sm:$0xff]
  %v5731 = vld [vmem:[%s5728 + $0x10] sm:$0xff]
  %v5732 = vld [vmem:[%s5728 + $0x18] sm:$0xff]
  %v5733 = vld [vmem:[%s5728 + $0x20] sm:$0xff]
  %v5734 = vld [vmem:[%s5728 + $0x28] sm:$0xff]
  %v5735 = vld [vmem:[%s5728 + $0x30] sm:$0xff]
  %v5736 = vld [vmem:[%s5728 + $0x38] sm:$0xff]
  %v5745 = vunpack.c.l.b16 %v5729
  %v5746 = vunpack.c.h.b16 %v5729
  %v5747 = vunpack.c.l.b16 %v5730
  %v5748 = vunpack.c.h.b16 %v5730
  %v5749 = vunpack.c.l.b16 %v5731
  %v5750 = vunpack.c.h.b16 %v5731
  %v5751 = vunpack.c.l.b16 %v5732
  %v5752 = vunpack.c.h.b16 %v5732
  %v5753 = vunpack.c.l.b16 %v5733
  %v5754 = vunpack.c.h.b16 %v5733
  %v5755 = vunpack.c.l.b16 %v5734
  %v5756 = vunpack.c.h.b16 %v5734
  %v5757 = vunpack.c.l.b16 %v5735
  %v5758 = vunpack.c.h.b16 %v5735
  %v5759 = vunpack.c.l.b16 %v5736
  %v5760 = vunpack.c.h.b16 %v5736
  %v5761 = vpack.c.b16 %v5747, %v5745
  %v5762 = vpack.c.b16 %v5748, %v5746
  %v5763 = vpack.c.b16 %v5751, %v5749
  %v5764 = vpack.c.b16 %v5752, %v5750
  %v5765 = vpack.c.b16 %v5755, %v5753
  %v5766 = vpack.c.b16 %v5756, %v5754
  %v5767 = vpack.c.b16 %v5759, %v5757
  %v5768 = vpack.c.b16 %v5760, %v5758
  %v5778 = vsel %vm580, %v2663, 0
  %5780 = vmatprep.subr.bf16.mxu0 %v5762
  %5781 = vmatpush1.bf16.msra.mxu0 %v5761
  %5782 = vmatprep.subr.bf16.mxu0 %v5764
  %5783 = vmatpush1.bf16.msra.mxu0 %v5763
  %5784 = vmatprep.subr.bf16.mxu0 %v5766
  %5785 = vmatpush1.bf16.msra.mxu0 %v5765
  %5786 = vmatprep.subr.bf16.mxu0 %v5768
  %5787 = vmatpush1.bf16.msra.mxu0 %v5767
  %5788 = vmatprep.subr.bf16.mxu0 0
  %5789 = vmatpush1.bf16.msra.mxu0 0
  %5790 = vmatprep.subr.bf16.mxu0 0
  %5791 = vmatpush1.bf16.msra.mxu0 0
  %5792 = vmatprep.subr.bf16.mxu0 0
  %5793 = vmatpush1.bf16.msra.mxu0 0
  %5794 = vmatprep.subr.bf16.mxu0 0
  %5795 = vmatpush1.bf16.msra.mxu0 0
  %5796 = vmatprep.subr.bf16.mxu0 0
  %5797 = vmatpush1.bf16.msra.mxu0 0
  %5798 = vmatprep.subr.bf16.mxu0 0
  %5799 = vmatpush1.bf16.msra.mxu0 0
  %5800 = vmatprep.subr.bf16.mxu0 0
  %5801 = vmatpush1.bf16.msra.mxu0 0
  %5802 = vmatprep.subr.bf16.mxu0 0
  %5803 = vmatpush1.bf16.msra.mxu0 0
  %5804 = vmatprep.subr.bf16.mxu0 0
  %5805 = vmatpush1.bf16.msra.mxu0 0
  %5806 = vmatprep.subr.bf16.mxu0 0
  %5807 = vmatpush1.bf16.msra.mxu0 0
  %5808 = vmatprep.subr.bf16.mxu0 0
  %5809 = vmatpush1.bf16.msra.mxu0 0
  %5810 = vmatprep.subr.bf16.mxu0 0
  %5811 = vmatpush1.bf16.msra.mxu0 0
  %5812 = vmatprep.mubr.bf16.mxu0 0
  %5813 = vmatmul.mubr.bf16.gmra.mrb[0].mxu0 %v5778
  %v5814 = vpop.f32.mrb[0].mxu0
  %v5815 = vadd.f32 0.0, %v5814
  %v5816 = vpop.f32.mrb[0].mxu0
  %v5817 = vadd.f32 0.0, %v5816
  %v5818 = vpop.f32.mrb[0].mxu0
  %v5819 = vadd.f32 0.0, %v5818
  %v5820 = vpop.f32.mrb[0].mxu0
  %v5821 = vadd.f32 0.0, %v5820
  %5822 = vdwg.mxu0
  %v5823 = vadd.f32 %v5724, %v5815
  %v5824 = vadd.f32 %v5725, %v5817
  %v5825 = vadd.f32 %v5726, %v5819
  %v5826 = vadd.f32 %v5727, %v5821
  %s5827 = scalar_lea.vmem %s7, 2048
  %v5828 = vld [vmem:[%s5827] sm:$0xff]
  %v5829 = vld [vmem:[%s5827 + $0x8] sm:$0xff]
  %v5830 = vld [vmem:[%s5827 + $0x10] sm:$0xff]
  %v5831 = vld [vmem:[%s5827 + $0x18] sm:$0xff]
  %v5832 = vld [vmem:[%s5827 + $0x20] sm:$0xff]
  %v5833 = vld [vmem:[%s5827 + $0x28] sm:$0xff]
  %v5834 = vld [vmem:[%s5827 + $0x30] sm:$0xff]
  %v5835 = vld [vmem:[%s5827 + $0x38] sm:$0xff]
  %v5844 = vunpack.c.l.b16 %v5828
  %v5845 = vunpack.c.h.b16 %v5828
  %v5846 = vunpack.c.l.b16 %v5829
  %v5847 = vunpack.c.h.b16 %v5829
  %v5848 = vunpack.c.l.b16 %v5830
  %v5849 = vunpack.c.h.b16 %v5830
  %v5850 = vunpack.c.l.b16 %v5831
  %v5851 = vunpack.c.h.b16 %v5831
  %v5852 = vunpack.c.l.b16 %v5832
  %v5853 = vunpack.c.h.b16 %v5832
  %v5854 = vunpack.c.l.b16 %v5833
  %v5855 = vunpack.c.h.b16 %v5833
  %v5856 = vunpack.c.l.b16 %v5834
  %v5857 = vunpack.c.h.b16 %v5834
  %v5858 = vunpack.c.l.b16 %v5835
  %v5859 = vunpack.c.h.b16 %v5835
  %v5860 = vpack.c.b16 %v5846, %v5844
  %v5861 = vpack.c.b16 %v5847, %v5845
  %v5862 = vpack.c.b16 %v5850, %v5848
  %v5863 = vpack.c.b16 %v5851, %v5849
  %v5864 = vpack.c.b16 %v5854, %v5852
  %v5865 = vpack.c.b16 %v5855, %v5853
  %v5866 = vpack.c.b16 %v5858, %v5856
  %v5867 = vpack.c.b16 %v5859, %v5857
  %v5877 = vsel %vm580, %v2664, 0
  %5879 = vmatprep.subr.bf16.mxu0 %v5861
  %5880 = vmatpush1.bf16.msra.mxu0 %v5860
  %5881 = vmatprep.subr.bf16.mxu0 %v5863
  %5882 = vmatpush1.bf16.msra.mxu0 %v5862
  %5883 = vmatprep.subr.bf16.mxu0 %v5865
  %5884 = vmatpush1.bf16.msra.mxu0 %v5864
  %5885 = vmatprep.subr.bf16.mxu0 %v5867
  %5886 = vmatpush1.bf16.msra.mxu0 %v5866
  %5887 = vmatprep.subr.bf16.mxu0 0
  %5888 = vmatpush1.bf16.msra.mxu0 0
  %5889 = vmatprep.subr.bf16.mxu0 0
  %5890 = vmatpush1.bf16.msra.mxu0 0
  %5891 = vmatprep.subr.bf16.mxu0 0
  %5892 = vmatpush1.bf16.msra.mxu0 0
  %5893 = vmatprep.subr.bf16.mxu0 0
  %5894 = vmatpush1.bf16.msra.mxu0 0
  %5895 = vmatprep.subr.bf16.mxu0 0
  %5896 = vmatpush1.bf16.msra.mxu0 0
  %5897 = vmatprep.subr.bf16.mxu0 0
  %5898 = vmatpush1.bf16.msra.mxu0 0
  %5899 = vmatprep.subr.bf16.mxu0 0
  %5900 = vmatpush1.bf16.msra.mxu0 0
  %5901 = vmatprep.subr.bf16.mxu0 0
  %5902 = vmatpush1.bf16.msra.mxu0 0
  %5903 = vmatprep.subr.bf16.mxu0 0
  %5904 = vmatpush1.bf16.msra.mxu0 0
  %5905 = vmatprep.subr.bf16.mxu0 0
  %5906 = vmatpush1.bf16.msra.mxu0 0
  %5907 = vmatprep.subr.bf16.mxu0 0
  %5908 = vmatpush1.bf16.msra.mxu0 0
  %5909 = vmatprep.subr.bf16.mxu0 0
  %5910 = vmatpush1.bf16.msra.mxu0 0
  %5911 = vmatprep.mubr.bf16.mxu0 0
  %5912 = vmatmul.mubr.bf16.gmra.mrb[0].mxu0 %v5877
  %v5913 = vpop.f32.mrb[0].mxu0
  %v5914 = vadd.f32 0.0, %v5913
  %v5915 = vpop.f32.mrb[0].mxu0
  %v5916 = vadd.f32 0.0, %v5915
  %v5917 = vpop.f32.mrb[0].mxu0
  %v5918 = vadd.f32 0.0, %v5917
  %v5919 = vpop.f32.mrb[0].mxu0
  %v5920 = vadd.f32 0.0, %v5919
  %5921 = vdwg.mxu0
  %v5922 = vadd.f32 %v5823, %v5914
  %v5923 = vadd.f32 %v5824, %v5916
  %v5924 = vadd.f32 %v5825, %v5918
  %v5925 = vadd.f32 %v5826, %v5920
  %s5926 = scalar_lea.vmem %s7, 2112
  %v5927 = vld [vmem:[%s5926] sm:$0xff]
  %v5928 = vld [vmem:[%s5926 + $0x8] sm:$0xff]
  %v5929 = vld [vmem:[%s5926 + $0x10] sm:$0xff]
  %v5930 = vld [vmem:[%s5926 + $0x18] sm:$0xff]
  %v5931 = vld [vmem:[%s5926 + $0x20] sm:$0xff]
  %v5932 = vld [vmem:[%s5926 + $0x28] sm:$0xff]
  %v5933 = vld [vmem:[%s5926 + $0x30] sm:$0xff]
  %v5934 = vld [vmem:[%s5926 + $0x38] sm:$0xff]
  %v5943 = vunpack.c.l.b16 %v5927
  %v5944 = vunpack.c.h.b16 %v5927
  %v5945 = vunpack.c.l.b16 %v5928
  %v5946 = vunpack.c.h.b16 %v5928
  %v5947 = vunpack.c.l.b16 %v5929
  %v5948 = vunpack.c.h.b16 %v5929
  %v5949 = vunpack.c.l.b16 %v5930
  %v5950 = vunpack.c.h.b16 %v5930
  %v5951 = vunpack.c.l.b16 %v5931
  %v5952 = vunpack.c.h.b16 %v5931
  %v5953 = vunpack.c.l.b16 %v5932
  %v5954 = vunpack.c.h.b16 %v5932
  %v5955 = vunpack.c.l.b16 %v5933
  %v5956 = vunpack.c.h.b16 %v5933
  %v5957 = vunpack.c.l.b16 %v5934
  %v5958 = vunpack.c.h.b16 %v5934
  %v5959 = vpack.c.b16 %v5945, %v5943
  %v5960 = vpack.c.b16 %v5946, %v5944
  %v5961 = vpack.c.b16 %v5949, %v5947
  %v5962 = vpack.c.b16 %v5950, %v5948
  %v5963 = vpack.c.b16 %v5953, %v5951
  %v5964 = vpack.c.b16 %v5954, %v5952
  %v5965 = vpack.c.b16 %v5957, %v5955
  %v5966 = vpack.c.b16 %v5958, %v5956
  %v5976 = vsel %vm580, %v2665, 0
  %5978 = vmatprep.subr.bf16.mxu0 %v5960
  %5979 = vmatpush1.bf16.msra.mxu0 %v5959
  %5980 = vmatprep.subr.bf16.mxu0 %v5962
  %5981 = vmatpush1.bf16.msra.mxu0 %v5961
  %5982 = vmatprep.subr.bf16.mxu0 %v5964
  %5983 = vmatpush1.bf16.msra.mxu0 %v5963
  %5984 = vmatprep.subr.bf16.mxu0 %v5966
  %5985 = vmatpush1.bf16.msra.mxu0 %v5965
  %5986 = vmatprep.subr.bf16.mxu0 0
  %5987 = vmatpush1.bf16.msra.mxu0 0
  %5988 = vmatprep.subr.bf16.mxu0 0
  %5989 = vmatpush1.bf16.msra.mxu0 0
  %5990 = vmatprep.subr.bf16.mxu0 0
  %5991 = vmatpush1.bf16.msra.mxu0 0
  %5992 = vmatprep.subr.bf16.mxu0 0
  %5993 = vmatpush1.bf16.msra.mxu0 0
  %5994 = vmatprep.subr.bf16.mxu0 0
  %5995 = vmatpush1.bf16.msra.mxu0 0
  %5996 = vmatprep.subr.bf16.mxu0 0
  %5997 = vmatpush1.bf16.msra.mxu0 0
  %5998 = vmatprep.subr.bf16.mxu0 0
  %5999 = vmatpush1.bf16.msra.mxu0 0
  %6000 = vmatprep.subr.bf16.mxu0 0
  %6001 = vmatpush1.bf16.msra.mxu0 0
  %6002 = vmatprep.subr.bf16.mxu0 0
  %6003 = vmatpush1.bf16.msra.mxu0 0
  %6004 = vmatprep.subr.bf16.mxu0 0
  %6005 = vmatpush1.bf16.msra.mxu0 0
  %6006 = vmatprep.subr.bf16.mxu0 0
  %6007 = vmatpush1.bf16.msra.mxu0 0
  %6008 = vmatprep.subr.bf16.mxu0 0
  %6009 = vmatpush1.bf16.msra.mxu0 0
  %6010 = vmatprep.mubr.bf16.mxu0 0
  %6011 = vmatmul.mubr.bf16.gmra.mrb[0].mxu0 %v5976
  %v6012 = vpop.f32.mrb[0].mxu0
  %v6013 = vadd.f32 0.0, %v6012
  %v6014 = vpop.f32.mrb[0].mxu0
  %v6015 = vadd.f32 0.0, %v6014
  %v6016 = vpop.f32.mrb[0].mxu0
  %v6017 = vadd.f32 0.0, %v6016
  %v6018 = vpop.f32.mrb[0].mxu0
  %v6019 = vadd.f32 0.0, %v6018
  %6020 = vdwg.mxu0
  %v6021 = vadd.f32 %v5922, %v6013
  %v6022 = vadd.f32 %v5923, %v6015
  %v6023 = vadd.f32 %v5924, %v6017
  %v6024 = vadd.f32 %v5925, %v6019
  %s6025 = scalar_lea.vmem %s7, 2176
  %v6026 = vld [vmem:[%s6025] sm:$0xff]
  %v6027 = vld [vmem:[%s6025 + $0x8] sm:$0xff]
  %v6028 = vld [vmem:[%s6025 + $0x10] sm:$0xff]
  %v6029 = vld [vmem:[%s6025 + $0x18] sm:$0xff]
  %v6030 = vld [vmem:[%s6025 + $0x20] sm:$0xff]
  %v6031 = vld [vmem:[%s6025 + $0x28] sm:$0xff]
  %v6032 = vld [vmem:[%s6025 + $0x30] sm:$0xff]
  %v6033 = vld [vmem:[%s6025 + $0x38] sm:$0xff]
  %v6042 = vunpack.c.l.b16 %v6026
  %v6043 = vunpack.c.h.b16 %v6026
  %v6044 = vunpack.c.l.b16 %v6027
  %v6045 = vunpack.c.h.b16 %v6027
  %v6046 = vunpack.c.l.b16 %v6028
  %v6047 = vunpack.c.h.b16 %v6028
  %v6048 = vunpack.c.l.b16 %v6029
  %v6049 = vunpack.c.h.b16 %v6029
  %v6050 = vunpack.c.l.b16 %v6030
  %v6051 = vunpack.c.h.b16 %v6030
  %v6052 = vunpack.c.l.b16 %v6031
  %v6053 = vunpack.c.h.b16 %v6031
  %v6054 = vunpack.c.l.b16 %v6032
  %v6055 = vunpack.c.h.b16 %v6032
  %v6056 = vunpack.c.l.b16 %v6033
  %v6057 = vunpack.c.h.b16 %v6033
  %v6058 = vpack.c.b16 %v6044, %v6042
  %v6059 = vpack.c.b16 %v6045, %v6043
  %v6060 = vpack.c.b16 %v6048, %v6046
  %v6061 = vpack.c.b16 %v6049, %v6047
  %v6062 = vpack.c.b16 %v6052, %v6050
  %v6063 = vpack.c.b16 %v6053, %v6051
  %v6064 = vpack.c.b16 %v6056, %v6054
  %v6065 = vpack.c.b16 %v6057, %v6055
  %v6075 = vsel %vm580, %v2666, 0
  %6077 = vmatprep.subr.bf16.mxu0 %v6059
  %6078 = vmatpush1.bf16.msra.mxu0 %v6058
  %6079 = vmatprep.subr.bf16.mxu0 %v6061
  %6080 = vmatpush1.bf16.msra.mxu0 %v6060
  %6081 = vmatprep.subr.bf16.mxu0 %v6063
  %6082 = vmatpush1.bf16.msra.mxu0 %v6062
  %6083 = vmatprep.subr.bf16.mxu0 %v6065
  %6084 = vmatpush1.bf16.msra.mxu0 %v6064
  %6085 = vmatprep.subr.bf16.mxu0 0
  %6086 = vmatpush1.bf16.msra.mxu0 0
  %6087 = vmatprep.subr.bf16.mxu0 0
  %6088 = vmatpush1.bf16.msra.mxu0 0
  %6089 = vmatprep.subr.bf16.mxu0 0
  %6090 = vmatpush1.bf16.msra.mxu0 0
  %6091 = vmatprep.subr.bf16.mxu0 0
  %6092 = vmatpush1.bf16.msra.mxu0 0
  %6093 = vmatprep.subr.bf16.mxu0 0
  %6094 = vmatpush1.bf16.msra.mxu0 0
  %6095 = vmatprep.subr.bf16.mxu0 0
  %6096 = vmatpush1.bf16.msra.mxu0 0
  %6097 = vmatprep.subr.bf16.mxu0 0
  %6098 = vmatpush1.bf16.msra.mxu0 0
  %6099 = vmatprep.subr.bf16.mxu0 0
  %6100 = vmatpush1.bf16.msra.mxu0 0
  %6101 = vmatprep.subr.bf16.mxu0 0
  %6102 = vmatpush1.bf16.msra.mxu0 0
  %6103 = vmatprep.subr.bf16.mxu0 0
  %6104 = vmatpush1.bf16.msra.mxu0 0
  %6105 = vmatprep.subr.bf16.mxu0 0
  %6106 = vmatpush1.bf16.msra.mxu0 0
  %6107 = vmatprep.subr.bf16.mxu0 0
  %6108 = vmatpush1.bf16.msra.mxu0 0
  %6109 = vmatprep.mubr.bf16.mxu0 0
  %6110 = vmatmul.mubr.bf16.gmra.mrb[0].mxu0 %v6075
  %v6111 = vpop.f32.mrb[0].mxu0
  %v6112 = vadd.f32 0.0, %v6111
  %v6113 = vpop.f32.mrb[0].mxu0
  %v6114 = vadd.f32 0.0, %v6113
  %v6115 = vpop.f32.mrb[0].mxu0
  %v6116 = vadd.f32 0.0, %v6115
  %v6117 = vpop.f32.mrb[0].mxu0
  %v6118 = vadd.f32 0.0, %v6117
  %6119 = vdwg.mxu0
  %v6120 = vadd.f32 %v6021, %v6112
  %v6121 = vadd.f32 %v6022, %v6114
  %v6122 = vadd.f32 %v6023, %v6116
  %v6123 = vadd.f32 %v6024, %v6118
  %s6124 = scalar_lea.vmem %s7, 2240
  %v6125 = vld [vmem:[%s6124] sm:$0xff]
  %v6126 = vld [vmem:[%s6124 + $0x8] sm:$0xff]
  %v6127 = vld [vmem:[%s6124 + $0x10] sm:$0xff]
  %v6128 = vld [vmem:[%s6124 + $0x18] sm:$0xff]
  %v6129 = vld [vmem:[%s6124 + $0x20] sm:$0xff]
  %v6130 = vld [vmem:[%s6124 + $0x28] sm:$0xff]
  %v6131 = vld [vmem:[%s6124 + $0x30] sm:$0xff]
  %v6132 = vld [vmem:[%s6124 + $0x38] sm:$0xff]
  %v6141 = vunpack.c.l.b16 %v6125
  %v6142 = vunpack.c.h.b16 %v6125
  %v6143 = vunpack.c.l.b16 %v6126
  %v6144 = vunpack.c.h.b16 %v6126
  %v6145 = vunpack.c.l.b16 %v6127
  %v6146 = vunpack.c.h.b16 %v6127
  %v6147 = vunpack.c.l.b16 %v6128
  %v6148 = vunpack.c.h.b16 %v6128
  %v6149 = vunpack.c.l.b16 %v6129
  %v6150 = vunpack.c.h.b16 %v6129
  %v6151 = vunpack.c.l.b16 %v6130
  %v6152 = vunpack.c.h.b16 %v6130
  %v6153 = vunpack.c.l.b16 %v6131
  %v6154 = vunpack.c.h.b16 %v6131
  %v6155 = vunpack.c.l.b16 %v6132
  %v6156 = vunpack.c.h.b16 %v6132
  %v6157 = vpack.c.b16 %v6143, %v6141
  %v6158 = vpack.c.b16 %v6144, %v6142
  %v6159 = vpack.c.b16 %v6147, %v6145
  %v6160 = vpack.c.b16 %v6148, %v6146
  %v6161 = vpack.c.b16 %v6151, %v6149
  %v6162 = vpack.c.b16 %v6152, %v6150
  %v6163 = vpack.c.b16 %v6155, %v6153
  %v6164 = vpack.c.b16 %v6156, %v6154
  %v6174 = vsel %vm580, %v2667, 0
  %6176 = vmatprep.subr.bf16.mxu0 %v6158
  %6177 = vmatpush1.bf16.msra.mxu0 %v6157
  %6178 = vmatprep.subr.bf16.mxu0 %v6160
  %6179 = vmatpush1.bf16.msra.mxu0 %v6159
  %6180 = vmatprep.subr.bf16.mxu0 %v6162
  %6181 = vmatpush1.bf16.msra.mxu0 %v6161
  %6182 = vmatprep.subr.bf16.mxu0 %v6164
  %6183 = vmatpush1.bf16.msra.mxu0 %v6163
  %6184 = vmatprep.subr.bf16.mxu0 0
  %6185 = vmatpush1.bf16.msra.mxu0 0
  %6186 = vmatprep.subr.bf16.mxu0 0
  %6187 = vmatpush1.bf16.msra.mxu0 0
  %6188 = vmatprep.subr.bf16.mxu0 0
  %6189 = vmatpush1.bf16.msra.mxu0 0
  %6190 = vmatprep.subr.bf16.mxu0 0
  %6191 = vmatpush1.bf16.msra.mxu0 0
  %6192 = vmatprep.subr.bf16.mxu0 0
  %6193 = vmatpush1.bf16.msra.mxu0 0
  %6194 = vmatprep.subr.bf16.mxu0 0
  %6195 = vmatpush1.bf16.msra.mxu0 0
  %6196 = vmatprep.subr.bf16.mxu0 0
  %6197 = vmatpush1.bf16.msra.mxu0 0
  %6198 = vmatprep.subr.bf16.mxu0 0
  %6199 = vmatpush1.bf16.msra.mxu0 0
  %6200 = vmatprep.subr.bf16.mxu0 0
  %6201 = vmatpush1.bf16.msra.mxu0 0
  %6202 = vmatprep.subr.bf16.mxu0 0
  %6203 = vmatpush1.bf16.msra.mxu0 0
  %6204 = vmatprep.subr.bf16.mxu0 0
  %6205 = vmatpush1.bf16.msra.mxu0 0
  %6206 = vmatprep.subr.bf16.mxu0 0
  %6207 = vmatpush1.bf16.msra.mxu0 0
  %6208 = vmatprep.mubr.bf16.mxu0 0
  %6209 = vmatmul.mubr.bf16.gmra.mrb[0].mxu0 %v6174
  %v6210 = vpop.f32.mrb[0].mxu0
  %v6211 = vadd.f32 0.0, %v6210
  %v6212 = vpop.f32.mrb[0].mxu0
  %v6213 = vadd.f32 0.0, %v6212
  %v6214 = vpop.f32.mrb[0].mxu0
  %v6215 = vadd.f32 0.0, %v6214
  %v6216 = vpop.f32.mrb[0].mxu0
  %v6217 = vadd.f32 0.0, %v6216
  %6218 = vdwg.mxu0
  %v6219 = vadd.f32 %v6120, %v6211
  %v6220 = vadd.f32 %v6121, %v6213
  %v6221 = vadd.f32 %v6122, %v6215
  %v6222 = vadd.f32 %v6123, %v6217
  %v6223 = vld [vmem:[%s8] sm:$0x3]
  %v6225 = vlaneseq
  %v6226 = vshrl.u32 %v6225, 7
  %v6227 = vsub.s32 0, %v6226
  %v6228 = vrot.slane %v6223, %v6227
  %v6229 = vlaneseq
  %v6230 = vshrl.u32 %v6229, 7
  %v6231 = vsub.s32 1, %v6230
  %v6232 = vrot.slane %v6223, %v6231
  %v6235 = vadd.f32 %v6219, %v6228
  %v6236 = vadd.f32 %v6220, %v6232
  %v6237 = vadd.f32 %v6221, %v6228
  %v6238 = vadd.f32 %v6222, %v6232
  %v6239 = vmax.f32 %v6235, 0.0
  %v6240 = vmax.f32 %v6236, 0.0
  %v6241 = vmax.f32 %v6237, 0.0
  %v6242 = vmax.f32 %v6238, 0.0
  %v6243 = vpack.c.bf16 %v6241, %v6239
  %v6244 = vpack.c.bf16 %v6242, %v6240
  %v6245 = vld [vmem:[%s9] sm:$0xf]
  %v6246 = vld [vmem:[%s9 + $0x4] sm:$0xf]
  %v6247 = vld [vmem:[%s9 + $0x8] sm:$0xf]
  %v6248 = vld [vmem:[%s9 + $0xc] sm:$0xf]
  %v6249 = vld [vmem:[%s9 + $0x10] sm:$0xf]
  %v6250 = vld [vmem:[%s9 + $0x14] sm:$0xf]
  %v6251 = vld [vmem:[%s9 + $0x18] sm:$0xf]
  %v6252 = vld [vmem:[%s9 + $0x1c] sm:$0xf]
  %v6253 = vld [vmem:[%s9 + $0x20] sm:$0xf]
  %v6254 = vld [vmem:[%s9 + $0x24] sm:$0xf]
  %v6255 = vld [vmem:[%s9 + $0x28] sm:$0xf]
  %v6256 = vld [vmem:[%s9 + $0x2c] sm:$0xf]
  %v6257 = vld [vmem:[%s9 + $0x30] sm:$0xf]
  %v6258 = vld [vmem:[%s9 + $0x34] sm:$0xf]
  %v6259 = vld [vmem:[%s9 + $0x38] sm:$0xf]
  %v6260 = vld [vmem:[%s9 + $0x3c] sm:$0xf]
  %v6261 = vld [vmem:[%s9 + $0x40] sm:$0xf]
  %v6262 = vld [vmem:[%s9 + $0x44] sm:$0xf]
  %v6263 = vld [vmem:[%s9 + $0x48] sm:$0xf]
  %v6264 = vld [vmem:[%s9 + $0x4c] sm:$0xf]
  %v6265 = vld [vmem:[%s9 + $0x50] sm:$0xf]
  %v6266 = vld [vmem:[%s9 + $0x54] sm:$0xf]
  %v6267 = vld [vmem:[%s9 + $0x58] sm:$0xf]
  %v6268 = vld [vmem:[%s9 + $0x5c] sm:$0xf]
  %v6269 = vld [vmem:[%s9 + $0x60] sm:$0xf]
  %v6270 = vld [vmem:[%s9 + $0x64] sm:$0xf]
  %v6271 = vld [vmem:[%s9 + $0x68] sm:$0xf]
  %v6272 = vld [vmem:[%s9 + $0x6c] sm:$0xf]
  %v6273 = vld [vmem:[%s9 + $0x70] sm:$0xf]
  %v6274 = vld [vmem:[%s9 + $0x74] sm:$0xf]
  %v6275 = vld [vmem:[%s9 + $0x78] sm:$0xf]
  %v6276 = vld [vmem:[%s9 + $0x7c] sm:$0xf]
  %v6277 = vld [vmem:[%s10] sm:$0x1]
  %v6279 = vlaneseq
  %v6280 = vshrl.u32 %v6279, 7
  %v6281 = vsub.s32 0, %v6280
  %v6282 = vrot.slane %v6277, %v6281
  %v6316 = vunpack.c.l.b16 %v6245
  %v6317 = vunpack.c.l.b16 %v6246
  %v6318 = vunpack.c.l.b16 %v6247
  %v6319 = vunpack.c.l.b16 %v6248
  %v6320 = vunpack.c.l.b16 %v6249
  %v6321 = vunpack.c.l.b16 %v6250
  %v6322 = vunpack.c.l.b16 %v6251
  %v6323 = vunpack.c.l.b16 %v6252
  %v6324 = vunpack.c.l.b16 %v6253
  %v6325 = vunpack.c.l.b16 %v6254
  %v6326 = vunpack.c.l.b16 %v6255
  %v6327 = vunpack.c.l.b16 %v6256
  %v6328 = vunpack.c.l.b16 %v6257
  %v6329 = vunpack.c.l.b16 %v6258
  %v6330 = vunpack.c.l.b16 %v6259
  %v6331 = vunpack.c.l.b16 %v6260
  %v6332 = vunpack.c.l.b16 %v6261
  %v6333 = vunpack.c.l.b16 %v6262
  %v6334 = vunpack.c.l.b16 %v6263
  %v6335 = vunpack.c.l.b16 %v6264
  %v6336 = vunpack.c.l.b16 %v6265
  %v6337 = vunpack.c.l.b16 %v6266
  %v6338 = vunpack.c.l.b16 %v6267
  %v6339 = vunpack.c.l.b16 %v6268
  %v6340 = vunpack.c.l.b16 %v6269
  %v6341 = vunpack.c.l.b16 %v6270
  %v6342 = vunpack.c.l.b16 %v6271
  %v6343 = vunpack.c.l.b16 %v6272
  %v6344 = vunpack.c.l.b16 %v6273
  %v6345 = vunpack.c.l.b16 %v6274
  %v6346 = vunpack.c.l.b16 %v6275
  %v6347 = vunpack.c.l.b16 %v6276
  %v6348 = vpack.c.b16 %v6317, %v6316
  %v6349 = vpack.c.b16 %v6319, %v6318
  %v6350 = vpack.c.b16 %v6321, %v6320
  %v6351 = vpack.c.b16 %v6323, %v6322
  %v6352 = vpack.c.b16 %v6325, %v6324
  %v6353 = vpack.c.b16 %v6327, %v6326
  %v6354 = vpack.c.b16 %v6329, %v6328
  %v6355 = vpack.c.b16 %v6331, %v6330
  %v6356 = vpack.c.b16 %v6333, %v6332
  %v6357 = vpack.c.b16 %v6335, %v6334
  %v6358 = vpack.c.b16 %v6337, %v6336
  %v6359 = vpack.c.b16 %v6339, %v6338
  %v6360 = vpack.c.b16 %v6341, %v6340
  %v6361 = vpack.c.b16 %v6343, %v6342
  %v6362 = vpack.c.b16 %v6345, %v6344
  %v6363 = vpack.c.b16 %v6347, %v6346
  %6380 = vmatprep.subr.bf16.mxu0 0
  %6381 = vmatpush1.bf16.msra.mxu0 %v6348
  %6382 = vmatprep.subr.bf16.mxu0 0
  %6383 = vmatpush1.bf16.msra.mxu0 %v6349
  %6384 = vmatprep.subr.bf16.mxu0 0
  %6385 = vmatpush1.bf16.msra.mxu0 %v6350
  %6386 = vmatprep.subr.bf16.mxu0 0
  %6387 = vmatpush1.bf16.msra.mxu0 %v6351
  %6388 = vmatprep.subr.bf16.mxu0 0
  %6389 = vmatpush1.bf16.msra.mxu0 %v6352
  %6390 = vmatprep.subr.bf16.mxu0 0
  %6391 = vmatpush1.bf16.msra.mxu0 %v6353
  %6392 = vmatprep.subr.bf16.mxu0 0
  %6393 = vmatpush1.bf16.msra.mxu0 %v6354
  %6394 = vmatprep.subr.bf16.mxu0 0
  %6395 = vmatpush1.bf16.msra.mxu0 %v6355
  %6396 = vmatprep.subr.bf16.mxu0 0
  %6397 = vmatpush1.bf16.msra.mxu0 %v6356
  %6398 = vmatprep.subr.bf16.mxu0 0
  %6399 = vmatpush1.bf16.msra.mxu0 %v6357
  %6400 = vmatprep.subr.bf16.mxu0 0
  %6401 = vmatpush1.bf16.msra.mxu0 %v6358
  %6402 = vmatprep.subr.bf16.mxu0 0
  %6403 = vmatpush1.bf16.msra.mxu0 %v6359
  %6404 = vmatprep.subr.bf16.mxu0 0
  %6405 = vmatpush1.bf16.msra.mxu0 %v6360
  %6406 = vmatprep.subr.bf16.mxu0 0
  %6407 = vmatpush1.bf16.msra.mxu0 %v6361
  %6408 = vmatprep.subr.bf16.mxu0 0
  %6409 = vmatpush1.bf16.msra.mxu0 %v6362
  %6410 = vmatprep.subr.bf16.mxu0 0
  %6411 = vmatpush1.bf16.msra.mxu0 %v6363
  %6412 = vmatprep.mubr.bf16.mxu0 %v6244
  %6413 = vmatmul.mubr.bf16.gmra.mrb[0].mxu0 %v6243
  %v6414 = vpop.f32.mrb[0].mxu0
  %v6415 = vadd.f32 %v6282, %v6414
  %v6416 = vpop.f32.mrb[0].mxu0
  %v6417 = vpop.f32.mrb[0].mxu0
  %v6418 = vadd.f32 %v6282, %v6417
  %v6419 = vpop.f32.mrb[0].mxu0
  %6420 = vdwg.mxu0
  %6421 = vst [vmem:[%s11] sm:$0xff] %v6415
  %6422 = vst [vmem:[%s11 + $0x8] sm:$0xff] %v6418
  // Predicated region
  $region46: #{cnn_small_forward.1} parent=0 // pred_check
    _
  $region47: #{cnn_small_forward.1} parent=0 // pred_check_branch
    %6424 = sbr.rel (0) target = $region49
  $region48: #{cnn_small_forward.1} parent=0 // pred_region
    _
  $region49: #{cnn_small_forward.1} parent=0 // pred_fallthru
    _
  // Predicated region
  $region50: #{cnn_small_forward.1} parent=0 // pred_check
    _
  $region51: #{cnn_small_forward.1} parent=0 // pred_check_branch
    %6426 = sbr.rel (0) target = $region53
  $region52: #{cnn_small_forward.1} parent=0 // pred_region
    _
  $region53: #{cnn_small_forward.1} parent=0 // pred_fallthru
    _

</llo_original>
